<compile_context>
chip_gen: v5e
topology: v5e:2x2
jax: 0.10.0
libtpu: 0.0.40
codegen_flags: <defaults>
</compile_context>

<pallas_src>
import functools

import jax
import jax.numpy as jnp
from jax.experimental import pallas as pl
from jax.experimental.pallas import tpu as pltpu


# ----------------------------------------------------------------------------
# Fused kernel: conv1-matmul + conv2/3/4 (9-tap accumulation) + FC, all in VMEM
# ----------------------------------------------------------------------------
def _decoder_fused_kernel(
    cols1_ref,   # (B*256, 32)  bf16  host im2col of the input, K padded 27->32
    w1_ref,      # (32, 32)     bf16  conv1 weight as (K=27 padded, 32)
    w2_ref,      # (9, 32, 32)  bf16  conv2 per-tap (Cin, Cout)
    w3_ref,      # (9, 32, 64)  bf16  conv3 per-tap (Cin, Cout)
    w4_ref,      # (9, 64, 64)  bf16  conv4 per-tap (Cin, Cout)
    bpack_ref,   # (4, 64)      f32   conv biases, row l = layer l+1 (zero padded)
    wfc_ref,     # (10, 64, 64) f32   fc weight as [class, hw, c] (NCHW flatten baked in)
    fcb_ref,     # (1, 10)      f32   fc bias
    out_ref,     # (B, 10)      f32   logits
    xp2_ref,     # (B, 18, 32, 32) f32 scratch: padded conv2 input (image at [1:17, 8:24])
    xp3_ref,     # (B, 18, 32, 32) f32 scratch: padded conv3 input (image at [1:17, 8:24])
    xp4_ref,     # (B, 10, 24, 64) f32 scratch: padded conv4 input (image at [1:9, 8:16])
    acc2_ref,    # (B*256, 32)  f32 scratch accumulator for conv2
    *,
    batch,
):
    B = batch
    slope = jnp.float32(0.2)
    f32 = jnp.float32

    def leaky(v):
        return jnp.where(v >= 0.0, v, slope * v)

    taps = [(kh, kw) for kh in range(3) for kw in range(3)]

    # ---- zero ONLY the halo borders (interiors are fully overwritten) -------
    # xp2/xp3: image at [1:17, 8:24]; taps read h in [0,18), w in [7,25).
    for xp in (xp2_ref, xp3_ref):
        xp[:, 0:1, :, :] = jnp.zeros((B, 1, 32, 32), f32)
        xp[:, 17:18, :, :] = jnp.zeros((B, 1, 32, 32), f32)
        xp[:, 1:17, 0:8, :] = jnp.zeros((B, 16, 8, 32), f32)
        xp[:, 1:17, 24:32, :] = jnp.zeros((B, 16, 8, 32), f32)
    # xp4: image at [1:9, 8:16]; taps read h in [0,10), w in [7,17).
    xp4_ref[:, 0:1, :, :] = jnp.zeros((B, 1, 24, 64), f32)
    xp4_ref[:, 9:10, :, :] = jnp.zeros((B, 1, 24, 64), f32)
    xp4_ref[:, 1:9, 0:8, :] = jnp.zeros((B, 8, 8, 64), f32)
    xp4_ref[:, 1:9, 16:24, :] = jnp.zeros((B, 8, 8, 64), f32)

    # ---- conv1 (3->32, s2): already im2col'd on the host -> single matmul ----
    y1 = jnp.dot(cols1_ref[...], w1_ref[...], preferred_element_type=jnp.float32)
    y1 = leaky(y1 + bpack_ref[0:1, 0:32])                        # (B*256, 32) f32
    xp2_ref[:, 1:17, 8:24, :] = y1.reshape(B, 16, 16, 32)

    # ---- conv2 (32->32, s1) on (B,16,16,32): 9 shifted-tap matmuls ----------
    for t, (kh, kw) in enumerate(taps):
        lhs = xp2_ref[:, kh:kh + 16, 7 + kw:7 + kw + 16, :].reshape(B * 256, 32)
        r = jnp.dot(lhs.astype(jnp.bfloat16), w2_ref[t],
                    preferred_element_type=jnp.float32)
        if t == 0:
            acc2_ref[...] = r                                     # first tap initializes
        else:
            acc2_ref[...] += r
    y2 = leaky(acc2_ref[...] + bpack_ref[1:2, 0:32])              # (B*256, 32) f32
    xp3_ref[:, 1:17, 8:24, :] = y2.reshape(B, 16, 16, 32)

    # ---- conv3 (32->64, s2): 9 strided-tap matmuls, value accumulator -------
    acc3 = None
    for t, (kh, kw) in enumerate(taps):
        lhs = xp3_ref[:, pl.ds(kh, 8, stride=2), pl.ds(7 + kw, 8, stride=2), :]
        lhs = lhs.reshape(B * 64, 32)
        r = jnp.dot(lhs.astype(jnp.bfloat16), w3_ref[t],
                    preferred_element_type=jnp.float32)
        acc3 = r if acc3 is None else acc3 + r
    y3 = leaky(acc3 + bpack_ref[2:3, 0:64])                       # (B*64, 64) f32
    xp4_ref[:, 1:9, 8:16, :] = y3.reshape(B, 8, 8, 64)

    # ---- conv4 (64->64, s1) on (B,8,8,64): value accumulator -----------------
    acc4 = None
    for t, (kh, kw) in enumerate(taps):
        lhs = xp4_ref[:, kh:kh + 8, 7 + kw:7 + kw + 8, :].reshape(B * 64, 64)
        r = jnp.dot(lhs.astype(jnp.bfloat16), w4_ref[t],
                    preferred_element_type=jnp.float32)
        acc4 = r if acc4 is None else acc4 + r
    y4 = leaky(acc4 + bpack_ref[3:4, 0:64])                       # (B*64, 64) f32

    # ---- FC: NCHW flatten + Linear(4096 -> 10), flatten baked into wfc ------
    # logits[b, o] = sum_{hw,c} y4[b, hw, c] * wfc[o, hw, c] + fcb[o]
    prod = y4.reshape(B, 1, 64, 64) * wfc_ref[...]                # (B, 10, 64, 64)
    s = jnp.sum(prod, axis=3)                                     # (B, 10, 64)
    logits = jnp.sum(s, axis=2) + fcb_ref[...]                    # (B, 10)
    out_ref[...] = logits                                         # single store


# ----------------------------------------------------------------------------
# Host-side (XLA) glue: conv1 im2col on the tiny NCHW input
# ----------------------------------------------------------------------------
def _conv1_im2col(x_nchw):
    """NCHW (B,3,32,32) -> (B*256, 32) bf16 im2col for conv1 (k3, s2, p1)."""
    B = x_nchw.shape[0]
    x = jnp.transpose(x_nchw, (0, 2, 3, 1)).astype(jnp.float32)       # NHWC
    xp = jnp.pad(x, ((0, 0), (1, 1), (1, 1), (0, 0)))
    patches = [xp[:, kh:kh + 31:2, kw:kw + 31:2, :]
               for kh in range(3) for kw in range(3)]
    cols = jnp.stack(patches, axis=-2).reshape(B * 16 * 16, 27)       # (kh,kw,Cin) order
    cols = jnp.pad(cols, ((0, 0), (0, 5)))                            # K: 27 -> 32
    return cols.astype(jnp.bfloat16)


# ----------------------------------------------------------------------------
# One-time parameter repacking (done outside the per-call hot path)
# ----------------------------------------------------------------------------
def prepare_params(params):
    def conv_taps(w):
        # (Cout, Cin, 3, 3) -> (9, Cin, Cout), tap index = kh*3 + kw
        cout, cin = w.shape[0], w.shape[1]
        return jnp.transpose(w, (2, 3, 1, 0)).reshape(9, cin, cout).astype(jnp.bfloat16)

    # conv1: (32,3,3,3) -> (kh,kw,ci,co) -> (27,32), zero-pad K to 32.
    w1 = jnp.transpose(params["conv1_w"], (2, 3, 1, 0)).reshape(27, 32)
    w1 = jnp.pad(w1, ((0, 5), (0, 0))).astype(jnp.bfloat16)

    bpack = jnp.zeros((4, 64), jnp.float32)
    bpack = bpack.at[0, :32].set(params["conv1_b"])
    bpack = bpack.at[1, :32].set(params["conv2_b"])
    bpack = bpack.at[2, :64].set(params["conv3_b"])
    bpack = bpack.at[3, :64].set(params["conv4_b"])

    # fc weight (10, 4096) with PyTorch flatten index k = c*64 + h*8 + w
    #   -> (10, hw, c): the NCHW flatten permutation is baked into the weights.
    wfc = params["fc_w"].reshape(10, 64, 8, 8).transpose(0, 2, 3, 1).reshape(10, 64, 64)

    return {
        "w1": w1,
        "w2": conv_taps(params["conv2_w"]),
        "w3": conv_taps(params["conv3_w"]),
        "w4": conv_taps(params["conv4_w"]),
        "bpack": bpack,
        "wfc": wfc.astype(jnp.float32),
        "fcb": params["fc_b"].reshape(1, 10).astype(jnp.float32),
    }


# ----------------------------------------------------------------------------
# Full Decoder forward: one fused pallas_call
# ----------------------------------------------------------------------------
def decoder_forward(x_nchw, prepped):
    B = x_nchw.shape[0]
    assert x_nchw.shape[1:] == (3, 32, 32), x_nchw.shape

    cols1 = _conv1_im2col(x_nchw)          # (B*256, 32) bf16

    kernel = functools.partial(_decoder_fused_kernel, batch=B)
    vmem = pl.BlockSpec(memory_space=pltpu.MemorySpace.VMEM)

    logits = pl.pallas_call(
        kernel,
        out_shape=jax.ShapeDtypeStruct((B, 10), jnp.float32),
        in_specs=[vmem] * 8,
        out_specs=vmem,
        scratch_shapes=[
            pltpu.VMEM((B, 18, 32, 32), jnp.float32),   # xp2 (padded conv2 input)
            pltpu.VMEM((B, 18, 32, 32), jnp.float32),   # xp3 (padded conv3 input)
            pltpu.VMEM((B, 10, 24, 64), jnp.float32),   # xp4 (padded conv4 input)
            pltpu.VMEM((B * 256, 32), jnp.float32),     # acc2
        ],
    )(
        cols1,
        prepped["w1"], prepped["w2"], prepped["w3"], prepped["w4"],
        prepped["bpack"], prepped["wfc"], prepped["fcb"],
    )
    return logits


# ----------------------------------------------------------------------------
# Deterministic parameter init (synthetic weights, PyTorch-like shapes)
# ----------------------------------------------------------------------------
def init_params(key):
    shapes = {
        "conv1_w": (32, 3, 3, 3),
        "conv2_w": (32, 32, 3, 3),
        "conv3_w": (64, 32, 3, 3),
        "conv4_w": (64, 64, 3, 3),
        "fc_w": (10, 64 * 8 * 8),
    }
    params = {}
    keys = jax.random.split(key, len(shapes))
    for (name, shape), k in zip(shapes.items(), keys):
        fan_in = int(jnp.prod(jnp.array(shape[1:])))
        scale = 1.0 / jnp.sqrt(jnp.float32(fan_in))
        params[name] = scale * jax.random.normal(k, shape, dtype=jnp.float32)
        params[name.replace("_w", "_b")] = jnp.zeros((shape[0],), dtype=jnp.float32)
    return params


if __name__ == "__main__":
    # Input must be (B, 3, 32, 32): the flatten -> Linear(64*8*8) hard-codes
    # the 32x32 spatial size.  Small batch of 2.
    key = jax.random.PRNGKey(0)
    x = jax.random.normal(key, (2, 3, 32, 32), dtype=jnp.float32)

    params = init_params(jax.random.PRNGKey(1))
    prepped = prepare_params(params)

    fwd = jax.jit(decoder_forward)
    logits = fwd(x, prepped)
    jax.block_until_ready(logits)

    assert logits.shape == (2, 10), logits.shape
    assert logits.dtype == jnp.float32
    print("KERNEL_OK")
</pallas_src>

<mosaic_0001>
module attributes {stable_mosaic.version = 11 : i64} {
  func.func @_decoder_fused_kernel(%arg0: memref<512x32xbf16, #tpu.memory_space<vmem>>, %arg1: memref<32x32xbf16, #tpu.memory_space<vmem>>, %arg2: memref<9x32x32xbf16, #tpu.memory_space<vmem>>, %arg3: memref<9x32x64xbf16, #tpu.memory_space<vmem>>, %arg4: memref<9x64x64xbf16, #tpu.memory_space<vmem>>, %arg5: memref<4x64xf32, #tpu.memory_space<vmem>>, %arg6: memref<10x64x64xf32, #tpu.memory_space<vmem>>, %arg7: memref<1x10xf32, #tpu.memory_space<vmem>>, %arg8: memref<2x10xf32, #tpu.memory_space<vmem>>, %arg9: memref<2x18x32x32xf32, #tpu.memory_space<vmem>>, %arg10: memref<2x18x32x32xf32, #tpu.memory_space<vmem>>, %arg11: memref<2x10x24x64xf32, #tpu.memory_space<vmem>>, %arg12: memref<512x32xf32, #tpu.memory_space<vmem>>) attributes {dimension_semantics = [], scalar_prefetch = 0 : i64, scratch_operands = 4 : i64, tpu.core_type = #tpu.core_type<tc>} {
    %cst = arith.constant 0.000000e+00 : f32
    %0 = vector.broadcast %cst : f32 to vector<2x1x32x32xf32>
    %c0 = arith.constant 0 : index
    %c0_0 = arith.constant 0 : index
    %c0_1 = arith.constant 0 : index
    %c0_2 = arith.constant 0 : index
    %1 = vector.load %arg9[%c0, %c0_0, %c0_1, %c0_2] : memref<2x18x32x32xf32, #tpu.memory_space<vmem>>, vector<2x1x32x32xf32>
    tpu.vector_store %arg9[%c0, %c0_0, %c0_1, %c0_2], %0 {strides = array<i32>} : memref<2x18x32x32xf32, #tpu.memory_space<vmem>>, vector<2x1x32x32xf32>,
    %cst_3 = arith.constant 0.000000e+00 : f32
    %2 = vector.broadcast %cst_3 : f32 to vector<2x1x32x32xf32>
    %c0_4 = arith.constant 0 : index
    %c17 = arith.constant 17 : index
    %c0_5 = arith.constant 0 : index
    %c0_6 = arith.constant 0 : index
    %3 = vector.load %arg9[%c0_4, %c17, %c0_5, %c0_6] : memref<2x18x32x32xf32, #tpu.memory_space<vmem>>, vector<2x1x32x32xf32>
    tpu.vector_store %arg9[%c0_4, %c17, %c0_5, %c0_6], %2 {strides = array<i32>} : memref<2x18x32x32xf32, #tpu.memory_space<vmem>>, vector<2x1x32x32xf32>,
    %cst_7 = arith.constant 0.000000e+00 : f32
    %4 = vector.broadcast %cst_7 : f32 to vector<2x16x8x32xf32>
    %c0_8 = arith.constant 0 : index
    %c1 = arith.constant 1 : index
    %c0_9 = arith.constant 0 : index
    %c0_10 = arith.constant 0 : index
    %5 = vector.load %arg9[%c0_8, %c1, %c0_9, %c0_10] : memref<2x18x32x32xf32, #tpu.memory_space<vmem>>, vector<2x16x8x32xf32>
    tpu.vector_store %arg9[%c0_8, %c1, %c0_9, %c0_10], %4 {strides = array<i32>} : memref<2x18x32x32xf32, #tpu.memory_space<vmem>>, vector<2x16x8x32xf32>,
    %cst_11 = arith.constant 0.000000e+00 : f32
    %6 = vector.broadcast %cst_11 : f32 to vector<2x16x8x32xf32>
    %c0_12 = arith.constant 0 : index
    %c1_13 = arith.constant 1 : index
    %c24 = arith.constant 24 : index
    %c0_14 = arith.constant 0 : index
    %7 = vector.load %arg9[%c0_12, %c1_13, %c24, %c0_14] : memref<2x18x32x32xf32, #tpu.memory_space<vmem>>, vector<2x16x8x32xf32>
    tpu.vector_store %arg9[%c0_12, %c1_13, %c24, %c0_14], %6 {strides = array<i32>} : memref<2x18x32x32xf32, #tpu.memory_space<vmem>>, vector<2x16x8x32xf32>,
    %cst_15 = arith.constant 0.000000e+00 : f32
    %8 = vector.broadcast %cst_15 : f32 to vector<2x1x32x32xf32>
    %c0_16 = arith.constant 0 : index
    %c0_17 = arith.constant 0 : index
    %c0_18 = arith.constant 0 : index
    %c0_19 = arith.constant 0 : index
    %9 = vector.load %arg10[%c0_16, %c0_17, %c0_18, %c0_19] : memref<2x18x32x32xf32, #tpu.memory_space<vmem>>, vector<2x1x32x32xf32>
    tpu.vector_store %arg10[%c0_16, %c0_17, %c0_18, %c0_19], %8 {strides = array<i32>} : memref<2x18x32x32xf32, #tpu.memory_space<vmem>>, vector<2x1x32x32xf32>,
    %cst_20 = arith.constant 0.000000e+00 : f32
    %10 = vector.broadcast %cst_20 : f32 to vector<2x1x32x32xf32>
    %c0_21 = arith.constant 0 : index
    %c17_22 = arith.constant 17 : index
    %c0_23 = arith.constant 0 : index
    %c0_24 = arith.constant 0 : index
    %11 = vector.load %arg10[%c0_21, %c17_22, %c0_23, %c0_24] : memref<2x18x32x32xf32, #tpu.memory_space<vmem>>, vector<2x1x32x32xf32>
    tpu.vector_store %arg10[%c0_21, %c17_22, %c0_23, %c0_24], %10 {strides = array<i32>} : memref<2x18x32x32xf32, #tpu.memory_space<vmem>>, vector<2x1x32x32xf32>,
    %cst_25 = arith.constant 0.000000e+00 : f32
    %12 = vector.broadcast %cst_25 : f32 to vector<2x16x8x32xf32>
    %c0_26 = arith.constant 0 : index
    %c1_27 = arith.constant 1 : index
    %c0_28 = arith.constant 0 : index
    %c0_29 = arith.constant 0 : index
    %13 = vector.load %arg10[%c0_26, %c1_27, %c0_28, %c0_29] : memref<2x18x32x32xf32, #tpu.memory_space<vmem>>, vector<2x16x8x32xf32>
    tpu.vector_store %arg10[%c0_26, %c1_27, %c0_28, %c0_29], %12 {strides = array<i32>} : memref<2x18x32x32xf32, #tpu.memory_space<vmem>>, vector<2x16x8x32xf32>,
    %cst_30 = arith.constant 0.000000e+00 : f32
    %14 = vector.broadcast %cst_30 : f32 to vector<2x16x8x32xf32>
    %c0_31 = arith.constant 0 : index
    %c1_32 = arith.constant 1 : index
    %c24_33 = arith.constant 24 : index
    %c0_34 = arith.constant 0 : index
    %15 = vector.load %arg10[%c0_31, %c1_32, %c24_33, %c0_34] : memref<2x18x32x32xf32, #tpu.memory_space<vmem>>, vector<2x16x8x32xf32>
    tpu.vector_store %arg10[%c0_31, %c1_32, %c24_33, %c0_34], %14 {strides = array<i32>} : memref<2x18x32x32xf32, #tpu.memory_space<vmem>>, vector<2x16x8x32xf32>,
    %cst_35 = arith.constant 0.000000e+00 : f32
    %16 = vector.broadcast %cst_35 : f32 to vector<2x1x24x64xf32>
    %c0_36 = arith.constant 0 : index
    %c0_37 = arith.constant 0 : index
    %c0_38 = arith.constant 0 : index
    %c0_39 = arith.constant 0 : index
    %17 = vector.load %arg11[%c0_36, %c0_37, %c0_38, %c0_39] : memref<2x10x24x64xf32, #tpu.memory_space<vmem>>, vector<2x1x24x64xf32>
    tpu.vector_store %arg11[%c0_36, %c0_37, %c0_38, %c0_39], %16 {strides = array<i32>} : memref<2x10x24x64xf32, #tpu.memory_space<vmem>>, vector<2x1x24x64xf32>,
    %cst_40 = arith.constant 0.000000e+00 : f32
    %18 = vector.broadcast %cst_40 : f32 to vector<2x1x24x64xf32>
    %c0_41 = arith.constant 0 : index
    %c9 = arith.constant 9 : index
    %c0_42 = arith.constant 0 : index
    %c0_43 = arith.constant 0 : index
    %19 = vector.load %arg11[%c0_41, %c9, %c0_42, %c0_43] : memref<2x10x24x64xf32, #tpu.memory_space<vmem>>, vector<2x1x24x64xf32>
    tpu.vector_store %arg11[%c0_41, %c9, %c0_42, %c0_43], %18 {strides = array<i32>} : memref<2x10x24x64xf32, #tpu.memory_space<vmem>>, vector<2x1x24x64xf32>,
    %cst_44 = arith.constant 0.000000e+00 : f32
    %20 = vector.broadcast %cst_44 : f32 to vector<2x8x8x64xf32>
    %c0_45 = arith.constant 0 : index
    %c1_46 = arith.constant 1 : index
    %c0_47 = arith.constant 0 : index
    %c0_48 = arith.constant 0 : index
    %21 = vector.load %arg11[%c0_45, %c1_46, %c0_47, %c0_48] : memref<2x10x24x64xf32, #tpu.memory_space<vmem>>, vector<2x8x8x64xf32>
    tpu.vector_store %arg11[%c0_45, %c1_46, %c0_47, %c0_48], %20 {strides = array<i32>} : memref<2x10x24x64xf32, #tpu.memory_space<vmem>>, vector<2x8x8x64xf32>,
    %cst_49 = arith.constant 0.000000e+00 : f32
    %22 = vector.broadcast %cst_49 : f32 to vector<2x8x8x64xf32>
    %c0_50 = arith.constant 0 : index
    %c1_51 = arith.constant 1 : index
    %c16 = arith.constant 16 : index
    %c0_52 = arith.constant 0 : index
    %23 = vector.load %arg11[%c0_50, %c1_51, %c16, %c0_52] : memref<2x10x24x64xf32, #tpu.memory_space<vmem>>, vector<2x8x8x64xf32>
    tpu.vector_store %arg11[%c0_50, %c1_51, %c16, %c0_52], %22 {strides = array<i32>} : memref<2x10x24x64xf32, #tpu.memory_space<vmem>>, vector<2x8x8x64xf32>,
    %c0_53 = arith.constant 0 : index
    %c0_54 = arith.constant 0 : index
    %24 = vector.load %arg0[%c0_53, %c0_54] : memref<512x32xbf16, #tpu.memory_space<vmem>>, vector<512x32xbf16>
    %c0_55 = arith.constant 0 : index
    %c0_56 = arith.constant 0 : index
    %25 = vector.load %arg1[%c0_55, %c0_56] : memref<32x32xbf16, #tpu.memory_space<vmem>>, vector<32x32xbf16>
    %cst_57 = arith.constant dense<0.000000e+00> : vector<512x32xf32>
    %26 = tpu.matmul %24, %25, %cst_57 {dimension_numbers = #tpu.dot_dimension_numbers<[1], [0], [0], [1], [0, 0, 1, 1], [], []>} : vector<512x32xbf16>, vector<32x32xbf16>, vector<512x32xf32> -> vector<512x32xf32>
    %c0_58 = arith.constant 0 : index
    %c0_59 = arith.constant 0 : index
    %27 = vector.load %arg5[%c0_58, %c0_59] : memref<4x64xf32, #tpu.memory_space<vmem>>, vector<1x32xf32>
    %28 = vector.broadcast %27 : vector<1x32xf32> to vector<512x32xf32>
    %29 = arith.addf %26, %28 : vector<512x32xf32>
    %cst_60 = arith.constant 0.000000e+00 : f32
    %30 = vector.broadcast %cst_60 : f32 to vector<512x32xf32>
    %31 = arith.cmpf oge, %29, %30 : vector<512x32xf32>
    %cst_61 = arith.constant 2.000000e-01 : f32
    %32 = vector.broadcast %cst_61 : f32 to vector<512x32xf32>
    %33 = arith.mulf %32, %29 : vector<512x32xf32>
    %34 = arith.select %31, %29, %33 : vector<512x32xi1>, vector<512x32xf32>
    %35 = vector.shape_cast %34 : vector<512x32xf32> to vector<2x16x16x32xf32>
    %c0_62 = arith.constant 0 : index
    %c1_63 = arith.constant 1 : index
    %c8 = arith.constant 8 : index
    %c0_64 = arith.constant 0 : index
    %36 = vector.load %arg9[%c0_62, %c1_63, %c8, %c0_64] : memref<2x18x32x32xf32, #tpu.memory_space<vmem>>, vector<2x16x16x32xf32>
    tpu.vector_store %arg9[%c0_62, %c1_63, %c8, %c0_64], %35 {strides = array<i32>} : memref<2x18x32x32xf32, #tpu.memory_space<vmem>>, vector<2x16x16x32xf32>,
    %c0_65 = arith.constant 0 : index
    %c0_66 = arith.constant 0 : index
    %c7 = arith.constant 7 : index
    %c0_67 = arith.constant 0 : index
    %37 = vector.load %arg9[%c0_65, %c0_66, %c7, %c0_67] : memref<2x18x32x32xf32, #tpu.memory_space<vmem>>, vector<2x16x16x32xf32>
    %38 = vector.shape_cast %37 : vector<2x16x16x32xf32> to vector<512x32xf32>
    %39 = arith.truncf %38 : vector<512x32xf32> to vector<512x32xbf16>
    %c0_68 = arith.constant 0 : index
    %c0_69 = arith.constant 0 : index
    %c0_70 = arith.constant 0 : index
    %40 = vector.load %arg2[%c0_68, %c0_69, %c0_70] : memref<9x32x32xbf16, #tpu.memory_space<vmem>>, vector<1x32x32xbf16>
    %41 = vector.shape_cast %40 : vector<1x32x32xbf16> to vector<32x32xbf16>
    %cst_71 = arith.constant dense<0.000000e+00> : vector<512x32xf32>
    %42 = tpu.matmul %39, %41, %cst_71 {dimension_numbers = #tpu.dot_dimension_numbers<[1], [0], [0], [1], [0, 0, 1, 1], [], []>} : vector<512x32xbf16>, vector<32x32xbf16>, vector<512x32xf32> -> vector<512x32xf32>
    %c0_72 = arith.constant 0 : index
    %c0_73 = arith.constant 0 : index
    %43 = vector.load %arg12[%c0_72, %c0_73] : memref<512x32xf32, #tpu.memory_space<vmem>>, vector<512x32xf32>
    tpu.vector_store %arg12[%c0_72, %c0_73], %42 {strides = array<i32>} : memref<512x32xf32, #tpu.memory_space<vmem>>, vector<512x32xf32>,
    %c0_74 = arith.constant 0 : index
    %c0_75 = arith.constant 0 : index
    %c8_76 = arith.constant 8 : index
    %c0_77 = arith.constant 0 : index
    %44 = vector.load %arg9[%c0_74, %c0_75, %c8_76, %c0_77] : memref<2x18x32x32xf32, #tpu.memory_space<vmem>>, vector<2x16x16x32xf32>
    %45 = vector.shape_cast %44 : vector<2x16x16x32xf32> to vector<512x32xf32>
    %46 = arith.truncf %45 : vector<512x32xf32> to vector<512x32xbf16>
    %c1_78 = arith.constant 1 : index
    %c0_79 = arith.constant 0 : index
    %c0_80 = arith.constant 0 : index
    %47 = vector.load %arg2[%c1_78, %c0_79, %c0_80] : memref<9x32x32xbf16, #tpu.memory_space<vmem>>, vector<1x32x32xbf16>
    %48 = vector.shape_cast %47 : vector<1x32x32xbf16> to vector<32x32xbf16>
    %cst_81 = arith.constant dense<0.000000e+00> : vector<512x32xf32>
    %49 = tpu.matmul %46, %48, %cst_81 {dimension_numbers = #tpu.dot_dimension_numbers<[1], [0], [0], [1], [0, 0, 1, 1], [], []>} : vector<512x32xbf16>, vector<32x32xbf16>, vector<512x32xf32> -> vector<512x32xf32>
    %c0_82 = arith.constant 0 : index
    %c0_83 = arith.constant 0 : index
    %50 = vector.load %arg12[%c0_82, %c0_83] : memref<512x32xf32, #tpu.memory_space<vmem>>, vector<512x32xf32>
    %51 = arith.addf %50, %49 : vector<512x32xf32>
    %c0_84 = arith.constant 0 : index
    %c0_85 = arith.constant 0 : index
    %52 = vector.load %arg12[%c0_84, %c0_85] : memref<512x32xf32, #tpu.memory_space<vmem>>, vector<512x32xf32>
    tpu.vector_store %arg12[%c0_84, %c0_85], %51 {strides = array<i32>} : memref<512x32xf32, #tpu.memory_space<vmem>>, vector<512x32xf32>,
    %c0_86 = arith.constant 0 : index
    %c0_87 = arith.constant 0 : index
    %c9_88 = arith.constant 9 : index
    %c0_89 = arith.constant 0 : index
    %53 = vector.load %arg9[%c0_86, %c0_87, %c9_88, %c0_89] : memref<2x18x32x32xf32, #tpu.memory_space<vmem>>, vector<2x16x16x32xf32>
    %54 = vector.shape_cast %53 : vector<2x16x16x32xf32> to vector<512x32xf32>
    %55 = arith.truncf %54 : vector<512x32xf32> to vector<512x32xbf16>
    %c2 = arith.constant 2 : index
    %c0_90 = arith.constant 0 : index
    %c0_91 = arith.constant 0 : index
    %56 = vector.load %arg2[%c2, %c0_90, %c0_91] : memref<9x32x32xbf16, #tpu.memory_space<vmem>>, vector<1x32x32xbf16>
    %57 = vector.shape_cast %56 : vector<1x32x32xbf16> to vector<32x32xbf16>
    %cst_92 = arith.constant dense<0.000000e+00> : vector<512x32xf32>
    %58 = tpu.matmul %55, %57, %cst_92 {dimension_numbers = #tpu.dot_dimension_numbers<[1], [0], [0], [1], [0, 0, 1, 1], [], []>} : vector<512x32xbf16>, vector<32x32xbf16>, vector<512x32xf32> -> vector<512x32xf32>
    %c0_93 = arith.constant 0 : index
    %c0_94 = arith.constant 0 : index
    %59 = vector.load %arg12[%c0_93, %c0_94] : memref<512x32xf32, #tpu.memory_space<vmem>>, vector<512x32xf32>
    %60 = arith.addf %59, %58 : vector<512x32xf32>
    %c0_95 = arith.constant 0 : index
    %c0_96 = arith.constant 0 : index
    %61 = vector.load %arg12[%c0_95, %c0_96] : memref<512x32xf32, #tpu.memory_space<vmem>>, vector<512x32xf32>
    tpu.vector_store %arg12[%c0_95, %c0_96], %60 {strides = array<i32>} : memref<512x32xf32, #tpu.memory_space<vmem>>, vector<512x32xf32>,
    %c0_97 = arith.constant 0 : index
    %c1_98 = arith.constant 1 : index
    %c7_99 = arith.constant 7 : index
    %c0_100 = arith.constant 0 : index
    %62 = vector.load %arg9[%c0_97, %c1_98, %c7_99, %c0_100] : memref<2x18x32x32xf32, #tpu.memory_space<vmem>>, vector<2x16x16x32xf32>
    %63 = vector.shape_cast %62 : vector<2x16x16x32xf32> to vector<512x32xf32>
    %64 = arith.truncf %63 : vector<512x32xf32> to vector<512x32xbf16>
    %c3 = arith.constant 3 : index
    %c0_101 = arith.constant 0 : index
    %c0_102 = arith.constant 0 : index
    %65 = vector.load %arg2[%c3, %c0_101, %c0_102] : memref<9x32x32xbf16, #tpu.memory_space<vmem>>, vector<1x32x32xbf16>
    %66 = vector.shape_cast %65 : vector<1x32x32xbf16> to vector<32x32xbf16>
    %cst_103 = arith.constant dense<0.000000e+00> : vector<512x32xf32>
    %67 = tpu.matmul %64, %66, %cst_103 {dimension_numbers = #tpu.dot_dimension_numbers<[1], [0], [0], [1], [0, 0, 1, 1], [], []>} : vector<512x32xbf16>, vector<32x32xbf16>, vector<512x32xf32> -> vector<512x32xf32>
    %c0_104 = arith.constant 0 : index
    %c0_105 = arith.constant 0 : index
    %68 = vector.load %arg12[%c0_104, %c0_105] : memref<512x32xf32, #tpu.memory_space<vmem>>, vector<512x32xf32>
    %69 = arith.addf %68, %67 : vector<512x32xf32>
    %c0_106 = arith.constant 0 : index
    %c0_107 = arith.constant 0 : index
    %70 = vector.load %arg12[%c0_106, %c0_107] : memref<512x32xf32, #tpu.memory_space<vmem>>, vector<512x32xf32>
    tpu.vector_store %arg12[%c0_106, %c0_107], %69 {strides = array<i32>} : memref<512x32xf32, #tpu.memory_space<vmem>>, vector<512x32xf32>,
    %c0_108 = arith.constant 0 : index
    %c1_109 = arith.constant 1 : index
    %c8_110 = arith.constant 8 : index
    %c0_111 = arith.constant 0 : index
    %71 = vector.load %arg9[%c0_108, %c1_109, %c8_110, %c0_111] : memref<2x18x32x32xf32, #tpu.memory_space<vmem>>, vector<2x16x16x32xf32>
    %72 = vector.shape_cast %71 : vector<2x16x16x32xf32> to vector<512x32xf32>
    %73 = arith.truncf %72 : vector<512x32xf32> to vector<512x32xbf16>
    %c4 = arith.constant 4 : index
    %c0_112 = arith.constant 0 : index
    %c0_113 = arith.constant 0 : index
    %74 = vector.load %arg2[%c4, %c0_112, %c0_113] : memref<9x32x32xbf16, #tpu.memory_space<vmem>>, vector<1x32x32xbf16>
    %75 = vector.shape_cast %74 : vector<1x32x32xbf16> to vector<32x32xbf16>
    %cst_114 = arith.constant dense<0.000000e+00> : vector<512x32xf32>
    %76 = tpu.matmul %73, %75, %cst_114 {dimension_numbers = #tpu.dot_dimension_numbers<[1], [0], [0], [1], [0, 0, 1, 1], [], []>} : vector<512x32xbf16>, vector<32x32xbf16>, vector<512x32xf32> -> vector<512x32xf32>
    %c0_115 = arith.constant 0 : index
    %c0_116 = arith.constant 0 : index
    %77 = vector.load %arg12[%c0_115, %c0_116] : memref<512x32xf32, #tpu.memory_space<vmem>>, vector<512x32xf32>
    %78 = arith.addf %77, %76 : vector<512x32xf32>
    %c0_117 = arith.constant 0 : index
    %c0_118 = arith.constant 0 : index
    %79 = vector.load %arg12[%c0_117, %c0_118] : memref<512x32xf32, #tpu.memory_space<vmem>>, vector<512x32xf32>
    tpu.vector_store %arg12[%c0_117, %c0_118], %78 {strides = array<i32>} : memref<512x32xf32, #tpu.memory_space<vmem>>, vector<512x32xf32>,
    %c0_119 = arith.constant 0 : index
    %c1_120 = arith.constant 1 : index
    %c9_121 = arith.constant 9 : index
    %c0_122 = arith.constant 0 : index
    %80 = vector.load %arg9[%c0_119, %c1_120, %c9_121, %c0_122] : memref<2x18x32x32xf32, #tpu.memory_space<vmem>>, vector<2x16x16x32xf32>
    %81 = vector.shape_cast %80 : vector<2x16x16x32xf32> to vector<512x32xf32>
    %82 = arith.truncf %81 : vector<512x32xf32> to vector<512x32xbf16>
    %c5 = arith.constant 5 : index
    %c0_123 = arith.constant 0 : index
    %c0_124 = arith.constant 0 : index
    %83 = vector.load %arg2[%c5, %c0_123, %c0_124] : memref<9x32x32xbf16, #tpu.memory_space<vmem>>, vector<1x32x32xbf16>
    %84 = vector.shape_cast %83 : vector<1x32x32xbf16> to vector<32x32xbf16>
    %cst_125 = arith.constant dense<0.000000e+00> : vector<512x32xf32>
    %85 = tpu.matmul %82, %84, %cst_125 {dimension_numbers = #tpu.dot_dimension_numbers<[1], [0], [0], [1], [0, 0, 1, 1], [], []>} : vector<512x32xbf16>, vector<32x32xbf16>, vector<512x32xf32> -> vector<512x32xf32>
    %c0_126 = arith.constant 0 : index
    %c0_127 = arith.constant 0 : index
    %86 = vector.load %arg12[%c0_126, %c0_127] : memref<512x32xf32, #tpu.memory_space<vmem>>, vector<512x32xf32>
    %87 = arith.addf %86, %85 : vector<512x32xf32>
    %c0_128 = arith.constant 0 : index
    %c0_129 = arith.constant 0 : index
    %88 = vector.load %arg12[%c0_128, %c0_129] : memref<512x32xf32, #tpu.memory_space<vmem>>, vector<512x32xf32>
    tpu.vector_store %arg12[%c0_128, %c0_129], %87 {strides = array<i32>} : memref<512x32xf32, #tpu.memory_space<vmem>>, vector<512x32xf32>,
    %c0_130 = arith.constant 0 : index
    %c2_131 = arith.constant 2 : index
    %c7_132 = arith.constant 7 : index
    %c0_133 = arith.constant 0 : index
    %89 = vector.load %arg9[%c0_130, %c2_131, %c7_132, %c0_133] : memref<2x18x32x32xf32, #tpu.memory_space<vmem>>, vector<2x16x16x32xf32>
    %90 = vector.shape_cast %89 : vector<2x16x16x32xf32> to vector<512x32xf32>
    %91 = arith.truncf %90 : vector<512x32xf32> to vector<512x32xbf16>
    %c6 = arith.constant 6 : index
    %c0_134 = arith.constant 0 : index
    %c0_135 = arith.constant 0 : index
    %92 = vector.load %arg2[%c6, %c0_134, %c0_135] : memref<9x32x32xbf16, #tpu.memory_space<vmem>>, vector<1x32x32xbf16>
    %93 = vector.shape_cast %92 : vector<1x32x32xbf16> to vector<32x32xbf16>
    %cst_136 = arith.constant dense<0.000000e+00> : vector<512x32xf32>
    %94 = tpu.matmul %91, %93, %cst_136 {dimension_numbers = #tpu.dot_dimension_numbers<[1], [0], [0], [1], [0, 0, 1, 1], [], []>} : vector<512x32xbf16>, vector<32x32xbf16>, vector<512x32xf32> -> vector<512x32xf32>
    %c0_137 = arith.constant 0 : index
    %c0_138 = arith.constant 0 : index
    %95 = vector.load %arg12[%c0_137, %c0_138] : memref<512x32xf32, #tpu.memory_space<vmem>>, vector<512x32xf32>
    %96 = arith.addf %95, %94 : vector<512x32xf32>
    %c0_139 = arith.constant 0 : index
    %c0_140 = arith.constant 0 : index
    %97 = vector.load %arg12[%c0_139, %c0_140] : memref<512x32xf32, #tpu.memory_space<vmem>>, vector<512x32xf32>
    tpu.vector_store %arg12[%c0_139, %c0_140], %96 {strides = array<i32>} : memref<512x32xf32, #tpu.memory_space<vmem>>, vector<512x32xf32>,
    %c0_141 = arith.constant 0 : index
    %c2_142 = arith.constant 2 : index
    %c8_143 = arith.constant 8 : index
    %c0_144 = arith.constant 0 : index
    %98 = vector.load %arg9[%c0_141, %c2_142, %c8_143, %c0_144] : memref<2x18x32x32xf32, #tpu.memory_space<vmem>>, vector<2x16x16x32xf32>
    %99 = vector.shape_cast %98 : vector<2x16x16x32xf32> to vector<512x32xf32>
    %100 = arith.truncf %99 : vector<512x32xf32> to vector<512x32xbf16>
    %c7_145 = arith.constant 7 : index
    %c0_146 = arith.constant 0 : index
    %c0_147 = arith.constant 0 : index
    %101 = vector.load %arg2[%c7_145, %c0_146, %c0_147] : memref<9x32x32xbf16, #tpu.memory_space<vmem>>, vector<1x32x32xbf16>
    %102 = vector.shape_cast %101 : vector<1x32x32xbf16> to vector<32x32xbf16>
    %cst_148 = arith.constant dense<0.000000e+00> : vector<512x32xf32>
    %103 = tpu.matmul %100, %102, %cst_148 {dimension_numbers = #tpu.dot_dimension_numbers<[1], [0], [0], [1], [0, 0, 1, 1], [], []>} : vector<512x32xbf16>, vector<32x32xbf16>, vector<512x32xf32> -> vector<512x32xf32>
    %c0_149 = arith.constant 0 : index
    %c0_150 = arith.constant 0 : index
    %104 = vector.load %arg12[%c0_149, %c0_150] : memref<512x32xf32, #tpu.memory_space<vmem>>, vector<512x32xf32>
    %105 = arith.addf %104, %103 : vector<512x32xf32>
    %c0_151 = arith.constant 0 : index
    %c0_152 = arith.constant 0 : index
    %106 = vector.load %arg12[%c0_151, %c0_152] : memref<512x32xf32, #tpu.memory_space<vmem>>, vector<512x32xf32>
    tpu.vector_store %arg12[%c0_151, %c0_152], %105 {strides = array<i32>} : memref<512x32xf32, #tpu.memory_space<vmem>>, vector<512x32xf32>,
    %c0_153 = arith.constant 0 : index
    %c2_154 = arith.constant 2 : index
    %c9_155 = arith.constant 9 : index
    %c0_156 = arith.constant 0 : index
    %107 = vector.load %arg9[%c0_153, %c2_154, %c9_155, %c0_156] : memref<2x18x32x32xf32, #tpu.memory_space<vmem>>, vector<2x16x16x32xf32>
    %108 = vector.shape_cast %107 : vector<2x16x16x32xf32> to vector<512x32xf32>
    %109 = arith.truncf %108 : vector<512x32xf32> to vector<512x32xbf16>
    %c8_157 = arith.constant 8 : index
    %c0_158 = arith.constant 0 : index
    %c0_159 = arith.constant 0 : index
    %110 = vector.load %arg2[%c8_157, %c0_158, %c0_159] : memref<9x32x32xbf16, #tpu.memory_space<vmem>>, vector<1x32x32xbf16>
    %111 = vector.shape_cast %110 : vector<1x32x32xbf16> to vector<32x32xbf16>
    %cst_160 = arith.constant dense<0.000000e+00> : vector<512x32xf32>
    %112 = tpu.matmul %109, %111, %cst_160 {dimension_numbers = #tpu.dot_dimension_numbers<[1], [0], [0], [1], [0, 0, 1, 1], [], []>} : vector<512x32xbf16>, vector<32x32xbf16>, vector<512x32xf32> -> vector<512x32xf32>
    %c0_161 = arith.constant 0 : index
    %c0_162 = arith.constant 0 : index
    %113 = vector.load %arg12[%c0_161, %c0_162] : memref<512x32xf32, #tpu.memory_space<vmem>>, vector<512x32xf32>
    %114 = arith.addf %113, %112 : vector<512x32xf32>
    %c0_163 = arith.constant 0 : index
    %c0_164 = arith.constant 0 : index
    %115 = vector.load %arg12[%c0_163, %c0_164] : memref<512x32xf32, #tpu.memory_space<vmem>>, vector<512x32xf32>
    tpu.vector_store %arg12[%c0_163, %c0_164], %114 {strides = array<i32>} : memref<512x32xf32, #tpu.memory_space<vmem>>, vector<512x32xf32>,
    %c0_165 = arith.constant 0 : index
    %c0_166 = arith.constant 0 : index
    %116 = vector.load %arg12[%c0_165, %c0_166] : memref<512x32xf32, #tpu.memory_space<vmem>>, vector<512x32xf32>
    %c1_167 = arith.constant 1 : index
    %c0_168 = arith.constant 0 : index
    %117 = vector.load %arg5[%c1_167, %c0_168] : memref<4x64xf32, #tpu.memory_space<vmem>>, vector<1x32xf32>
    %118 = vector.broadcast %117 : vector<1x32xf32> to vector<512x32xf32>
    %119 = arith.addf %116, %118 : vector<512x32xf32>
    %cst_169 = arith.constant 0.000000e+00 : f32
    %120 = vector.broadcast %cst_169 : f32 to vector<512x32xf32>
    %121 = arith.cmpf oge, %119, %120 : vector<512x32xf32>
    %cst_170 = arith.constant 2.000000e-01 : f32
    %122 = vector.broadcast %cst_170 : f32 to vector<512x32xf32>
    %123 = arith.mulf %122, %119 : vector<512x32xf32>
    %124 = arith.select %121, %119, %123 : vector<512x32xi1>, vector<512x32xf32>
    %125 = vector.shape_cast %124 : vector<512x32xf32> to vector<2x16x16x32xf32>
    %c0_171 = arith.constant 0 : index
    %c1_172 = arith.constant 1 : index
    %c8_173 = arith.constant 8 : index
    %c0_174 = arith.constant 0 : index
    %126 = vector.load %arg10[%c0_171, %c1_172, %c8_173, %c0_174] : memref<2x18x32x32xf32, #tpu.memory_space<vmem>>, vector<2x16x16x32xf32>
    tpu.vector_store %arg10[%c0_171, %c1_172, %c8_173, %c0_174], %125 {strides = array<i32>} : memref<2x18x32x32xf32, #tpu.memory_space<vmem>>, vector<2x16x16x32xf32>,
    %c0_175 = arith.constant 0 : index
    %c0_176 = arith.constant 0 : index
    %c7_177 = arith.constant 7 : index
    %c0_178 = arith.constant 0 : index
    %127 = tpu.strided_load %arg10[%c0_175, %c0_176, %c7_177, %c0_178] {strides = array<i32: 1, 2, 2, 1>} : memref<2x18x32x32xf32, #tpu.memory_space<vmem>>, vector<2x8x8x32xf32>
    %128 = vector.shape_cast %127 : vector<2x8x8x32xf32> to vector<128x32xf32>
    %129 = arith.truncf %128 : vector<128x32xf32> to vector<128x32xbf16>
    %c0_179 = arith.constant 0 : index
    %c0_180 = arith.constant 0 : index
    %c0_181 = arith.constant 0 : index
    %130 = vector.load %arg3[%c0_179, %c0_180, %c0_181] : memref<9x32x64xbf16, #tpu.memory_space<vmem>>, vector<1x32x64xbf16>
    %131 = vector.shape_cast %130 : vector<1x32x64xbf16> to vector<32x64xbf16>
    %cst_182 = arith.constant dense<0.000000e+00> : vector<128x64xf32>
    %132 = tpu.matmul %129, %131, %cst_182 {dimension_numbers = #tpu.dot_dimension_numbers<[1], [0], [0], [1], [0, 0, 1, 1], [], []>} : vector<128x32xbf16>, vector<32x64xbf16>, vector<128x64xf32> -> vector<128x64xf32>
    %c0_183 = arith.constant 0 : index
    %c0_184 = arith.constant 0 : index
    %c8_185 = arith.constant 8 : index
    %c0_186 = arith.constant 0 : index
    %133 = tpu.strided_load %arg10[%c0_183, %c0_184, %c8_185, %c0_186] {strides = array<i32: 1, 2, 2, 1>} : memref<2x18x32x32xf32, #tpu.memory_space<vmem>>, vector<2x8x8x32xf32>
    %134 = vector.shape_cast %133 : vector<2x8x8x32xf32> to vector<128x32xf32>
    %135 = arith.truncf %134 : vector<128x32xf32> to vector<128x32xbf16>
    %c1_187 = arith.constant 1 : index
    %c0_188 = arith.constant 0 : index
    %c0_189 = arith.constant 0 : index
    %136 = vector.load %arg3[%c1_187, %c0_188, %c0_189] : memref<9x32x64xbf16, #tpu.memory_space<vmem>>, vector<1x32x64xbf16>
    %137 = vector.shape_cast %136 : vector<1x32x64xbf16> to vector<32x64xbf16>
    %cst_190 = arith.constant dense<0.000000e+00> : vector<128x64xf32>
    %138 = tpu.matmul %135, %137, %cst_190 {dimension_numbers = #tpu.dot_dimension_numbers<[1], [0], [0], [1], [0, 0, 1, 1], [], []>} : vector<128x32xbf16>, vector<32x64xbf16>, vector<128x64xf32> -> vector<128x64xf32>
    %139 = arith.addf %132, %138 : vector<128x64xf32>
    %c0_191 = arith.constant 0 : index
    %c0_192 = arith.constant 0 : index
    %c9_193 = arith.constant 9 : index
    %c0_194 = arith.constant 0 : index
    %140 = tpu.strided_load %arg10[%c0_191, %c0_192, %c9_193, %c0_194] {strides = array<i32: 1, 2, 2, 1>} : memref<2x18x32x32xf32, #tpu.memory_space<vmem>>, vector<2x8x8x32xf32>
    %141 = vector.shape_cast %140 : vector<2x8x8x32xf32> to vector<128x32xf32>
    %142 = arith.truncf %141 : vector<128x32xf32> to vector<128x32xbf16>
    %c2_195 = arith.constant 2 : index
    %c0_196 = arith.constant 0 : index
    %c0_197 = arith.constant 0 : index
    %143 = vector.load %arg3[%c2_195, %c0_196, %c0_197] : memref<9x32x64xbf16, #tpu.memory_space<vmem>>, vector<1x32x64xbf16>
    %144 = vector.shape_cast %143 : vector<1x32x64xbf16> to vector<32x64xbf16>
    %cst_198 = arith.constant dense<0.000000e+00> : vector<128x64xf32>
    %145 = tpu.matmul %142, %144, %cst_198 {dimension_numbers = #tpu.dot_dimension_numbers<[1], [0], [0], [1], [0, 0, 1, 1], [], []>} : vector<128x32xbf16>, vector<32x64xbf16>, vector<128x64xf32> -> vector<128x64xf32>
    %146 = arith.addf %139, %145 : vector<128x64xf32>
    %c0_199 = arith.constant 0 : index
    %c1_200 = arith.constant 1 : index
    %c7_201 = arith.constant 7 : index
    %c0_202 = arith.constant 0 : index
    %147 = tpu.strided_load %arg10[%c0_199, %c1_200, %c7_201, %c0_202] {strides = array<i32: 1, 2, 2, 1>} : memref<2x18x32x32xf32, #tpu.memory_space<vmem>>, vector<2x8x8x32xf32>
    %148 = vector.shape_cast %147 : vector<2x8x8x32xf32> to vector<128x32xf32>
    %149 = arith.truncf %148 : vector<128x32xf32> to vector<128x32xbf16>
    %c3_203 = arith.constant 3 : index
    %c0_204 = arith.constant 0 : index
    %c0_205 = arith.constant 0 : index
    %150 = vector.load %arg3[%c3_203, %c0_204, %c0_205] : memref<9x32x64xbf16, #tpu.memory_space<vmem>>, vector<1x32x64xbf16>
    %151 = vector.shape_cast %150 : vector<1x32x64xbf16> to vector<32x64xbf16>
    %cst_206 = arith.constant dense<0.000000e+00> : vector<128x64xf32>
    %152 = tpu.matmul %149, %151, %cst_206 {dimension_numbers = #tpu.dot_dimension_numbers<[1], [0], [0], [1], [0, 0, 1, 1], [], []>} : vector<128x32xbf16>, vector<32x64xbf16>, vector<128x64xf32> -> vector<128x64xf32>
    %153 = arith.addf %146, %152 : vector<128x64xf32>
    %c0_207 = arith.constant 0 : index
    %c1_208 = arith.constant 1 : index
    %c8_209 = arith.constant 8 : index
    %c0_210 = arith.constant 0 : index
    %154 = tpu.strided_load %arg10[%c0_207, %c1_208, %c8_209, %c0_210] {strides = array<i32: 1, 2, 2, 1>} : memref<2x18x32x32xf32, #tpu.memory_space<vmem>>, vector<2x8x8x32xf32>
    %155 = vector.shape_cast %154 : vector<2x8x8x32xf32> to vector<128x32xf32>
    %156 = arith.truncf %155 : vector<128x32xf32> to vector<128x32xbf16>
    %c4_211 = arith.constant 4 : index
    %c0_212 = arith.constant 0 : index
    %c0_213 = arith.constant 0 : index
    %157 = vector.load %arg3[%c4_211, %c0_212, %c0_213] : memref<9x32x64xbf16, #tpu.memory_space<vmem>>, vector<1x32x64xbf16>
    %158 = vector.shape_cast %157 : vector<1x32x64xbf16> to vector<32x64xbf16>
    %cst_214 = arith.constant dense<0.000000e+00> : vector<128x64xf32>
    %159 = tpu.matmul %156, %158, %cst_214 {dimension_numbers = #tpu.dot_dimension_numbers<[1], [0], [0], [1], [0, 0, 1, 1], [], []>} : vector<128x32xbf16>, vector<32x64xbf16>, vector<128x64xf32> -> vector<128x64xf32>
    %160 = arith.addf %153, %159 : vector<128x64xf32>
    %c0_215 = arith.constant 0 : index
    %c1_216 = arith.constant 1 : index
    %c9_217 = arith.constant 9 : index
    %c0_218 = arith.constant 0 : index
    %161 = tpu.strided_load %arg10[%c0_215, %c1_216, %c9_217, %c0_218] {strides = array<i32: 1, 2, 2, 1>} : memref<2x18x32x32xf32, #tpu.memory_space<vmem>>, vector<2x8x8x32xf32>
    %162 = vector.shape_cast %161 : vector<2x8x8x32xf32> to vector<128x32xf32>
    %163 = arith.truncf %162 : vector<128x32xf32> to vector<128x32xbf16>
    %c5_219 = arith.constant 5 : index
    %c0_220 = arith.constant 0 : index
    %c0_221 = arith.constant 0 : index
    %164 = vector.load %arg3[%c5_219, %c0_220, %c0_221] : memref<9x32x64xbf16, #tpu.memory_space<vmem>>, vector<1x32x64xbf16>
    %165 = vector.shape_cast %164 : vector<1x32x64xbf16> to vector<32x64xbf16>
    %cst_222 = arith.constant dense<0.000000e+00> : vector<128x64xf32>
    %166 = tpu.matmul %163, %165, %cst_222 {dimension_numbers = #tpu.dot_dimension_numbers<[1], [0], [0], [1], [0, 0, 1, 1], [], []>} : vector<128x32xbf16>, vector<32x64xbf16>, vector<128x64xf32> -> vector<128x64xf32>
    %167 = arith.addf %160, %166 : vector<128x64xf32>
    %c0_223 = arith.constant 0 : index
    %c2_224 = arith.constant 2 : index
    %c7_225 = arith.constant 7 : index
    %c0_226 = arith.constant 0 : index
    %168 = tpu.strided_load %arg10[%c0_223, %c2_224, %c7_225, %c0_226] {strides = array<i32: 1, 2, 2, 1>} : memref<2x18x32x32xf32, #tpu.memory_space<vmem>>, vector<2x8x8x32xf32>
    %169 = vector.shape_cast %168 : vector<2x8x8x32xf32> to vector<128x32xf32>
    %170 = arith.truncf %169 : vector<128x32xf32> to vector<128x32xbf16>
    %c6_227 = arith.constant 6 : index
    %c0_228 = arith.constant 0 : index
    %c0_229 = arith.constant 0 : index
    %171 = vector.load %arg3[%c6_227, %c0_228, %c0_229] : memref<9x32x64xbf16, #tpu.memory_space<vmem>>, vector<1x32x64xbf16>
    %172 = vector.shape_cast %171 : vector<1x32x64xbf16> to vector<32x64xbf16>
    %cst_230 = arith.constant dense<0.000000e+00> : vector<128x64xf32>
    %173 = tpu.matmul %170, %172, %cst_230 {dimension_numbers = #tpu.dot_dimension_numbers<[1], [0], [0], [1], [0, 0, 1, 1], [], []>} : vector<128x32xbf16>, vector<32x64xbf16>, vector<128x64xf32> -> vector<128x64xf32>
    %174 = arith.addf %167, %173 : vector<128x64xf32>
    %c0_231 = arith.constant 0 : index
    %c2_232 = arith.constant 2 : index
    %c8_233 = arith.constant 8 : index
    %c0_234 = arith.constant 0 : index
    %175 = tpu.strided_load %arg10[%c0_231, %c2_232, %c8_233, %c0_234] {strides = array<i32: 1, 2, 2, 1>} : memref<2x18x32x32xf32, #tpu.memory_space<vmem>>, vector<2x8x8x32xf32>
    %176 = vector.shape_cast %175 : vector<2x8x8x32xf32> to vector<128x32xf32>
    %177 = arith.truncf %176 : vector<128x32xf32> to vector<128x32xbf16>
    %c7_235 = arith.constant 7 : index
    %c0_236 = arith.constant 0 : index
    %c0_237 = arith.constant 0 : index
    %178 = vector.load %arg3[%c7_235, %c0_236, %c0_237] : memref<9x32x64xbf16, #tpu.memory_space<vmem>>, vector<1x32x64xbf16>
    %179 = vector.shape_cast %178 : vector<1x32x64xbf16> to vector<32x64xbf16>
    %cst_238 = arith.constant dense<0.000000e+00> : vector<128x64xf32>
    %180 = tpu.matmul %177, %179, %cst_238 {dimension_numbers = #tpu.dot_dimension_numbers<[1], [0], [0], [1], [0, 0, 1, 1], [], []>} : vector<128x32xbf16>, vector<32x64xbf16>, vector<128x64xf32> -> vector<128x64xf32>
    %181 = arith.addf %174, %180 : vector<128x64xf32>
    %c0_239 = arith.constant 0 : index
    %c2_240 = arith.constant 2 : index
    %c9_241 = arith.constant 9 : index
    %c0_242 = arith.constant 0 : index
    %182 = tpu.strided_load %arg10[%c0_239, %c2_240, %c9_241, %c0_242] {strides = array<i32: 1, 2, 2, 1>} : memref<2x18x32x32xf32, #tpu.memory_space<vmem>>, vector<2x8x8x32xf32>
    %183 = vector.shape_cast %182 : vector<2x8x8x32xf32> to vector<128x32xf32>
    %184 = arith.truncf %183 : vector<128x32xf32> to vector<128x32xbf16>
    %c8_243 = arith.constant 8 : index
    %c0_244 = arith.constant 0 : index
    %c0_245 = arith.constant 0 : index
    %185 = vector.load %arg3[%c8_243, %c0_244, %c0_245] : memref<9x32x64xbf16, #tpu.memory_space<vmem>>, vector<1x32x64xbf16>
    %186 = vector.shape_cast %185 : vector<1x32x64xbf16> to vector<32x64xbf16>
    %cst_246 = arith.constant dense<0.000000e+00> : vector<128x64xf32>
    %187 = tpu.matmul %184, %186, %cst_246 {dimension_numbers = #tpu.dot_dimension_numbers<[1], [0], [0], [1], [0, 0, 1, 1], [], []>} : vector<128x32xbf16>, vector<32x64xbf16>, vector<128x64xf32> -> vector<128x64xf32>
    %188 = arith.addf %181, %187 : vector<128x64xf32>
    %c2_247 = arith.constant 2 : index
    %c0_248 = arith.constant 0 : index
    %189 = vector.load %arg5[%c2_247, %c0_248] : memref<4x64xf32, #tpu.memory_space<vmem>>, vector<1x64xf32>
    %190 = vector.broadcast %189 : vector<1x64xf32> to vector<128x64xf32>
    %191 = arith.addf %188, %190 : vector<128x64xf32>
    %cst_249 = arith.constant 0.000000e+00 : f32
    %192 = vector.broadcast %cst_249 : f32 to vector<128x64xf32>
    %193 = arith.cmpf oge, %191, %192 : vector<128x64xf32>
    %cst_250 = arith.constant 2.000000e-01 : f32
    %194 = vector.broadcast %cst_250 : f32 to vector<128x64xf32>
    %195 = arith.mulf %194, %191 : vector<128x64xf32>
    %196 = arith.select %193, %191, %195 : vector<128x64xi1>, vector<128x64xf32>
    %197 = vector.shape_cast %196 : vector<128x64xf32> to vector<2x8x8x64xf32>
    %c0_251 = arith.constant 0 : index
    %c1_252 = arith.constant 1 : index
    %c8_253 = arith.constant 8 : index
    %c0_254 = arith.constant 0 : index
    %198 = vector.load %arg11[%c0_251, %c1_252, %c8_253, %c0_254] : memref<2x10x24x64xf32, #tpu.memory_space<vmem>>, vector<2x8x8x64xf32>
    tpu.vector_store %arg11[%c0_251, %c1_252, %c8_253, %c0_254], %197 {strides = array<i32>} : memref<2x10x24x64xf32, #tpu.memory_space<vmem>>, vector<2x8x8x64xf32>,
    %c0_255 = arith.constant 0 : index
    %c0_256 = arith.constant 0 : index
    %c7_257 = arith.constant 7 : index
    %c0_258 = arith.constant 0 : index
    %199 = vector.load %arg11[%c0_255, %c0_256, %c7_257, %c0_258] : memref<2x10x24x64xf32, #tpu.memory_space<vmem>>, vector<2x8x8x64xf32>
    %200 = vector.shape_cast %199 : vector<2x8x8x64xf32> to vector<128x64xf32>
    %201 = arith.truncf %200 : vector<128x64xf32> to vector<128x64xbf16>
    %c0_259 = arith.constant 0 : index
    %c0_260 = arith.constant 0 : index
    %c0_261 = arith.constant 0 : index
    %202 = vector.load %arg4[%c0_259, %c0_260, %c0_261] : memref<9x64x64xbf16, #tpu.memory_space<vmem>>, vector<1x64x64xbf16>
    %203 = vector.shape_cast %202 : vector<1x64x64xbf16> to vector<64x64xbf16>
    %cst_262 = arith.constant dense<0.000000e+00> : vector<128x64xf32>
    %204 = tpu.matmul %201, %203, %cst_262 {dimension_numbers = #tpu.dot_dimension_numbers<[1], [0], [0], [1], [0, 0, 1, 1], [], []>} : vector<128x64xbf16>, vector<64x64xbf16>, vector<128x64xf32> -> vector<128x64xf32>
    %c0_263 = arith.constant 0 : index
    %c0_264 = arith.constant 0 : index
    %c8_265 = arith.constant 8 : index
    %c0_266 = arith.constant 0 : index
    %205 = vector.load %arg11[%c0_263, %c0_264, %c8_265, %c0_266] : memref<2x10x24x64xf32, #tpu.memory_space<vmem>>, vector<2x8x8x64xf32>
    %206 = vector.shape_cast %205 : vector<2x8x8x64xf32> to vector<128x64xf32>
    %207 = arith.truncf %206 : vector<128x64xf32> to vector<128x64xbf16>
    %c1_267 = arith.constant 1 : index
    %c0_268 = arith.constant 0 : index
    %c0_269 = arith.constant 0 : index
    %208 = vector.load %arg4[%c1_267, %c0_268, %c0_269] : memref<9x64x64xbf16, #tpu.memory_space<vmem>>, vector<1x64x64xbf16>
    %209 = vector.shape_cast %208 : vector<1x64x64xbf16> to vector<64x64xbf16>
    %cst_270 = arith.constant dense<0.000000e+00> : vector<128x64xf32>
    %210 = tpu.matmul %207, %209, %cst_270 {dimension_numbers = #tpu.dot_dimension_numbers<[1], [0], [0], [1], [0, 0, 1, 1], [], []>} : vector<128x64xbf16>, vector<64x64xbf16>, vector<128x64xf32> -> vector<128x64xf32>
    %211 = arith.addf %204, %210 : vector<128x64xf32>
    %c0_271 = arith.constant 0 : index
    %c0_272 = arith.constant 0 : index
    %c9_273 = arith.constant 9 : index
    %c0_274 = arith.constant 0 : index
    %212 = vector.load %arg11[%c0_271, %c0_272, %c9_273, %c0_274] : memref<2x10x24x64xf32, #tpu.memory_space<vmem>>, vector<2x8x8x64xf32>
    %213 = vector.shape_cast %212 : vector<2x8x8x64xf32> to vector<128x64xf32>
    %214 = arith.truncf %213 : vector<128x64xf32> to vector<128x64xbf16>
    %c2_275 = arith.constant 2 : index
    %c0_276 = arith.constant 0 : index
    %c0_277 = arith.constant 0 : index
    %215 = vector.load %arg4[%c2_275, %c0_276, %c0_277] : memref<9x64x64xbf16, #tpu.memory_space<vmem>>, vector<1x64x64xbf16>
    %216 = vector.shape_cast %215 : vector<1x64x64xbf16> to vector<64x64xbf16>
    %cst_278 = arith.constant dense<0.000000e+00> : vector<128x64xf32>
    %217 = tpu.matmul %214, %216, %cst_278 {dimension_numbers = #tpu.dot_dimension_numbers<[1], [0], [0], [1], [0, 0, 1, 1], [], []>} : vector<128x64xbf16>, vector<64x64xbf16>, vector<128x64xf32> -> vector<128x64xf32>
    %218 = arith.addf %211, %217 : vector<128x64xf32>
    %c0_279 = arith.constant 0 : index
    %c1_280 = arith.constant 1 : index
    %c7_281 = arith.constant 7 : index
    %c0_282 = arith.constant 0 : index
    %219 = vector.load %arg11[%c0_279, %c1_280, %c7_281, %c0_282] : memref<2x10x24x64xf32, #tpu.memory_space<vmem>>, vector<2x8x8x64xf32>
    %220 = vector.shape_cast %219 : vector<2x8x8x64xf32> to vector<128x64xf32>
    %221 = arith.truncf %220 : vector<128x64xf32> to vector<128x64xbf16>
    %c3_283 = arith.constant 3 : index
    %c0_284 = arith.constant 0 : index
    %c0_285 = arith.constant 0 : index
    %222 = vector.load %arg4[%c3_283, %c0_284, %c0_285] : memref<9x64x64xbf16, #tpu.memory_space<vmem>>, vector<1x64x64xbf16>
    %223 = vector.shape_cast %222 : vector<1x64x64xbf16> to vector<64x64xbf16>
    %cst_286 = arith.constant dense<0.000000e+00> : vector<128x64xf32>
    %224 = tpu.matmul %221, %223, %cst_286 {dimension_numbers = #tpu.dot_dimension_numbers<[1], [0], [0], [1], [0, 0, 1, 1], [], []>} : vector<128x64xbf16>, vector<64x64xbf16>, vector<128x64xf32> -> vector<128x64xf32>
    %225 = arith.addf %218, %224 : vector<128x64xf32>
    %c0_287 = arith.constant 0 : index
    %c1_288 = arith.constant 1 : index
    %c8_289 = arith.constant 8 : index
    %c0_290 = arith.constant 0 : index
    %226 = vector.load %arg11[%c0_287, %c1_288, %c8_289, %c0_290] : memref<2x10x24x64xf32, #tpu.memory_space<vmem>>, vector<2x8x8x64xf32>
    %227 = vector.shape_cast %226 : vector<2x8x8x64xf32> to vector<128x64xf32>
    %228 = arith.truncf %227 : vector<128x64xf32> to vector<128x64xbf16>
    %c4_291 = arith.constant 4 : index
    %c0_292 = arith.constant 0 : index
    %c0_293 = arith.constant 0 : index
    %229 = vector.load %arg4[%c4_291, %c0_292, %c0_293] : memref<9x64x64xbf16, #tpu.memory_space<vmem>>, vector<1x64x64xbf16>
    %230 = vector.shape_cast %229 : vector<1x64x64xbf16> to vector<64x64xbf16>
    %cst_294 = arith.constant dense<0.000000e+00> : vector<128x64xf32>
    %231 = tpu.matmul %228, %230, %cst_294 {dimension_numbers = #tpu.dot_dimension_numbers<[1], [0], [0], [1], [0, 0, 1, 1], [], []>} : vector<128x64xbf16>, vector<64x64xbf16>, vector<128x64xf32> -> vector<128x64xf32>
    %232 = arith.addf %225, %231 : vector<128x64xf32>
    %c0_295 = arith.constant 0 : index
    %c1_296 = arith.constant 1 : index
    %c9_297 = arith.constant 9 : index
    %c0_298 = arith.constant 0 : index
    %233 = vector.load %arg11[%c0_295, %c1_296, %c9_297, %c0_298] : memref<2x10x24x64xf32, #tpu.memory_space<vmem>>, vector<2x8x8x64xf32>
    %234 = vector.shape_cast %233 : vector<2x8x8x64xf32> to vector<128x64xf32>
    %235 = arith.truncf %234 : vector<128x64xf32> to vector<128x64xbf16>
    %c5_299 = arith.constant 5 : index
    %c0_300 = arith.constant 0 : index
    %c0_301 = arith.constant 0 : index
    %236 = vector.load %arg4[%c5_299, %c0_300, %c0_301] : memref<9x64x64xbf16, #tpu.memory_space<vmem>>, vector<1x64x64xbf16>
    %237 = vector.shape_cast %236 : vector<1x64x64xbf16> to vector<64x64xbf16>
    %cst_302 = arith.constant dense<0.000000e+00> : vector<128x64xf32>
    %238 = tpu.matmul %235, %237, %cst_302 {dimension_numbers = #tpu.dot_dimension_numbers<[1], [0], [0], [1], [0, 0, 1, 1], [], []>} : vector<128x64xbf16>, vector<64x64xbf16>, vector<128x64xf32> -> vector<128x64xf32>
    %239 = arith.addf %232, %238 : vector<128x64xf32>
    %c0_303 = arith.constant 0 : index
    %c2_304 = arith.constant 2 : index
    %c7_305 = arith.constant 7 : index
    %c0_306 = arith.constant 0 : index
    %240 = vector.load %arg11[%c0_303, %c2_304, %c7_305, %c0_306] : memref<2x10x24x64xf32, #tpu.memory_space<vmem>>, vector<2x8x8x64xf32>
    %241 = vector.shape_cast %240 : vector<2x8x8x64xf32> to vector<128x64xf32>
    %242 = arith.truncf %241 : vector<128x64xf32> to vector<128x64xbf16>
    %c6_307 = arith.constant 6 : index
    %c0_308 = arith.constant 0 : index
    %c0_309 = arith.constant 0 : index
    %243 = vector.load %arg4[%c6_307, %c0_308, %c0_309] : memref<9x64x64xbf16, #tpu.memory_space<vmem>>, vector<1x64x64xbf16>
    %244 = vector.shape_cast %243 : vector<1x64x64xbf16> to vector<64x64xbf16>
    %cst_310 = arith.constant dense<0.000000e+00> : vector<128x64xf32>
    %245 = tpu.matmul %242, %244, %cst_310 {dimension_numbers = #tpu.dot_dimension_numbers<[1], [0], [0], [1], [0, 0, 1, 1], [], []>} : vector<128x64xbf16>, vector<64x64xbf16>, vector<128x64xf32> -> vector<128x64xf32>
    %246 = arith.addf %239, %245 : vector<128x64xf32>
    %c0_311 = arith.constant 0 : index
    %c2_312 = arith.constant 2 : index
    %c8_313 = arith.constant 8 : index
    %c0_314 = arith.constant 0 : index
    %247 = vector.load %arg11[%c0_311, %c2_312, %c8_313, %c0_314] : memref<2x10x24x64xf32, #tpu.memory_space<vmem>>, vector<2x8x8x64xf32>
    %248 = vector.shape_cast %247 : vector<2x8x8x64xf32> to vector<128x64xf32>
    %249 = arith.truncf %248 : vector<128x64xf32> to vector<128x64xbf16>
    %c7_315 = arith.constant 7 : index
    %c0_316 = arith.constant 0 : index
    %c0_317 = arith.constant 0 : index
    %250 = vector.load %arg4[%c7_315, %c0_316, %c0_317] : memref<9x64x64xbf16, #tpu.memory_space<vmem>>, vector<1x64x64xbf16>
    %251 = vector.shape_cast %250 : vector<1x64x64xbf16> to vector<64x64xbf16>
    %cst_318 = arith.constant dense<0.000000e+00> : vector<128x64xf32>
    %252 = tpu.matmul %249, %251, %cst_318 {dimension_numbers = #tpu.dot_dimension_numbers<[1], [0], [0], [1], [0, 0, 1, 1], [], []>} : vector<128x64xbf16>, vector<64x64xbf16>, vector<128x64xf32> -> vector<128x64xf32>
    %253 = arith.addf %246, %252 : vector<128x64xf32>
    %c0_319 = arith.constant 0 : index
    %c2_320 = arith.constant 2 : index
    %c9_321 = arith.constant 9 : index
    %c0_322 = arith.constant 0 : index
    %254 = vector.load %arg11[%c0_319, %c2_320, %c9_321, %c0_322] : memref<2x10x24x64xf32, #tpu.memory_space<vmem>>, vector<2x8x8x64xf32>
    %255 = vector.shape_cast %254 : vector<2x8x8x64xf32> to vector<128x64xf32>
    %256 = arith.truncf %255 : vector<128x64xf32> to vector<128x64xbf16>
    %c8_323 = arith.constant 8 : index
    %c0_324 = arith.constant 0 : index
    %c0_325 = arith.constant 0 : index
    %257 = vector.load %arg4[%c8_323, %c0_324, %c0_325] : memref<9x64x64xbf16, #tpu.memory_space<vmem>>, vector<1x64x64xbf16>
    %258 = vector.shape_cast %257 : vector<1x64x64xbf16> to vector<64x64xbf16>
    %cst_326 = arith.constant dense<0.000000e+00> : vector<128x64xf32>
    %259 = tpu.matmul %256, %258, %cst_326 {dimension_numbers = #tpu.dot_dimension_numbers<[1], [0], [0], [1], [0, 0, 1, 1], [], []>} : vector<128x64xbf16>, vector<64x64xbf16>, vector<128x64xf32> -> vector<128x64xf32>
    %260 = arith.addf %253, %259 : vector<128x64xf32>
    %c3_327 = arith.constant 3 : index
    %c0_328 = arith.constant 0 : index
    %261 = vector.load %arg5[%c3_327, %c0_328] : memref<4x64xf32, #tpu.memory_space<vmem>>, vector<1x64xf32>
    %262 = vector.broadcast %261 : vector<1x64xf32> to vector<128x64xf32>
    %263 = arith.addf %260, %262 : vector<128x64xf32>
    %cst_329 = arith.constant 0.000000e+00 : f32
    %264 = vector.broadcast %cst_329 : f32 to vector<128x64xf32>
    %265 = arith.cmpf oge, %263, %264 : vector<128x64xf32>
    %cst_330 = arith.constant 2.000000e-01 : f32
    %266 = vector.broadcast %cst_330 : f32 to vector<128x64xf32>
    %267 = arith.mulf %266, %263 : vector<128x64xf32>
    %268 = arith.select %265, %263, %267 : vector<128x64xi1>, vector<128x64xf32>
    %269 = vector.shape_cast %268 : vector<128x64xf32> to vector<2x1x64x64xf32>
    %c0_331 = arith.constant 0 : index
    %c0_332 = arith.constant 0 : index
    %c0_333 = arith.constant 0 : index
    %270 = vector.load %arg6[%c0_331, %c0_332, %c0_333] : memref<10x64x64xf32, #tpu.memory_space<vmem>>, vector<10x64x64xf32>
    %271 = vector.shape_cast %270 : vector<10x64x64xf32> to vector<1x10x64x64xf32>
    %272 = vector.broadcast %269 : vector<2x1x64x64xf32> to vector<2x10x64x64xf32>
    %273 = vector.broadcast %271 : vector<1x10x64x64xf32> to vector<2x10x64x64xf32>
    %274 = arith.mulf %272, %273 : vector<2x10x64x64xf32>
    %cst_334 = arith.constant dense<0.000000e+00> : vector<2x10x64xf32>
    %275 = vector.multi_reduction <add>, %274, %cst_334 [3] : vector<2x10x64x64xf32> to vector<2x10x64xf32>
    %cst_335 = arith.constant dense<0.000000e+00> : vector<2x10xf32>
    %276 = vector.multi_reduction <add>, %275, %cst_335 [2] : vector<2x10x64xf32> to vector<2x10xf32>
    %c0_336 = arith.constant 0 : index
    %c0_337 = arith.constant 0 : index
    %277 = vector.load %arg7[%c0_336, %c0_337] : memref<1x10xf32, #tpu.memory_space<vmem>>, vector<1x10xf32>
    %278 = vector.broadcast %277 : vector<1x10xf32> to vector<2x10xf32>
    %279 = arith.addf %276, %278 : vector<2x10xf32>
    %c0_338 = arith.constant 0 : index
    %c0_339 = arith.constant 0 : index
    %280 = vector.load %arg8[%c0_338, %c0_339] : memref<2x10xf32, #tpu.memory_space<vmem>>, vector<2x10xf32>
    tpu.vector_store %arg8[%c0_338, %c0_339], %279 {strides = array<i32>} : memref<2x10xf32, #tpu.memory_space<vmem>>, vector<2x10xf32>,
    return
  }
}

</mosaic_0001>

<llo_original>
// kernel: decoder_forward.1
$region0: #{decoder_forward.1}
  #allocation0 [shape = 'u32[]', space=smem, size = 0x4, offset = 0x4, fixed_abs, tag = 'smem constant byte address 0x4 - core index']
  #allocation1 [shape = 'u32[72,128]{1,0:T(1,128)}', space=vmem, size = 0x9000, scoped, tag = 'internal scratch']
  #allocation2 [shape = 'f32[2,18,32,32]{3,2,1,0:T(8,128)}', space=vmem, size = 0x90000, scoped, tag = 'scratch operand']
  #allocation3 [shape = 'f32[2,18,32,32]{3,2,1,0:T(8,128)}', space=vmem, size = 0x90000, scoped, tag = 'scratch operand']
  #allocation4 [shape = 'f32[2,10,24,64]{3,2,1,0:T(8,128)}', space=vmem, size = 0x3c000, scoped, tag = 'scratch operand']
  #allocation5 [shape = 'f32[512,32]{1,0:T(8,128)}', space=vmem, size = 0x40000, scoped, tag = 'scratch operand']
  %s0 = inlined_call_operand.vmem [shape: bf16[512,32], index: 0, kind: input, shape index: {}]
  %s1 = inlined_call_operand.vmem [shape: bf16[32,32], index: 1, kind: input, shape index: {}]
  %s2 = inlined_call_operand.vmem [shape: bf16[9,32,32], index: 2, kind: input, shape index: {}]
  %s3 = inlined_call_operand.vmem [shape: bf16[9,32,64], index: 3, kind: input, shape index: {}]
  %s4 = inlined_call_operand.vmem [shape: bf16[9,64,64], index: 4, kind: input, shape index: {}]
  %s5 = inlined_call_operand.vmem [shape: f32[4,64], index: 5, kind: input, shape index: {}]
  %s6 = inlined_call_operand.vmem [shape: f32[10,64,64], index: 6, kind: input, shape index: {}]
  %s7 = inlined_call_operand.vmem [shape: f32[1,10], index: 7, kind: input, shape index: {}]
  %s8 = inlined_call_operand.hbm [shape: f32[2,10], index: 8, kind: output, shape index: {}]
  %s9 = sld [smem:[#allocation0]]
  $region42: #{decoder_forward.1} parent=0
    _
  %s11 = ssub.s32 1, %s9
  %s12 = scalar_select 0, %s11, %s9
  $region1: #{decoder_forward.1} parent=0
    #allocation6 [shape = 'u8[1024]{0}', space=vmem, size = 0x400, scoped, tag = 'output window, operand 0, single buffered']
    #allocation7 [shape = 's32[1]{0}', space=sflag, size = 0x4, scoped, tag = 'scoped memory for decoder_forward.1']
    %13 = vsyncpa [#allocation7], 0
    // Predicated region
    $region2: #{decoder_forward.1} parent=1 // pred_check
      _
    $region3: #{decoder_forward.1} parent=1 // pred_check_branch
      %15 = sbr.rel (0) target = $region5
    $region4: #{decoder_forward.1} parent=1 // pred_region
      _
    $region5: #{decoder_forward.1} parent=1 // pred_fallthru
      _
    // Predicated region
    $region6: #{decoder_forward.1} parent=1 // pred_check
      _
    $region7: #{decoder_forward.1} parent=1 // pred_check_branch
      %17 = sbr.rel (0) target = $region9
    $region8: #{decoder_forward.1} parent=1 // pred_region
      _
    $region9: #{decoder_forward.1} parent=1 // pred_fallthru
      _
    // Predicated region
    $region10: #{decoder_forward.1} parent=1 // pred_check
      _
    $region11: #{decoder_forward.1} parent=1 // pred_check_branch
      %19 = sbr.rel (0) target = $region13
    $region12: #{decoder_forward.1} parent=1 // pred_region
      _
    $region13: #{decoder_forward.1} parent=1 // pred_fallthru
      _
    // Predicated region
    $region14: #{decoder_forward.1} parent=1 // pred_check
      _
    $region15: #{decoder_forward.1} parent=1 // pred_check_branch
      %21 = sbr.rel (0) target = $region17
    $region16: #{decoder_forward.1} parent=1 // pred_region
      _
    $region17: #{decoder_forward.1} parent=1 // pred_fallthru
      _
    // Predicated region
    $region18: #{decoder_forward.1} parent=1 // pred_check
      _
    $region19: #{decoder_forward.1} parent=1 // pred_check_branch
      %23 = sbr.rel (0) target = $region21
    $region20: #{decoder_forward.1} parent=1 // pred_region
      _
    $region21: #{decoder_forward.1} parent=1 // pred_fallthru
      _
    // Predicated region
    $region22: #{decoder_forward.1} parent=1 // pred_check
      _
    $region23: #{decoder_forward.1} parent=1 // pred_check_branch
      %25 = sbr.rel (0) target = $region25
    $region24: #{decoder_forward.1} parent=1 // pred_region
      _
    $region25: #{decoder_forward.1} parent=1 // pred_fallthru
      _
    // Predicated region
    $region26: #{decoder_forward.1} parent=1 // pred_check
      _
    $region27: #{decoder_forward.1} parent=1 // pred_check_branch
      %27 = sbr.rel (0) target = $region29
    $region28: #{decoder_forward.1} parent=1 // pred_region
      _
    $region29: #{decoder_forward.1} parent=1 // pred_fallthru
      _
    // Predicated region
    $region30: #{decoder_forward.1} parent=1 // pred_check
      _
    $region31: #{decoder_forward.1} parent=1 // pred_check_branch
      %29 = sbr.rel (0) target = $region33
    $region32: #{decoder_forward.1} parent=1 // pred_region
      _
    $region33: #{decoder_forward.1} parent=1 // pred_fallthru
      _
    %vm31 = vcmask 261120
    %32 = vst.msk [vmem:[#allocation2] sm:$0xff] %vm31, 0.0
    %33 = vst.msk [vmem:[#allocation2 + $0x8] sm:$0xff] %vm31, 0.0
    %34 = vst.msk [vmem:[#allocation2 + $0x10] sm:$0xff] %vm31, 0.0
    %35 = vst.msk [vmem:[#allocation2 + $0x18] sm:$0xff] %vm31, 0.0
    %36 = vst.msk [vmem:[#allocation2 + $0x240] sm:$0xff] %vm31, 0.0
    %37 = vst.msk [vmem:[#allocation2 + $0x248] sm:$0xff] %vm31, 0.0
    %38 = vst.msk [vmem:[#allocation2 + $0x250] sm:$0xff] %vm31, 0.0
    %39 = vst.msk [vmem:[#allocation2 + $0x258] sm:$0xff] %vm31, 0.0
    %s40 = scalar_lea.vmem [#allocation2], 544
    %41 = vst.msk [vmem:[%s40] sm:$0xff] %vm31, 0.0
    %42 = vst.msk [vmem:[%s40 + $0x8] sm:$0xff] %vm31, 0.0
    %43 = vst.msk [vmem:[%s40 + $0x10] sm:$0xff] %vm31, 0.0
    %44 = vst.msk [vmem:[%s40 + $0x18] sm:$0xff] %vm31, 0.0
    %45 = vst.msk [vmem:[%s40 + $0x240] sm:$0xff] %vm31, 0.0
    %46 = vst.msk [vmem:[%s40 + $0x248] sm:$0xff] %vm31, 0.0
    %47 = vst.msk [vmem:[%s40 + $0x250] sm:$0xff] %vm31, 0.0
    %48 = vst.msk [vmem:[%s40 + $0x258] sm:$0xff] %vm31, 0.0
    %s49 = scalar_lea.vmem [#allocation2], 32
    %50 = vst.msk [vmem:[%s49] sm:$0xff] %vm31, 0.0
    %51 = vst.msk [vmem:[%s49 + $0x20] sm:$0xff] %vm31, 0.0
    %52 = vst.msk [vmem:[%s49 + $0x40] sm:$0xff] %vm31, 0.0
    %53 = vst.msk [vmem:[%s49 + $0x60] sm:$0xff] %vm31, 0.0
    %54 = vst.msk [vmem:[%s49 + $0x80] sm:$0xff] %vm31, 0.0
    %55 = vst.msk [vmem:[%s49 + $0xa0] sm:$0xff] %vm31, 0.0
    %56 = vst.msk [vmem:[%s49 + $0xc0] sm:$0xff] %vm31, 0.0
    %57 = vst.msk [vmem:[%s49 + $0xe0] sm:$0xff] %vm31, 0.0
    %58 = vst.msk [vmem:[%s49 + $0x100] sm:$0xff] %vm31, 0.0
    %59 = vst.msk [vmem:[%s49 + $0x120] sm:$0xff] %vm31, 0.0
    %60 = vst.msk [vmem:[%s49 + $0x140] sm:$0xff] %vm31, 0.0
    %61 = vst.msk [vmem:[%s49 + $0x160] sm:$0xff] %vm31, 0.0
    %62 = vst.msk [vmem:[%s49 + $0x180] sm:$0xff] %vm31, 0.0
    %63 = vst.msk [vmem:[%s49 + $0x1a0] sm:$0xff] %vm31, 0.0
    %64 = vst.msk [vmem:[%s49 + $0x1c0] sm:$0xff] %vm31, 0.0
    %65 = vst.msk [vmem:[%s49 + $0x1e0] sm:$0xff] %vm31, 0.0
    %66 = vst.msk [vmem:[%s49 + $0x240] sm:$0xff] %vm31, 0.0
    %67 = vst.msk [vmem:[%s49 + $0x260] sm:$0xff] %vm31, 0.0
    %68 = vst.msk [vmem:[%s49 + $0x280] sm:$0xff] %vm31, 0.0
    %69 = vst.msk [vmem:[%s49 + $0x2a0] sm:$0xff] %vm31, 0.0
    %70 = vst.msk [vmem:[%s49 + $0x2c0] sm:$0xff] %vm31, 0.0
    %71 = vst.msk [vmem:[%s49 + $0x2e0] sm:$0xff] %vm31, 0.0
    %72 = vst.msk [vmem:[%s49 + $0x300] sm:$0xff] %vm31, 0.0
    %73 = vst.msk [vmem:[%s49 + $0x320] sm:$0xff] %vm31, 0.0
    %74 = vst.msk [vmem:[%s49 + $0x340] sm:$0xff] %vm31, 0.0
    %75 = vst.msk [vmem:[%s49 + $0x360] sm:$0xff] %vm31, 0.0
    %76 = vst.msk [vmem:[%s49 + $0x380] sm:$0xff] %vm31, 0.0
    %77 = vst.msk [vmem:[%s49 + $0x3a0] sm:$0xff] %vm31, 0.0
    %78 = vst.msk [vmem:[%s49 + $0x3c0] sm:$0xff] %vm31, 0.0
    %79 = vst.msk [vmem:[%s49 + $0x3e0] sm:$0xff] %vm31, 0.0
    %80 = vst.msk [vmem:[%s49 + $0x400] sm:$0xff] %vm31, 0.0
    %81 = vst.msk [vmem:[%s49 + $0x420] sm:$0xff] %vm31, 0.0
    %82 = vst.msk [vmem:[%s49 + $0x18] sm:$0xff] %vm31, 0.0
    %83 = vst.msk [vmem:[%s49 + $0x38] sm:$0xff] %vm31, 0.0
    %84 = vst.msk [vmem:[%s49 + $0x58] sm:$0xff] %vm31, 0.0
    %85 = vst.msk [vmem:[%s49 + $0x78] sm:$0xff] %vm31, 0.0
    %86 = vst.msk [vmem:[%s49 + $0x98] sm:$0xff] %vm31, 0.0
    %87 = vst.msk [vmem:[%s49 + $0xb8] sm:$0xff] %vm31, 0.0
    %88 = vst.msk [vmem:[%s49 + $0xd8] sm:$0xff] %vm31, 0.0
    %89 = vst.msk [vmem:[%s49 + $0xf8] sm:$0xff] %vm31, 0.0
    %90 = vst.msk [vmem:[%s49 + $0x118] sm:$0xff] %vm31, 0.0
    %91 = vst.msk [vmem:[%s49 + $0x138] sm:$0xff] %vm31, 0.0
    %92 = vst.msk [vmem:[%s49 + $0x158] sm:$0xff] %vm31, 0.0
    %93 = vst.msk [vmem:[%s49 + $0x178] sm:$0xff] %vm31, 0.0
    %94 = vst.msk [vmem:[%s49 + $0x198] sm:$0xff] %vm31, 0.0
    %95 = vst.msk [vmem:[%s49 + $0x1b8] sm:$0xff] %vm31, 0.0
    %96 = vst.msk [vmem:[%s49 + $0x1d8] sm:$0xff] %vm31, 0.0
    %97 = vst.msk [vmem:[%s49 + $0x1f8] sm:$0xff] %vm31, 0.0
    %98 = vst.msk [vmem:[%s49 + $0x258] sm:$0xff] %vm31, 0.0
    %99 = vst.msk [vmem:[%s49 + $0x278] sm:$0xff] %vm31, 0.0
    %100 = vst.msk [vmem:[%s49 + $0x298] sm:$0xff] %vm31, 0.0
    %101 = vst.msk [vmem:[%s49 + $0x2b8] sm:$0xff] %vm31, 0.0
    %102 = vst.msk [vmem:[%s49 + $0x2d8] sm:$0xff] %vm31, 0.0
    %103 = vst.msk [vmem:[%s49 + $0x2f8] sm:$0xff] %vm31, 0.0
    %104 = vst.msk [vmem:[%s49 + $0x318] sm:$0xff] %vm31, 0.0
    %105 = vst.msk [vmem:[%s49 + $0x338] sm:$0xff] %vm31, 0.0
    %106 = vst.msk [vmem:[%s49 + $0x358] sm:$0xff] %vm31, 0.0
    %107 = vst.msk [vmem:[%s49 + $0x378] sm:$0xff] %vm31, 0.0
    %108 = vst.msk [vmem:[%s49 + $0x398] sm:$0xff] %vm31, 0.0
    %109 = vst.msk [vmem:[%s49 + $0x3b8] sm:$0xff] %vm31, 0.0
    %110 = vst.msk [vmem:[%s49 + $0x3d8] sm:$0xff] %vm31, 0.0
    %111 = vst.msk [vmem:[%s49 + $0x3f8] sm:$0xff] %vm31, 0.0
    %112 = vst.msk [vmem:[%s49 + $0x418] sm:$0xff] %vm31, 0.0
    %113 = vst.msk [vmem:[%s49 + $0x438] sm:$0xff] %vm31, 0.0
    %114 = vst.msk [vmem:[#allocation3] sm:$0xff] %vm31, 0.0
    %115 = vst.msk [vmem:[#allocation3 + $0x8] sm:$0xff] %vm31, 0.0
    %116 = vst.msk [vmem:[#allocation3 + $0x10] sm:$0xff] %vm31, 0.0
    %117 = vst.msk [vmem:[#allocation3 + $0x18] sm:$0xff] %vm31, 0.0
    %118 = vst.msk [vmem:[#allocation3 + $0x240] sm:$0xff] %vm31, 0.0
    %119 = vst.msk [vmem:[#allocation3 + $0x248] sm:$0xff] %vm31, 0.0
    %120 = vst.msk [vmem:[#allocation3 + $0x250] sm:$0xff] %vm31, 0.0
    %121 = vst.msk [vmem:[#allocation3 + $0x258] sm:$0xff] %vm31, 0.0
    %s122 = scalar_lea.vmem [#allocation3], 544
    %123 = vst.msk [vmem:[%s122] sm:$0xff] %vm31, 0.0
    %124 = vst.msk [vmem:[%s122 + $0x8] sm:$0xff] %vm31, 0.0
    %125 = vst.msk [vmem:[%s122 + $0x10] sm:$0xff] %vm31, 0.0
    %126 = vst.msk [vmem:[%s122 + $0x18] sm:$0xff] %vm31, 0.0
    %127 = vst.msk [vmem:[%s122 + $0x240] sm:$0xff] %vm31, 0.0
    %128 = vst.msk [vmem:[%s122 + $0x248] sm:$0xff] %vm31, 0.0
    %129 = vst.msk [vmem:[%s122 + $0x250] sm:$0xff] %vm31, 0.0
    %130 = vst.msk [vmem:[%s122 + $0x258] sm:$0xff] %vm31, 0.0
    %s131 = scalar_lea.vmem [#allocation3], 32
    %132 = vst.msk [vmem:[%s131] sm:$0xff] %vm31, 0.0
    %133 = vst.msk [vmem:[%s131 + $0x20] sm:$0xff] %vm31, 0.0
    %134 = vst.msk [vmem:[%s131 + $0x40] sm:$0xff] %vm31, 0.0
    %135 = vst.msk [vmem:[%s131 + $0x60] sm:$0xff] %vm31, 0.0
    %136 = vst.msk [vmem:[%s131 + $0x80] sm:$0xff] %vm31, 0.0
    %137 = vst.msk [vmem:[%s131 + $0xa0] sm:$0xff] %vm31, 0.0
    %138 = vst.msk [vmem:[%s131 + $0xc0] sm:$0xff] %vm31, 0.0
    %139 = vst.msk [vmem:[%s131 + $0xe0] sm:$0xff] %vm31, 0.0
    %140 = vst.msk [vmem:[%s131 + $0x100] sm:$0xff] %vm31, 0.0
    %141 = vst.msk [vmem:[%s131 + $0x120] sm:$0xff] %vm31, 0.0
    %142 = vst.msk [vmem:[%s131 + $0x140] sm:$0xff] %vm31, 0.0
    %143 = vst.msk [vmem:[%s131 + $0x160] sm:$0xff] %vm31, 0.0
    %144 = vst.msk [vmem:[%s131 + $0x180] sm:$0xff] %vm31, 0.0
    %145 = vst.msk [vmem:[%s131 + $0x1a0] sm:$0xff] %vm31, 0.0
    %146 = vst.msk [vmem:[%s131 + $0x1c0] sm:$0xff] %vm31, 0.0
    %147 = vst.msk [vmem:[%s131 + $0x1e0] sm:$0xff] %vm31, 0.0
    %148 = vst.msk [vmem:[%s131 + $0x240] sm:$0xff] %vm31, 0.0
    %149 = vst.msk [vmem:[%s131 + $0x260] sm:$0xff] %vm31, 0.0
    %150 = vst.msk [vmem:[%s131 + $0x280] sm:$0xff] %vm31, 0.0
    %151 = vst.msk [vmem:[%s131 + $0x2a0] sm:$0xff] %vm31, 0.0
    %152 = vst.msk [vmem:[%s131 + $0x2c0] sm:$0xff] %vm31, 0.0
    %153 = vst.msk [vmem:[%s131 + $0x2e0] sm:$0xff] %vm31, 0.0
    %154 = vst.msk [vmem:[%s131 + $0x300] sm:$0xff] %vm31, 0.0
    %155 = vst.msk [vmem:[%s131 + $0x320] sm:$0xff] %vm31, 0.0
    %156 = vst.msk [vmem:[%s131 + $0x340] sm:$0xff] %vm31, 0.0
    %157 = vst.msk [vmem:[%s131 + $0x360] sm:$0xff] %vm31, 0.0
    %158 = vst.msk [vmem:[%s131 + $0x380] sm:$0xff] %vm31, 0.0
    %159 = vst.msk [vmem:[%s131 + $0x3a0] sm:$0xff] %vm31, 0.0
    %160 = vst.msk [vmem:[%s131 + $0x3c0] sm:$0xff] %vm31, 0.0
    %161 = vst.msk [vmem:[%s131 + $0x3e0] sm:$0xff] %vm31, 0.0
    %162 = vst.msk [vmem:[%s131 + $0x400] sm:$0xff] %vm31, 0.0
    %163 = vst.msk [vmem:[%s131 + $0x420] sm:$0xff] %vm31, 0.0
    %164 = vst.msk [vmem:[%s131 + $0x18] sm:$0xff] %vm31, 0.0
    %165 = vst.msk [vmem:[%s131 + $0x38] sm:$0xff] %vm31, 0.0
    %166 = vst.msk [vmem:[%s131 + $0x58] sm:$0xff] %vm31, 0.0
    %167 = vst.msk [vmem:[%s131 + $0x78] sm:$0xff] %vm31, 0.0
    %168 = vst.msk [vmem:[%s131 + $0x98] sm:$0xff] %vm31, 0.0
    %169 = vst.msk [vmem:[%s131 + $0xb8] sm:$0xff] %vm31, 0.0
    %170 = vst.msk [vmem:[%s131 + $0xd8] sm:$0xff] %vm31, 0.0
    %171 = vst.msk [vmem:[%s131 + $0xf8] sm:$0xff] %vm31, 0.0
    %172 = vst.msk [vmem:[%s131 + $0x118] sm:$0xff] %vm31, 0.0
    %173 = vst.msk [vmem:[%s131 + $0x138] sm:$0xff] %vm31, 0.0
    %174 = vst.msk [vmem:[%s131 + $0x158] sm:$0xff] %vm31, 0.0
    %175 = vst.msk [vmem:[%s131 + $0x178] sm:$0xff] %vm31, 0.0
    %176 = vst.msk [vmem:[%s131 + $0x198] sm:$0xff] %vm31, 0.0
    %177 = vst.msk [vmem:[%s131 + $0x1b8] sm:$0xff] %vm31, 0.0
    %178 = vst.msk [vmem:[%s131 + $0x1d8] sm:$0xff] %vm31, 0.0
    %179 = vst.msk [vmem:[%s131 + $0x1f8] sm:$0xff] %vm31, 0.0
    %180 = vst.msk [vmem:[%s131 + $0x258] sm:$0xff] %vm31, 0.0
    %181 = vst.msk [vmem:[%s131 + $0x278] sm:$0xff] %vm31, 0.0
    %182 = vst.msk [vmem:[%s131 + $0x298] sm:$0xff] %vm31, 0.0
    %183 = vst.msk [vmem:[%s131 + $0x2b8] sm:$0xff] %vm31, 0.0
    %184 = vst.msk [vmem:[%s131 + $0x2d8] sm:$0xff] %vm31, 0.0
    %185 = vst.msk [vmem:[%s131 + $0x2f8] sm:$0xff] %vm31, 0.0
    %186 = vst.msk [vmem:[%s131 + $0x318] sm:$0xff] %vm31, 0.0
    %187 = vst.msk [vmem:[%s131 + $0x338] sm:$0xff] %vm31, 0.0
    %188 = vst.msk [vmem:[%s131 + $0x358] sm:$0xff] %vm31, 0.0
    %189 = vst.msk [vmem:[%s131 + $0x378] sm:$0xff] %vm31, 0.0
    %190 = vst.msk [vmem:[%s131 + $0x398] sm:$0xff] %vm31, 0.0
    %191 = vst.msk [vmem:[%s131 + $0x3b8] sm:$0xff] %vm31, 0.0
    %192 = vst.msk [vmem:[%s131 + $0x3d8] sm:$0xff] %vm31, 0.0
    %193 = vst.msk [vmem:[%s131 + $0x3f8] sm:$0xff] %vm31, 0.0
    %194 = vst.msk [vmem:[%s131 + $0x418] sm:$0xff] %vm31, 0.0
    %195 = vst.msk [vmem:[%s131 + $0x438] sm:$0xff] %vm31, 0.0
    %vm196 = vcmask 523264
    %197 = vst.msk [vmem:[#allocation4] sm:$0xff] %vm196, 0.0
    %198 = vst.msk [vmem:[#allocation4 + $0x8] sm:$0xff] %vm196, 0.0
    %199 = vst.msk [vmem:[#allocation4 + $0x10] sm:$0xff] %vm196, 0.0
    %200 = vst.msk [vmem:[#allocation4 + $0xf0] sm:$0xff] %vm196, 0.0
    %201 = vst.msk [vmem:[#allocation4 + $0xf8] sm:$0xff] %vm196, 0.0
    %202 = vst.msk [vmem:[#allocation4 + $0x100] sm:$0xff] %vm196, 0.0
    %s203 = scalar_lea.vmem [#allocation4], 216
    %204 = vst.msk [vmem:[%s203] sm:$0xff] %vm196, 0.0
    %205 = vst.msk [vmem:[%s203 + $0x8] sm:$0xff] %vm196, 0.0
    %206 = vst.msk [vmem:[%s203 + $0x10] sm:$0xff] %vm196, 0.0
    %207 = vst.msk [vmem:[%s203 + $0xf0] sm:$0xff] %vm196, 0.0
    %208 = vst.msk [vmem:[%s203 + $0xf8] sm:$0xff] %vm196, 0.0
    %209 = vst.msk [vmem:[%s203 + $0x100] sm:$0xff] %vm196, 0.0
    %s210 = scalar_lea.vmem [#allocation4], 24
    %211 = vst.msk [vmem:[%s210] sm:$0xff] %vm196, 0.0
    %212 = vst.msk [vmem:[%s210 + $0x18] sm:$0xff] %vm196, 0.0
    %213 = vst.msk [vmem:[%s210 + $0x30] sm:$0xff] %vm196, 0.0
    %214 = vst.msk [vmem:[%s210 + $0x48] sm:$0xff] %vm196, 0.0
    %215 = vst.msk [vmem:[%s210 + $0x60] sm:$0xff] %vm196, 0.0
    %216 = vst.msk [vmem:[%s210 + $0x78] sm:$0xff] %vm196, 0.0
    %217 = vst.msk [vmem:[%s210 + $0x90] sm:$0xff] %vm196, 0.0
    %218 = vst.msk [vmem:[%s210 + $0xa8] sm:$0xff] %vm196, 0.0
    %219 = vst.msk [vmem:[%s210 + $0xf0] sm:$0xff] %vm196, 0.0
    %220 = vst.msk [vmem:[%s210 + $0x108] sm:$0xff] %vm196, 0.0
    %221 = vst.msk [vmem:[%s210 + $0x120] sm:$0xff] %vm196, 0.0
    %222 = vst.msk [vmem:[%s210 + $0x138] sm:$0xff] %vm196, 0.0
    %223 = vst.msk [vmem:[%s210 + $0x150] sm:$0xff] %vm196, 0.0
    %224 = vst.msk [vmem:[%s210 + $0x168] sm:$0xff] %vm196, 0.0
    %225 = vst.msk [vmem:[%s210 + $0x180] sm:$0xff] %vm196, 0.0
    %226 = vst.msk [vmem:[%s210 + $0x198] sm:$0xff] %vm196, 0.0
    %227 = vst.msk [vmem:[%s210 + $0x10] sm:$0xff] %vm196, 0.0
    %228 = vst.msk [vmem:[%s210 + $0x28] sm:$0xff] %vm196, 0.0
    %229 = vst.msk [vmem:[%s210 + $0x40] sm:$0xff] %vm196, 0.0
    %230 = vst.msk [vmem:[%s210 + $0x58] sm:$0xff] %vm196, 0.0
    %231 = vst.msk [vmem:[%s210 + $0x70] sm:$0xff] %vm196, 0.0
    %232 = vst.msk [vmem:[%s210 + $0x88] sm:$0xff] %vm196, 0.0
    %233 = vst.msk [vmem:[%s210 + $0xa0] sm:$0xff] %vm196, 0.0
    %234 = vst.msk [vmem:[%s210 + $0xb8] sm:$0xff] %vm196, 0.0
    %235 = vst.msk [vmem:[%s210 + $0x100] sm:$0xff] %vm196, 0.0
    %236 = vst.msk [vmem:[%s210 + $0x118] sm:$0xff] %vm196, 0.0
    %237 = vst.msk [vmem:[%s210 + $0x130] sm:$0xff] %vm196, 0.0
    %238 = vst.msk [vmem:[%s210 + $0x148] sm:$0xff] %vm196, 0.0
    %239 = vst.msk [vmem:[%s210 + $0x160] sm:$0xff] %vm196, 0.0
    %240 = vst.msk [vmem:[%s210 + $0x178] sm:$0xff] %vm196, 0.0
    %241 = vst.msk [vmem:[%s210 + $0x190] sm:$0xff] %vm196, 0.0
    %242 = vst.msk [vmem:[%s210 + $0x1a8] sm:$0xff] %vm196, 0.0
    %v243 = vld [vmem:[%s0] sm:$0xf]
    %v244 = vld [vmem:[%s0 + $0x4] sm:$0xf]
    %v245 = vld [vmem:[%s0 + $0x8] sm:$0xf]
    %v246 = vld [vmem:[%s0 + $0xc] sm:$0xf]
    %v247 = vld [vmem:[%s0 + $0x10] sm:$0xf]
    %v248 = vld [vmem:[%s0 + $0x14] sm:$0xf]
    %v249 = vld [vmem:[%s0 + $0x18] sm:$0xf]
    %v250 = vld [vmem:[%s0 + $0x1c] sm:$0xf]
    %v251 = vld [vmem:[%s0 + $0x20] sm:$0xf]
    %v252 = vld [vmem:[%s0 + $0x24] sm:$0xf]
    %v253 = vld [vmem:[%s0 + $0x28] sm:$0xf]
    %v254 = vld [vmem:[%s0 + $0x2c] sm:$0xf]
    %v255 = vld [vmem:[%s0 + $0x30] sm:$0xf]
    %v256 = vld [vmem:[%s0 + $0x34] sm:$0xf]
    %v257 = vld [vmem:[%s0 + $0x38] sm:$0xf]
    %v258 = vld [vmem:[%s0 + $0x3c] sm:$0xf]
    %v259 = vld [vmem:[%s0 + $0x40] sm:$0xf]
    %v260 = vld [vmem:[%s0 + $0x44] sm:$0xf]
    %v261 = vld [vmem:[%s0 + $0x48] sm:$0xf]
    %v262 = vld [vmem:[%s0 + $0x4c] sm:$0xf]
    %v263 = vld [vmem:[%s0 + $0x50] sm:$0xf]
    %v264 = vld [vmem:[%s0 + $0x54] sm:$0xf]
    %v265 = vld [vmem:[%s0 + $0x58] sm:$0xf]
    %v266 = vld [vmem:[%s0 + $0x5c] sm:$0xf]
    %v267 = vld [vmem:[%s0 + $0x60] sm:$0xf]
    %v268 = vld [vmem:[%s0 + $0x64] sm:$0xf]
    %v269 = vld [vmem:[%s0 + $0x68] sm:$0xf]
    %v270 = vld [vmem:[%s0 + $0x6c] sm:$0xf]
    %v271 = vld [vmem:[%s0 + $0x70] sm:$0xf]
    %v272 = vld [vmem:[%s0 + $0x74] sm:$0xf]
    %v273 = vld [vmem:[%s0 + $0x78] sm:$0xf]
    %v274 = vld [vmem:[%s0 + $0x7c] sm:$0xf]
    %v275 = vld [vmem:[%s0 + $0x80] sm:$0xf]
    %v276 = vld [vmem:[%s0 + $0x84] sm:$0xf]
    %v277 = vld [vmem:[%s0 + $0x88] sm:$0xf]
    %v278 = vld [vmem:[%s0 + $0x8c] sm:$0xf]
    %v279 = vld [vmem:[%s0 + $0x90] sm:$0xf]
    %v280 = vld [vmem:[%s0 + $0x94] sm:$0xf]
    %v281 = vld [vmem:[%s0 + $0x98] sm:$0xf]
    %v282 = vld [vmem:[%s0 + $0x9c] sm:$0xf]
    %v283 = vld [vmem:[%s0 + $0xa0] sm:$0xf]
    %v284 = vld [vmem:[%s0 + $0xa4] sm:$0xf]
    %v285 = vld [vmem:[%s0 + $0xa8] sm:$0xf]
    %v286 = vld [vmem:[%s0 + $0xac] sm:$0xf]
    %v287 = vld [vmem:[%s0 + $0xb0] sm:$0xf]
    %v288 = vld [vmem:[%s0 + $0xb4] sm:$0xf]
    %v289 = vld [vmem:[%s0 + $0xb8] sm:$0xf]
    %v290 = vld [vmem:[%s0 + $0xbc] sm:$0xf]
    %v291 = vld [vmem:[%s0 + $0xc0] sm:$0xf]
    %v292 = vld [vmem:[%s0 + $0xc4] sm:$0xf]
    %v293 = vld [vmem:[%s0 + $0xc8] sm:$0xf]
    %v294 = vld [vmem:[%s0 + $0xcc] sm:$0xf]
    %v295 = vld [vmem:[%s0 + $0xd0] sm:$0xf]
    %v296 = vld [vmem:[%s0 + $0xd4] sm:$0xf]
    %v297 = vld [vmem:[%s0 + $0xd8] sm:$0xf]
    %v298 = vld [vmem:[%s0 + $0xdc] sm:$0xf]
    %v299 = vld [vmem:[%s0 + $0xe0] sm:$0xf]
    %v300 = vld [vmem:[%s0 + $0xe4] sm:$0xf]
    %v301 = vld [vmem:[%s0 + $0xe8] sm:$0xf]
    %v302 = vld [vmem:[%s0 + $0xec] sm:$0xf]
    %v303 = vld [vmem:[%s0 + $0xf0] sm:$0xf]
    %v304 = vld [vmem:[%s0 + $0xf4] sm:$0xf]
    %v305 = vld [vmem:[%s0 + $0xf8] sm:$0xf]
    %v306 = vld [vmem:[%s0 + $0xfc] sm:$0xf]
    %v307 = vld [vmem:[%s1] sm:$0xf]
    %v308 = vld [vmem:[%s1 + $0x4] sm:$0xf]
    %v309 = vld [vmem:[%s1 + $0x8] sm:$0xf]
    %v310 = vld [vmem:[%s1 + $0xc] sm:$0xf]
    %v311 = vld [vmem:[%s5] sm:$0x1]
    %v312 = vperm.slane %v311, 0
    %v377 = vunpack.c.l.b16 %v243
    %v378 = vunpack.c.l.b16 %v244
    %v379 = vunpack.c.l.b16 %v245
    %v380 = vunpack.c.l.b16 %v246
    %v381 = vunpack.c.l.b16 %v247
    %v382 = vunpack.c.l.b16 %v248
    %v383 = vunpack.c.l.b16 %v249
    %v384 = vunpack.c.l.b16 %v250
    %v385 = vunpack.c.l.b16 %v251
    %v386 = vunpack.c.l.b16 %v252
    %v387 = vunpack.c.l.b16 %v253
    %v388 = vunpack.c.l.b16 %v254
    %v389 = vunpack.c.l.b16 %v255
    %v390 = vunpack.c.l.b16 %v256
    %v391 = vunpack.c.l.b16 %v257
    %v392 = vunpack.c.l.b16 %v258
    %v393 = vunpack.c.l.b16 %v259
    %v394 = vunpack.c.l.b16 %v260
    %v395 = vunpack.c.l.b16 %v261
    %v396 = vunpack.c.l.b16 %v262
    %v397 = vunpack.c.l.b16 %v263
    %v398 = vunpack.c.l.b16 %v264
    %v399 = vunpack.c.l.b16 %v265
    %v400 = vunpack.c.l.b16 %v266
    %v401 = vunpack.c.l.b16 %v267
    %v402 = vunpack.c.l.b16 %v268
    %v403 = vunpack.c.l.b16 %v269
    %v404 = vunpack.c.l.b16 %v270
    %v405 = vunpack.c.l.b16 %v271
    %v406 = vunpack.c.l.b16 %v272
    %v407 = vunpack.c.l.b16 %v273
    %v408 = vunpack.c.l.b16 %v274
    %v409 = vunpack.c.l.b16 %v275
    %v410 = vunpack.c.l.b16 %v276
    %v411 = vunpack.c.l.b16 %v277
    %v412 = vunpack.c.l.b16 %v278
    %v413 = vunpack.c.l.b16 %v279
    %v414 = vunpack.c.l.b16 %v280
    %v415 = vunpack.c.l.b16 %v281
    %v416 = vunpack.c.l.b16 %v282
    %v417 = vunpack.c.l.b16 %v283
    %v418 = vunpack.c.l.b16 %v284
    %v419 = vunpack.c.l.b16 %v285
    %v420 = vunpack.c.l.b16 %v286
    %v421 = vunpack.c.l.b16 %v287
    %v422 = vunpack.c.l.b16 %v288
    %v423 = vunpack.c.l.b16 %v289
    %v424 = vunpack.c.l.b16 %v290
    %v425 = vunpack.c.l.b16 %v291
    %v426 = vunpack.c.l.b16 %v292
    %v427 = vunpack.c.l.b16 %v293
    %v428 = vunpack.c.l.b16 %v294
    %v429 = vunpack.c.l.b16 %v295
    %v430 = vunpack.c.l.b16 %v296
    %v431 = vunpack.c.l.b16 %v297
    %v432 = vunpack.c.l.b16 %v298
    %v433 = vunpack.c.l.b16 %v299
    %v434 = vunpack.c.l.b16 %v300
    %v435 = vunpack.c.l.b16 %v301
    %v436 = vunpack.c.l.b16 %v302
    %v437 = vunpack.c.l.b16 %v303
    %v438 = vunpack.c.l.b16 %v304
    %v439 = vunpack.c.l.b16 %v305
    %v440 = vunpack.c.l.b16 %v306
    %v441 = vpack.c.b16 %v378, %v377
    %v442 = vpack.c.b16 %v380, %v379
    %v443 = vpack.c.b16 %v382, %v381
    %v444 = vpack.c.b16 %v384, %v383
    %v445 = vpack.c.b16 %v386, %v385
    %v446 = vpack.c.b16 %v388, %v387
    %v447 = vpack.c.b16 %v390, %v389
    %v448 = vpack.c.b16 %v392, %v391
    %v449 = vpack.c.b16 %v394, %v393
    %v450 = vpack.c.b16 %v396, %v395
    %v451 = vpack.c.b16 %v398, %v397
    %v452 = vpack.c.b16 %v400, %v399
    %v453 = vpack.c.b16 %v402, %v401
    %v454 = vpack.c.b16 %v404, %v403
    %v455 = vpack.c.b16 %v406, %v405
    %v456 = vpack.c.b16 %v408, %v407
    %v457 = vpack.c.b16 %v410, %v409
    %v458 = vpack.c.b16 %v412, %v411
    %v459 = vpack.c.b16 %v414, %v413
    %v460 = vpack.c.b16 %v416, %v415
    %v461 = vpack.c.b16 %v418, %v417
    %v462 = vpack.c.b16 %v420, %v419
    %v463 = vpack.c.b16 %v422, %v421
    %v464 = vpack.c.b16 %v424, %v423
    %v465 = vpack.c.b16 %v426, %v425
    %v466 = vpack.c.b16 %v428, %v427
    %v467 = vpack.c.b16 %v430, %v429
    %v468 = vpack.c.b16 %v432, %v431
    %v469 = vpack.c.b16 %v434, %v433
    %v470 = vpack.c.b16 %v436, %v435
    %v471 = vpack.c.b16 %v438, %v437
    %v472 = vpack.c.b16 %v440, %v439
    %v477 = vunpack.c.l.b16 %v307
    %v478 = vunpack.c.l.b16 %v308
    %v479 = vunpack.c.l.b16 %v309
    %v480 = vunpack.c.l.b16 %v310
    %v481 = vpack.c.b16 %v478, %v477
    %v482 = vpack.c.b16 %v480, %v479
    %v486 = vsel %vm31, %v441, 0
    %v489 = vsel %vm31, %v442, 0
    %v492 = vsel %vm31, %v443, 0
    %v495 = vsel %vm31, %v444, 0
    %v498 = vsel %vm31, %v445, 0
    %v501 = vsel %vm31, %v446, 0
    %v504 = vsel %vm31, %v447, 0
    %v507 = vsel %vm31, %v448, 0
    %v510 = vsel %vm31, %v449, 0
    %v513 = vsel %vm31, %v450, 0
    %v516 = vsel %vm31, %v451, 0
    %v519 = vsel %vm31, %v452, 0
    %v522 = vsel %vm31, %v453, 0
    %v525 = vsel %vm31, %v454, 0
    %v528 = vsel %vm31, %v455, 0
    %v531 = vsel %vm31, %v456, 0
    %v534 = vsel %vm31, %v457, 0
    %v537 = vsel %vm31, %v458, 0
    %v540 = vsel %vm31, %v459, 0
    %v543 = vsel %vm31, %v460, 0
    %v546 = vsel %vm31, %v461, 0
    %v549 = vsel %vm31, %v462, 0
    %v552 = vsel %vm31, %v463, 0
    %v555 = vsel %vm31, %v464, 0
    %v558 = vsel %vm31, %v465, 0
    %v561 = vsel %vm31, %v466, 0
    %v564 = vsel %vm31, %v467, 0
    %v567 = vsel %vm31, %v468, 0
    %v570 = vsel %vm31, %v469, 0
    %v573 = vsel %vm31, %v470, 0
    %v576 = vsel %vm31, %v471, 0
    %v579 = vsel %vm31, %v472, 0
    %581 = vmatpush.bf16.msra.mxu0 0
    %582 = vmatpush.bf16.msra.mxu0 0
    %583 = vmatpush.bf16.msra.mxu0 0
    %584 = vmatpush.bf16.msra.mxu0 0
    %585 = vmatpush.bf16.msra.mxu0 0
    %586 = vmatpush.bf16.msra.mxu0 0
    %587 = vmatpush.bf16.msra.mxu0 %v482
    %588 = vmatpush.bf16.msra.mxu0 %v481
    %589 = vmatmul.bf16.gmra.mxu0 %v486
    %v590 = vpop.f32.mrf.mxu0
    %v591 = vadd.f32 %v312, %v590
    %v592 = vpop.f32.mrf.mxu0
    %v593 = vadd.f32 %v312, %v592
    %594 = vmatmul.bf16.gmra.mxu0 %v489
    %v595 = vpop.f32.mrf.mxu0
    %v596 = vadd.f32 %v312, %v595
    %v597 = vpop.f32.mrf.mxu0
    %v598 = vadd.f32 %v312, %v597
    %599 = vmatmul.bf16.gmra.mxu0 %v492
    %v600 = vpop.f32.mrf.mxu0
    %v601 = vadd.f32 %v312, %v600
    %v602 = vpop.f32.mrf.mxu0
    %v603 = vadd.f32 %v312, %v602
    %604 = vmatmul.bf16.gmra.mxu0 %v495
    %v605 = vpop.f32.mrf.mxu0
    %v606 = vadd.f32 %v312, %v605
    %v607 = vpop.f32.mrf.mxu0
    %v608 = vadd.f32 %v312, %v607
    %609 = vmatmul.bf16.gmra.mxu0 %v498
    %v610 = vpop.f32.mrf.mxu0
    %v611 = vadd.f32 %v312, %v610
    %v612 = vpop.f32.mrf.mxu0
    %v613 = vadd.f32 %v312, %v612
    %614 = vmatmul.bf16.gmra.mxu0 %v501
    %v615 = vpop.f32.mrf.mxu0
    %v616 = vadd.f32 %v312, %v615
    %v617 = vpop.f32.mrf.mxu0
    %v618 = vadd.f32 %v312, %v617
    %619 = vmatmul.bf16.gmra.mxu0 %v504
    %v620 = vpop.f32.mrf.mxu0
    %v621 = vadd.f32 %v312, %v620
    %v622 = vpop.f32.mrf.mxu0
    %v623 = vadd.f32 %v312, %v622
    %624 = vmatmul.bf16.gmra.mxu0 %v507
    %v625 = vpop.f32.mrf.mxu0
    %v626 = vadd.f32 %v312, %v625
    %v627 = vpop.f32.mrf.mxu0
    %v628 = vadd.f32 %v312, %v627
    %629 = vmatmul.bf16.gmra.mxu0 %v510
    %v630 = vpop.f32.mrf.mxu0
    %v631 = vadd.f32 %v312, %v630
    %v632 = vpop.f32.mrf.mxu0
    %v633 = vadd.f32 %v312, %v632
    %634 = vmatmul.bf16.gmra.mxu0 %v513
    %v635 = vpop.f32.mrf.mxu0
    %v636 = vadd.f32 %v312, %v635
    %v637 = vpop.f32.mrf.mxu0
    %v638 = vadd.f32 %v312, %v637
    %639 = vmatmul.bf16.gmra.mxu0 %v516
    %v640 = vpop.f32.mrf.mxu0
    %v641 = vadd.f32 %v312, %v640
    %v642 = vpop.f32.mrf.mxu0
    %v643 = vadd.f32 %v312, %v642
    %644 = vmatmul.bf16.gmra.mxu0 %v519
    %v645 = vpop.f32.mrf.mxu0
    %v646 = vadd.f32 %v312, %v645
    %v647 = vpop.f32.mrf.mxu0
    %v648 = vadd.f32 %v312, %v647
    %649 = vmatmul.bf16.gmra.mxu0 %v522
    %v650 = vpop.f32.mrf.mxu0
    %v651 = vadd.f32 %v312, %v650
    %v652 = vpop.f32.mrf.mxu0
    %v653 = vadd.f32 %v312, %v652
    %654 = vmatmul.bf16.gmra.mxu0 %v525
    %v655 = vpop.f32.mrf.mxu0
    %v656 = vadd.f32 %v312, %v655
    %v657 = vpop.f32.mrf.mxu0
    %v658 = vadd.f32 %v312, %v657
    %659 = vmatmul.bf16.gmra.mxu0 %v528
    %v660 = vpop.f32.mrf.mxu0
    %v661 = vadd.f32 %v312, %v660
    %v662 = vpop.f32.mrf.mxu0
    %v663 = vadd.f32 %v312, %v662
    %664 = vmatmul.bf16.gmra.mxu0 %v531
    %v665 = vpop.f32.mrf.mxu0
    %v666 = vadd.f32 %v312, %v665
    %v667 = vpop.f32.mrf.mxu0
    %v668 = vadd.f32 %v312, %v667
    %669 = vmatmul.bf16.gmra.mxu0 %v534
    %v670 = vpop.f32.mrf.mxu0
    %v671 = vadd.f32 %v312, %v670
    %v672 = vpop.f32.mrf.mxu0
    %v673 = vadd.f32 %v312, %v672
    %674 = vmatmul.bf16.gmra.mxu0 %v537
    %v675 = vpop.f32.mrf.mxu0
    %v676 = vadd.f32 %v312, %v675
    %v677 = vpop.f32.mrf.mxu0
    %v678 = vadd.f32 %v312, %v677
    %679 = vmatmul.bf16.gmra.mxu0 %v540
    %v680 = vpop.f32.mrf.mxu0
    %v681 = vadd.f32 %v312, %v680
    %v682 = vpop.f32.mrf.mxu0
    %v683 = vadd.f32 %v312, %v682
    %684 = vmatmul.bf16.gmra.mxu0 %v543
    %v685 = vpop.f32.mrf.mxu0
    %v686 = vadd.f32 %v312, %v685
    %v687 = vpop.f32.mrf.mxu0
    %v688 = vadd.f32 %v312, %v687
    %689 = vmatmul.bf16.gmra.mxu0 %v546
    %v690 = vpop.f32.mrf.mxu0
    %v691 = vadd.f32 %v312, %v690
    %v692 = vpop.f32.mrf.mxu0
    %v693 = vadd.f32 %v312, %v692
    %694 = vmatmul.bf16.gmra.mxu0 %v549
    %v695 = vpop.f32.mrf.mxu0
    %v696 = vadd.f32 %v312, %v695
    %v697 = vpop.f32.mrf.mxu0
    %v698 = vadd.f32 %v312, %v697
    %699 = vmatmul.bf16.gmra.mxu0 %v552
    %v700 = vpop.f32.mrf.mxu0
    %v701 = vadd.f32 %v312, %v700
    %v702 = vpop.f32.mrf.mxu0
    %v703 = vadd.f32 %v312, %v702
    %704 = vmatmul.bf16.gmra.mxu0 %v555
    %v705 = vpop.f32.mrf.mxu0
    %v706 = vadd.f32 %v312, %v705
    %v707 = vpop.f32.mrf.mxu0
    %v708 = vadd.f32 %v312, %v707
    %709 = vmatmul.bf16.gmra.mxu0 %v558
    %v710 = vpop.f32.mrf.mxu0
    %v711 = vadd.f32 %v312, %v710
    %v712 = vpop.f32.mrf.mxu0
    %v713 = vadd.f32 %v312, %v712
    %714 = vmatmul.bf16.gmra.mxu0 %v561
    %v715 = vpop.f32.mrf.mxu0
    %v716 = vadd.f32 %v312, %v715
    %v717 = vpop.f32.mrf.mxu0
    %v718 = vadd.f32 %v312, %v717
    %719 = vmatmul.bf16.gmra.mxu0 %v564
    %v720 = vpop.f32.mrf.mxu0
    %v721 = vadd.f32 %v312, %v720
    %v722 = vpop.f32.mrf.mxu0
    %v723 = vadd.f32 %v312, %v722
    %724 = vmatmul.bf16.gmra.mxu0 %v567
    %v725 = vpop.f32.mrf.mxu0
    %v726 = vadd.f32 %v312, %v725
    %v727 = vpop.f32.mrf.mxu0
    %v728 = vadd.f32 %v312, %v727
    %729 = vmatmul.bf16.gmra.mxu0 %v570
    %v730 = vpop.f32.mrf.mxu0
    %v731 = vadd.f32 %v312, %v730
    %v732 = vpop.f32.mrf.mxu0
    %v733 = vadd.f32 %v312, %v732
    %734 = vmatmul.bf16.gmra.mxu0 %v573
    %v735 = vpop.f32.mrf.mxu0
    %v736 = vadd.f32 %v312, %v735
    %v737 = vpop.f32.mrf.mxu0
    %v738 = vadd.f32 %v312, %v737
    %739 = vmatmul.bf16.gmra.mxu0 %v576
    %v740 = vpop.f32.mrf.mxu0
    %v741 = vadd.f32 %v312, %v740
    %v742 = vpop.f32.mrf.mxu0
    %v743 = vadd.f32 %v312, %v742
    %744 = vmatmul.bf16.gmra.mxu0 %v579
    %v745 = vpop.f32.mrf.mxu0
    %v746 = vadd.f32 %v312, %v745
    %v747 = vpop.f32.mrf.mxu0
    %v748 = vadd.f32 %v312, %v747
    %749 = vdwg.mxu0
    %vm750 = vcmp.ge.f32.partialorder %v591, 0.0
    %vm751 = vcmp.ge.f32.partialorder %v593, 0.0
    %vm752 = vcmp.ge.f32.partialorder %v596, 0.0
    %vm753 = vcmp.ge.f32.partialorder %v598, 0.0
    %vm754 = vcmp.ge.f32.partialorder %v601, 0.0
    %vm755 = vcmp.ge.f32.partialorder %v603, 0.0
    %vm756 = vcmp.ge.f32.partialorder %v606, 0.0
    %vm757 = vcmp.ge.f32.partialorder %v608, 0.0
    %vm758 = vcmp.ge.f32.partialorder %v611, 0.0
    %vm759 = vcmp.ge.f32.partialorder %v613, 0.0
    %vm760 = vcmp.ge.f32.partialorder %v616, 0.0
    %vm761 = vcmp.ge.f32.partialorder %v618, 0.0
    %vm762 = vcmp.ge.f32.partialorder %v621, 0.0
    %vm763 = vcmp.ge.f32.partialorder %v623, 0.0
    %vm764 = vcmp.ge.f32.partialorder %v626, 0.0
    %vm765 = vcmp.ge.f32.partialorder %v628, 0.0
    %vm766 = vcmp.ge.f32.partialorder %v631, 0.0
    %vm767 = vcmp.ge.f32.partialorder %v633, 0.0
    %vm768 = vcmp.ge.f32.partialorder %v636, 0.0
    %vm769 = vcmp.ge.f32.partialorder %v638, 0.0
    %vm770 = vcmp.ge.f32.partialorder %v641, 0.0
    %vm771 = vcmp.ge.f32.partialorder %v643, 0.0
    %vm772 = vcmp.ge.f32.partialorder %v646, 0.0
    %vm773 = vcmp.ge.f32.partialorder %v648, 0.0
    %vm774 = vcmp.ge.f32.partialorder %v651, 0.0
    %vm775 = vcmp.ge.f32.partialorder %v653, 0.0
    %vm776 = vcmp.ge.f32.partialorder %v656, 0.0
    %vm777 = vcmp.ge.f32.partialorder %v658, 0.0
    %vm778 = vcmp.ge.f32.partialorder %v661, 0.0
    %vm779 = vcmp.ge.f32.partialorder %v663, 0.0
    %vm780 = vcmp.ge.f32.partialorder %v666, 0.0
    %vm781 = vcmp.ge.f32.partialorder %v668, 0.0
    %vm782 = vcmp.ge.f32.partialorder %v671, 0.0
    %vm783 = vcmp.ge.f32.partialorder %v673, 0.0
    %vm784 = vcmp.ge.f32.partialorder %v676, 0.0
    %vm785 = vcmp.ge.f32.partialorder %v678, 0.0
    %vm786 = vcmp.ge.f32.partialorder %v681, 0.0
    %vm787 = vcmp.ge.f32.partialorder %v683, 0.0
    %vm788 = vcmp.ge.f32.partialorder %v686, 0.0
    %vm789 = vcmp.ge.f32.partialorder %v688, 0.0
    %vm790 = vcmp.ge.f32.partialorder %v691, 0.0
    %vm791 = vcmp.ge.f32.partialorder %v693, 0.0
    %vm792 = vcmp.ge.f32.partialorder %v696, 0.0
    %vm793 = vcmp.ge.f32.partialorder %v698, 0.0
    %vm794 = vcmp.ge.f32.partialorder %v701, 0.0
    %vm795 = vcmp.ge.f32.partialorder %v703, 0.0
    %vm796 = vcmp.ge.f32.partialorder %v706, 0.0
    %vm797 = vcmp.ge.f32.partialorder %v708, 0.0
    %vm798 = vcmp.ge.f32.partialorder %v711, 0.0
    %vm799 = vcmp.ge.f32.partialorder %v713, 0.0
    %vm800 = vcmp.ge.f32.partialorder %v716, 0.0
    %vm801 = vcmp.ge.f32.partialorder %v718, 0.0
    %vm802 = vcmp.ge.f32.partialorder %v721, 0.0
    %vm803 = vcmp.ge.f32.partialorder %v723, 0.0
    %vm804 = vcmp.ge.f32.partialorder %v726, 0.0
    %vm805 = vcmp.ge.f32.partialorder %v728, 0.0
    %vm806 = vcmp.ge.f32.partialorder %v731, 0.0
    %vm807 = vcmp.ge.f32.partialorder %v733, 0.0
    %vm808 = vcmp.ge.f32.partialorder %v736, 0.0
    %vm809 = vcmp.ge.f32.partialorder %v738, 0.0
    %vm810 = vcmp.ge.f32.partialorder %v741, 0.0
    %vm811 = vcmp.ge.f32.partialorder %v743, 0.0
    %vm812 = vcmp.ge.f32.partialorder %v746, 0.0
    %vm813 = vcmp.ge.f32.partialorder %v748, 0.0
    %v814 = vmul.f32 %v591, 0.2
    %v815 = vmul.f32 %v593, 0.2
    %v816 = vmul.f32 %v596, 0.2
    %v817 = vmul.f32 %v598, 0.2
    %v818 = vmul.f32 %v601, 0.2
    %v819 = vmul.f32 %v603, 0.2
    %v820 = vmul.f32 %v606, 0.2
    %v821 = vmul.f32 %v608, 0.2
    %v822 = vmul.f32 %v611, 0.2
    %v823 = vmul.f32 %v613, 0.2
    %v824 = vmul.f32 %v616, 0.2
    %v825 = vmul.f32 %v618, 0.2
    %v826 = vmul.f32 %v621, 0.2
    %v827 = vmul.f32 %v623, 0.2
    %v828 = vmul.f32 %v626, 0.2
    %v829 = vmul.f32 %v628, 0.2
    %v830 = vmul.f32 %v631, 0.2
    %v831 = vmul.f32 %v633, 0.2
    %v832 = vmul.f32 %v636, 0.2
    %v833 = vmul.f32 %v638, 0.2
    %v834 = vmul.f32 %v641, 0.2
    %v835 = vmul.f32 %v643, 0.2
    %v836 = vmul.f32 %v646, 0.2
    %v837 = vmul.f32 %v648, 0.2
    %v838 = vmul.f32 %v651, 0.2
    %v839 = vmul.f32 %v653, 0.2
    %v840 = vmul.f32 %v656, 0.2
    %v841 = vmul.f32 %v658, 0.2
    %v842 = vmul.f32 %v661, 0.2
    %v843 = vmul.f32 %v663, 0.2
    %v844 = vmul.f32 %v666, 0.2
    %v845 = vmul.f32 %v668, 0.2
    %v846 = vmul.f32 %v671, 0.2
    %v847 = vmul.f32 %v673, 0.2
    %v848 = vmul.f32 %v676, 0.2
    %v849 = vmul.f32 %v678, 0.2
    %v850 = vmul.f32 %v681, 0.2
    %v851 = vmul.f32 %v683, 0.2
    %v852 = vmul.f32 %v686, 0.2
    %v853 = vmul.f32 %v688, 0.2
    %v854 = vmul.f32 %v691, 0.2
    %v855 = vmul.f32 %v693, 0.2
    %v856 = vmul.f32 %v696, 0.2
    %v857 = vmul.f32 %v698, 0.2
    %v858 = vmul.f32 %v701, 0.2
    %v859 = vmul.f32 %v703, 0.2
    %v860 = vmul.f32 %v706, 0.2
    %v861 = vmul.f32 %v708, 0.2
    %v862 = vmul.f32 %v711, 0.2
    %v863 = vmul.f32 %v713, 0.2
    %v864 = vmul.f32 %v716, 0.2
    %v865 = vmul.f32 %v718, 0.2
    %v866 = vmul.f32 %v721, 0.2
    %v867 = vmul.f32 %v723, 0.2
    %v868 = vmul.f32 %v726, 0.2
    %v869 = vmul.f32 %v728, 0.2
    %v870 = vmul.f32 %v731, 0.2
    %v871 = vmul.f32 %v733, 0.2
    %v872 = vmul.f32 %v736, 0.2
    %v873 = vmul.f32 %v738, 0.2
    %v874 = vmul.f32 %v741, 0.2
    %v875 = vmul.f32 %v743, 0.2
    %v876 = vmul.f32 %v746, 0.2
    %v877 = vmul.f32 %v748, 0.2
    %v878 = vsel %vm750, %v591, %v814
    %v879 = vsel %vm751, %v593, %v815
    %v880 = vsel %vm752, %v596, %v816
    %v881 = vsel %vm753, %v598, %v817
    %v882 = vsel %vm754, %v601, %v818
    %v883 = vsel %vm755, %v603, %v819
    %v884 = vsel %vm756, %v606, %v820
    %v885 = vsel %vm757, %v608, %v821
    %v886 = vsel %vm758, %v611, %v822
    %v887 = vsel %vm759, %v613, %v823
    %v888 = vsel %vm760, %v616, %v824
    %v889 = vsel %vm761, %v618, %v825
    %v890 = vsel %vm762, %v621, %v826
    %v891 = vsel %vm763, %v623, %v827
    %v892 = vsel %vm764, %v626, %v828
    %v893 = vsel %vm765, %v628, %v829
    %v894 = vsel %vm766, %v631, %v830
    %v895 = vsel %vm767, %v633, %v831
    %v896 = vsel %vm768, %v636, %v832
    %v897 = vsel %vm769, %v638, %v833
    %v898 = vsel %vm770, %v641, %v834
    %v899 = vsel %vm771, %v643, %v835
    %v900 = vsel %vm772, %v646, %v836
    %v901 = vsel %vm773, %v648, %v837
    %v902 = vsel %vm774, %v651, %v838
    %v903 = vsel %vm775, %v653, %v839
    %v904 = vsel %vm776, %v656, %v840
    %v905 = vsel %vm777, %v658, %v841
    %v906 = vsel %vm778, %v661, %v842
    %v907 = vsel %vm779, %v663, %v843
    %v908 = vsel %vm780, %v666, %v844
    %v909 = vsel %vm781, %v668, %v845
    %v910 = vsel %vm782, %v671, %v846
    %v911 = vsel %vm783, %v673, %v847
    %v912 = vsel %vm784, %v676, %v848
    %v913 = vsel %vm785, %v678, %v849
    %v914 = vsel %vm786, %v681, %v850
    %v915 = vsel %vm787, %v683, %v851
    %v916 = vsel %vm788, %v686, %v852
    %v917 = vsel %vm789, %v688, %v853
    %v918 = vsel %vm790, %v691, %v854
    %v919 = vsel %vm791, %v693, %v855
    %v920 = vsel %vm792, %v696, %v856
    %v921 = vsel %vm793, %v698, %v857
    %v922 = vsel %vm794, %v701, %v858
    %v923 = vsel %vm795, %v703, %v859
    %v924 = vsel %vm796, %v706, %v860
    %v925 = vsel %vm797, %v708, %v861
    %v926 = vsel %vm798, %v711, %v862
    %v927 = vsel %vm799, %v713, %v863
    %v928 = vsel %vm800, %v716, %v864
    %v929 = vsel %vm801, %v718, %v865
    %v930 = vsel %vm802, %v721, %v866
    %v931 = vsel %vm803, %v723, %v867
    %v932 = vsel %vm804, %v726, %v868
    %v933 = vsel %vm805, %v728, %v869
    %v934 = vsel %vm806, %v731, %v870
    %v935 = vsel %vm807, %v733, %v871
    %v936 = vsel %vm808, %v736, %v872
    %v937 = vsel %vm809, %v738, %v873
    %v938 = vsel %vm810, %v741, %v874
    %v939 = vsel %vm811, %v743, %v875
    %v940 = vsel %vm812, %v746, %v876
    %v941 = vsel %vm813, %v748, %v877
    %942 = vst.msk [vmem:[%s49 + $0x8] sm:$0xff] %vm31, %v878
    %943 = vst.msk [vmem:[%s49 + $0x10] sm:$0xff] %vm31, %v879
    %944 = vst.msk [vmem:[%s49 + $0x28] sm:$0xff] %vm31, %v880
    %945 = vst.msk [vmem:[%s49 + $0x30] sm:$0xff] %vm31, %v881
    %946 = vst.msk [vmem:[%s49 + $0x48] sm:$0xff] %vm31, %v882
    %947 = vst.msk [vmem:[%s49 + $0x50] sm:$0xff] %vm31, %v883
    %948 = vst.msk [vmem:[%s49 + $0x68] sm:$0xff] %vm31, %v884
    %949 = vst.msk [vmem:[%s49 + $0x70] sm:$0xff] %vm31, %v885
    %950 = vst.msk [vmem:[%s49 + $0x88] sm:$0xff] %vm31, %v886
    %951 = vst.msk [vmem:[%s49 + $0x90] sm:$0xff] %vm31, %v887
    %952 = vst.msk [vmem:[%s49 + $0xa8] sm:$0xff] %vm31, %v888
    %953 = vst.msk [vmem:[%s49 + $0xb0] sm:$0xff] %vm31, %v889
    %954 = vst.msk [vmem:[%s49 + $0xc8] sm:$0xff] %vm31, %v890
    %955 = vst.msk [vmem:[%s49 + $0xd0] sm:$0xff] %vm31, %v891
    %956 = vst.msk [vmem:[%s49 + $0xe8] sm:$0xff] %vm31, %v892
    %957 = vst.msk [vmem:[%s49 + $0xf0] sm:$0xff] %vm31, %v893
    %958 = vst.msk [vmem:[%s49 + $0x108] sm:$0xff] %vm31, %v894
    %959 = vst.msk [vmem:[%s49 + $0x110] sm:$0xff] %vm31, %v895
    %960 = vst.msk [vmem:[%s49 + $0x128] sm:$0xff] %vm31, %v896
    %961 = vst.msk [vmem:[%s49 + $0x130] sm:$0xff] %vm31, %v897
    %962 = vst.msk [vmem:[%s49 + $0x148] sm:$0xff] %vm31, %v898
    %963 = vst.msk [vmem:[%s49 + $0x150] sm:$0xff] %vm31, %v899
    %964 = vst.msk [vmem:[%s49 + $0x168] sm:$0xff] %vm31, %v900
    %965 = vst.msk [vmem:[%s49 + $0x170] sm:$0xff] %vm31, %v901
    %966 = vst.msk [vmem:[%s49 + $0x188] sm:$0xff] %vm31, %v902
    %967 = vst.msk [vmem:[%s49 + $0x190] sm:$0xff] %vm31, %v903
    %968 = vst.msk [vmem:[%s49 + $0x1a8] sm:$0xff] %vm31, %v904
    %969 = vst.msk [vmem:[%s49 + $0x1b0] sm:$0xff] %vm31, %v905
    %970 = vst.msk [vmem:[%s49 + $0x1c8] sm:$0xff] %vm31, %v906
    %971 = vst.msk [vmem:[%s49 + $0x1d0] sm:$0xff] %vm31, %v907
    %972 = vst.msk [vmem:[%s49 + $0x1e8] sm:$0xff] %vm31, %v908
    %973 = vst.msk [vmem:[%s49 + $0x1f0] sm:$0xff] %vm31, %v909
    %974 = vst.msk [vmem:[%s49 + $0x248] sm:$0xff] %vm31, %v910
    %975 = vst.msk [vmem:[%s49 + $0x250] sm:$0xff] %vm31, %v911
    %976 = vst.msk [vmem:[%s49 + $0x268] sm:$0xff] %vm31, %v912
    %977 = vst.msk [vmem:[%s49 + $0x270] sm:$0xff] %vm31, %v913
    %978 = vst.msk [vmem:[%s49 + $0x288] sm:$0xff] %vm31, %v914
    %979 = vst.msk [vmem:[%s49 + $0x290] sm:$0xff] %vm31, %v915
    %980 = vst.msk [vmem:[%s49 + $0x2a8] sm:$0xff] %vm31, %v916
    %981 = vst.msk [vmem:[%s49 + $0x2b0] sm:$0xff] %vm31, %v917
    %982 = vst.msk [vmem:[%s49 + $0x2c8] sm:$0xff] %vm31, %v918
    %983 = vst.msk [vmem:[%s49 + $0x2d0] sm:$0xff] %vm31, %v919
    %984 = vst.msk [vmem:[%s49 + $0x2e8] sm:$0xff] %vm31, %v920
    %985 = vst.msk [vmem:[%s49 + $0x2f0] sm:$0xff] %vm31, %v921
    %986 = vst.msk [vmem:[%s49 + $0x308] sm:$0xff] %vm31, %v922
    %987 = vst.msk [vmem:[%s49 + $0x310] sm:$0xff] %vm31, %v923
    %988 = vst.msk [vmem:[%s49 + $0x328] sm:$0xff] %vm31, %v924
    %989 = vst.msk [vmem:[%s49 + $0x330] sm:$0xff] %vm31, %v925
    %990 = vst.msk [vmem:[%s49 + $0x348] sm:$0xff] %vm31, %v926
    %991 = vst.msk [vmem:[%s49 + $0x350] sm:$0xff] %vm31, %v927
    %992 = vst.msk [vmem:[%s49 + $0x368] sm:$0xff] %vm31, %v928
    %993 = vst.msk [vmem:[%s49 + $0x370] sm:$0xff] %vm31, %v929
    %994 = vst.msk [vmem:[%s49 + $0x388] sm:$0xff] %vm31, %v930
    %995 = vst.msk [vmem:[%s49 + $0x390] sm:$0xff] %vm31, %v931
    %996 = vst.msk [vmem:[%s49 + $0x3a8] sm:$0xff] %vm31, %v932
    %997 = vst.msk [vmem:[%s49 + $0x3b0] sm:$0xff] %vm31, %v933
    %998 = vst.msk [vmem:[%s49 + $0x3c8] sm:$0xff] %vm31, %v934
    %999 = vst.msk [vmem:[%s49 + $0x3d0] sm:$0xff] %vm31, %v935
    %1000 = vst.msk [vmem:[%s49 + $0x3e8] sm:$0xff] %vm31, %v936
    %1001 = vst.msk [vmem:[%s49 + $0x3f0] sm:$0xff] %vm31, %v937
    %1002 = vst.msk [vmem:[%s49 + $0x408] sm:$0xff] %vm31, %v938
    %1003 = vst.msk [vmem:[%s49 + $0x410] sm:$0xff] %vm31, %v939
    %1004 = vst.msk [vmem:[%s49 + $0x428] sm:$0xff] %vm31, %v940
    %1005 = vst.msk [vmem:[%s49 + $0x430] sm:$0xff] %vm31, %v941
    %v1006 = vld [vmem:[#allocation2 + $0x7] sm:$0xff]
    %v1007 = vld [vmem:[#allocation2 + $0xf] sm:$0xff]
    %v1008 = vld [vmem:[#allocation2 + $0x27] sm:$0xff]
    %v1009 = vld [vmem:[#allocation2 + $0x2f] sm:$0xff]
    %v1010 = vld [vmem:[#allocation2 + $0x47] sm:$0xff]
    %v1011 = vld [vmem:[#allocation2 + $0x4f] sm:$0xff]
    %v1012 = vld [vmem:[#allocation2 + $0x67] sm:$0xff]
    %v1013 = vld [vmem:[#allocation2 + $0x6f] sm:$0xff]
    %v1014 = vld [vmem:[#allocation2 + $0x87] sm:$0xff]
    %v1015 = vld [vmem:[#allocation2 + $0x8f] sm:$0xff]
    %v1016 = vld [vmem:[#allocation2 + $0xa7] sm:$0xff]
    %v1017 = vld [vmem:[#allocation2 + $0xaf] sm:$0xff]
    %v1018 = vld [vmem:[#allocation2 + $0xc7] sm:$0xff]
    %v1019 = vld [vmem:[#allocation2 + $0xcf] sm:$0xff]
    %v1020 = vld [vmem:[#allocation2 + $0xe7] sm:$0xff]
    %v1021 = vld [vmem:[#allocation2 + $0xef] sm:$0xff]
    %v1022 = vld [vmem:[#allocation2 + $0x107] sm:$0xff]
    %v1023 = vld [vmem:[#allocation2 + $0x10f] sm:$0xff]
    %v1024 = vld [vmem:[#allocation2 + $0x127] sm:$0xff]
    %v1025 = vld [vmem:[#allocation2 + $0x12f] sm:$0xff]
    %v1026 = vld [vmem:[#allocation2 + $0x147] sm:$0xff]
    %v1027 = vld [vmem:[#allocation2 + $0x14f] sm:$0xff]
    %v1028 = vld [vmem:[#allocation2 + $0x167] sm:$0xff]
    %v1029 = vld [vmem:[#allocation2 + $0x16f] sm:$0xff]
    %v1030 = vld [vmem:[#allocation2 + $0x187] sm:$0xff]
    %v1031 = vld [vmem:[#allocation2 + $0x18f] sm:$0xff]
    %v1032 = vld [vmem:[#allocation2 + $0x1a7] sm:$0xff]
    %v1033 = vld [vmem:[#allocation2 + $0x1af] sm:$0xff]
    %v1034 = vld [vmem:[#allocation2 + $0x1c7] sm:$0xff]
    %v1035 = vld [vmem:[#allocation2 + $0x1cf] sm:$0xff]
    %v1036 = vld [vmem:[#allocation2 + $0x1e7] sm:$0xff]
    %v1037 = vld [vmem:[#allocation2 + $0x1ef] sm:$0xff]
    %v1038 = vld [vmem:[#allocation2 + $0x247] sm:$0xff]
    %v1039 = vld [vmem:[#allocation2 + $0x24f] sm:$0xff]
    %v1040 = vld [vmem:[#allocation2 + $0x267] sm:$0xff]
    %v1041 = vld [vmem:[#allocation2 + $0x26f] sm:$0xff]
    %v1042 = vld [vmem:[#allocation2 + $0x287] sm:$0xff]
    %v1043 = vld [vmem:[#allocation2 + $0x28f] sm:$0xff]
    %v1044 = vld [vmem:[#allocation2 + $0x2a7] sm:$0xff]
    %v1045 = vld [vmem:[#allocation2 + $0x2af] sm:$0xff]
    %v1046 = vld [vmem:[#allocation2 + $0x2c7] sm:$0xff]
    %v1047 = vld [vmem:[#allocation2 + $0x2cf] sm:$0xff]
    %v1048 = vld [vmem:[#allocation2 + $0x2e7] sm:$0xff]
    %v1049 = vld [vmem:[#allocation2 + $0x2ef] sm:$0xff]
    %v1050 = vld [vmem:[#allocation2 + $0x307] sm:$0xff]
    %v1051 = vld [vmem:[#allocation2 + $0x30f] sm:$0xff]
    %v1052 = vld [vmem:[#allocation2 + $0x327] sm:$0xff]
    %v1053 = vld [vmem:[#allocation2 + $0x32f] sm:$0xff]
    %v1054 = vld [vmem:[#allocation2 + $0x347] sm:$0xff]
    %v1055 = vld [vmem:[#allocation2 + $0x34f] sm:$0xff]
    %v1056 = vld [vmem:[#allocation2 + $0x367] sm:$0xff]
    %v1057 = vld [vmem:[#allocation2 + $0x36f] sm:$0xff]
    %v1058 = vld [vmem:[#allocation2 + $0x387] sm:$0xff]
    %v1059 = vld [vmem:[#allocation2 + $0x38f] sm:$0xff]
    %v1060 = vld [vmem:[#allocation2 + $0x3a7] sm:$0xff]
    %v1061 = vld [vmem:[#allocation2 + $0x3af] sm:$0xff]
    %v1062 = vld [vmem:[#allocation2 + $0x3c7] sm:$0xff]
    %v1063 = vld [vmem:[#allocation2 + $0x3cf] sm:$0xff]
    %v1064 = vld [vmem:[#allocation2 + $0x3e7] sm:$0xff]
    %v1065 = vld [vmem:[#allocation2 + $0x3ef] sm:$0xff]
    %v1066 = vld [vmem:[#allocation2 + $0x407] sm:$0xff]
    %v1067 = vld [vmem:[#allocation2 + $0x40f] sm:$0xff]
    %v1068 = vld [vmem:[#allocation2 + $0x427] sm:$0xff]
    %v1069 = vld [vmem:[#allocation2 + $0x42f] sm:$0xff]
    %v1070 = vpack.c.bf16 %v1007, %v1006
    %v1071 = vpack.c.bf16 %v1009, %v1008
    %v1072 = vpack.c.bf16 %v1011, %v1010
    %v1073 = vpack.c.bf16 %v1013, %v1012
    %v1074 = vpack.c.bf16 %v1015, %v1014
    %v1075 = vpack.c.bf16 %v1017, %v1016
    %v1076 = vpack.c.bf16 %v1019, %v1018
    %v1077 = vpack.c.bf16 %v1021, %v1020
    %v1078 = vpack.c.bf16 %v1023, %v1022
    %v1079 = vpack.c.bf16 %v1025, %v1024
    %v1080 = vpack.c.bf16 %v1027, %v1026
    %v1081 = vpack.c.bf16 %v1029, %v1028
    %v1082 = vpack.c.bf16 %v1031, %v1030
    %v1083 = vpack.c.bf16 %v1033, %v1032
    %v1084 = vpack.c.bf16 %v1035, %v1034
    %v1085 = vpack.c.bf16 %v1037, %v1036
    %v1086 = vpack.c.bf16 %v1039, %v1038
    %v1087 = vpack.c.bf16 %v1041, %v1040
    %v1088 = vpack.c.bf16 %v1043, %v1042
    %v1089 = vpack.c.bf16 %v1045, %v1044
    %v1090 = vpack.c.bf16 %v1047, %v1046
    %v1091 = vpack.c.bf16 %v1049, %v1048
    %v1092 = vpack.c.bf16 %v1051, %v1050
    %v1093 = vpack.c.bf16 %v1053, %v1052
    %v1094 = vpack.c.bf16 %v1055, %v1054
    %v1095 = vpack.c.bf16 %v1057, %v1056
    %v1096 = vpack.c.bf16 %v1059, %v1058
    %v1097 = vpack.c.bf16 %v1061, %v1060
    %v1098 = vpack.c.bf16 %v1063, %v1062
    %v1099 = vpack.c.bf16 %v1065, %v1064
    %v1100 = vpack.c.bf16 %v1067, %v1066
    %v1101 = vpack.c.bf16 %v1069, %v1068
    %v1102 = vld [vmem:[%s2] sm:$0xf]
    %v1103 = vld [vmem:[%s2 + $0x4] sm:$0xf]
    %v1104 = vld [vmem:[%s2 + $0x8] sm:$0xf]
    %v1105 = vld [vmem:[%s2 + $0xc] sm:$0xf]
    %v1110 = vunpack.c.l.b16 %v1102
    %v1111 = vunpack.c.l.b16 %v1103
    %v1112 = vunpack.c.l.b16 %v1104
    %v1113 = vunpack.c.l.b16 %v1105
    %v1114 = vpack.c.b16 %v1111, %v1110
    %v1115 = vpack.c.b16 %v1113, %v1112
    %v1119 = vsel %vm31, %v1070, 0
    %v1122 = vsel %vm31, %v1071, 0
    %v1125 = vsel %vm31, %v1072, 0
    %v1128 = vsel %vm31, %v1073, 0
    %v1131 = vsel %vm31, %v1074, 0
    %v1134 = vsel %vm31, %v1075, 0
    %v1137 = vsel %vm31, %v1076, 0
    %v1140 = vsel %vm31, %v1077, 0
    %v1143 = vsel %vm31, %v1078, 0
    %v1146 = vsel %vm31, %v1079, 0
    %v1149 = vsel %vm31, %v1080, 0
    %v1152 = vsel %vm31, %v1081, 0
    %v1155 = vsel %vm31, %v1082, 0
    %v1158 = vsel %vm31, %v1083, 0
    %v1161 = vsel %vm31, %v1084, 0
    %v1164 = vsel %vm31, %v1085, 0
    %v1167 = vsel %vm31, %v1086, 0
    %v1170 = vsel %vm31, %v1087, 0
    %v1173 = vsel %vm31, %v1088, 0
    %v1176 = vsel %vm31, %v1089, 0
    %v1179 = vsel %vm31, %v1090, 0
    %v1182 = vsel %vm31, %v1091, 0
    %v1185 = vsel %vm31, %v1092, 0
    %v1188 = vsel %vm31, %v1093, 0
    %v1191 = vsel %vm31, %v1094, 0
    %v1194 = vsel %vm31, %v1095, 0
    %v1197 = vsel %vm31, %v1096, 0
    %v1200 = vsel %vm31, %v1097, 0
    %v1203 = vsel %vm31, %v1098, 0
    %v1206 = vsel %vm31, %v1099, 0
    %v1209 = vsel %vm31, %v1100, 0
    %v1212 = vsel %vm31, %v1101, 0
    %1214 = vmatpush.bf16.msra.mxu0 0
    %1215 = vmatpush.bf16.msra.mxu0 0
    %1216 = vmatpush.bf16.msra.mxu0 0
    %1217 = vmatpush.bf16.msra.mxu0 0
    %1218 = vmatpush.bf16.msra.mxu0 0
    %1219 = vmatpush.bf16.msra.mxu0 0
    %1220 = vmatpush.bf16.msra.mxu0 %v1115
    %1221 = vmatpush.bf16.msra.mxu0 %v1114
    %1222 = vmatmul.bf16.gmra.mxu0 %v1119
    %v1223 = vpop.f32.mrf.mxu0
    %v1224 = vadd.f32 0.0, %v1223
    %v1225 = vpop.f32.mrf.mxu0
    %v1226 = vadd.f32 0.0, %v1225
    %1227 = vmatmul.bf16.gmra.mxu0 %v1122
    %v1228 = vpop.f32.mrf.mxu0
    %v1229 = vadd.f32 0.0, %v1228
    %v1230 = vpop.f32.mrf.mxu0
    %v1231 = vadd.f32 0.0, %v1230
    %1232 = vmatmul.bf16.gmra.mxu0 %v1125
    %v1233 = vpop.f32.mrf.mxu0
    %v1234 = vadd.f32 0.0, %v1233
    %v1235 = vpop.f32.mrf.mxu0
    %v1236 = vadd.f32 0.0, %v1235
    %1237 = vmatmul.bf16.gmra.mxu0 %v1128
    %v1238 = vpop.f32.mrf.mxu0
    %v1239 = vadd.f32 0.0, %v1238
    %v1240 = vpop.f32.mrf.mxu0
    %v1241 = vadd.f32 0.0, %v1240
    %1242 = vmatmul.bf16.gmra.mxu0 %v1131
    %v1243 = vpop.f32.mrf.mxu0
    %v1244 = vadd.f32 0.0, %v1243
    %v1245 = vpop.f32.mrf.mxu0
    %v1246 = vadd.f32 0.0, %v1245
    %1247 = vmatmul.bf16.gmra.mxu0 %v1134
    %v1248 = vpop.f32.mrf.mxu0
    %v1249 = vadd.f32 0.0, %v1248
    %v1250 = vpop.f32.mrf.mxu0
    %v1251 = vadd.f32 0.0, %v1250
    %1252 = vmatmul.bf16.gmra.mxu0 %v1137
    %v1253 = vpop.f32.mrf.mxu0
    %v1254 = vadd.f32 0.0, %v1253
    %v1255 = vpop.f32.mrf.mxu0
    %v1256 = vadd.f32 0.0, %v1255
    %1257 = vmatmul.bf16.gmra.mxu0 %v1140
    %v1258 = vpop.f32.mrf.mxu0
    %v1259 = vadd.f32 0.0, %v1258
    %v1260 = vpop.f32.mrf.mxu0
    %v1261 = vadd.f32 0.0, %v1260
    %1262 = vmatmul.bf16.gmra.mxu0 %v1143
    %v1263 = vpop.f32.mrf.mxu0
    %v1264 = vadd.f32 0.0, %v1263
    %v1265 = vpop.f32.mrf.mxu0
    %v1266 = vadd.f32 0.0, %v1265
    %1267 = vmatmul.bf16.gmra.mxu0 %v1146
    %v1268 = vpop.f32.mrf.mxu0
    %v1269 = vadd.f32 0.0, %v1268
    %v1270 = vpop.f32.mrf.mxu0
    %v1271 = vadd.f32 0.0, %v1270
    %1272 = vmatmul.bf16.gmra.mxu0 %v1149
    %v1273 = vpop.f32.mrf.mxu0
    %v1274 = vadd.f32 0.0, %v1273
    %v1275 = vpop.f32.mrf.mxu0
    %v1276 = vadd.f32 0.0, %v1275
    %1277 = vmatmul.bf16.gmra.mxu0 %v1152
    %v1278 = vpop.f32.mrf.mxu0
    %v1279 = vadd.f32 0.0, %v1278
    %v1280 = vpop.f32.mrf.mxu0
    %v1281 = vadd.f32 0.0, %v1280
    %1282 = vmatmul.bf16.gmra.mxu0 %v1155
    %v1283 = vpop.f32.mrf.mxu0
    %v1284 = vadd.f32 0.0, %v1283
    %v1285 = vpop.f32.mrf.mxu0
    %v1286 = vadd.f32 0.0, %v1285
    %1287 = vmatmul.bf16.gmra.mxu0 %v1158
    %v1288 = vpop.f32.mrf.mxu0
    %v1289 = vadd.f32 0.0, %v1288
    %v1290 = vpop.f32.mrf.mxu0
    %v1291 = vadd.f32 0.0, %v1290
    %1292 = vmatmul.bf16.gmra.mxu0 %v1161
    %v1293 = vpop.f32.mrf.mxu0
    %v1294 = vadd.f32 0.0, %v1293
    %v1295 = vpop.f32.mrf.mxu0
    %v1296 = vadd.f32 0.0, %v1295
    %1297 = vmatmul.bf16.gmra.mxu0 %v1164
    %v1298 = vpop.f32.mrf.mxu0
    %v1299 = vadd.f32 0.0, %v1298
    %v1300 = vpop.f32.mrf.mxu0
    %v1301 = vadd.f32 0.0, %v1300
    %1302 = vmatmul.bf16.gmra.mxu0 %v1167
    %v1303 = vpop.f32.mrf.mxu0
    %v1304 = vadd.f32 0.0, %v1303
    %v1305 = vpop.f32.mrf.mxu0
    %v1306 = vadd.f32 0.0, %v1305
    %1307 = vmatmul.bf16.gmra.mxu0 %v1170
    %v1308 = vpop.f32.mrf.mxu0
    %v1309 = vadd.f32 0.0, %v1308
    %v1310 = vpop.f32.mrf.mxu0
    %v1311 = vadd.f32 0.0, %v1310
    %1312 = vmatmul.bf16.gmra.mxu0 %v1173
    %v1313 = vpop.f32.mrf.mxu0
    %v1314 = vadd.f32 0.0, %v1313
    %v1315 = vpop.f32.mrf.mxu0
    %v1316 = vadd.f32 0.0, %v1315
    %1317 = vmatmul.bf16.gmra.mxu0 %v1176
    %v1318 = vpop.f32.mrf.mxu0
    %v1319 = vadd.f32 0.0, %v1318
    %v1320 = vpop.f32.mrf.mxu0
    %v1321 = vadd.f32 0.0, %v1320
    %1322 = vmatmul.bf16.gmra.mxu0 %v1179
    %v1323 = vpop.f32.mrf.mxu0
    %v1324 = vadd.f32 0.0, %v1323
    %v1325 = vpop.f32.mrf.mxu0
    %v1326 = vadd.f32 0.0, %v1325
    %1327 = vmatmul.bf16.gmra.mxu0 %v1182
    %v1328 = vpop.f32.mrf.mxu0
    %v1329 = vadd.f32 0.0, %v1328
    %v1330 = vpop.f32.mrf.mxu0
    %v1331 = vadd.f32 0.0, %v1330
    %1332 = vmatmul.bf16.gmra.mxu0 %v1185
    %v1333 = vpop.f32.mrf.mxu0
    %v1334 = vadd.f32 0.0, %v1333
    %v1335 = vpop.f32.mrf.mxu0
    %v1336 = vadd.f32 0.0, %v1335
    %1337 = vmatmul.bf16.gmra.mxu0 %v1188
    %v1338 = vpop.f32.mrf.mxu0
    %v1339 = vadd.f32 0.0, %v1338
    %v1340 = vpop.f32.mrf.mxu0
    %v1341 = vadd.f32 0.0, %v1340
    %1342 = vmatmul.bf16.gmra.mxu0 %v1191
    %v1343 = vpop.f32.mrf.mxu0
    %v1344 = vadd.f32 0.0, %v1343
    %v1345 = vpop.f32.mrf.mxu0
    %v1346 = vadd.f32 0.0, %v1345
    %1347 = vmatmul.bf16.gmra.mxu0 %v1194
    %v1348 = vpop.f32.mrf.mxu0
    %v1349 = vadd.f32 0.0, %v1348
    %v1350 = vpop.f32.mrf.mxu0
    %v1351 = vadd.f32 0.0, %v1350
    %1352 = vmatmul.bf16.gmra.mxu0 %v1197
    %v1353 = vpop.f32.mrf.mxu0
    %v1354 = vadd.f32 0.0, %v1353
    %v1355 = vpop.f32.mrf.mxu0
    %v1356 = vadd.f32 0.0, %v1355
    %1357 = vmatmul.bf16.gmra.mxu0 %v1200
    %v1358 = vpop.f32.mrf.mxu0
    %v1359 = vadd.f32 0.0, %v1358
    %v1360 = vpop.f32.mrf.mxu0
    %v1361 = vadd.f32 0.0, %v1360
    %1362 = vmatmul.bf16.gmra.mxu0 %v1203
    %v1363 = vpop.f32.mrf.mxu0
    %v1364 = vadd.f32 0.0, %v1363
    %v1365 = vpop.f32.mrf.mxu0
    %v1366 = vadd.f32 0.0, %v1365
    %1367 = vmatmul.bf16.gmra.mxu0 %v1206
    %v1368 = vpop.f32.mrf.mxu0
    %v1369 = vadd.f32 0.0, %v1368
    %v1370 = vpop.f32.mrf.mxu0
    %v1371 = vadd.f32 0.0, %v1370
    %1372 = vmatmul.bf16.gmra.mxu0 %v1209
    %v1373 = vpop.f32.mrf.mxu0
    %v1374 = vadd.f32 0.0, %v1373
    %v1375 = vpop.f32.mrf.mxu0
    %v1376 = vadd.f32 0.0, %v1375
    %1377 = vmatmul.bf16.gmra.mxu0 %v1212
    %v1378 = vpop.f32.mrf.mxu0
    %v1379 = vadd.f32 0.0, %v1378
    %v1380 = vpop.f32.mrf.mxu0
    %v1381 = vadd.f32 0.0, %v1380
    %1382 = vdwg.mxu0
    %1383 = vst.msk [vmem:[#allocation5] sm:$0xff] %vm31, %v1224
    %1384 = vst.msk [vmem:[#allocation5 + $0x8] sm:$0xff] %vm31, %v1226
    %1385 = vst.msk [vmem:[#allocation5 + $0x10] sm:$0xff] %vm31, %v1229
    %1386 = vst.msk [vmem:[#allocation5 + $0x18] sm:$0xff] %vm31, %v1231
    %1387 = vst.msk [vmem:[#allocation5 + $0x20] sm:$0xff] %vm31, %v1234
    %1388 = vst.msk [vmem:[#allocation5 + $0x28] sm:$0xff] %vm31, %v1236
    %1389 = vst.msk [vmem:[#allocation5 + $0x30] sm:$0xff] %vm31, %v1239
    %1390 = vst.msk [vmem:[#allocation5 + $0x38] sm:$0xff] %vm31, %v1241
    %1391 = vst.msk [vmem:[#allocation5 + $0x40] sm:$0xff] %vm31, %v1244
    %1392 = vst.msk [vmem:[#allocation5 + $0x48] sm:$0xff] %vm31, %v1246
    %1393 = vst.msk [vmem:[#allocation5 + $0x50] sm:$0xff] %vm31, %v1249
    %1394 = vst.msk [vmem:[#allocation5 + $0x58] sm:$0xff] %vm31, %v1251
    %1395 = vst.msk [vmem:[#allocation5 + $0x60] sm:$0xff] %vm31, %v1254
    %1396 = vst.msk [vmem:[#allocation5 + $0x68] sm:$0xff] %vm31, %v1256
    %1397 = vst.msk [vmem:[#allocation5 + $0x70] sm:$0xff] %vm31, %v1259
    %1398 = vst.msk [vmem:[#allocation5 + $0x78] sm:$0xff] %vm31, %v1261
    %1399 = vst.msk [vmem:[#allocation5 + $0x80] sm:$0xff] %vm31, %v1264
    %1400 = vst.msk [vmem:[#allocation5 + $0x88] sm:$0xff] %vm31, %v1266
    %1401 = vst.msk [vmem:[#allocation5 + $0x90] sm:$0xff] %vm31, %v1269
    %1402 = vst.msk [vmem:[#allocation5 + $0x98] sm:$0xff] %vm31, %v1271
    %1403 = vst.msk [vmem:[#allocation5 + $0xa0] sm:$0xff] %vm31, %v1274
    %1404 = vst.msk [vmem:[#allocation5 + $0xa8] sm:$0xff] %vm31, %v1276
    %1405 = vst.msk [vmem:[#allocation5 + $0xb0] sm:$0xff] %vm31, %v1279
    %1406 = vst.msk [vmem:[#allocation5 + $0xb8] sm:$0xff] %vm31, %v1281
    %1407 = vst.msk [vmem:[#allocation5 + $0xc0] sm:$0xff] %vm31, %v1284
    %1408 = vst.msk [vmem:[#allocation5 + $0xc8] sm:$0xff] %vm31, %v1286
    %1409 = vst.msk [vmem:[#allocation5 + $0xd0] sm:$0xff] %vm31, %v1289
    %1410 = vst.msk [vmem:[#allocation5 + $0xd8] sm:$0xff] %vm31, %v1291
    %1411 = vst.msk [vmem:[#allocation5 + $0xe0] sm:$0xff] %vm31, %v1294
    %1412 = vst.msk [vmem:[#allocation5 + $0xe8] sm:$0xff] %vm31, %v1296
    %1413 = vst.msk [vmem:[#allocation5 + $0xf0] sm:$0xff] %vm31, %v1299
    %1414 = vst.msk [vmem:[#allocation5 + $0xf8] sm:$0xff] %vm31, %v1301
    %1415 = vst.msk [vmem:[#allocation5 + $0x100] sm:$0xff] %vm31, %v1304
    %1416 = vst.msk [vmem:[#allocation5 + $0x108] sm:$0xff] %vm31, %v1306
    %1417 = vst.msk [vmem:[#allocation5 + $0x110] sm:$0xff] %vm31, %v1309
    %1418 = vst.msk [vmem:[#allocation5 + $0x118] sm:$0xff] %vm31, %v1311
    %1419 = vst.msk [vmem:[#allocation5 + $0x120] sm:$0xff] %vm31, %v1314
    %1420 = vst.msk [vmem:[#allocation5 + $0x128] sm:$0xff] %vm31, %v1316
    %1421 = vst.msk [vmem:[#allocation5 + $0x130] sm:$0xff] %vm31, %v1319
    %1422 = vst.msk [vmem:[#allocation5 + $0x138] sm:$0xff] %vm31, %v1321
    %1423 = vst.msk [vmem:[#allocation5 + $0x140] sm:$0xff] %vm31, %v1324
    %1424 = vst.msk [vmem:[#allocation5 + $0x148] sm:$0xff] %vm31, %v1326
    %1425 = vst.msk [vmem:[#allocation5 + $0x150] sm:$0xff] %vm31, %v1329
    %1426 = vst.msk [vmem:[#allocation5 + $0x158] sm:$0xff] %vm31, %v1331
    %1427 = vst.msk [vmem:[#allocation5 + $0x160] sm:$0xff] %vm31, %v1334
    %1428 = vst.msk [vmem:[#allocation5 + $0x168] sm:$0xff] %vm31, %v1336
    %1429 = vst.msk [vmem:[#allocation5 + $0x170] sm:$0xff] %vm31, %v1339
    %1430 = vst.msk [vmem:[#allocation5 + $0x178] sm:$0xff] %vm31, %v1341
    %1431 = vst.msk [vmem:[#allocation5 + $0x180] sm:$0xff] %vm31, %v1344
    %1432 = vst.msk [vmem:[#allocation5 + $0x188] sm:$0xff] %vm31, %v1346
    %1433 = vst.msk [vmem:[#allocation5 + $0x190] sm:$0xff] %vm31, %v1349
    %1434 = vst.msk [vmem:[#allocation5 + $0x198] sm:$0xff] %vm31, %v1351
    %1435 = vst.msk [vmem:[#allocation5 + $0x1a0] sm:$0xff] %vm31, %v1354
    %1436 = vst.msk [vmem:[#allocation5 + $0x1a8] sm:$0xff] %vm31, %v1356
    %1437 = vst.msk [vmem:[#allocation5 + $0x1b0] sm:$0xff] %vm31, %v1359
    %1438 = vst.msk [vmem:[#allocation5 + $0x1b8] sm:$0xff] %vm31, %v1361
    %1439 = vst.msk [vmem:[#allocation5 + $0x1c0] sm:$0xff] %vm31, %v1364
    %1440 = vst.msk [vmem:[#allocation5 + $0x1c8] sm:$0xff] %vm31, %v1366
    %1441 = vst.msk [vmem:[#allocation5 + $0x1d0] sm:$0xff] %vm31, %v1369
    %1442 = vst.msk [vmem:[#allocation5 + $0x1d8] sm:$0xff] %vm31, %v1371
    %1443 = vst.msk [vmem:[#allocation5 + $0x1e0] sm:$0xff] %vm31, %v1374
    %1444 = vst.msk [vmem:[#allocation5 + $0x1e8] sm:$0xff] %vm31, %v1376
    %1445 = vst.msk [vmem:[#allocation5 + $0x1f0] sm:$0xff] %vm31, %v1379
    %1446 = vst.msk [vmem:[#allocation5 + $0x1f8] sm:$0xff] %vm31, %v1381
    %v1447 = vld [vmem:[#allocation2 + $0x8] sm:$0xff]
    %v1448 = vld [vmem:[#allocation2 + $0x10] sm:$0xff]
    %v1449 = vld [vmem:[#allocation2 + $0x28] sm:$0xff]
    %v1450 = vld [vmem:[#allocation2 + $0x30] sm:$0xff]
    %v1451 = vld [vmem:[#allocation2 + $0x48] sm:$0xff]
    %v1452 = vld [vmem:[#allocation2 + $0x50] sm:$0xff]
    %v1453 = vld [vmem:[#allocation2 + $0x68] sm:$0xff]
    %v1454 = vld [vmem:[#allocation2 + $0x70] sm:$0xff]
    %v1455 = vld [vmem:[#allocation2 + $0x88] sm:$0xff]
    %v1456 = vld [vmem:[#allocation2 + $0x90] sm:$0xff]
    %v1457 = vld [vmem:[#allocation2 + $0xa8] sm:$0xff]
    %v1458 = vld [vmem:[#allocation2 + $0xb0] sm:$0xff]
    %v1459 = vld [vmem:[#allocation2 + $0xc8] sm:$0xff]
    %v1460 = vld [vmem:[#allocation2 + $0xd0] sm:$0xff]
    %v1461 = vld [vmem:[#allocation2 + $0xe8] sm:$0xff]
    %v1462 = vld [vmem:[#allocation2 + $0xf0] sm:$0xff]
    %v1463 = vld [vmem:[#allocation2 + $0x108] sm:$0xff]
    %v1464 = vld [vmem:[#allocation2 + $0x110] sm:$0xff]
    %v1465 = vld [vmem:[#allocation2 + $0x128] sm:$0xff]
    %v1466 = vld [vmem:[#allocation2 + $0x130] sm:$0xff]
    %v1467 = vld [vmem:[#allocation2 + $0x148] sm:$0xff]
    %v1468 = vld [vmem:[#allocation2 + $0x150] sm:$0xff]
    %v1469 = vld [vmem:[#allocation2 + $0x168] sm:$0xff]
    %v1470 = vld [vmem:[#allocation2 + $0x170] sm:$0xff]
    %v1471 = vld [vmem:[#allocation2 + $0x188] sm:$0xff]
    %v1472 = vld [vmem:[#allocation2 + $0x190] sm:$0xff]
    %v1473 = vld [vmem:[#allocation2 + $0x1a8] sm:$0xff]
    %v1474 = vld [vmem:[#allocation2 + $0x1b0] sm:$0xff]
    %v1475 = vld [vmem:[#allocation2 + $0x1c8] sm:$0xff]
    %v1476 = vld [vmem:[#allocation2 + $0x1d0] sm:$0xff]
    %v1477 = vld [vmem:[#allocation2 + $0x1e8] sm:$0xff]
    %v1478 = vld [vmem:[#allocation2 + $0x1f0] sm:$0xff]
    %v1479 = vld [vmem:[#allocation2 + $0x248] sm:$0xff]
    %v1480 = vld [vmem:[#allocation2 + $0x250] sm:$0xff]
    %v1481 = vld [vmem:[#allocation2 + $0x268] sm:$0xff]
    %v1482 = vld [vmem:[#allocation2 + $0x270] sm:$0xff]
    %v1483 = vld [vmem:[#allocation2 + $0x288] sm:$0xff]
    %v1484 = vld [vmem:[#allocation2 + $0x290] sm:$0xff]
    %v1485 = vld [vmem:[#allocation2 + $0x2a8] sm:$0xff]
    %v1486 = vld [vmem:[#allocation2 + $0x2b0] sm:$0xff]
    %v1487 = vld [vmem:[#allocation2 + $0x2c8] sm:$0xff]
    %v1488 = vld [vmem:[#allocation2 + $0x2d0] sm:$0xff]
    %v1489 = vld [vmem:[#allocation2 + $0x2e8] sm:$0xff]
    %v1490 = vld [vmem:[#allocation2 + $0x2f0] sm:$0xff]
    %v1491 = vld [vmem:[#allocation2 + $0x308] sm:$0xff]
    %v1492 = vld [vmem:[#allocation2 + $0x310] sm:$0xff]
    %v1493 = vld [vmem:[#allocation2 + $0x328] sm:$0xff]
    %v1494 = vld [vmem:[#allocation2 + $0x330] sm:$0xff]
    %v1495 = vld [vmem:[#allocation2 + $0x348] sm:$0xff]
    %v1496 = vld [vmem:[#allocation2 + $0x350] sm:$0xff]
    %v1497 = vld [vmem:[#allocation2 + $0x368] sm:$0xff]
    %v1498 = vld [vmem:[#allocation2 + $0x370] sm:$0xff]
    %v1499 = vld [vmem:[#allocation2 + $0x388] sm:$0xff]
    %v1500 = vld [vmem:[#allocation2 + $0x390] sm:$0xff]
    %v1501 = vld [vmem:[#allocation2 + $0x3a8] sm:$0xff]
    %v1502 = vld [vmem:[#allocation2 + $0x3b0] sm:$0xff]
    %v1503 = vld [vmem:[#allocation2 + $0x3c8] sm:$0xff]
    %v1504 = vld [vmem:[#allocation2 + $0x3d0] sm:$0xff]
    %v1505 = vld [vmem:[#allocation2 + $0x3e8] sm:$0xff]
    %v1506 = vld [vmem:[#allocation2 + $0x3f0] sm:$0xff]
    %v1507 = vld [vmem:[#allocation2 + $0x408] sm:$0xff]
    %v1508 = vld [vmem:[#allocation2 + $0x410] sm:$0xff]
    %v1509 = vld [vmem:[#allocation2 + $0x428] sm:$0xff]
    %v1510 = vld [vmem:[#allocation2 + $0x430] sm:$0xff]
    %v1511 = vpack.c.bf16 %v1448, %v1447
    %v1512 = vpack.c.bf16 %v1450, %v1449
    %v1513 = vpack.c.bf16 %v1452, %v1451
    %v1514 = vpack.c.bf16 %v1454, %v1453
    %v1515 = vpack.c.bf16 %v1456, %v1455
    %v1516 = vpack.c.bf16 %v1458, %v1457
    %v1517 = vpack.c.bf16 %v1460, %v1459
    %v1518 = vpack.c.bf16 %v1462, %v1461
    %v1519 = vpack.c.bf16 %v1464, %v1463
    %v1520 = vpack.c.bf16 %v1466, %v1465
    %v1521 = vpack.c.bf16 %v1468, %v1467
    %v1522 = vpack.c.bf16 %v1470, %v1469
    %v1523 = vpack.c.bf16 %v1472, %v1471
    %v1524 = vpack.c.bf16 %v1474, %v1473
    %v1525 = vpack.c.bf16 %v1476, %v1475
    %v1526 = vpack.c.bf16 %v1478, %v1477
    %v1527 = vpack.c.bf16 %v1480, %v1479
    %v1528 = vpack.c.bf16 %v1482, %v1481
    %v1529 = vpack.c.bf16 %v1484, %v1483
    %v1530 = vpack.c.bf16 %v1486, %v1485
    %v1531 = vpack.c.bf16 %v1488, %v1487
    %v1532 = vpack.c.bf16 %v1490, %v1489
    %v1533 = vpack.c.bf16 %v1492, %v1491
    %v1534 = vpack.c.bf16 %v1494, %v1493
    %v1535 = vpack.c.bf16 %v1496, %v1495
    %v1536 = vpack.c.bf16 %v1498, %v1497
    %v1537 = vpack.c.bf16 %v1500, %v1499
    %v1538 = vpack.c.bf16 %v1502, %v1501
    %v1539 = vpack.c.bf16 %v1504, %v1503
    %v1540 = vpack.c.bf16 %v1506, %v1505
    %v1541 = vpack.c.bf16 %v1508, %v1507
    %v1542 = vpack.c.bf16 %v1510, %v1509
    %s1543 = scalar_lea.vmem %s2, 16
    %v1544 = vld [vmem:[%s1543] sm:$0xf]
    %v1545 = vld [vmem:[%s1543 + $0x4] sm:$0xf]
    %v1546 = vld [vmem:[%s1543 + $0x8] sm:$0xf]
    %v1547 = vld [vmem:[%s1543 + $0xc] sm:$0xf]
    %v1552 = vunpack.c.l.b16 %v1544
    %v1553 = vunpack.c.l.b16 %v1545
    %v1554 = vunpack.c.l.b16 %v1546
    %v1555 = vunpack.c.l.b16 %v1547
    %v1556 = vpack.c.b16 %v1553, %v1552
    %v1557 = vpack.c.b16 %v1555, %v1554
    %v1561 = vsel %vm31, %v1511, 0
    %v1564 = vsel %vm31, %v1512, 0
    %v1567 = vsel %vm31, %v1513, 0
    %v1570 = vsel %vm31, %v1514, 0
    %v1573 = vsel %vm31, %v1515, 0
    %v1576 = vsel %vm31, %v1516, 0
    %v1579 = vsel %vm31, %v1517, 0
    %v1582 = vsel %vm31, %v1518, 0
    %v1585 = vsel %vm31, %v1519, 0
    %v1588 = vsel %vm31, %v1520, 0
    %v1591 = vsel %vm31, %v1521, 0
    %v1594 = vsel %vm31, %v1522, 0
    %v1597 = vsel %vm31, %v1523, 0
    %v1600 = vsel %vm31, %v1524, 0
    %v1603 = vsel %vm31, %v1525, 0
    %v1606 = vsel %vm31, %v1526, 0
    %v1609 = vsel %vm31, %v1527, 0
    %v1612 = vsel %vm31, %v1528, 0
    %v1615 = vsel %vm31, %v1529, 0
    %v1618 = vsel %vm31, %v1530, 0
    %v1621 = vsel %vm31, %v1531, 0
    %v1624 = vsel %vm31, %v1532, 0
    %v1627 = vsel %vm31, %v1533, 0
    %v1630 = vsel %vm31, %v1534, 0
    %v1633 = vsel %vm31, %v1535, 0
    %v1636 = vsel %vm31, %v1536, 0
    %v1639 = vsel %vm31, %v1537, 0
    %v1642 = vsel %vm31, %v1538, 0
    %v1645 = vsel %vm31, %v1539, 0
    %v1648 = vsel %vm31, %v1540, 0
    %v1651 = vsel %vm31, %v1541, 0
    %v1654 = vsel %vm31, %v1542, 0
    %1656 = vmatpush.bf16.msra.mxu0 0
    %1657 = vmatpush.bf16.msra.mxu0 0
    %1658 = vmatpush.bf16.msra.mxu0 0
    %1659 = vmatpush.bf16.msra.mxu0 0
    %1660 = vmatpush.bf16.msra.mxu0 0
    %1661 = vmatpush.bf16.msra.mxu0 0
    %1662 = vmatpush.bf16.msra.mxu0 %v1557
    %1663 = vmatpush.bf16.msra.mxu0 %v1556
    %1664 = vmatmul.bf16.gmra.mxu0 %v1561
    %v1665 = vpop.f32.mrf.mxu0
    %v1666 = vadd.f32 0.0, %v1665
    %v1667 = vpop.f32.mrf.mxu0
    %v1668 = vadd.f32 0.0, %v1667
    %1669 = vmatmul.bf16.gmra.mxu0 %v1564
    %v1670 = vpop.f32.mrf.mxu0
    %v1671 = vadd.f32 0.0, %v1670
    %v1672 = vpop.f32.mrf.mxu0
    %v1673 = vadd.f32 0.0, %v1672
    %1674 = vmatmul.bf16.gmra.mxu0 %v1567
    %v1675 = vpop.f32.mrf.mxu0
    %v1676 = vadd.f32 0.0, %v1675
    %v1677 = vpop.f32.mrf.mxu0
    %v1678 = vadd.f32 0.0, %v1677
    %1679 = vmatmul.bf16.gmra.mxu0 %v1570
    %v1680 = vpop.f32.mrf.mxu0
    %v1681 = vadd.f32 0.0, %v1680
    %v1682 = vpop.f32.mrf.mxu0
    %v1683 = vadd.f32 0.0, %v1682
    %1684 = vmatmul.bf16.gmra.mxu0 %v1573
    %v1685 = vpop.f32.mrf.mxu0
    %v1686 = vadd.f32 0.0, %v1685
    %v1687 = vpop.f32.mrf.mxu0
    %v1688 = vadd.f32 0.0, %v1687
    %1689 = vmatmul.bf16.gmra.mxu0 %v1576
    %v1690 = vpop.f32.mrf.mxu0
    %v1691 = vadd.f32 0.0, %v1690
    %v1692 = vpop.f32.mrf.mxu0
    %v1693 = vadd.f32 0.0, %v1692
    %1694 = vmatmul.bf16.gmra.mxu0 %v1579
    %v1695 = vpop.f32.mrf.mxu0
    %v1696 = vadd.f32 0.0, %v1695
    %v1697 = vpop.f32.mrf.mxu0
    %v1698 = vadd.f32 0.0, %v1697
    %1699 = vmatmul.bf16.gmra.mxu0 %v1582
    %v1700 = vpop.f32.mrf.mxu0
    %v1701 = vadd.f32 0.0, %v1700
    %v1702 = vpop.f32.mrf.mxu0
    %v1703 = vadd.f32 0.0, %v1702
    %1704 = vmatmul.bf16.gmra.mxu0 %v1585
    %v1705 = vpop.f32.mrf.mxu0
    %v1706 = vadd.f32 0.0, %v1705
    %v1707 = vpop.f32.mrf.mxu0
    %v1708 = vadd.f32 0.0, %v1707
    %1709 = vmatmul.bf16.gmra.mxu0 %v1588
    %v1710 = vpop.f32.mrf.mxu0
    %v1711 = vadd.f32 0.0, %v1710
    %v1712 = vpop.f32.mrf.mxu0
    %v1713 = vadd.f32 0.0, %v1712
    %1714 = vmatmul.bf16.gmra.mxu0 %v1591
    %v1715 = vpop.f32.mrf.mxu0
    %v1716 = vadd.f32 0.0, %v1715
    %v1717 = vpop.f32.mrf.mxu0
    %v1718 = vadd.f32 0.0, %v1717
    %1719 = vmatmul.bf16.gmra.mxu0 %v1594
    %v1720 = vpop.f32.mrf.mxu0
    %v1721 = vadd.f32 0.0, %v1720
    %v1722 = vpop.f32.mrf.mxu0
    %v1723 = vadd.f32 0.0, %v1722
    %1724 = vmatmul.bf16.gmra.mxu0 %v1597
    %v1725 = vpop.f32.mrf.mxu0
    %v1726 = vadd.f32 0.0, %v1725
    %v1727 = vpop.f32.mrf.mxu0
    %v1728 = vadd.f32 0.0, %v1727
    %1729 = vmatmul.bf16.gmra.mxu0 %v1600
    %v1730 = vpop.f32.mrf.mxu0
    %v1731 = vadd.f32 0.0, %v1730
    %v1732 = vpop.f32.mrf.mxu0
    %v1733 = vadd.f32 0.0, %v1732
    %1734 = vmatmul.bf16.gmra.mxu0 %v1603
    %v1735 = vpop.f32.mrf.mxu0
    %v1736 = vadd.f32 0.0, %v1735
    %v1737 = vpop.f32.mrf.mxu0
    %v1738 = vadd.f32 0.0, %v1737
    %1739 = vmatmul.bf16.gmra.mxu0 %v1606
    %v1740 = vpop.f32.mrf.mxu0
    %v1741 = vadd.f32 0.0, %v1740
    %v1742 = vpop.f32.mrf.mxu0
    %v1743 = vadd.f32 0.0, %v1742
    %1744 = vmatmul.bf16.gmra.mxu0 %v1609
    %v1745 = vpop.f32.mrf.mxu0
    %v1746 = vadd.f32 0.0, %v1745
    %v1747 = vpop.f32.mrf.mxu0
    %v1748 = vadd.f32 0.0, %v1747
    %1749 = vmatmul.bf16.gmra.mxu0 %v1612
    %v1750 = vpop.f32.mrf.mxu0
    %v1751 = vadd.f32 0.0, %v1750
    %v1752 = vpop.f32.mrf.mxu0
    %v1753 = vadd.f32 0.0, %v1752
    %1754 = vmatmul.bf16.gmra.mxu0 %v1615
    %v1755 = vpop.f32.mrf.mxu0
    %v1756 = vadd.f32 0.0, %v1755
    %v1757 = vpop.f32.mrf.mxu0
    %v1758 = vadd.f32 0.0, %v1757
    %1759 = vmatmul.bf16.gmra.mxu0 %v1618
    %v1760 = vpop.f32.mrf.mxu0
    %v1761 = vadd.f32 0.0, %v1760
    %v1762 = vpop.f32.mrf.mxu0
    %v1763 = vadd.f32 0.0, %v1762
    %1764 = vmatmul.bf16.gmra.mxu0 %v1621
    %v1765 = vpop.f32.mrf.mxu0
    %v1766 = vadd.f32 0.0, %v1765
    %v1767 = vpop.f32.mrf.mxu0
    %v1768 = vadd.f32 0.0, %v1767
    %1769 = vmatmul.bf16.gmra.mxu0 %v1624
    %v1770 = vpop.f32.mrf.mxu0
    %v1771 = vadd.f32 0.0, %v1770
    %v1772 = vpop.f32.mrf.mxu0
    %v1773 = vadd.f32 0.0, %v1772
    %1774 = vmatmul.bf16.gmra.mxu0 %v1627
    %v1775 = vpop.f32.mrf.mxu0
    %v1776 = vadd.f32 0.0, %v1775
    %v1777 = vpop.f32.mrf.mxu0
    %v1778 = vadd.f32 0.0, %v1777
    %1779 = vmatmul.bf16.gmra.mxu0 %v1630
    %v1780 = vpop.f32.mrf.mxu0
    %v1781 = vadd.f32 0.0, %v1780
    %v1782 = vpop.f32.mrf.mxu0
    %v1783 = vadd.f32 0.0, %v1782
    %1784 = vmatmul.bf16.gmra.mxu0 %v1633
    %v1785 = vpop.f32.mrf.mxu0
    %v1786 = vadd.f32 0.0, %v1785
    %v1787 = vpop.f32.mrf.mxu0
    %v1788 = vadd.f32 0.0, %v1787
    %1789 = vmatmul.bf16.gmra.mxu0 %v1636
    %v1790 = vpop.f32.mrf.mxu0
    %v1791 = vadd.f32 0.0, %v1790
    %v1792 = vpop.f32.mrf.mxu0
    %v1793 = vadd.f32 0.0, %v1792
    %1794 = vmatmul.bf16.gmra.mxu0 %v1639
    %v1795 = vpop.f32.mrf.mxu0
    %v1796 = vadd.f32 0.0, %v1795
    %v1797 = vpop.f32.mrf.mxu0
    %v1798 = vadd.f32 0.0, %v1797
    %1799 = vmatmul.bf16.gmra.mxu0 %v1642
    %v1800 = vpop.f32.mrf.mxu0
    %v1801 = vadd.f32 0.0, %v1800
    %v1802 = vpop.f32.mrf.mxu0
    %v1803 = vadd.f32 0.0, %v1802
    %1804 = vmatmul.bf16.gmra.mxu0 %v1645
    %v1805 = vpop.f32.mrf.mxu0
    %v1806 = vadd.f32 0.0, %v1805
    %v1807 = vpop.f32.mrf.mxu0
    %v1808 = vadd.f32 0.0, %v1807
    %1809 = vmatmul.bf16.gmra.mxu0 %v1648
    %v1810 = vpop.f32.mrf.mxu0
    %v1811 = vadd.f32 0.0, %v1810
    %v1812 = vpop.f32.mrf.mxu0
    %v1813 = vadd.f32 0.0, %v1812
    %1814 = vmatmul.bf16.gmra.mxu0 %v1651
    %v1815 = vpop.f32.mrf.mxu0
    %v1816 = vadd.f32 0.0, %v1815
    %v1817 = vpop.f32.mrf.mxu0
    %v1818 = vadd.f32 0.0, %v1817
    %1819 = vmatmul.bf16.gmra.mxu0 %v1654
    %v1820 = vpop.f32.mrf.mxu0
    %v1821 = vadd.f32 0.0, %v1820
    %v1822 = vpop.f32.mrf.mxu0
    %v1823 = vadd.f32 0.0, %v1822
    %1824 = vdwg.mxu0
    %v1825 = vld [vmem:[#allocation5] sm:$0xff]
    %v1826 = vld [vmem:[#allocation5 + $0x8] sm:$0xff]
    %v1827 = vld [vmem:[#allocation5 + $0x10] sm:$0xff]
    %v1828 = vld [vmem:[#allocation5 + $0x18] sm:$0xff]
    %v1829 = vld [vmem:[#allocation5 + $0x20] sm:$0xff]
    %v1830 = vld [vmem:[#allocation5 + $0x28] sm:$0xff]
    %v1831 = vld [vmem:[#allocation5 + $0x30] sm:$0xff]
    %v1832 = vld [vmem:[#allocation5 + $0x38] sm:$0xff]
    %v1833 = vld [vmem:[#allocation5 + $0x40] sm:$0xff]
    %v1834 = vld [vmem:[#allocation5 + $0x48] sm:$0xff]
    %v1835 = vld [vmem:[#allocation5 + $0x50] sm:$0xff]
    %v1836 = vld [vmem:[#allocation5 + $0x58] sm:$0xff]
    %v1837 = vld [vmem:[#allocation5 + $0x60] sm:$0xff]
    %v1838 = vld [vmem:[#allocation5 + $0x68] sm:$0xff]
    %v1839 = vld [vmem:[#allocation5 + $0x70] sm:$0xff]
    %v1840 = vld [vmem:[#allocation5 + $0x78] sm:$0xff]
    %v1841 = vld [vmem:[#allocation5 + $0x80] sm:$0xff]
    %v1842 = vld [vmem:[#allocation5 + $0x88] sm:$0xff]
    %v1843 = vld [vmem:[#allocation5 + $0x90] sm:$0xff]
    %v1844 = vld [vmem:[#allocation5 + $0x98] sm:$0xff]
    %v1845 = vld [vmem:[#allocation5 + $0xa0] sm:$0xff]
    %v1846 = vld [vmem:[#allocation5 + $0xa8] sm:$0xff]
    %v1847 = vld [vmem:[#allocation5 + $0xb0] sm:$0xff]
    %v1848 = vld [vmem:[#allocation5 + $0xb8] sm:$0xff]
    %v1849 = vld [vmem:[#allocation5 + $0xc0] sm:$0xff]
    %v1850 = vld [vmem:[#allocation5 + $0xc8] sm:$0xff]
    %v1851 = vld [vmem:[#allocation5 + $0xd0] sm:$0xff]
    %v1852 = vld [vmem:[#allocation5 + $0xd8] sm:$0xff]
    %v1853 = vld [vmem:[#allocation5 + $0xe0] sm:$0xff]
    %v1854 = vld [vmem:[#allocation5 + $0xe8] sm:$0xff]
    %v1855 = vld [vmem:[#allocation5 + $0xf0] sm:$0xff]
    %v1856 = vld [vmem:[#allocation5 + $0xf8] sm:$0xff]
    %v1857 = vld [vmem:[#allocation5 + $0x100] sm:$0xff]
    %v1858 = vld [vmem:[#allocation5 + $0x108] sm:$0xff]
    %v1859 = vld [vmem:[#allocation5 + $0x110] sm:$0xff]
    %v1860 = vld [vmem:[#allocation5 + $0x118] sm:$0xff]
    %v1861 = vld [vmem:[#allocation5 + $0x120] sm:$0xff]
    %v1862 = vld [vmem:[#allocation5 + $0x128] sm:$0xff]
    %v1863 = vld [vmem:[#allocation5 + $0x130] sm:$0xff]
    %v1864 = vld [vmem:[#allocation5 + $0x138] sm:$0xff]
    %v1865 = vld [vmem:[#allocation5 + $0x140] sm:$0xff]
    %v1866 = vld [vmem:[#allocation5 + $0x148] sm:$0xff]
    %v1867 = vld [vmem:[#allocation5 + $0x150] sm:$0xff]
    %v1868 = vld [vmem:[#allocation5 + $0x158] sm:$0xff]
    %v1869 = vld [vmem:[#allocation5 + $0x160] sm:$0xff]
    %v1870 = vld [vmem:[#allocation5 + $0x168] sm:$0xff]
    %v1871 = vld [vmem:[#allocation5 + $0x170] sm:$0xff]
    %v1872 = vld [vmem:[#allocation5 + $0x178] sm:$0xff]
    %v1873 = vld [vmem:[#allocation5 + $0x180] sm:$0xff]
    %v1874 = vld [vmem:[#allocation5 + $0x188] sm:$0xff]
    %v1875 = vld [vmem:[#allocation5 + $0x190] sm:$0xff]
    %v1876 = vld [vmem:[#allocation5 + $0x198] sm:$0xff]
    %v1877 = vld [vmem:[#allocation5 + $0x1a0] sm:$0xff]
    %v1878 = vld [vmem:[#allocation5 + $0x1a8] sm:$0xff]
    %v1879 = vld [vmem:[#allocation5 + $0x1b0] sm:$0xff]
    %v1880 = vld [vmem:[#allocation5 + $0x1b8] sm:$0xff]
    %v1881 = vld [vmem:[#allocation5 + $0x1c0] sm:$0xff]
    %v1882 = vld [vmem:[#allocation5 + $0x1c8] sm:$0xff]
    %v1883 = vld [vmem:[#allocation5 + $0x1d0] sm:$0xff]
    %v1884 = vld [vmem:[#allocation5 + $0x1d8] sm:$0xff]
    %v1885 = vld [vmem:[#allocation5 + $0x1e0] sm:$0xff]
    %v1886 = vld [vmem:[#allocation5 + $0x1e8] sm:$0xff]
    %v1887 = vld [vmem:[#allocation5 + $0x1f0] sm:$0xff]
    %v1888 = vld [vmem:[#allocation5 + $0x1f8] sm:$0xff]
    %v1889 = vadd.f32 %v1825, %v1666
    %v1890 = vadd.f32 %v1826, %v1668
    %v1891 = vadd.f32 %v1827, %v1671
    %v1892 = vadd.f32 %v1828, %v1673
    %v1893 = vadd.f32 %v1829, %v1676
    %v1894 = vadd.f32 %v1830, %v1678
    %v1895 = vadd.f32 %v1831, %v1681
    %v1896 = vadd.f32 %v1832, %v1683
    %v1897 = vadd.f32 %v1833, %v1686
    %v1898 = vadd.f32 %v1834, %v1688
    %v1899 = vadd.f32 %v1835, %v1691
    %v1900 = vadd.f32 %v1836, %v1693
    %v1901 = vadd.f32 %v1837, %v1696
    %v1902 = vadd.f32 %v1838, %v1698
    %v1903 = vadd.f32 %v1839, %v1701
    %v1904 = vadd.f32 %v1840, %v1703
    %v1905 = vadd.f32 %v1841, %v1706
    %v1906 = vadd.f32 %v1842, %v1708
    %v1907 = vadd.f32 %v1843, %v1711
    %v1908 = vadd.f32 %v1844, %v1713
    %v1909 = vadd.f32 %v1845, %v1716
    %v1910 = vadd.f32 %v1846, %v1718
    %v1911 = vadd.f32 %v1847, %v1721
    %v1912 = vadd.f32 %v1848, %v1723
    %v1913 = vadd.f32 %v1849, %v1726
    %v1914 = vadd.f32 %v1850, %v1728
    %v1915 = vadd.f32 %v1851, %v1731
    %v1916 = vadd.f32 %v1852, %v1733
    %v1917 = vadd.f32 %v1853, %v1736
    %v1918 = vadd.f32 %v1854, %v1738
    %v1919 = vadd.f32 %v1855, %v1741
    %v1920 = vadd.f32 %v1856, %v1743
    %v1921 = vadd.f32 %v1857, %v1746
    %v1922 = vadd.f32 %v1858, %v1748
    %v1923 = vadd.f32 %v1859, %v1751
    %v1924 = vadd.f32 %v1860, %v1753
    %v1925 = vadd.f32 %v1861, %v1756
    %v1926 = vadd.f32 %v1862, %v1758
    %v1927 = vadd.f32 %v1863, %v1761
    %v1928 = vadd.f32 %v1864, %v1763
    %v1929 = vadd.f32 %v1865, %v1766
    %v1930 = vadd.f32 %v1866, %v1768
    %v1931 = vadd.f32 %v1867, %v1771
    %v1932 = vadd.f32 %v1868, %v1773
    %v1933 = vadd.f32 %v1869, %v1776
    %v1934 = vadd.f32 %v1870, %v1778
    %v1935 = vadd.f32 %v1871, %v1781
    %v1936 = vadd.f32 %v1872, %v1783
    %v1937 = vadd.f32 %v1873, %v1786
    %v1938 = vadd.f32 %v1874, %v1788
    %v1939 = vadd.f32 %v1875, %v1791
    %v1940 = vadd.f32 %v1876, %v1793
    %v1941 = vadd.f32 %v1877, %v1796
    %v1942 = vadd.f32 %v1878, %v1798
    %v1943 = vadd.f32 %v1879, %v1801
    %v1944 = vadd.f32 %v1880, %v1803
    %v1945 = vadd.f32 %v1881, %v1806
    %v1946 = vadd.f32 %v1882, %v1808
    %v1947 = vadd.f32 %v1883, %v1811
    %v1948 = vadd.f32 %v1884, %v1813
    %v1949 = vadd.f32 %v1885, %v1816
    %v1950 = vadd.f32 %v1886, %v1818
    %v1951 = vadd.f32 %v1887, %v1821
    %v1952 = vadd.f32 %v1888, %v1823
    %1953 = vst.msk [vmem:[#allocation5] sm:$0xff] %vm31, %v1889
    %1954 = vst.msk [vmem:[#allocation5 + $0x8] sm:$0xff] %vm31, %v1890
    %1955 = vst.msk [vmem:[#allocation5 + $0x10] sm:$0xff] %vm31, %v1891
    %1956 = vst.msk [vmem:[#allocation5 + $0x18] sm:$0xff] %vm31, %v1892
    %1957 = vst.msk [vmem:[#allocation5 + $0x20] sm:$0xff] %vm31, %v1893
    %1958 = vst.msk [vmem:[#allocation5 + $0x28] sm:$0xff] %vm31, %v1894
    %1959 = vst.msk [vmem:[#allocation5 + $0x30] sm:$0xff] %vm31, %v1895
    %1960 = vst.msk [vmem:[#allocation5 + $0x38] sm:$0xff] %vm31, %v1896
    %1961 = vst.msk [vmem:[#allocation5 + $0x40] sm:$0xff] %vm31, %v1897
    %1962 = vst.msk [vmem:[#allocation5 + $0x48] sm:$0xff] %vm31, %v1898
    %1963 = vst.msk [vmem:[#allocation5 + $0x50] sm:$0xff] %vm31, %v1899
    %1964 = vst.msk [vmem:[#allocation5 + $0x58] sm:$0xff] %vm31, %v1900
    %1965 = vst.msk [vmem:[#allocation5 + $0x60] sm:$0xff] %vm31, %v1901
    %1966 = vst.msk [vmem:[#allocation5 + $0x68] sm:$0xff] %vm31, %v1902
    %1967 = vst.msk [vmem:[#allocation5 + $0x70] sm:$0xff] %vm31, %v1903
    %1968 = vst.msk [vmem:[#allocation5 + $0x78] sm:$0xff] %vm31, %v1904
    %1969 = vst.msk [vmem:[#allocation5 + $0x80] sm:$0xff] %vm31, %v1905
    %1970 = vst.msk [vmem:[#allocation5 + $0x88] sm:$0xff] %vm31, %v1906
    %1971 = vst.msk [vmem:[#allocation5 + $0x90] sm:$0xff] %vm31, %v1907
    %1972 = vst.msk [vmem:[#allocation5 + $0x98] sm:$0xff] %vm31, %v1908
    %1973 = vst.msk [vmem:[#allocation5 + $0xa0] sm:$0xff] %vm31, %v1909
    %1974 = vst.msk [vmem:[#allocation5 + $0xa8] sm:$0xff] %vm31, %v1910
    %1975 = vst.msk [vmem:[#allocation5 + $0xb0] sm:$0xff] %vm31, %v1911
    %1976 = vst.msk [vmem:[#allocation5 + $0xb8] sm:$0xff] %vm31, %v1912
    %1977 = vst.msk [vmem:[#allocation5 + $0xc0] sm:$0xff] %vm31, %v1913
    %1978 = vst.msk [vmem:[#allocation5 + $0xc8] sm:$0xff] %vm31, %v1914
    %1979 = vst.msk [vmem:[#allocation5 + $0xd0] sm:$0xff] %vm31, %v1915
    %1980 = vst.msk [vmem:[#allocation5 + $0xd8] sm:$0xff] %vm31, %v1916
    %1981 = vst.msk [vmem:[#allocation5 + $0xe0] sm:$0xff] %vm31, %v1917
    %1982 = vst.msk [vmem:[#allocation5 + $0xe8] sm:$0xff] %vm31, %v1918
    %1983 = vst.msk [vmem:[#allocation5 + $0xf0] sm:$0xff] %vm31, %v1919
    %1984 = vst.msk [vmem:[#allocation5 + $0xf8] sm:$0xff] %vm31, %v1920
    %1985 = vst.msk [vmem:[#allocation5 + $0x100] sm:$0xff] %vm31, %v1921
    %1986 = vst.msk [vmem:[#allocation5 + $0x108] sm:$0xff] %vm31, %v1922
    %1987 = vst.msk [vmem:[#allocation5 + $0x110] sm:$0xff] %vm31, %v1923
    %1988 = vst.msk [vmem:[#allocation5 + $0x118] sm:$0xff] %vm31, %v1924
    %1989 = vst.msk [vmem:[#allocation5 + $0x120] sm:$0xff] %vm31, %v1925
    %1990 = vst.msk [vmem:[#allocation5 + $0x128] sm:$0xff] %vm31, %v1926
    %1991 = vst.msk [vmem:[#allocation5 + $0x130] sm:$0xff] %vm31, %v1927
    %1992 = vst.msk [vmem:[#allocation5 + $0x138] sm:$0xff] %vm31, %v1928
    %1993 = vst.msk [vmem:[#allocation5 + $0x140] sm:$0xff] %vm31, %v1929
    %1994 = vst.msk [vmem:[#allocation5 + $0x148] sm:$0xff] %vm31, %v1930
    %1995 = vst.msk [vmem:[#allocation5 + $0x150] sm:$0xff] %vm31, %v1931
    %1996 = vst.msk [vmem:[#allocation5 + $0x158] sm:$0xff] %vm31, %v1932
    %1997 = vst.msk [vmem:[#allocation5 + $0x160] sm:$0xff] %vm31, %v1933
    %1998 = vst.msk [vmem:[#allocation5 + $0x168] sm:$0xff] %vm31, %v1934
    %1999 = vst.msk [vmem:[#allocation5 + $0x170] sm:$0xff] %vm31, %v1935
    %2000 = vst.msk [vmem:[#allocation5 + $0x178] sm:$0xff] %vm31, %v1936
    %2001 = vst.msk [vmem:[#allocation5 + $0x180] sm:$0xff] %vm31, %v1937
    %2002 = vst.msk [vmem:[#allocation5 + $0x188] sm:$0xff] %vm31, %v1938
    %2003 = vst.msk [vmem:[#allocation5 + $0x190] sm:$0xff] %vm31, %v1939
    %2004 = vst.msk [vmem:[#allocation5 + $0x198] sm:$0xff] %vm31, %v1940
    %2005 = vst.msk [vmem:[#allocation5 + $0x1a0] sm:$0xff] %vm31, %v1941
    %2006 = vst.msk [vmem:[#allocation5 + $0x1a8] sm:$0xff] %vm31, %v1942
    %2007 = vst.msk [vmem:[#allocation5 + $0x1b0] sm:$0xff] %vm31, %v1943
    %2008 = vst.msk [vmem:[#allocation5 + $0x1b8] sm:$0xff] %vm31, %v1944
    %2009 = vst.msk [vmem:[#allocation5 + $0x1c0] sm:$0xff] %vm31, %v1945
    %2010 = vst.msk [vmem:[#allocation5 + $0x1c8] sm:$0xff] %vm31, %v1946
    %2011 = vst.msk [vmem:[#allocation5 + $0x1d0] sm:$0xff] %vm31, %v1947
    %2012 = vst.msk [vmem:[#allocation5 + $0x1d8] sm:$0xff] %vm31, %v1948
    %2013 = vst.msk [vmem:[#allocation5 + $0x1e0] sm:$0xff] %vm31, %v1949
    %2014 = vst.msk [vmem:[#allocation5 + $0x1e8] sm:$0xff] %vm31, %v1950
    %2015 = vst.msk [vmem:[#allocation5 + $0x1f0] sm:$0xff] %vm31, %v1951
    %2016 = vst.msk [vmem:[#allocation5 + $0x1f8] sm:$0xff] %vm31, %v1952
    %v2017 = vld [vmem:[#allocation2 + $0x9] sm:$0xff]
    %v2018 = vld [vmem:[#allocation2 + $0x11] sm:$0xff]
    %v2019 = vld [vmem:[#allocation2 + $0x29] sm:$0xff]
    %v2020 = vld [vmem:[#allocation2 + $0x31] sm:$0xff]
    %v2021 = vld [vmem:[#allocation2 + $0x49] sm:$0xff]
    %v2022 = vld [vmem:[#allocation2 + $0x51] sm:$0xff]
    %v2023 = vld [vmem:[#allocation2 + $0x69] sm:$0xff]
    %v2024 = vld [vmem:[#allocation2 + $0x71] sm:$0xff]
    %v2025 = vld [vmem:[#allocation2 + $0x89] sm:$0xff]
    %v2026 = vld [vmem:[#allocation2 + $0x91] sm:$0xff]
    %v2027 = vld [vmem:[#allocation2 + $0xa9] sm:$0xff]
    %v2028 = vld [vmem:[#allocation2 + $0xb1] sm:$0xff]
    %v2029 = vld [vmem:[#allocation2 + $0xc9] sm:$0xff]
    %v2030 = vld [vmem:[#allocation2 + $0xd1] sm:$0xff]
    %v2031 = vld [vmem:[#allocation2 + $0xe9] sm:$0xff]
    %v2032 = vld [vmem:[#allocation2 + $0xf1] sm:$0xff]
    %v2033 = vld [vmem:[#allocation2 + $0x109] sm:$0xff]
    %v2034 = vld [vmem:[#allocation2 + $0x111] sm:$0xff]
    %v2035 = vld [vmem:[#allocation2 + $0x129] sm:$0xff]
    %v2036 = vld [vmem:[#allocation2 + $0x131] sm:$0xff]
    %v2037 = vld [vmem:[#allocation2 + $0x149] sm:$0xff]
    %v2038 = vld [vmem:[#allocation2 + $0x151] sm:$0xff]
    %v2039 = vld [vmem:[#allocation2 + $0x169] sm:$0xff]
    %v2040 = vld [vmem:[#allocation2 + $0x171] sm:$0xff]
    %v2041 = vld [vmem:[#allocation2 + $0x189] sm:$0xff]
    %v2042 = vld [vmem:[#allocation2 + $0x191] sm:$0xff]
    %v2043 = vld [vmem:[#allocation2 + $0x1a9] sm:$0xff]
    %v2044 = vld [vmem:[#allocation2 + $0x1b1] sm:$0xff]
    %v2045 = vld [vmem:[#allocation2 + $0x1c9] sm:$0xff]
    %v2046 = vld [vmem:[#allocation2 + $0x1d1] sm:$0xff]
    %v2047 = vld [vmem:[#allocation2 + $0x1e9] sm:$0xff]
    %v2048 = vld [vmem:[#allocation2 + $0x1f1] sm:$0xff]
    %v2049 = vld [vmem:[#allocation2 + $0x249] sm:$0xff]
    %v2050 = vld [vmem:[#allocation2 + $0x251] sm:$0xff]
    %v2051 = vld [vmem:[#allocation2 + $0x269] sm:$0xff]
    %v2052 = vld [vmem:[#allocation2 + $0x271] sm:$0xff]
    %v2053 = vld [vmem:[#allocation2 + $0x289] sm:$0xff]
    %v2054 = vld [vmem:[#allocation2 + $0x291] sm:$0xff]
    %v2055 = vld [vmem:[#allocation2 + $0x2a9] sm:$0xff]
    %v2056 = vld [vmem:[#allocation2 + $0x2b1] sm:$0xff]
    %v2057 = vld [vmem:[#allocation2 + $0x2c9] sm:$0xff]
    %v2058 = vld [vmem:[#allocation2 + $0x2d1] sm:$0xff]
    %v2059 = vld [vmem:[#allocation2 + $0x2e9] sm:$0xff]
    %v2060 = vld [vmem:[#allocation2 + $0x2f1] sm:$0xff]
    %v2061 = vld [vmem:[#allocation2 + $0x309] sm:$0xff]
    %v2062 = vld [vmem:[#allocation2 + $0x311] sm:$0xff]
    %v2063 = vld [vmem:[#allocation2 + $0x329] sm:$0xff]
    %v2064 = vld [vmem:[#allocation2 + $0x331] sm:$0xff]
    %v2065 = vld [vmem:[#allocation2 + $0x349] sm:$0xff]
    %v2066 = vld [vmem:[#allocation2 + $0x351] sm:$0xff]
    %v2067 = vld [vmem:[#allocation2 + $0x369] sm:$0xff]
    %v2068 = vld [vmem:[#allocation2 + $0x371] sm:$0xff]
    %v2069 = vld [vmem:[#allocation2 + $0x389] sm:$0xff]
    %v2070 = vld [vmem:[#allocation2 + $0x391] sm:$0xff]
    %v2071 = vld [vmem:[#allocation2 + $0x3a9] sm:$0xff]
    %v2072 = vld [vmem:[#allocation2 + $0x3b1] sm:$0xff]
    %v2073 = vld [vmem:[#allocation2 + $0x3c9] sm:$0xff]
    %v2074 = vld [vmem:[#allocation2 + $0x3d1] sm:$0xff]
    %v2075 = vld [vmem:[#allocation2 + $0x3e9] sm:$0xff]
    %v2076 = vld [vmem:[#allocation2 + $0x3f1] sm:$0xff]
    %v2077 = vld [vmem:[#allocation2 + $0x409] sm:$0xff]
    %v2078 = vld [vmem:[#allocation2 + $0x411] sm:$0xff]
    %v2079 = vld [vmem:[#allocation2 + $0x429] sm:$0xff]
    %v2080 = vld [vmem:[#allocation2 + $0x431] sm:$0xff]
    %v2081 = vpack.c.bf16 %v2018, %v2017
    %v2082 = vpack.c.bf16 %v2020, %v2019
    %v2083 = vpack.c.bf16 %v2022, %v2021
    %v2084 = vpack.c.bf16 %v2024, %v2023
    %v2085 = vpack.c.bf16 %v2026, %v2025
    %v2086 = vpack.c.bf16 %v2028, %v2027
    %v2087 = vpack.c.bf16 %v2030, %v2029
    %v2088 = vpack.c.bf16 %v2032, %v2031
    %v2089 = vpack.c.bf16 %v2034, %v2033
    %v2090 = vpack.c.bf16 %v2036, %v2035
    %v2091 = vpack.c.bf16 %v2038, %v2037
    %v2092 = vpack.c.bf16 %v2040, %v2039
    %v2093 = vpack.c.bf16 %v2042, %v2041
    %v2094 = vpack.c.bf16 %v2044, %v2043
    %v2095 = vpack.c.bf16 %v2046, %v2045
    %v2096 = vpack.c.bf16 %v2048, %v2047
    %v2097 = vpack.c.bf16 %v2050, %v2049
    %v2098 = vpack.c.bf16 %v2052, %v2051
    %v2099 = vpack.c.bf16 %v2054, %v2053
    %v2100 = vpack.c.bf16 %v2056, %v2055
    %v2101 = vpack.c.bf16 %v2058, %v2057
    %v2102 = vpack.c.bf16 %v2060, %v2059
    %v2103 = vpack.c.bf16 %v2062, %v2061
    %v2104 = vpack.c.bf16 %v2064, %v2063
    %v2105 = vpack.c.bf16 %v2066, %v2065
    %v2106 = vpack.c.bf16 %v2068, %v2067
    %v2107 = vpack.c.bf16 %v2070, %v2069
    %v2108 = vpack.c.bf16 %v2072, %v2071
    %v2109 = vpack.c.bf16 %v2074, %v2073
    %v2110 = vpack.c.bf16 %v2076, %v2075
    %v2111 = vpack.c.bf16 %v2078, %v2077
    %v2112 = vpack.c.bf16 %v2080, %v2079
    %s2113 = scalar_lea.vmem %s2, 32
    %v2114 = vld [vmem:[%s2113] sm:$0xf]
    %v2115 = vld [vmem:[%s2113 + $0x4] sm:$0xf]
    %v2116 = vld [vmem:[%s2113 + $0x8] sm:$0xf]
    %v2117 = vld [vmem:[%s2113 + $0xc] sm:$0xf]
    %v2122 = vunpack.c.l.b16 %v2114
    %v2123 = vunpack.c.l.b16 %v2115
    %v2124 = vunpack.c.l.b16 %v2116
    %v2125 = vunpack.c.l.b16 %v2117
    %v2126 = vpack.c.b16 %v2123, %v2122
    %v2127 = vpack.c.b16 %v2125, %v2124
    %v2131 = vsel %vm31, %v2081, 0
    %v2134 = vsel %vm31, %v2082, 0
    %v2137 = vsel %vm31, %v2083, 0
    %v2140 = vsel %vm31, %v2084, 0
    %v2143 = vsel %vm31, %v2085, 0
    %v2146 = vsel %vm31, %v2086, 0
    %v2149 = vsel %vm31, %v2087, 0
    %v2152 = vsel %vm31, %v2088, 0
    %v2155 = vsel %vm31, %v2089, 0
    %v2158 = vsel %vm31, %v2090, 0
    %v2161 = vsel %vm31, %v2091, 0
    %v2164 = vsel %vm31, %v2092, 0
    %v2167 = vsel %vm31, %v2093, 0
    %v2170 = vsel %vm31, %v2094, 0
    %v2173 = vsel %vm31, %v2095, 0
    %v2176 = vsel %vm31, %v2096, 0
    %v2179 = vsel %vm31, %v2097, 0
    %v2182 = vsel %vm31, %v2098, 0
    %v2185 = vsel %vm31, %v2099, 0
    %v2188 = vsel %vm31, %v2100, 0
    %v2191 = vsel %vm31, %v2101, 0
    %v2194 = vsel %vm31, %v2102, 0
    %v2197 = vsel %vm31, %v2103, 0
    %v2200 = vsel %vm31, %v2104, 0
    %v2203 = vsel %vm31, %v2105, 0
    %v2206 = vsel %vm31, %v2106, 0
    %v2209 = vsel %vm31, %v2107, 0
    %v2212 = vsel %vm31, %v2108, 0
    %v2215 = vsel %vm31, %v2109, 0
    %v2218 = vsel %vm31, %v2110, 0
    %v2221 = vsel %vm31, %v2111, 0
    %v2224 = vsel %vm31, %v2112, 0
    %2226 = vmatpush.bf16.msra.mxu0 0
    %2227 = vmatpush.bf16.msra.mxu0 0
    %2228 = vmatpush.bf16.msra.mxu0 0
    %2229 = vmatpush.bf16.msra.mxu0 0
    %2230 = vmatpush.bf16.msra.mxu0 0
    %2231 = vmatpush.bf16.msra.mxu0 0
    %2232 = vmatpush.bf16.msra.mxu0 %v2127
    %2233 = vmatpush.bf16.msra.mxu0 %v2126
    %2234 = vmatmul.bf16.gmra.mxu0 %v2131
    %v2235 = vpop.f32.mrf.mxu0
    %v2236 = vadd.f32 0.0, %v2235
    %v2237 = vpop.f32.mrf.mxu0
    %v2238 = vadd.f32 0.0, %v2237
    %2239 = vmatmul.bf16.gmra.mxu0 %v2134
    %v2240 = vpop.f32.mrf.mxu0
    %v2241 = vadd.f32 0.0, %v2240
    %v2242 = vpop.f32.mrf.mxu0
    %v2243 = vadd.f32 0.0, %v2242
    %2244 = vmatmul.bf16.gmra.mxu0 %v2137
    %v2245 = vpop.f32.mrf.mxu0
    %v2246 = vadd.f32 0.0, %v2245
    %v2247 = vpop.f32.mrf.mxu0
    %v2248 = vadd.f32 0.0, %v2247
    %2249 = vmatmul.bf16.gmra.mxu0 %v2140
    %v2250 = vpop.f32.mrf.mxu0
    %v2251 = vadd.f32 0.0, %v2250
    %v2252 = vpop.f32.mrf.mxu0
    %v2253 = vadd.f32 0.0, %v2252
    %2254 = vmatmul.bf16.gmra.mxu0 %v2143
    %v2255 = vpop.f32.mrf.mxu0
    %v2256 = vadd.f32 0.0, %v2255
    %v2257 = vpop.f32.mrf.mxu0
    %v2258 = vadd.f32 0.0, %v2257
    %2259 = vmatmul.bf16.gmra.mxu0 %v2146
    %v2260 = vpop.f32.mrf.mxu0
    %v2261 = vadd.f32 0.0, %v2260
    %v2262 = vpop.f32.mrf.mxu0
    %v2263 = vadd.f32 0.0, %v2262
    %2264 = vmatmul.bf16.gmra.mxu0 %v2149
    %v2265 = vpop.f32.mrf.mxu0
    %v2266 = vadd.f32 0.0, %v2265
    %v2267 = vpop.f32.mrf.mxu0
    %v2268 = vadd.f32 0.0, %v2267
    %2269 = vmatmul.bf16.gmra.mxu0 %v2152
    %v2270 = vpop.f32.mrf.mxu0
    %v2271 = vadd.f32 0.0, %v2270
    %v2272 = vpop.f32.mrf.mxu0
    %v2273 = vadd.f32 0.0, %v2272
    %2274 = vmatmul.bf16.gmra.mxu0 %v2155
    %v2275 = vpop.f32.mrf.mxu0
    %v2276 = vadd.f32 0.0, %v2275
    %v2277 = vpop.f32.mrf.mxu0
    %v2278 = vadd.f32 0.0, %v2277
    %2279 = vmatmul.bf16.gmra.mxu0 %v2158
    %v2280 = vpop.f32.mrf.mxu0
    %v2281 = vadd.f32 0.0, %v2280
    %v2282 = vpop.f32.mrf.mxu0
    %v2283 = vadd.f32 0.0, %v2282
    %2284 = vmatmul.bf16.gmra.mxu0 %v2161
    %v2285 = vpop.f32.mrf.mxu0
    %v2286 = vadd.f32 0.0, %v2285
    %v2287 = vpop.f32.mrf.mxu0
    %v2288 = vadd.f32 0.0, %v2287
    %2289 = vmatmul.bf16.gmra.mxu0 %v2164
    %v2290 = vpop.f32.mrf.mxu0
    %v2291 = vadd.f32 0.0, %v2290
    %v2292 = vpop.f32.mrf.mxu0
    %v2293 = vadd.f32 0.0, %v2292
    %2294 = vmatmul.bf16.gmra.mxu0 %v2167
    %v2295 = vpop.f32.mrf.mxu0
    %v2296 = vadd.f32 0.0, %v2295
    %v2297 = vpop.f32.mrf.mxu0
    %v2298 = vadd.f32 0.0, %v2297
    %2299 = vmatmul.bf16.gmra.mxu0 %v2170
    %v2300 = vpop.f32.mrf.mxu0
    %v2301 = vadd.f32 0.0, %v2300
    %v2302 = vpop.f32.mrf.mxu0
    %v2303 = vadd.f32 0.0, %v2302
    %2304 = vmatmul.bf16.gmra.mxu0 %v2173
    %v2305 = vpop.f32.mrf.mxu0
    %v2306 = vadd.f32 0.0, %v2305
    %v2307 = vpop.f32.mrf.mxu0
    %v2308 = vadd.f32 0.0, %v2307
    %2309 = vmatmul.bf16.gmra.mxu0 %v2176
    %v2310 = vpop.f32.mrf.mxu0
    %v2311 = vadd.f32 0.0, %v2310
    %v2312 = vpop.f32.mrf.mxu0
    %v2313 = vadd.f32 0.0, %v2312
    %2314 = vmatmul.bf16.gmra.mxu0 %v2179
    %v2315 = vpop.f32.mrf.mxu0
    %v2316 = vadd.f32 0.0, %v2315
    %v2317 = vpop.f32.mrf.mxu0
    %v2318 = vadd.f32 0.0, %v2317
    %2319 = vmatmul.bf16.gmra.mxu0 %v2182
    %v2320 = vpop.f32.mrf.mxu0
    %v2321 = vadd.f32 0.0, %v2320
    %v2322 = vpop.f32.mrf.mxu0
    %v2323 = vadd.f32 0.0, %v2322
    %2324 = vmatmul.bf16.gmra.mxu0 %v2185
    %v2325 = vpop.f32.mrf.mxu0
    %v2326 = vadd.f32 0.0, %v2325
    %v2327 = vpop.f32.mrf.mxu0
    %v2328 = vadd.f32 0.0, %v2327
    %2329 = vmatmul.bf16.gmra.mxu0 %v2188
    %v2330 = vpop.f32.mrf.mxu0
    %v2331 = vadd.f32 0.0, %v2330
    %v2332 = vpop.f32.mrf.mxu0
    %v2333 = vadd.f32 0.0, %v2332
    %2334 = vmatmul.bf16.gmra.mxu0 %v2191
    %v2335 = vpop.f32.mrf.mxu0
    %v2336 = vadd.f32 0.0, %v2335
    %v2337 = vpop.f32.mrf.mxu0
    %v2338 = vadd.f32 0.0, %v2337
    %2339 = vmatmul.bf16.gmra.mxu0 %v2194
    %v2340 = vpop.f32.mrf.mxu0
    %v2341 = vadd.f32 0.0, %v2340
    %v2342 = vpop.f32.mrf.mxu0
    %v2343 = vadd.f32 0.0, %v2342
    %2344 = vmatmul.bf16.gmra.mxu0 %v2197
    %v2345 = vpop.f32.mrf.mxu0
    %v2346 = vadd.f32 0.0, %v2345
    %v2347 = vpop.f32.mrf.mxu0
    %v2348 = vadd.f32 0.0, %v2347
    %2349 = vmatmul.bf16.gmra.mxu0 %v2200
    %v2350 = vpop.f32.mrf.mxu0
    %v2351 = vadd.f32 0.0, %v2350
    %v2352 = vpop.f32.mrf.mxu0
    %v2353 = vadd.f32 0.0, %v2352
    %2354 = vmatmul.bf16.gmra.mxu0 %v2203
    %v2355 = vpop.f32.mrf.mxu0
    %v2356 = vadd.f32 0.0, %v2355
    %v2357 = vpop.f32.mrf.mxu0
    %v2358 = vadd.f32 0.0, %v2357
    %2359 = vmatmul.bf16.gmra.mxu0 %v2206
    %v2360 = vpop.f32.mrf.mxu0
    %v2361 = vadd.f32 0.0, %v2360
    %v2362 = vpop.f32.mrf.mxu0
    %v2363 = vadd.f32 0.0, %v2362
    %2364 = vmatmul.bf16.gmra.mxu0 %v2209
    %v2365 = vpop.f32.mrf.mxu0
    %v2366 = vadd.f32 0.0, %v2365
    %v2367 = vpop.f32.mrf.mxu0
    %v2368 = vadd.f32 0.0, %v2367
    %2369 = vmatmul.bf16.gmra.mxu0 %v2212
    %v2370 = vpop.f32.mrf.mxu0
    %v2371 = vadd.f32 0.0, %v2370
    %v2372 = vpop.f32.mrf.mxu0
    %v2373 = vadd.f32 0.0, %v2372
    %2374 = vmatmul.bf16.gmra.mxu0 %v2215
    %v2375 = vpop.f32.mrf.mxu0
    %v2376 = vadd.f32 0.0, %v2375
    %v2377 = vpop.f32.mrf.mxu0
    %v2378 = vadd.f32 0.0, %v2377
    %2379 = vmatmul.bf16.gmra.mxu0 %v2218
    %v2380 = vpop.f32.mrf.mxu0
    %v2381 = vadd.f32 0.0, %v2380
    %v2382 = vpop.f32.mrf.mxu0
    %v2383 = vadd.f32 0.0, %v2382
    %2384 = vmatmul.bf16.gmra.mxu0 %v2221
    %v2385 = vpop.f32.mrf.mxu0
    %v2386 = vadd.f32 0.0, %v2385
    %v2387 = vpop.f32.mrf.mxu0
    %v2388 = vadd.f32 0.0, %v2387
    %2389 = vmatmul.bf16.gmra.mxu0 %v2224
    %v2390 = vpop.f32.mrf.mxu0
    %v2391 = vadd.f32 0.0, %v2390
    %v2392 = vpop.f32.mrf.mxu0
    %v2393 = vadd.f32 0.0, %v2392
    %2394 = vdwg.mxu0
    %v2395 = vld [vmem:[#allocation5] sm:$0xff]
    %v2396 = vld [vmem:[#allocation5 + $0x8] sm:$0xff]
    %v2397 = vld [vmem:[#allocation5 + $0x10] sm:$0xff]
    %v2398 = vld [vmem:[#allocation5 + $0x18] sm:$0xff]
    %v2399 = vld [vmem:[#allocation5 + $0x20] sm:$0xff]
    %v2400 = vld [vmem:[#allocation5 + $0x28] sm:$0xff]
    %v2401 = vld [vmem:[#allocation5 + $0x30] sm:$0xff]
    %v2402 = vld [vmem:[#allocation5 + $0x38] sm:$0xff]
    %v2403 = vld [vmem:[#allocation5 + $0x40] sm:$0xff]
    %v2404 = vld [vmem:[#allocation5 + $0x48] sm:$0xff]
    %v2405 = vld [vmem:[#allocation5 + $0x50] sm:$0xff]
    %v2406 = vld [vmem:[#allocation5 + $0x58] sm:$0xff]
    %v2407 = vld [vmem:[#allocation5 + $0x60] sm:$0xff]
    %v2408 = vld [vmem:[#allocation5 + $0x68] sm:$0xff]
    %v2409 = vld [vmem:[#allocation5 + $0x70] sm:$0xff]
    %v2410 = vld [vmem:[#allocation5 + $0x78] sm:$0xff]
    %v2411 = vld [vmem:[#allocation5 + $0x80] sm:$0xff]
    %v2412 = vld [vmem:[#allocation5 + $0x88] sm:$0xff]
    %v2413 = vld [vmem:[#allocation5 + $0x90] sm:$0xff]
    %v2414 = vld [vmem:[#allocation5 + $0x98] sm:$0xff]
    %v2415 = vld [vmem:[#allocation5 + $0xa0] sm:$0xff]
    %v2416 = vld [vmem:[#allocation5 + $0xa8] sm:$0xff]
    %v2417 = vld [vmem:[#allocation5 + $0xb0] sm:$0xff]
    %v2418 = vld [vmem:[#allocation5 + $0xb8] sm:$0xff]
    %v2419 = vld [vmem:[#allocation5 + $0xc0] sm:$0xff]
    %v2420 = vld [vmem:[#allocation5 + $0xc8] sm:$0xff]
    %v2421 = vld [vmem:[#allocation5 + $0xd0] sm:$0xff]
    %v2422 = vld [vmem:[#allocation5 + $0xd8] sm:$0xff]
    %v2423 = vld [vmem:[#allocation5 + $0xe0] sm:$0xff]
    %v2424 = vld [vmem:[#allocation5 + $0xe8] sm:$0xff]
    %v2425 = vld [vmem:[#allocation5 + $0xf0] sm:$0xff]
    %v2426 = vld [vmem:[#allocation5 + $0xf8] sm:$0xff]
    %v2427 = vld [vmem:[#allocation5 + $0x100] sm:$0xff]
    %v2428 = vld [vmem:[#allocation5 + $0x108] sm:$0xff]
    %v2429 = vld [vmem:[#allocation5 + $0x110] sm:$0xff]
    %v2430 = vld [vmem:[#allocation5 + $0x118] sm:$0xff]
    %v2431 = vld [vmem:[#allocation5 + $0x120] sm:$0xff]
    %v2432 = vld [vmem:[#allocation5 + $0x128] sm:$0xff]
    %v2433 = vld [vmem:[#allocation5 + $0x130] sm:$0xff]
    %v2434 = vld [vmem:[#allocation5 + $0x138] sm:$0xff]
    %v2435 = vld [vmem:[#allocation5 + $0x140] sm:$0xff]
    %v2436 = vld [vmem:[#allocation5 + $0x148] sm:$0xff]
    %v2437 = vld [vmem:[#allocation5 + $0x150] sm:$0xff]
    %v2438 = vld [vmem:[#allocation5 + $0x158] sm:$0xff]
    %v2439 = vld [vmem:[#allocation5 + $0x160] sm:$0xff]
    %v2440 = vld [vmem:[#allocation5 + $0x168] sm:$0xff]
    %v2441 = vld [vmem:[#allocation5 + $0x170] sm:$0xff]
    %v2442 = vld [vmem:[#allocation5 + $0x178] sm:$0xff]
    %v2443 = vld [vmem:[#allocation5 + $0x180] sm:$0xff]
    %v2444 = vld [vmem:[#allocation5 + $0x188] sm:$0xff]
    %v2445 = vld [vmem:[#allocation5 + $0x190] sm:$0xff]
    %v2446 = vld [vmem:[#allocation5 + $0x198] sm:$0xff]
    %v2447 = vld [vmem:[#allocation5 + $0x1a0] sm:$0xff]
    %v2448 = vld [vmem:[#allocation5 + $0x1a8] sm:$0xff]
    %v2449 = vld [vmem:[#allocation5 + $0x1b0] sm:$0xff]
    %v2450 = vld [vmem:[#allocation5 + $0x1b8] sm:$0xff]
    %v2451 = vld [vmem:[#allocation5 + $0x1c0] sm:$0xff]
    %v2452 = vld [vmem:[#allocation5 + $0x1c8] sm:$0xff]
    %v2453 = vld [vmem:[#allocation5 + $0x1d0] sm:$0xff]
    %v2454 = vld [vmem:[#allocation5 + $0x1d8] sm:$0xff]
    %v2455 = vld [vmem:[#allocation5 + $0x1e0] sm:$0xff]
    %v2456 = vld [vmem:[#allocation5 + $0x1e8] sm:$0xff]
    %v2457 = vld [vmem:[#allocation5 + $0x1f0] sm:$0xff]
    %v2458 = vld [vmem:[#allocation5 + $0x1f8] sm:$0xff]
    %v2459 = vadd.f32 %v2395, %v2236
    %v2460 = vadd.f32 %v2396, %v2238
    %v2461 = vadd.f32 %v2397, %v2241
    %v2462 = vadd.f32 %v2398, %v2243
    %v2463 = vadd.f32 %v2399, %v2246
    %v2464 = vadd.f32 %v2400, %v2248
    %v2465 = vadd.f32 %v2401, %v2251
    %v2466 = vadd.f32 %v2402, %v2253
    %v2467 = vadd.f32 %v2403, %v2256
    %v2468 = vadd.f32 %v2404, %v2258
    %v2469 = vadd.f32 %v2405, %v2261
    %v2470 = vadd.f32 %v2406, %v2263
    %v2471 = vadd.f32 %v2407, %v2266
    %v2472 = vadd.f32 %v2408, %v2268
    %v2473 = vadd.f32 %v2409, %v2271
    %v2474 = vadd.f32 %v2410, %v2273
    %v2475 = vadd.f32 %v2411, %v2276
    %v2476 = vadd.f32 %v2412, %v2278
    %v2477 = vadd.f32 %v2413, %v2281
    %v2478 = vadd.f32 %v2414, %v2283
    %v2479 = vadd.f32 %v2415, %v2286
    %v2480 = vadd.f32 %v2416, %v2288
    %v2481 = vadd.f32 %v2417, %v2291
    %v2482 = vadd.f32 %v2418, %v2293
    %v2483 = vadd.f32 %v2419, %v2296
    %v2484 = vadd.f32 %v2420, %v2298
    %v2485 = vadd.f32 %v2421, %v2301
    %v2486 = vadd.f32 %v2422, %v2303
    %v2487 = vadd.f32 %v2423, %v2306
    %v2488 = vadd.f32 %v2424, %v2308
    %v2489 = vadd.f32 %v2425, %v2311
    %v2490 = vadd.f32 %v2426, %v2313
    %v2491 = vadd.f32 %v2427, %v2316
    %v2492 = vadd.f32 %v2428, %v2318
    %v2493 = vadd.f32 %v2429, %v2321
    %v2494 = vadd.f32 %v2430, %v2323
    %v2495 = vadd.f32 %v2431, %v2326
    %v2496 = vadd.f32 %v2432, %v2328
    %v2497 = vadd.f32 %v2433, %v2331
    %v2498 = vadd.f32 %v2434, %v2333
    %v2499 = vadd.f32 %v2435, %v2336
    %v2500 = vadd.f32 %v2436, %v2338
    %v2501 = vadd.f32 %v2437, %v2341
    %v2502 = vadd.f32 %v2438, %v2343
    %v2503 = vadd.f32 %v2439, %v2346
    %v2504 = vadd.f32 %v2440, %v2348
    %v2505 = vadd.f32 %v2441, %v2351
    %v2506 = vadd.f32 %v2442, %v2353
    %v2507 = vadd.f32 %v2443, %v2356
    %v2508 = vadd.f32 %v2444, %v2358
    %v2509 = vadd.f32 %v2445, %v2361
    %v2510 = vadd.f32 %v2446, %v2363
    %v2511 = vadd.f32 %v2447, %v2366
    %v2512 = vadd.f32 %v2448, %v2368
    %v2513 = vadd.f32 %v2449, %v2371
    %v2514 = vadd.f32 %v2450, %v2373
    %v2515 = vadd.f32 %v2451, %v2376
    %v2516 = vadd.f32 %v2452, %v2378
    %v2517 = vadd.f32 %v2453, %v2381
    %v2518 = vadd.f32 %v2454, %v2383
    %v2519 = vadd.f32 %v2455, %v2386
    %v2520 = vadd.f32 %v2456, %v2388
    %v2521 = vadd.f32 %v2457, %v2391
    %v2522 = vadd.f32 %v2458, %v2393
    %2523 = vst.msk [vmem:[#allocation5] sm:$0xff] %vm31, %v2459
    %2524 = vst.msk [vmem:[#allocation5 + $0x8] sm:$0xff] %vm31, %v2460
    %2525 = vst.msk [vmem:[#allocation5 + $0x10] sm:$0xff] %vm31, %v2461
    %2526 = vst.msk [vmem:[#allocation5 + $0x18] sm:$0xff] %vm31, %v2462
    %2527 = vst.msk [vmem:[#allocation5 + $0x20] sm:$0xff] %vm31, %v2463
    %2528 = vst.msk [vmem:[#allocation5 + $0x28] sm:$0xff] %vm31, %v2464
    %2529 = vst.msk [vmem:[#allocation5 + $0x30] sm:$0xff] %vm31, %v2465
    %2530 = vst.msk [vmem:[#allocation5 + $0x38] sm:$0xff] %vm31, %v2466
    %2531 = vst.msk [vmem:[#allocation5 + $0x40] sm:$0xff] %vm31, %v2467
    %2532 = vst.msk [vmem:[#allocation5 + $0x48] sm:$0xff] %vm31, %v2468
    %2533 = vst.msk [vmem:[#allocation5 + $0x50] sm:$0xff] %vm31, %v2469
    %2534 = vst.msk [vmem:[#allocation5 + $0x58] sm:$0xff] %vm31, %v2470
    %2535 = vst.msk [vmem:[#allocation5 + $0x60] sm:$0xff] %vm31, %v2471
    %2536 = vst.msk [vmem:[#allocation5 + $0x68] sm:$0xff] %vm31, %v2472
    %2537 = vst.msk [vmem:[#allocation5 + $0x70] sm:$0xff] %vm31, %v2473
    %2538 = vst.msk [vmem:[#allocation5 + $0x78] sm:$0xff] %vm31, %v2474
    %2539 = vst.msk [vmem:[#allocation5 + $0x80] sm:$0xff] %vm31, %v2475
    %2540 = vst.msk [vmem:[#allocation5 + $0x88] sm:$0xff] %vm31, %v2476
    %2541 = vst.msk [vmem:[#allocation5 + $0x90] sm:$0xff] %vm31, %v2477
    %2542 = vst.msk [vmem:[#allocation5 + $0x98] sm:$0xff] %vm31, %v2478
    %2543 = vst.msk [vmem:[#allocation5 + $0xa0] sm:$0xff] %vm31, %v2479
    %2544 = vst.msk [vmem:[#allocation5 + $0xa8] sm:$0xff] %vm31, %v2480
    %2545 = vst.msk [vmem:[#allocation5 + $0xb0] sm:$0xff] %vm31, %v2481
    %2546 = vst.msk [vmem:[#allocation5 + $0xb8] sm:$0xff] %vm31, %v2482
    %2547 = vst.msk [vmem:[#allocation5 + $0xc0] sm:$0xff] %vm31, %v2483
    %2548 = vst.msk [vmem:[#allocation5 + $0xc8] sm:$0xff] %vm31, %v2484
    %2549 = vst.msk [vmem:[#allocation5 + $0xd0] sm:$0xff] %vm31, %v2485
    %2550 = vst.msk [vmem:[#allocation5 + $0xd8] sm:$0xff] %vm31, %v2486
    %2551 = vst.msk [vmem:[#allocation5 + $0xe0] sm:$0xff] %vm31, %v2487
    %2552 = vst.msk [vmem:[#allocation5 + $0xe8] sm:$0xff] %vm31, %v2488
    %2553 = vst.msk [vmem:[#allocation5 + $0xf0] sm:$0xff] %vm31, %v2489
    %2554 = vst.msk [vmem:[#allocation5 + $0xf8] sm:$0xff] %vm31, %v2490
    %2555 = vst.msk [vmem:[#allocation5 + $0x100] sm:$0xff] %vm31, %v2491
    %2556 = vst.msk [vmem:[#allocation5 + $0x108] sm:$0xff] %vm31, %v2492
    %2557 = vst.msk [vmem:[#allocation5 + $0x110] sm:$0xff] %vm31, %v2493
    %2558 = vst.msk [vmem:[#allocation5 + $0x118] sm:$0xff] %vm31, %v2494
    %2559 = vst.msk [vmem:[#allocation5 + $0x120] sm:$0xff] %vm31, %v2495
    %2560 = vst.msk [vmem:[#allocation5 + $0x128] sm:$0xff] %vm31, %v2496
    %2561 = vst.msk [vmem:[#allocation5 + $0x130] sm:$0xff] %vm31, %v2497
    %2562 = vst.msk [vmem:[#allocation5 + $0x138] sm:$0xff] %vm31, %v2498
    %2563 = vst.msk [vmem:[#allocation5 + $0x140] sm:$0xff] %vm31, %v2499
    %2564 = vst.msk [vmem:[#allocation5 + $0x148] sm:$0xff] %vm31, %v2500
    %2565 = vst.msk [vmem:[#allocation5 + $0x150] sm:$0xff] %vm31, %v2501
    %2566 = vst.msk [vmem:[#allocation5 + $0x158] sm:$0xff] %vm31, %v2502
    %2567 = vst.msk [vmem:[#allocation5 + $0x160] sm:$0xff] %vm31, %v2503
    %2568 = vst.msk [vmem:[#allocation5 + $0x168] sm:$0xff] %vm31, %v2504
    %2569 = vst.msk [vmem:[#allocation5 + $0x170] sm:$0xff] %vm31, %v2505
    %2570 = vst.msk [vmem:[#allocation5 + $0x178] sm:$0xff] %vm31, %v2506
    %2571 = vst.msk [vmem:[#allocation5 + $0x180] sm:$0xff] %vm31, %v2507
    %2572 = vst.msk [vmem:[#allocation5 + $0x188] sm:$0xff] %vm31, %v2508
    %2573 = vst.msk [vmem:[#allocation5 + $0x190] sm:$0xff] %vm31, %v2509
    %2574 = vst.msk [vmem:[#allocation5 + $0x198] sm:$0xff] %vm31, %v2510
    %2575 = vst.msk [vmem:[#allocation5 + $0x1a0] sm:$0xff] %vm31, %v2511
    %2576 = vst.msk [vmem:[#allocation5 + $0x1a8] sm:$0xff] %vm31, %v2512
    %2577 = vst.msk [vmem:[#allocation5 + $0x1b0] sm:$0xff] %vm31, %v2513
    %2578 = vst.msk [vmem:[#allocation5 + $0x1b8] sm:$0xff] %vm31, %v2514
    %2579 = vst.msk [vmem:[#allocation5 + $0x1c0] sm:$0xff] %vm31, %v2515
    %2580 = vst.msk [vmem:[#allocation5 + $0x1c8] sm:$0xff] %vm31, %v2516
    %2581 = vst.msk [vmem:[#allocation5 + $0x1d0] sm:$0xff] %vm31, %v2517
    %2582 = vst.msk [vmem:[#allocation5 + $0x1d8] sm:$0xff] %vm31, %v2518
    %2583 = vst.msk [vmem:[#allocation5 + $0x1e0] sm:$0xff] %vm31, %v2519
    %2584 = vst.msk [vmem:[#allocation5 + $0x1e8] sm:$0xff] %vm31, %v2520
    %2585 = vst.msk [vmem:[#allocation5 + $0x1f0] sm:$0xff] %vm31, %v2521
    %2586 = vst.msk [vmem:[#allocation5 + $0x1f8] sm:$0xff] %vm31, %v2522
    %v2587 = vld [vmem:[%s49 + $0x7] sm:$0xff]
    %v2588 = vld [vmem:[%s49 + $0xf] sm:$0xff]
    %v2589 = vld [vmem:[%s49 + $0x27] sm:$0xff]
    %v2590 = vld [vmem:[%s49 + $0x2f] sm:$0xff]
    %v2591 = vld [vmem:[%s49 + $0x47] sm:$0xff]
    %v2592 = vld [vmem:[%s49 + $0x4f] sm:$0xff]
    %v2593 = vld [vmem:[%s49 + $0x67] sm:$0xff]
    %v2594 = vld [vmem:[%s49 + $0x6f] sm:$0xff]
    %v2595 = vld [vmem:[%s49 + $0x87] sm:$0xff]
    %v2596 = vld [vmem:[%s49 + $0x8f] sm:$0xff]
    %v2597 = vld [vmem:[%s49 + $0xa7] sm:$0xff]
    %v2598 = vld [vmem:[%s49 + $0xaf] sm:$0xff]
    %v2599 = vld [vmem:[%s49 + $0xc7] sm:$0xff]
    %v2600 = vld [vmem:[%s49 + $0xcf] sm:$0xff]
    %v2601 = vld [vmem:[%s49 + $0xe7] sm:$0xff]
    %v2602 = vld [vmem:[%s49 + $0xef] sm:$0xff]
    %v2603 = vld [vmem:[%s49 + $0x107] sm:$0xff]
    %v2604 = vld [vmem:[%s49 + $0x10f] sm:$0xff]
    %v2605 = vld [vmem:[%s49 + $0x127] sm:$0xff]
    %v2606 = vld [vmem:[%s49 + $0x12f] sm:$0xff]
    %v2607 = vld [vmem:[%s49 + $0x147] sm:$0xff]
    %v2608 = vld [vmem:[%s49 + $0x14f] sm:$0xff]
    %v2609 = vld [vmem:[%s49 + $0x167] sm:$0xff]
    %v2610 = vld [vmem:[%s49 + $0x16f] sm:$0xff]
    %v2611 = vld [vmem:[%s49 + $0x187] sm:$0xff]
    %v2612 = vld [vmem:[%s49 + $0x18f] sm:$0xff]
    %v2613 = vld [vmem:[%s49 + $0x1a7] sm:$0xff]
    %v2614 = vld [vmem:[%s49 + $0x1af] sm:$0xff]
    %v2615 = vld [vmem:[%s49 + $0x1c7] sm:$0xff]
    %v2616 = vld [vmem:[%s49 + $0x1cf] sm:$0xff]
    %v2617 = vld [vmem:[%s49 + $0x1e7] sm:$0xff]
    %v2618 = vld [vmem:[%s49 + $0x1ef] sm:$0xff]
    %v2619 = vld [vmem:[%s49 + $0x247] sm:$0xff]
    %v2620 = vld [vmem:[%s49 + $0x24f] sm:$0xff]
    %v2621 = vld [vmem:[%s49 + $0x267] sm:$0xff]
    %v2622 = vld [vmem:[%s49 + $0x26f] sm:$0xff]
    %v2623 = vld [vmem:[%s49 + $0x287] sm:$0xff]
    %v2624 = vld [vmem:[%s49 + $0x28f] sm:$0xff]
    %v2625 = vld [vmem:[%s49 + $0x2a7] sm:$0xff]
    %v2626 = vld [vmem:[%s49 + $0x2af] sm:$0xff]
    %v2627 = vld [vmem:[%s49 + $0x2c7] sm:$0xff]
    %v2628 = vld [vmem:[%s49 + $0x2cf] sm:$0xff]
    %v2629 = vld [vmem:[%s49 + $0x2e7] sm:$0xff]
    %v2630 = vld [vmem:[%s49 + $0x2ef] sm:$0xff]
    %v2631 = vld [vmem:[%s49 + $0x307] sm:$0xff]
    %v2632 = vld [vmem:[%s49 + $0x30f] sm:$0xff]
    %v2633 = vld [vmem:[%s49 + $0x327] sm:$0xff]
    %v2634 = vld [vmem:[%s49 + $0x32f] sm:$0xff]
    %v2635 = vld [vmem:[%s49 + $0x347] sm:$0xff]
    %v2636 = vld [vmem:[%s49 + $0x34f] sm:$0xff]
    %v2637 = vld [vmem:[%s49 + $0x367] sm:$0xff]
    %v2638 = vld [vmem:[%s49 + $0x36f] sm:$0xff]
    %v2639 = vld [vmem:[%s49 + $0x387] sm:$0xff]
    %v2640 = vld [vmem:[%s49 + $0x38f] sm:$0xff]
    %v2641 = vld [vmem:[%s49 + $0x3a7] sm:$0xff]
    %v2642 = vld [vmem:[%s49 + $0x3af] sm:$0xff]
    %v2643 = vld [vmem:[%s49 + $0x3c7] sm:$0xff]
    %v2644 = vld [vmem:[%s49 + $0x3cf] sm:$0xff]
    %v2645 = vld [vmem:[%s49 + $0x3e7] sm:$0xff]
    %v2646 = vld [vmem:[%s49 + $0x3ef] sm:$0xff]
    %v2647 = vld [vmem:[%s49 + $0x407] sm:$0xff]
    %v2648 = vld [vmem:[%s49 + $0x40f] sm:$0xff]
    %v2649 = vld [vmem:[%s49 + $0x427] sm:$0xff]
    %v2650 = vld [vmem:[%s49 + $0x42f] sm:$0xff]
    %v2651 = vpack.c.bf16 %v2588, %v2587
    %v2652 = vpack.c.bf16 %v2590, %v2589
    %v2653 = vpack.c.bf16 %v2592, %v2591
    %v2654 = vpack.c.bf16 %v2594, %v2593
    %v2655 = vpack.c.bf16 %v2596, %v2595
    %v2656 = vpack.c.bf16 %v2598, %v2597
    %v2657 = vpack.c.bf16 %v2600, %v2599
    %v2658 = vpack.c.bf16 %v2602, %v2601
    %v2659 = vpack.c.bf16 %v2604, %v2603
    %v2660 = vpack.c.bf16 %v2606, %v2605
    %v2661 = vpack.c.bf16 %v2608, %v2607
    %v2662 = vpack.c.bf16 %v2610, %v2609
    %v2663 = vpack.c.bf16 %v2612, %v2611
    %v2664 = vpack.c.bf16 %v2614, %v2613
    %v2665 = vpack.c.bf16 %v2616, %v2615
    %v2666 = vpack.c.bf16 %v2618, %v2617
    %v2667 = vpack.c.bf16 %v2620, %v2619
    %v2668 = vpack.c.bf16 %v2622, %v2621
    %v2669 = vpack.c.bf16 %v2624, %v2623
    %v2670 = vpack.c.bf16 %v2626, %v2625
    %v2671 = vpack.c.bf16 %v2628, %v2627
    %v2672 = vpack.c.bf16 %v2630, %v2629
    %v2673 = vpack.c.bf16 %v2632, %v2631
    %v2674 = vpack.c.bf16 %v2634, %v2633
    %v2675 = vpack.c.bf16 %v2636, %v2635
    %v2676 = vpack.c.bf16 %v2638, %v2637
    %v2677 = vpack.c.bf16 %v2640, %v2639
    %v2678 = vpack.c.bf16 %v2642, %v2641
    %v2679 = vpack.c.bf16 %v2644, %v2643
    %v2680 = vpack.c.bf16 %v2646, %v2645
    %v2681 = vpack.c.bf16 %v2648, %v2647
    %v2682 = vpack.c.bf16 %v2650, %v2649
    %s2683 = scalar_lea.vmem %s2, 48
    %v2684 = vld [vmem:[%s2683] sm:$0xf]
    %v2685 = vld [vmem:[%s2683 + $0x4] sm:$0xf]
    %v2686 = vld [vmem:[%s2683 + $0x8] sm:$0xf]
    %v2687 = vld [vmem:[%s2683 + $0xc] sm:$0xf]
    %v2692 = vunpack.c.l.b16 %v2684
    %v2693 = vunpack.c.l.b16 %v2685
    %v2694 = vunpack.c.l.b16 %v2686
    %v2695 = vunpack.c.l.b16 %v2687
    %v2696 = vpack.c.b16 %v2693, %v2692
    %v2697 = vpack.c.b16 %v2695, %v2694
    %v2701 = vsel %vm31, %v2651, 0
    %v2704 = vsel %vm31, %v2652, 0
    %v2707 = vsel %vm31, %v2653, 0
    %v2710 = vsel %vm31, %v2654, 0
    %v2713 = vsel %vm31, %v2655, 0
    %v2716 = vsel %vm31, %v2656, 0
    %v2719 = vsel %vm31, %v2657, 0
    %v2722 = vsel %vm31, %v2658, 0
    %v2725 = vsel %vm31, %v2659, 0
    %v2728 = vsel %vm31, %v2660, 0
    %v2731 = vsel %vm31, %v2661, 0
    %v2734 = vsel %vm31, %v2662, 0
    %v2737 = vsel %vm31, %v2663, 0
    %v2740 = vsel %vm31, %v2664, 0
    %v2743 = vsel %vm31, %v2665, 0
    %v2746 = vsel %vm31, %v2666, 0
    %v2749 = vsel %vm31, %v2667, 0
    %v2752 = vsel %vm31, %v2668, 0
    %v2755 = vsel %vm31, %v2669, 0
    %v2758 = vsel %vm31, %v2670, 0
    %v2761 = vsel %vm31, %v2671, 0
    %v2764 = vsel %vm31, %v2672, 0
    %v2767 = vsel %vm31, %v2673, 0
    %v2770 = vsel %vm31, %v2674, 0
    %v2773 = vsel %vm31, %v2675, 0
    %v2776 = vsel %vm31, %v2676, 0
    %v2779 = vsel %vm31, %v2677, 0
    %v2782 = vsel %vm31, %v2678, 0
    %v2785 = vsel %vm31, %v2679, 0
    %v2788 = vsel %vm31, %v2680, 0
    %v2791 = vsel %vm31, %v2681, 0
    %v2794 = vsel %vm31, %v2682, 0
    %2796 = vmatpush.bf16.msra.mxu0 0
    %2797 = vmatpush.bf16.msra.mxu0 0
    %2798 = vmatpush.bf16.msra.mxu0 0
    %2799 = vmatpush.bf16.msra.mxu0 0
    %2800 = vmatpush.bf16.msra.mxu0 0
    %2801 = vmatpush.bf16.msra.mxu0 0
    %2802 = vmatpush.bf16.msra.mxu0 %v2697
    %2803 = vmatpush.bf16.msra.mxu0 %v2696
    %2804 = vmatmul.bf16.gmra.mxu0 %v2701
    %v2805 = vpop.f32.mrf.mxu0
    %v2806 = vadd.f32 0.0, %v2805
    %v2807 = vpop.f32.mrf.mxu0
    %v2808 = vadd.f32 0.0, %v2807
    %2809 = vmatmul.bf16.gmra.mxu0 %v2704
    %v2810 = vpop.f32.mrf.mxu0
    %v2811 = vadd.f32 0.0, %v2810
    %v2812 = vpop.f32.mrf.mxu0
    %v2813 = vadd.f32 0.0, %v2812
    %2814 = vmatmul.bf16.gmra.mxu0 %v2707
    %v2815 = vpop.f32.mrf.mxu0
    %v2816 = vadd.f32 0.0, %v2815
    %v2817 = vpop.f32.mrf.mxu0
    %v2818 = vadd.f32 0.0, %v2817
    %2819 = vmatmul.bf16.gmra.mxu0 %v2710
    %v2820 = vpop.f32.mrf.mxu0
    %v2821 = vadd.f32 0.0, %v2820
    %v2822 = vpop.f32.mrf.mxu0
    %v2823 = vadd.f32 0.0, %v2822
    %2824 = vmatmul.bf16.gmra.mxu0 %v2713
    %v2825 = vpop.f32.mrf.mxu0
    %v2826 = vadd.f32 0.0, %v2825
    %v2827 = vpop.f32.mrf.mxu0
    %v2828 = vadd.f32 0.0, %v2827
    %2829 = vmatmul.bf16.gmra.mxu0 %v2716
    %v2830 = vpop.f32.mrf.mxu0
    %v2831 = vadd.f32 0.0, %v2830
    %v2832 = vpop.f32.mrf.mxu0
    %v2833 = vadd.f32 0.0, %v2832
    %2834 = vmatmul.bf16.gmra.mxu0 %v2719
    %v2835 = vpop.f32.mrf.mxu0
    %v2836 = vadd.f32 0.0, %v2835
    %v2837 = vpop.f32.mrf.mxu0
    %v2838 = vadd.f32 0.0, %v2837
    %2839 = vmatmul.bf16.gmra.mxu0 %v2722
    %v2840 = vpop.f32.mrf.mxu0
    %v2841 = vadd.f32 0.0, %v2840
    %v2842 = vpop.f32.mrf.mxu0
    %v2843 = vadd.f32 0.0, %v2842
    %2844 = vmatmul.bf16.gmra.mxu0 %v2725
    %v2845 = vpop.f32.mrf.mxu0
    %v2846 = vadd.f32 0.0, %v2845
    %v2847 = vpop.f32.mrf.mxu0
    %v2848 = vadd.f32 0.0, %v2847
    %2849 = vmatmul.bf16.gmra.mxu0 %v2728
    %v2850 = vpop.f32.mrf.mxu0
    %v2851 = vadd.f32 0.0, %v2850
    %v2852 = vpop.f32.mrf.mxu0
    %v2853 = vadd.f32 0.0, %v2852
    %2854 = vmatmul.bf16.gmra.mxu0 %v2731
    %v2855 = vpop.f32.mrf.mxu0
    %v2856 = vadd.f32 0.0, %v2855
    %v2857 = vpop.f32.mrf.mxu0
    %v2858 = vadd.f32 0.0, %v2857
    %2859 = vmatmul.bf16.gmra.mxu0 %v2734
    %v2860 = vpop.f32.mrf.mxu0
    %v2861 = vadd.f32 0.0, %v2860
    %v2862 = vpop.f32.mrf.mxu0
    %v2863 = vadd.f32 0.0, %v2862
    %2864 = vmatmul.bf16.gmra.mxu0 %v2737
    %v2865 = vpop.f32.mrf.mxu0
    %v2866 = vadd.f32 0.0, %v2865
    %v2867 = vpop.f32.mrf.mxu0
    %v2868 = vadd.f32 0.0, %v2867
    %2869 = vmatmul.bf16.gmra.mxu0 %v2740
    %v2870 = vpop.f32.mrf.mxu0
    %v2871 = vadd.f32 0.0, %v2870
    %v2872 = vpop.f32.mrf.mxu0
    %v2873 = vadd.f32 0.0, %v2872
    %2874 = vmatmul.bf16.gmra.mxu0 %v2743
    %v2875 = vpop.f32.mrf.mxu0
    %v2876 = vadd.f32 0.0, %v2875
    %v2877 = vpop.f32.mrf.mxu0
    %v2878 = vadd.f32 0.0, %v2877
    %2879 = vmatmul.bf16.gmra.mxu0 %v2746
    %v2880 = vpop.f32.mrf.mxu0
    %v2881 = vadd.f32 0.0, %v2880
    %v2882 = vpop.f32.mrf.mxu0
    %v2883 = vadd.f32 0.0, %v2882
    %2884 = vmatmul.bf16.gmra.mxu0 %v2749
    %v2885 = vpop.f32.mrf.mxu0
    %v2886 = vadd.f32 0.0, %v2885
    %v2887 = vpop.f32.mrf.mxu0
    %v2888 = vadd.f32 0.0, %v2887
    %2889 = vmatmul.bf16.gmra.mxu0 %v2752
    %v2890 = vpop.f32.mrf.mxu0
    %v2891 = vadd.f32 0.0, %v2890
    %v2892 = vpop.f32.mrf.mxu0
    %v2893 = vadd.f32 0.0, %v2892
    %2894 = vmatmul.bf16.gmra.mxu0 %v2755
    %v2895 = vpop.f32.mrf.mxu0
    %v2896 = vadd.f32 0.0, %v2895
    %v2897 = vpop.f32.mrf.mxu0
    %v2898 = vadd.f32 0.0, %v2897
    %2899 = vmatmul.bf16.gmra.mxu0 %v2758
    %v2900 = vpop.f32.mrf.mxu0
    %v2901 = vadd.f32 0.0, %v2900
    %v2902 = vpop.f32.mrf.mxu0
    %v2903 = vadd.f32 0.0, %v2902
    %2904 = vmatmul.bf16.gmra.mxu0 %v2761
    %v2905 = vpop.f32.mrf.mxu0
    %v2906 = vadd.f32 0.0, %v2905
    %v2907 = vpop.f32.mrf.mxu0
    %v2908 = vadd.f32 0.0, %v2907
    %2909 = vmatmul.bf16.gmra.mxu0 %v2764
    %v2910 = vpop.f32.mrf.mxu0
    %v2911 = vadd.f32 0.0, %v2910
    %v2912 = vpop.f32.mrf.mxu0
    %v2913 = vadd.f32 0.0, %v2912
    %2914 = vmatmul.bf16.gmra.mxu0 %v2767
    %v2915 = vpop.f32.mrf.mxu0
    %v2916 = vadd.f32 0.0, %v2915
    %v2917 = vpop.f32.mrf.mxu0
    %v2918 = vadd.f32 0.0, %v2917
    %2919 = vmatmul.bf16.gmra.mxu0 %v2770
    %v2920 = vpop.f32.mrf.mxu0
    %v2921 = vadd.f32 0.0, %v2920
    %v2922 = vpop.f32.mrf.mxu0
    %v2923 = vadd.f32 0.0, %v2922
    %2924 = vmatmul.bf16.gmra.mxu0 %v2773
    %v2925 = vpop.f32.mrf.mxu0
    %v2926 = vadd.f32 0.0, %v2925
    %v2927 = vpop.f32.mrf.mxu0
    %v2928 = vadd.f32 0.0, %v2927
    %2929 = vmatmul.bf16.gmra.mxu0 %v2776
    %v2930 = vpop.f32.mrf.mxu0
    %v2931 = vadd.f32 0.0, %v2930
    %v2932 = vpop.f32.mrf.mxu0
    %v2933 = vadd.f32 0.0, %v2932
    %2934 = vmatmul.bf16.gmra.mxu0 %v2779
    %v2935 = vpop.f32.mrf.mxu0
    %v2936 = vadd.f32 0.0, %v2935
    %v2937 = vpop.f32.mrf.mxu0
    %v2938 = vadd.f32 0.0, %v2937
    %2939 = vmatmul.bf16.gmra.mxu0 %v2782
    %v2940 = vpop.f32.mrf.mxu0
    %v2941 = vadd.f32 0.0, %v2940
    %v2942 = vpop.f32.mrf.mxu0
    %v2943 = vadd.f32 0.0, %v2942
    %2944 = vmatmul.bf16.gmra.mxu0 %v2785
    %v2945 = vpop.f32.mrf.mxu0
    %v2946 = vadd.f32 0.0, %v2945
    %v2947 = vpop.f32.mrf.mxu0
    %v2948 = vadd.f32 0.0, %v2947
    %2949 = vmatmul.bf16.gmra.mxu0 %v2788
    %v2950 = vpop.f32.mrf.mxu0
    %v2951 = vadd.f32 0.0, %v2950
    %v2952 = vpop.f32.mrf.mxu0
    %v2953 = vadd.f32 0.0, %v2952
    %2954 = vmatmul.bf16.gmra.mxu0 %v2791
    %v2955 = vpop.f32.mrf.mxu0
    %v2956 = vadd.f32 0.0, %v2955
    %v2957 = vpop.f32.mrf.mxu0
    %v2958 = vadd.f32 0.0, %v2957
    %2959 = vmatmul.bf16.gmra.mxu0 %v2794
    %v2960 = vpop.f32.mrf.mxu0
    %v2961 = vadd.f32 0.0, %v2960
    %v2962 = vpop.f32.mrf.mxu0
    %v2963 = vadd.f32 0.0, %v2962
    %2964 = vdwg.mxu0
    %v2965 = vld [vmem:[#allocation5] sm:$0xff]
    %v2966 = vld [vmem:[#allocation5 + $0x8] sm:$0xff]
    %v2967 = vld [vmem:[#allocation5 + $0x10] sm:$0xff]
    %v2968 = vld [vmem:[#allocation5 + $0x18] sm:$0xff]
    %v2969 = vld [vmem:[#allocation5 + $0x20] sm:$0xff]
    %v2970 = vld [vmem:[#allocation5 + $0x28] sm:$0xff]
    %v2971 = vld [vmem:[#allocation5 + $0x30] sm:$0xff]
    %v2972 = vld [vmem:[#allocation5 + $0x38] sm:$0xff]
    %v2973 = vld [vmem:[#allocation5 + $0x40] sm:$0xff]
    %v2974 = vld [vmem:[#allocation5 + $0x48] sm:$0xff]
    %v2975 = vld [vmem:[#allocation5 + $0x50] sm:$0xff]
    %v2976 = vld [vmem:[#allocation5 + $0x58] sm:$0xff]
    %v2977 = vld [vmem:[#allocation5 + $0x60] sm:$0xff]
    %v2978 = vld [vmem:[#allocation5 + $0x68] sm:$0xff]
    %v2979 = vld [vmem:[#allocation5 + $0x70] sm:$0xff]
    %v2980 = vld [vmem:[#allocation5 + $0x78] sm:$0xff]
    %v2981 = vld [vmem:[#allocation5 + $0x80] sm:$0xff]
    %v2982 = vld [vmem:[#allocation5 + $0x88] sm:$0xff]
    %v2983 = vld [vmem:[#allocation5 + $0x90] sm:$0xff]
    %v2984 = vld [vmem:[#allocation5 + $0x98] sm:$0xff]
    %v2985 = vld [vmem:[#allocation5 + $0xa0] sm:$0xff]
    %v2986 = vld [vmem:[#allocation5 + $0xa8] sm:$0xff]
    %v2987 = vld [vmem:[#allocation5 + $0xb0] sm:$0xff]
    %v2988 = vld [vmem:[#allocation5 + $0xb8] sm:$0xff]
    %v2989 = vld [vmem:[#allocation5 + $0xc0] sm:$0xff]
    %v2990 = vld [vmem:[#allocation5 + $0xc8] sm:$0xff]
    %v2991 = vld [vmem:[#allocation5 + $0xd0] sm:$0xff]
    %v2992 = vld [vmem:[#allocation5 + $0xd8] sm:$0xff]
    %v2993 = vld [vmem:[#allocation5 + $0xe0] sm:$0xff]
    %v2994 = vld [vmem:[#allocation5 + $0xe8] sm:$0xff]
    %v2995 = vld [vmem:[#allocation5 + $0xf0] sm:$0xff]
    %v2996 = vld [vmem:[#allocation5 + $0xf8] sm:$0xff]
    %v2997 = vld [vmem:[#allocation5 + $0x100] sm:$0xff]
    %v2998 = vld [vmem:[#allocation5 + $0x108] sm:$0xff]
    %v2999 = vld [vmem:[#allocation5 + $0x110] sm:$0xff]
    %v3000 = vld [vmem:[#allocation5 + $0x118] sm:$0xff]
    %v3001 = vld [vmem:[#allocation5 + $0x120] sm:$0xff]
    %v3002 = vld [vmem:[#allocation5 + $0x128] sm:$0xff]
    %v3003 = vld [vmem:[#allocation5 + $0x130] sm:$0xff]
    %v3004 = vld [vmem:[#allocation5 + $0x138] sm:$0xff]
    %v3005 = vld [vmem:[#allocation5 + $0x140] sm:$0xff]
    %v3006 = vld [vmem:[#allocation5 + $0x148] sm:$0xff]
    %v3007 = vld [vmem:[#allocation5 + $0x150] sm:$0xff]
    %v3008 = vld [vmem:[#allocation5 + $0x158] sm:$0xff]
    %v3009 = vld [vmem:[#allocation5 + $0x160] sm:$0xff]
    %v3010 = vld [vmem:[#allocation5 + $0x168] sm:$0xff]
    %v3011 = vld [vmem:[#allocation5 + $0x170] sm:$0xff]
    %v3012 = vld [vmem:[#allocation5 + $0x178] sm:$0xff]
    %v3013 = vld [vmem:[#allocation5 + $0x180] sm:$0xff]
    %v3014 = vld [vmem:[#allocation5 + $0x188] sm:$0xff]
    %v3015 = vld [vmem:[#allocation5 + $0x190] sm:$0xff]
    %v3016 = vld [vmem:[#allocation5 + $0x198] sm:$0xff]
    %v3017 = vld [vmem:[#allocation5 + $0x1a0] sm:$0xff]
    %v3018 = vld [vmem:[#allocation5 + $0x1a8] sm:$0xff]
    %v3019 = vld [vmem:[#allocation5 + $0x1b0] sm:$0xff]
    %v3020 = vld [vmem:[#allocation5 + $0x1b8] sm:$0xff]
    %v3021 = vld [vmem:[#allocation5 + $0x1c0] sm:$0xff]
    %v3022 = vld [vmem:[#allocation5 + $0x1c8] sm:$0xff]
    %v3023 = vld [vmem:[#allocation5 + $0x1d0] sm:$0xff]
    %v3024 = vld [vmem:[#allocation5 + $0x1d8] sm:$0xff]
    %v3025 = vld [vmem:[#allocation5 + $0x1e0] sm:$0xff]
    %v3026 = vld [vmem:[#allocation5 + $0x1e8] sm:$0xff]
    %v3027 = vld [vmem:[#allocation5 + $0x1f0] sm:$0xff]
    %v3028 = vld [vmem:[#allocation5 + $0x1f8] sm:$0xff]
    %v3029 = vadd.f32 %v2965, %v2806
    %v3030 = vadd.f32 %v2966, %v2808
    %v3031 = vadd.f32 %v2967, %v2811
    %v3032 = vadd.f32 %v2968, %v2813
    %v3033 = vadd.f32 %v2969, %v2816
    %v3034 = vadd.f32 %v2970, %v2818
    %v3035 = vadd.f32 %v2971, %v2821
    %v3036 = vadd.f32 %v2972, %v2823
    %v3037 = vadd.f32 %v2973, %v2826
    %v3038 = vadd.f32 %v2974, %v2828
    %v3039 = vadd.f32 %v2975, %v2831
    %v3040 = vadd.f32 %v2976, %v2833
    %v3041 = vadd.f32 %v2977, %v2836
    %v3042 = vadd.f32 %v2978, %v2838
    %v3043 = vadd.f32 %v2979, %v2841
    %v3044 = vadd.f32 %v2980, %v2843
    %v3045 = vadd.f32 %v2981, %v2846
    %v3046 = vadd.f32 %v2982, %v2848
    %v3047 = vadd.f32 %v2983, %v2851
    %v3048 = vadd.f32 %v2984, %v2853
    %v3049 = vadd.f32 %v2985, %v2856
    %v3050 = vadd.f32 %v2986, %v2858
    %v3051 = vadd.f32 %v2987, %v2861
    %v3052 = vadd.f32 %v2988, %v2863
    %v3053 = vadd.f32 %v2989, %v2866
    %v3054 = vadd.f32 %v2990, %v2868
    %v3055 = vadd.f32 %v2991, %v2871
    %v3056 = vadd.f32 %v2992, %v2873
    %v3057 = vadd.f32 %v2993, %v2876
    %v3058 = vadd.f32 %v2994, %v2878
    %v3059 = vadd.f32 %v2995, %v2881
    %v3060 = vadd.f32 %v2996, %v2883
    %v3061 = vadd.f32 %v2997, %v2886
    %v3062 = vadd.f32 %v2998, %v2888
    %v3063 = vadd.f32 %v2999, %v2891
    %v3064 = vadd.f32 %v3000, %v2893
    %v3065 = vadd.f32 %v3001, %v2896
    %v3066 = vadd.f32 %v3002, %v2898
    %v3067 = vadd.f32 %v3003, %v2901
    %v3068 = vadd.f32 %v3004, %v2903
    %v3069 = vadd.f32 %v3005, %v2906
    %v3070 = vadd.f32 %v3006, %v2908
    %v3071 = vadd.f32 %v3007, %v2911
    %v3072 = vadd.f32 %v3008, %v2913
    %v3073 = vadd.f32 %v3009, %v2916
    %v3074 = vadd.f32 %v3010, %v2918
    %v3075 = vadd.f32 %v3011, %v2921
    %v3076 = vadd.f32 %v3012, %v2923
    %v3077 = vadd.f32 %v3013, %v2926
    %v3078 = vadd.f32 %v3014, %v2928
    %v3079 = vadd.f32 %v3015, %v2931
    %v3080 = vadd.f32 %v3016, %v2933
    %v3081 = vadd.f32 %v3017, %v2936
    %v3082 = vadd.f32 %v3018, %v2938
    %v3083 = vadd.f32 %v3019, %v2941
    %v3084 = vadd.f32 %v3020, %v2943
    %v3085 = vadd.f32 %v3021, %v2946
    %v3086 = vadd.f32 %v3022, %v2948
    %v3087 = vadd.f32 %v3023, %v2951
    %v3088 = vadd.f32 %v3024, %v2953
    %v3089 = vadd.f32 %v3025, %v2956
    %v3090 = vadd.f32 %v3026, %v2958
    %v3091 = vadd.f32 %v3027, %v2961
    %v3092 = vadd.f32 %v3028, %v2963
    %3093 = vst.msk [vmem:[#allocation5] sm:$0xff] %vm31, %v3029
    %3094 = vst.msk [vmem:[#allocation5 + $0x8] sm:$0xff] %vm31, %v3030
    %3095 = vst.msk [vmem:[#allocation5 + $0x10] sm:$0xff] %vm31, %v3031
    %3096 = vst.msk [vmem:[#allocation5 + $0x18] sm:$0xff] %vm31, %v3032
    %3097 = vst.msk [vmem:[#allocation5 + $0x20] sm:$0xff] %vm31, %v3033
    %3098 = vst.msk [vmem:[#allocation5 + $0x28] sm:$0xff] %vm31, %v3034
    %3099 = vst.msk [vmem:[#allocation5 + $0x30] sm:$0xff] %vm31, %v3035
    %3100 = vst.msk [vmem:[#allocation5 + $0x38] sm:$0xff] %vm31, %v3036
    %3101 = vst.msk [vmem:[#allocation5 + $0x40] sm:$0xff] %vm31, %v3037
    %3102 = vst.msk [vmem:[#allocation5 + $0x48] sm:$0xff] %vm31, %v3038
    %3103 = vst.msk [vmem:[#allocation5 + $0x50] sm:$0xff] %vm31, %v3039
    %3104 = vst.msk [vmem:[#allocation5 + $0x58] sm:$0xff] %vm31, %v3040
    %3105 = vst.msk [vmem:[#allocation5 + $0x60] sm:$0xff] %vm31, %v3041
    %3106 = vst.msk [vmem:[#allocation5 + $0x68] sm:$0xff] %vm31, %v3042
    %3107 = vst.msk [vmem:[#allocation5 + $0x70] sm:$0xff] %vm31, %v3043
    %3108 = vst.msk [vmem:[#allocation5 + $0x78] sm:$0xff] %vm31, %v3044
    %3109 = vst.msk [vmem:[#allocation5 + $0x80] sm:$0xff] %vm31, %v3045
    %3110 = vst.msk [vmem:[#allocation5 + $0x88] sm:$0xff] %vm31, %v3046
    %3111 = vst.msk [vmem:[#allocation5 + $0x90] sm:$0xff] %vm31, %v3047
    %3112 = vst.msk [vmem:[#allocation5 + $0x98] sm:$0xff] %vm31, %v3048
    %3113 = vst.msk [vmem:[#allocation5 + $0xa0] sm:$0xff] %vm31, %v3049
    %3114 = vst.msk [vmem:[#allocation5 + $0xa8] sm:$0xff] %vm31, %v3050
    %3115 = vst.msk [vmem:[#allocation5 + $0xb0] sm:$0xff] %vm31, %v3051
    %3116 = vst.msk [vmem:[#allocation5 + $0xb8] sm:$0xff] %vm31, %v3052
    %3117 = vst.msk [vmem:[#allocation5 + $0xc0] sm:$0xff] %vm31, %v3053
    %3118 = vst.msk [vmem:[#allocation5 + $0xc8] sm:$0xff] %vm31, %v3054
    %3119 = vst.msk [vmem:[#allocation5 + $0xd0] sm:$0xff] %vm31, %v3055
    %3120 = vst.msk [vmem:[#allocation5 + $0xd8] sm:$0xff] %vm31, %v3056
    %3121 = vst.msk [vmem:[#allocation5 + $0xe0] sm:$0xff] %vm31, %v3057
    %3122 = vst.msk [vmem:[#allocation5 + $0xe8] sm:$0xff] %vm31, %v3058
    %3123 = vst.msk [vmem:[#allocation5 + $0xf0] sm:$0xff] %vm31, %v3059
    %3124 = vst.msk [vmem:[#allocation5 + $0xf8] sm:$0xff] %vm31, %v3060
    %3125 = vst.msk [vmem:[#allocation5 + $0x100] sm:$0xff] %vm31, %v3061
    %3126 = vst.msk [vmem:[#allocation5 + $0x108] sm:$0xff] %vm31, %v3062
    %3127 = vst.msk [vmem:[#allocation5 + $0x110] sm:$0xff] %vm31, %v3063
    %3128 = vst.msk [vmem:[#allocation5 + $0x118] sm:$0xff] %vm31, %v3064
    %3129 = vst.msk [vmem:[#allocation5 + $0x120] sm:$0xff] %vm31, %v3065
    %3130 = vst.msk [vmem:[#allocation5 + $0x128] sm:$0xff] %vm31, %v3066
    %3131 = vst.msk [vmem:[#allocation5 + $0x130] sm:$0xff] %vm31, %v3067
    %3132 = vst.msk [vmem:[#allocation5 + $0x138] sm:$0xff] %vm31, %v3068
    %3133 = vst.msk [vmem:[#allocation5 + $0x140] sm:$0xff] %vm31, %v3069
    %3134 = vst.msk [vmem:[#allocation5 + $0x148] sm:$0xff] %vm31, %v3070
    %3135 = vst.msk [vmem:[#allocation5 + $0x150] sm:$0xff] %vm31, %v3071
    %3136 = vst.msk [vmem:[#allocation5 + $0x158] sm:$0xff] %vm31, %v3072
    %3137 = vst.msk [vmem:[#allocation5 + $0x160] sm:$0xff] %vm31, %v3073
    %3138 = vst.msk [vmem:[#allocation5 + $0x168] sm:$0xff] %vm31, %v3074
    %3139 = vst.msk [vmem:[#allocation5 + $0x170] sm:$0xff] %vm31, %v3075
    %3140 = vst.msk [vmem:[#allocation5 + $0x178] sm:$0xff] %vm31, %v3076
    %3141 = vst.msk [vmem:[#allocation5 + $0x180] sm:$0xff] %vm31, %v3077
    %3142 = vst.msk [vmem:[#allocation5 + $0x188] sm:$0xff] %vm31, %v3078
    %3143 = vst.msk [vmem:[#allocation5 + $0x190] sm:$0xff] %vm31, %v3079
    %3144 = vst.msk [vmem:[#allocation5 + $0x198] sm:$0xff] %vm31, %v3080
    %3145 = vst.msk [vmem:[#allocation5 + $0x1a0] sm:$0xff] %vm31, %v3081
    %3146 = vst.msk [vmem:[#allocation5 + $0x1a8] sm:$0xff] %vm31, %v3082
    %3147 = vst.msk [vmem:[#allocation5 + $0x1b0] sm:$0xff] %vm31, %v3083
    %3148 = vst.msk [vmem:[#allocation5 + $0x1b8] sm:$0xff] %vm31, %v3084
    %3149 = vst.msk [vmem:[#allocation5 + $0x1c0] sm:$0xff] %vm31, %v3085
    %3150 = vst.msk [vmem:[#allocation5 + $0x1c8] sm:$0xff] %vm31, %v3086
    %3151 = vst.msk [vmem:[#allocation5 + $0x1d0] sm:$0xff] %vm31, %v3087
    %3152 = vst.msk [vmem:[#allocation5 + $0x1d8] sm:$0xff] %vm31, %v3088
    %3153 = vst.msk [vmem:[#allocation5 + $0x1e0] sm:$0xff] %vm31, %v3089
    %3154 = vst.msk [vmem:[#allocation5 + $0x1e8] sm:$0xff] %vm31, %v3090
    %3155 = vst.msk [vmem:[#allocation5 + $0x1f0] sm:$0xff] %vm31, %v3091
    %3156 = vst.msk [vmem:[#allocation5 + $0x1f8] sm:$0xff] %vm31, %v3092
    %v3157 = vld [vmem:[%s49 + $0x8] sm:$0xff]
    %v3158 = vld [vmem:[%s49 + $0x10] sm:$0xff]
    %v3159 = vld [vmem:[%s49 + $0x28] sm:$0xff]
    %v3160 = vld [vmem:[%s49 + $0x30] sm:$0xff]
    %v3161 = vld [vmem:[%s49 + $0x48] sm:$0xff]
    %v3162 = vld [vmem:[%s49 + $0x50] sm:$0xff]
    %v3163 = vld [vmem:[%s49 + $0x68] sm:$0xff]
    %v3164 = vld [vmem:[%s49 + $0x70] sm:$0xff]
    %v3165 = vld [vmem:[%s49 + $0x88] sm:$0xff]
    %v3166 = vld [vmem:[%s49 + $0x90] sm:$0xff]
    %v3167 = vld [vmem:[%s49 + $0xa8] sm:$0xff]
    %v3168 = vld [vmem:[%s49 + $0xb0] sm:$0xff]
    %v3169 = vld [vmem:[%s49 + $0xc8] sm:$0xff]
    %v3170 = vld [vmem:[%s49 + $0xd0] sm:$0xff]
    %v3171 = vld [vmem:[%s49 + $0xe8] sm:$0xff]
    %v3172 = vld [vmem:[%s49 + $0xf0] sm:$0xff]
    %v3173 = vld [vmem:[%s49 + $0x108] sm:$0xff]
    %v3174 = vld [vmem:[%s49 + $0x110] sm:$0xff]
    %v3175 = vld [vmem:[%s49 + $0x128] sm:$0xff]
    %v3176 = vld [vmem:[%s49 + $0x130] sm:$0xff]
    %v3177 = vld [vmem:[%s49 + $0x148] sm:$0xff]
    %v3178 = vld [vmem:[%s49 + $0x150] sm:$0xff]
    %v3179 = vld [vmem:[%s49 + $0x168] sm:$0xff]
    %v3180 = vld [vmem:[%s49 + $0x170] sm:$0xff]
    %v3181 = vld [vmem:[%s49 + $0x188] sm:$0xff]
    %v3182 = vld [vmem:[%s49 + $0x190] sm:$0xff]
    %v3183 = vld [vmem:[%s49 + $0x1a8] sm:$0xff]
    %v3184 = vld [vmem:[%s49 + $0x1b0] sm:$0xff]
    %v3185 = vld [vmem:[%s49 + $0x1c8] sm:$0xff]
    %v3186 = vld [vmem:[%s49 + $0x1d0] sm:$0xff]
    %v3187 = vld [vmem:[%s49 + $0x1e8] sm:$0xff]
    %v3188 = vld [vmem:[%s49 + $0x1f0] sm:$0xff]
    %v3189 = vld [vmem:[%s49 + $0x248] sm:$0xff]
    %v3190 = vld [vmem:[%s49 + $0x250] sm:$0xff]
    %v3191 = vld [vmem:[%s49 + $0x268] sm:$0xff]
    %v3192 = vld [vmem:[%s49 + $0x270] sm:$0xff]
    %v3193 = vld [vmem:[%s49 + $0x288] sm:$0xff]
    %v3194 = vld [vmem:[%s49 + $0x290] sm:$0xff]
    %v3195 = vld [vmem:[%s49 + $0x2a8] sm:$0xff]
    %v3196 = vld [vmem:[%s49 + $0x2b0] sm:$0xff]
    %v3197 = vld [vmem:[%s49 + $0x2c8] sm:$0xff]
    %v3198 = vld [vmem:[%s49 + $0x2d0] sm:$0xff]
    %v3199 = vld [vmem:[%s49 + $0x2e8] sm:$0xff]
    %v3200 = vld [vmem:[%s49 + $0x2f0] sm:$0xff]
    %v3201 = vld [vmem:[%s49 + $0x308] sm:$0xff]
    %v3202 = vld [vmem:[%s49 + $0x310] sm:$0xff]
    %v3203 = vld [vmem:[%s49 + $0x328] sm:$0xff]
    %v3204 = vld [vmem:[%s49 + $0x330] sm:$0xff]
    %v3205 = vld [vmem:[%s49 + $0x348] sm:$0xff]
    %v3206 = vld [vmem:[%s49 + $0x350] sm:$0xff]
    %v3207 = vld [vmem:[%s49 + $0x368] sm:$0xff]
    %v3208 = vld [vmem:[%s49 + $0x370] sm:$0xff]
    %v3209 = vld [vmem:[%s49 + $0x388] sm:$0xff]
    %v3210 = vld [vmem:[%s49 + $0x390] sm:$0xff]
    %v3211 = vld [vmem:[%s49 + $0x3a8] sm:$0xff]
    %v3212 = vld [vmem:[%s49 + $0x3b0] sm:$0xff]
    %v3213 = vld [vmem:[%s49 + $0x3c8] sm:$0xff]
    %v3214 = vld [vmem:[%s49 + $0x3d0] sm:$0xff]
    %v3215 = vld [vmem:[%s49 + $0x3e8] sm:$0xff]
    %v3216 = vld [vmem:[%s49 + $0x3f0] sm:$0xff]
    %v3217 = vld [vmem:[%s49 + $0x408] sm:$0xff]
    %v3218 = vld [vmem:[%s49 + $0x410] sm:$0xff]
    %v3219 = vld [vmem:[%s49 + $0x428] sm:$0xff]
    %v3220 = vld [vmem:[%s49 + $0x430] sm:$0xff]
    %v3221 = vpack.c.bf16 %v3158, %v3157
    %v3222 = vpack.c.bf16 %v3160, %v3159
    %v3223 = vpack.c.bf16 %v3162, %v3161
    %v3224 = vpack.c.bf16 %v3164, %v3163
    %v3225 = vpack.c.bf16 %v3166, %v3165
    %v3226 = vpack.c.bf16 %v3168, %v3167
    %v3227 = vpack.c.bf16 %v3170, %v3169
    %v3228 = vpack.c.bf16 %v3172, %v3171
    %v3229 = vpack.c.bf16 %v3174, %v3173
    %v3230 = vpack.c.bf16 %v3176, %v3175
    %v3231 = vpack.c.bf16 %v3178, %v3177
    %v3232 = vpack.c.bf16 %v3180, %v3179
    %v3233 = vpack.c.bf16 %v3182, %v3181
    %v3234 = vpack.c.bf16 %v3184, %v3183
    %v3235 = vpack.c.bf16 %v3186, %v3185
    %v3236 = vpack.c.bf16 %v3188, %v3187
    %v3237 = vpack.c.bf16 %v3190, %v3189
    %v3238 = vpack.c.bf16 %v3192, %v3191
    %v3239 = vpack.c.bf16 %v3194, %v3193
    %v3240 = vpack.c.bf16 %v3196, %v3195
    %v3241 = vpack.c.bf16 %v3198, %v3197
    %v3242 = vpack.c.bf16 %v3200, %v3199
    %v3243 = vpack.c.bf16 %v3202, %v3201
    %v3244 = vpack.c.bf16 %v3204, %v3203
    %v3245 = vpack.c.bf16 %v3206, %v3205
    %v3246 = vpack.c.bf16 %v3208, %v3207
    %v3247 = vpack.c.bf16 %v3210, %v3209
    %v3248 = vpack.c.bf16 %v3212, %v3211
    %v3249 = vpack.c.bf16 %v3214, %v3213
    %v3250 = vpack.c.bf16 %v3216, %v3215
    %v3251 = vpack.c.bf16 %v3218, %v3217
    %v3252 = vpack.c.bf16 %v3220, %v3219
    %s3253 = scalar_lea.vmem %s2, 64
    %v3254 = vld [vmem:[%s3253] sm:$0xf]
    %v3255 = vld [vmem:[%s3253 + $0x4] sm:$0xf]
    %v3256 = vld [vmem:[%s3253 + $0x8] sm:$0xf]
    %v3257 = vld [vmem:[%s3253 + $0xc] sm:$0xf]
    %v3262 = vunpack.c.l.b16 %v3254
    %v3263 = vunpack.c.l.b16 %v3255
    %v3264 = vunpack.c.l.b16 %v3256
    %v3265 = vunpack.c.l.b16 %v3257
    %v3266 = vpack.c.b16 %v3263, %v3262
    %v3267 = vpack.c.b16 %v3265, %v3264
    %v3271 = vsel %vm31, %v3221, 0
    %v3274 = vsel %vm31, %v3222, 0
    %v3277 = vsel %vm31, %v3223, 0
    %v3280 = vsel %vm31, %v3224, 0
    %v3283 = vsel %vm31, %v3225, 0
    %v3286 = vsel %vm31, %v3226, 0
    %v3289 = vsel %vm31, %v3227, 0
    %v3292 = vsel %vm31, %v3228, 0
    %v3295 = vsel %vm31, %v3229, 0
    %v3298 = vsel %vm31, %v3230, 0
    %v3301 = vsel %vm31, %v3231, 0
    %v3304 = vsel %vm31, %v3232, 0
    %v3307 = vsel %vm31, %v3233, 0
    %v3310 = vsel %vm31, %v3234, 0
    %v3313 = vsel %vm31, %v3235, 0
    %v3316 = vsel %vm31, %v3236, 0
    %v3319 = vsel %vm31, %v3237, 0
    %v3322 = vsel %vm31, %v3238, 0
    %v3325 = vsel %vm31, %v3239, 0
    %v3328 = vsel %vm31, %v3240, 0
    %v3331 = vsel %vm31, %v3241, 0
    %v3334 = vsel %vm31, %v3242, 0
    %v3337 = vsel %vm31, %v3243, 0
    %v3340 = vsel %vm31, %v3244, 0
    %v3343 = vsel %vm31, %v3245, 0
    %v3346 = vsel %vm31, %v3246, 0
    %v3349 = vsel %vm31, %v3247, 0
    %v3352 = vsel %vm31, %v3248, 0
    %v3355 = vsel %vm31, %v3249, 0
    %v3358 = vsel %vm31, %v3250, 0
    %v3361 = vsel %vm31, %v3251, 0
    %v3364 = vsel %vm31, %v3252, 0
    %3366 = vmatpush.bf16.msra.mxu0 0
    %3367 = vmatpush.bf16.msra.mxu0 0
    %3368 = vmatpush.bf16.msra.mxu0 0
    %3369 = vmatpush.bf16.msra.mxu0 0
    %3370 = vmatpush.bf16.msra.mxu0 0
    %3371 = vmatpush.bf16.msra.mxu0 0
    %3372 = vmatpush.bf16.msra.mxu0 %v3267
    %3373 = vmatpush.bf16.msra.mxu0 %v3266
    %3374 = vmatmul.bf16.gmra.mxu0 %v3271
    %v3375 = vpop.f32.mrf.mxu0
    %v3376 = vadd.f32 0.0, %v3375
    %v3377 = vpop.f32.mrf.mxu0
    %v3378 = vadd.f32 0.0, %v3377
    %3379 = vmatmul.bf16.gmra.mxu0 %v3274
    %v3380 = vpop.f32.mrf.mxu0
    %v3381 = vadd.f32 0.0, %v3380
    %v3382 = vpop.f32.mrf.mxu0
    %v3383 = vadd.f32 0.0, %v3382
    %3384 = vmatmul.bf16.gmra.mxu0 %v3277
    %v3385 = vpop.f32.mrf.mxu0
    %v3386 = vadd.f32 0.0, %v3385
    %v3387 = vpop.f32.mrf.mxu0
    %v3388 = vadd.f32 0.0, %v3387
    %3389 = vmatmul.bf16.gmra.mxu0 %v3280
    %v3390 = vpop.f32.mrf.mxu0
    %v3391 = vadd.f32 0.0, %v3390
    %v3392 = vpop.f32.mrf.mxu0
    %v3393 = vadd.f32 0.0, %v3392
    %3394 = vmatmul.bf16.gmra.mxu0 %v3283
    %v3395 = vpop.f32.mrf.mxu0
    %v3396 = vadd.f32 0.0, %v3395
    %v3397 = vpop.f32.mrf.mxu0
    %v3398 = vadd.f32 0.0, %v3397
    %3399 = vmatmul.bf16.gmra.mxu0 %v3286
    %v3400 = vpop.f32.mrf.mxu0
    %v3401 = vadd.f32 0.0, %v3400
    %v3402 = vpop.f32.mrf.mxu0
    %v3403 = vadd.f32 0.0, %v3402
    %3404 = vmatmul.bf16.gmra.mxu0 %v3289
    %v3405 = vpop.f32.mrf.mxu0
    %v3406 = vadd.f32 0.0, %v3405
    %v3407 = vpop.f32.mrf.mxu0
    %v3408 = vadd.f32 0.0, %v3407
    %3409 = vmatmul.bf16.gmra.mxu0 %v3292
    %v3410 = vpop.f32.mrf.mxu0
    %v3411 = vadd.f32 0.0, %v3410
    %v3412 = vpop.f32.mrf.mxu0
    %v3413 = vadd.f32 0.0, %v3412
    %3414 = vmatmul.bf16.gmra.mxu0 %v3295
    %v3415 = vpop.f32.mrf.mxu0
    %v3416 = vadd.f32 0.0, %v3415
    %v3417 = vpop.f32.mrf.mxu0
    %v3418 = vadd.f32 0.0, %v3417
    %3419 = vmatmul.bf16.gmra.mxu0 %v3298
    %v3420 = vpop.f32.mrf.mxu0
    %v3421 = vadd.f32 0.0, %v3420
    %v3422 = vpop.f32.mrf.mxu0
    %v3423 = vadd.f32 0.0, %v3422
    %3424 = vmatmul.bf16.gmra.mxu0 %v3301
    %v3425 = vpop.f32.mrf.mxu0
    %v3426 = vadd.f32 0.0, %v3425
    %v3427 = vpop.f32.mrf.mxu0
    %v3428 = vadd.f32 0.0, %v3427
    %3429 = vmatmul.bf16.gmra.mxu0 %v3304
    %v3430 = vpop.f32.mrf.mxu0
    %v3431 = vadd.f32 0.0, %v3430
    %v3432 = vpop.f32.mrf.mxu0
    %v3433 = vadd.f32 0.0, %v3432
    %3434 = vmatmul.bf16.gmra.mxu0 %v3307
    %v3435 = vpop.f32.mrf.mxu0
    %v3436 = vadd.f32 0.0, %v3435
    %v3437 = vpop.f32.mrf.mxu0
    %v3438 = vadd.f32 0.0, %v3437
    %3439 = vmatmul.bf16.gmra.mxu0 %v3310
    %v3440 = vpop.f32.mrf.mxu0
    %v3441 = vadd.f32 0.0, %v3440
    %v3442 = vpop.f32.mrf.mxu0
    %v3443 = vadd.f32 0.0, %v3442
    %3444 = vmatmul.bf16.gmra.mxu0 %v3313
    %v3445 = vpop.f32.mrf.mxu0
    %v3446 = vadd.f32 0.0, %v3445
    %v3447 = vpop.f32.mrf.mxu0
    %v3448 = vadd.f32 0.0, %v3447
    %3449 = vmatmul.bf16.gmra.mxu0 %v3316
    %v3450 = vpop.f32.mrf.mxu0
    %v3451 = vadd.f32 0.0, %v3450
    %v3452 = vpop.f32.mrf.mxu0
    %v3453 = vadd.f32 0.0, %v3452
    %3454 = vmatmul.bf16.gmra.mxu0 %v3319
    %v3455 = vpop.f32.mrf.mxu0
    %v3456 = vadd.f32 0.0, %v3455
    %v3457 = vpop.f32.mrf.mxu0
    %v3458 = vadd.f32 0.0, %v3457
    %3459 = vmatmul.bf16.gmra.mxu0 %v3322
    %v3460 = vpop.f32.mrf.mxu0
    %v3461 = vadd.f32 0.0, %v3460
    %v3462 = vpop.f32.mrf.mxu0
    %v3463 = vadd.f32 0.0, %v3462
    %3464 = vmatmul.bf16.gmra.mxu0 %v3325
    %v3465 = vpop.f32.mrf.mxu0
    %v3466 = vadd.f32 0.0, %v3465
    %v3467 = vpop.f32.mrf.mxu0
    %v3468 = vadd.f32 0.0, %v3467
    %3469 = vmatmul.bf16.gmra.mxu0 %v3328
    %v3470 = vpop.f32.mrf.mxu0
    %v3471 = vadd.f32 0.0, %v3470
    %v3472 = vpop.f32.mrf.mxu0
    %v3473 = vadd.f32 0.0, %v3472
    %3474 = vmatmul.bf16.gmra.mxu0 %v3331
    %v3475 = vpop.f32.mrf.mxu0
    %v3476 = vadd.f32 0.0, %v3475
    %v3477 = vpop.f32.mrf.mxu0
    %v3478 = vadd.f32 0.0, %v3477
    %3479 = vmatmul.bf16.gmra.mxu0 %v3334
    %v3480 = vpop.f32.mrf.mxu0
    %v3481 = vadd.f32 0.0, %v3480
    %v3482 = vpop.f32.mrf.mxu0
    %v3483 = vadd.f32 0.0, %v3482
    %3484 = vmatmul.bf16.gmra.mxu0 %v3337
    %v3485 = vpop.f32.mrf.mxu0
    %v3486 = vadd.f32 0.0, %v3485
    %v3487 = vpop.f32.mrf.mxu0
    %v3488 = vadd.f32 0.0, %v3487
    %3489 = vmatmul.bf16.gmra.mxu0 %v3340
    %v3490 = vpop.f32.mrf.mxu0
    %v3491 = vadd.f32 0.0, %v3490
    %v3492 = vpop.f32.mrf.mxu0
    %v3493 = vadd.f32 0.0, %v3492
    %3494 = vmatmul.bf16.gmra.mxu0 %v3343
    %v3495 = vpop.f32.mrf.mxu0
    %v3496 = vadd.f32 0.0, %v3495
    %v3497 = vpop.f32.mrf.mxu0
    %v3498 = vadd.f32 0.0, %v3497
    %3499 = vmatmul.bf16.gmra.mxu0 %v3346
    %v3500 = vpop.f32.mrf.mxu0
    %v3501 = vadd.f32 0.0, %v3500
    %v3502 = vpop.f32.mrf.mxu0
    %v3503 = vadd.f32 0.0, %v3502
    %3504 = vmatmul.bf16.gmra.mxu0 %v3349
    %v3505 = vpop.f32.mrf.mxu0
    %v3506 = vadd.f32 0.0, %v3505
    %v3507 = vpop.f32.mrf.mxu0
    %v3508 = vadd.f32 0.0, %v3507
    %3509 = vmatmul.bf16.gmra.mxu0 %v3352
    %v3510 = vpop.f32.mrf.mxu0
    %v3511 = vadd.f32 0.0, %v3510
    %v3512 = vpop.f32.mrf.mxu0
    %v3513 = vadd.f32 0.0, %v3512
    %3514 = vmatmul.bf16.gmra.mxu0 %v3355
    %v3515 = vpop.f32.mrf.mxu0
    %v3516 = vadd.f32 0.0, %v3515
    %v3517 = vpop.f32.mrf.mxu0
    %v3518 = vadd.f32 0.0, %v3517
    %3519 = vmatmul.bf16.gmra.mxu0 %v3358
    %v3520 = vpop.f32.mrf.mxu0
    %v3521 = vadd.f32 0.0, %v3520
    %v3522 = vpop.f32.mrf.mxu0
    %v3523 = vadd.f32 0.0, %v3522
    %3524 = vmatmul.bf16.gmra.mxu0 %v3361
    %v3525 = vpop.f32.mrf.mxu0
    %v3526 = vadd.f32 0.0, %v3525
    %v3527 = vpop.f32.mrf.mxu0
    %v3528 = vadd.f32 0.0, %v3527
    %3529 = vmatmul.bf16.gmra.mxu0 %v3364
    %v3530 = vpop.f32.mrf.mxu0
    %v3531 = vadd.f32 0.0, %v3530
    %v3532 = vpop.f32.mrf.mxu0
    %v3533 = vadd.f32 0.0, %v3532
    %3534 = vdwg.mxu0
    %v3535 = vld [vmem:[#allocation5] sm:$0xff]
    %v3536 = vld [vmem:[#allocation5 + $0x8] sm:$0xff]
    %v3537 = vld [vmem:[#allocation5 + $0x10] sm:$0xff]
    %v3538 = vld [vmem:[#allocation5 + $0x18] sm:$0xff]
    %v3539 = vld [vmem:[#allocation5 + $0x20] sm:$0xff]
    %v3540 = vld [vmem:[#allocation5 + $0x28] sm:$0xff]
    %v3541 = vld [vmem:[#allocation5 + $0x30] sm:$0xff]
    %v3542 = vld [vmem:[#allocation5 + $0x38] sm:$0xff]
    %v3543 = vld [vmem:[#allocation5 + $0x40] sm:$0xff]
    %v3544 = vld [vmem:[#allocation5 + $0x48] sm:$0xff]
    %v3545 = vld [vmem:[#allocation5 + $0x50] sm:$0xff]
    %v3546 = vld [vmem:[#allocation5 + $0x58] sm:$0xff]
    %v3547 = vld [vmem:[#allocation5 + $0x60] sm:$0xff]
    %v3548 = vld [vmem:[#allocation5 + $0x68] sm:$0xff]
    %v3549 = vld [vmem:[#allocation5 + $0x70] sm:$0xff]
    %v3550 = vld [vmem:[#allocation5 + $0x78] sm:$0xff]
    %v3551 = vld [vmem:[#allocation5 + $0x80] sm:$0xff]
    %v3552 = vld [vmem:[#allocation5 + $0x88] sm:$0xff]
    %v3553 = vld [vmem:[#allocation5 + $0x90] sm:$0xff]
    %v3554 = vld [vmem:[#allocation5 + $0x98] sm:$0xff]
    %v3555 = vld [vmem:[#allocation5 + $0xa0] sm:$0xff]
    %v3556 = vld [vmem:[#allocation5 + $0xa8] sm:$0xff]
    %v3557 = vld [vmem:[#allocation5 + $0xb0] sm:$0xff]
    %v3558 = vld [vmem:[#allocation5 + $0xb8] sm:$0xff]
    %v3559 = vld [vmem:[#allocation5 + $0xc0] sm:$0xff]
    %v3560 = vld [vmem:[#allocation5 + $0xc8] sm:$0xff]
    %v3561 = vld [vmem:[#allocation5 + $0xd0] sm:$0xff]
    %v3562 = vld [vmem:[#allocation5 + $0xd8] sm:$0xff]
    %v3563 = vld [vmem:[#allocation5 + $0xe0] sm:$0xff]
    %v3564 = vld [vmem:[#allocation5 + $0xe8] sm:$0xff]
    %v3565 = vld [vmem:[#allocation5 + $0xf0] sm:$0xff]
    %v3566 = vld [vmem:[#allocation5 + $0xf8] sm:$0xff]
    %v3567 = vld [vmem:[#allocation5 + $0x100] sm:$0xff]
    %v3568 = vld [vmem:[#allocation5 + $0x108] sm:$0xff]
    %v3569 = vld [vmem:[#allocation5 + $0x110] sm:$0xff]
    %v3570 = vld [vmem:[#allocation5 + $0x118] sm:$0xff]
    %v3571 = vld [vmem:[#allocation5 + $0x120] sm:$0xff]
    %v3572 = vld [vmem:[#allocation5 + $0x128] sm:$0xff]
    %v3573 = vld [vmem:[#allocation5 + $0x130] sm:$0xff]
    %v3574 = vld [vmem:[#allocation5 + $0x138] sm:$0xff]
    %v3575 = vld [vmem:[#allocation5 + $0x140] sm:$0xff]
    %v3576 = vld [vmem:[#allocation5 + $0x148] sm:$0xff]
    %v3577 = vld [vmem:[#allocation5 + $0x150] sm:$0xff]
    %v3578 = vld [vmem:[#allocation5 + $0x158] sm:$0xff]
    %v3579 = vld [vmem:[#allocation5 + $0x160] sm:$0xff]
    %v3580 = vld [vmem:[#allocation5 + $0x168] sm:$0xff]
    %v3581 = vld [vmem:[#allocation5 + $0x170] sm:$0xff]
    %v3582 = vld [vmem:[#allocation5 + $0x178] sm:$0xff]
    %v3583 = vld [vmem:[#allocation5 + $0x180] sm:$0xff]
    %v3584 = vld [vmem:[#allocation5 + $0x188] sm:$0xff]
    %v3585 = vld [vmem:[#allocation5 + $0x190] sm:$0xff]
    %v3586 = vld [vmem:[#allocation5 + $0x198] sm:$0xff]
    %v3587 = vld [vmem:[#allocation5 + $0x1a0] sm:$0xff]
    %v3588 = vld [vmem:[#allocation5 + $0x1a8] sm:$0xff]
    %v3589 = vld [vmem:[#allocation5 + $0x1b0] sm:$0xff]
    %v3590 = vld [vmem:[#allocation5 + $0x1b8] sm:$0xff]
    %v3591 = vld [vmem:[#allocation5 + $0x1c0] sm:$0xff]
    %v3592 = vld [vmem:[#allocation5 + $0x1c8] sm:$0xff]
    %v3593 = vld [vmem:[#allocation5 + $0x1d0] sm:$0xff]
    %v3594 = vld [vmem:[#allocation5 + $0x1d8] sm:$0xff]
    %v3595 = vld [vmem:[#allocation5 + $0x1e0] sm:$0xff]
    %v3596 = vld [vmem:[#allocation5 + $0x1e8] sm:$0xff]
    %v3597 = vld [vmem:[#allocation5 + $0x1f0] sm:$0xff]
    %v3598 = vld [vmem:[#allocation5 + $0x1f8] sm:$0xff]
    %v3599 = vadd.f32 %v3535, %v3376
    %v3600 = vadd.f32 %v3536, %v3378
    %v3601 = vadd.f32 %v3537, %v3381
    %v3602 = vadd.f32 %v3538, %v3383
    %v3603 = vadd.f32 %v3539, %v3386
    %v3604 = vadd.f32 %v3540, %v3388
    %v3605 = vadd.f32 %v3541, %v3391
    %v3606 = vadd.f32 %v3542, %v3393
    %v3607 = vadd.f32 %v3543, %v3396
    %v3608 = vadd.f32 %v3544, %v3398
    %v3609 = vadd.f32 %v3545, %v3401
    %v3610 = vadd.f32 %v3546, %v3403
    %v3611 = vadd.f32 %v3547, %v3406
    %v3612 = vadd.f32 %v3548, %v3408
    %v3613 = vadd.f32 %v3549, %v3411
    %v3614 = vadd.f32 %v3550, %v3413
    %v3615 = vadd.f32 %v3551, %v3416
    %v3616 = vadd.f32 %v3552, %v3418
    %v3617 = vadd.f32 %v3553, %v3421
    %v3618 = vadd.f32 %v3554, %v3423
    %v3619 = vadd.f32 %v3555, %v3426
    %v3620 = vadd.f32 %v3556, %v3428
    %v3621 = vadd.f32 %v3557, %v3431
    %v3622 = vadd.f32 %v3558, %v3433
    %v3623 = vadd.f32 %v3559, %v3436
    %v3624 = vadd.f32 %v3560, %v3438
    %v3625 = vadd.f32 %v3561, %v3441
    %v3626 = vadd.f32 %v3562, %v3443
    %v3627 = vadd.f32 %v3563, %v3446
    %v3628 = vadd.f32 %v3564, %v3448
    %v3629 = vadd.f32 %v3565, %v3451
    %v3630 = vadd.f32 %v3566, %v3453
    %v3631 = vadd.f32 %v3567, %v3456
    %v3632 = vadd.f32 %v3568, %v3458
    %v3633 = vadd.f32 %v3569, %v3461
    %v3634 = vadd.f32 %v3570, %v3463
    %v3635 = vadd.f32 %v3571, %v3466
    %v3636 = vadd.f32 %v3572, %v3468
    %v3637 = vadd.f32 %v3573, %v3471
    %v3638 = vadd.f32 %v3574, %v3473
    %v3639 = vadd.f32 %v3575, %v3476
    %v3640 = vadd.f32 %v3576, %v3478
    %v3641 = vadd.f32 %v3577, %v3481
    %v3642 = vadd.f32 %v3578, %v3483
    %v3643 = vadd.f32 %v3579, %v3486
    %v3644 = vadd.f32 %v3580, %v3488
    %v3645 = vadd.f32 %v3581, %v3491
    %v3646 = vadd.f32 %v3582, %v3493
    %v3647 = vadd.f32 %v3583, %v3496
    %v3648 = vadd.f32 %v3584, %v3498
    %v3649 = vadd.f32 %v3585, %v3501
    %v3650 = vadd.f32 %v3586, %v3503
    %v3651 = vadd.f32 %v3587, %v3506
    %v3652 = vadd.f32 %v3588, %v3508
    %v3653 = vadd.f32 %v3589, %v3511
    %v3654 = vadd.f32 %v3590, %v3513
    %v3655 = vadd.f32 %v3591, %v3516
    %v3656 = vadd.f32 %v3592, %v3518
    %v3657 = vadd.f32 %v3593, %v3521
    %v3658 = vadd.f32 %v3594, %v3523
    %v3659 = vadd.f32 %v3595, %v3526
    %v3660 = vadd.f32 %v3596, %v3528
    %v3661 = vadd.f32 %v3597, %v3531
    %v3662 = vadd.f32 %v3598, %v3533
    %3663 = vst.msk [vmem:[#allocation5] sm:$0xff] %vm31, %v3599
    %3664 = vst.msk [vmem:[#allocation5 + $0x8] sm:$0xff] %vm31, %v3600
    %3665 = vst.msk [vmem:[#allocation5 + $0x10] sm:$0xff] %vm31, %v3601
    %3666 = vst.msk [vmem:[#allocation5 + $0x18] sm:$0xff] %vm31, %v3602
    %3667 = vst.msk [vmem:[#allocation5 + $0x20] sm:$0xff] %vm31, %v3603
    %3668 = vst.msk [vmem:[#allocation5 + $0x28] sm:$0xff] %vm31, %v3604
    %3669 = vst.msk [vmem:[#allocation5 + $0x30] sm:$0xff] %vm31, %v3605
    %3670 = vst.msk [vmem:[#allocation5 + $0x38] sm:$0xff] %vm31, %v3606
    %3671 = vst.msk [vmem:[#allocation5 + $0x40] sm:$0xff] %vm31, %v3607
    %3672 = vst.msk [vmem:[#allocation5 + $0x48] sm:$0xff] %vm31, %v3608
    %3673 = vst.msk [vmem:[#allocation5 + $0x50] sm:$0xff] %vm31, %v3609
    %3674 = vst.msk [vmem:[#allocation5 + $0x58] sm:$0xff] %vm31, %v3610
    %3675 = vst.msk [vmem:[#allocation5 + $0x60] sm:$0xff] %vm31, %v3611
    %3676 = vst.msk [vmem:[#allocation5 + $0x68] sm:$0xff] %vm31, %v3612
    %3677 = vst.msk [vmem:[#allocation5 + $0x70] sm:$0xff] %vm31, %v3613
    %3678 = vst.msk [vmem:[#allocation5 + $0x78] sm:$0xff] %vm31, %v3614
    %3679 = vst.msk [vmem:[#allocation5 + $0x80] sm:$0xff] %vm31, %v3615
    %3680 = vst.msk [vmem:[#allocation5 + $0x88] sm:$0xff] %vm31, %v3616
    %3681 = vst.msk [vmem:[#allocation5 + $0x90] sm:$0xff] %vm31, %v3617
    %3682 = vst.msk [vmem:[#allocation5 + $0x98] sm:$0xff] %vm31, %v3618
    %3683 = vst.msk [vmem:[#allocation5 + $0xa0] sm:$0xff] %vm31, %v3619
    %3684 = vst.msk [vmem:[#allocation5 + $0xa8] sm:$0xff] %vm31, %v3620
    %3685 = vst.msk [vmem:[#allocation5 + $0xb0] sm:$0xff] %vm31, %v3621
    %3686 = vst.msk [vmem:[#allocation5 + $0xb8] sm:$0xff] %vm31, %v3622
    %3687 = vst.msk [vmem:[#allocation5 + $0xc0] sm:$0xff] %vm31, %v3623
    %3688 = vst.msk [vmem:[#allocation5 + $0xc8] sm:$0xff] %vm31, %v3624
    %3689 = vst.msk [vmem:[#allocation5 + $0xd0] sm:$0xff] %vm31, %v3625
    %3690 = vst.msk [vmem:[#allocation5 + $0xd8] sm:$0xff] %vm31, %v3626
    %3691 = vst.msk [vmem:[#allocation5 + $0xe0] sm:$0xff] %vm31, %v3627
    %3692 = vst.msk [vmem:[#allocation5 + $0xe8] sm:$0xff] %vm31, %v3628
    %3693 = vst.msk [vmem:[#allocation5 + $0xf0] sm:$0xff] %vm31, %v3629
    %3694 = vst.msk [vmem:[#allocation5 + $0xf8] sm:$0xff] %vm31, %v3630
    %3695 = vst.msk [vmem:[#allocation5 + $0x100] sm:$0xff] %vm31, %v3631
    %3696 = vst.msk [vmem:[#allocation5 + $0x108] sm:$0xff] %vm31, %v3632
    %3697 = vst.msk [vmem:[#allocation5 + $0x110] sm:$0xff] %vm31, %v3633
    %3698 = vst.msk [vmem:[#allocation5 + $0x118] sm:$0xff] %vm31, %v3634
    %3699 = vst.msk [vmem:[#allocation5 + $0x120] sm:$0xff] %vm31, %v3635
    %3700 = vst.msk [vmem:[#allocation5 + $0x128] sm:$0xff] %vm31, %v3636
    %3701 = vst.msk [vmem:[#allocation5 + $0x130] sm:$0xff] %vm31, %v3637
    %3702 = vst.msk [vmem:[#allocation5 + $0x138] sm:$0xff] %vm31, %v3638
    %3703 = vst.msk [vmem:[#allocation5 + $0x140] sm:$0xff] %vm31, %v3639
    %3704 = vst.msk [vmem:[#allocation5 + $0x148] sm:$0xff] %vm31, %v3640
    %3705 = vst.msk [vmem:[#allocation5 + $0x150] sm:$0xff] %vm31, %v3641
    %3706 = vst.msk [vmem:[#allocation5 + $0x158] sm:$0xff] %vm31, %v3642
    %3707 = vst.msk [vmem:[#allocation5 + $0x160] sm:$0xff] %vm31, %v3643
    %3708 = vst.msk [vmem:[#allocation5 + $0x168] sm:$0xff] %vm31, %v3644
    %3709 = vst.msk [vmem:[#allocation5 + $0x170] sm:$0xff] %vm31, %v3645
    %3710 = vst.msk [vmem:[#allocation5 + $0x178] sm:$0xff] %vm31, %v3646
    %3711 = vst.msk [vmem:[#allocation5 + $0x180] sm:$0xff] %vm31, %v3647
    %3712 = vst.msk [vmem:[#allocation5 + $0x188] sm:$0xff] %vm31, %v3648
    %3713 = vst.msk [vmem:[#allocation5 + $0x190] sm:$0xff] %vm31, %v3649
    %3714 = vst.msk [vmem:[#allocation5 + $0x198] sm:$0xff] %vm31, %v3650
    %3715 = vst.msk [vmem:[#allocation5 + $0x1a0] sm:$0xff] %vm31, %v3651
    %3716 = vst.msk [vmem:[#allocation5 + $0x1a8] sm:$0xff] %vm31, %v3652
    %3717 = vst.msk [vmem:[#allocation5 + $0x1b0] sm:$0xff] %vm31, %v3653
    %3718 = vst.msk [vmem:[#allocation5 + $0x1b8] sm:$0xff] %vm31, %v3654
    %3719 = vst.msk [vmem:[#allocation5 + $0x1c0] sm:$0xff] %vm31, %v3655
    %3720 = vst.msk [vmem:[#allocation5 + $0x1c8] sm:$0xff] %vm31, %v3656
    %3721 = vst.msk [vmem:[#allocation5 + $0x1d0] sm:$0xff] %vm31, %v3657
    %3722 = vst.msk [vmem:[#allocation5 + $0x1d8] sm:$0xff] %vm31, %v3658
    %3723 = vst.msk [vmem:[#allocation5 + $0x1e0] sm:$0xff] %vm31, %v3659
    %3724 = vst.msk [vmem:[#allocation5 + $0x1e8] sm:$0xff] %vm31, %v3660
    %3725 = vst.msk [vmem:[#allocation5 + $0x1f0] sm:$0xff] %vm31, %v3661
    %3726 = vst.msk [vmem:[#allocation5 + $0x1f8] sm:$0xff] %vm31, %v3662
    %v3727 = vld [vmem:[%s49 + $0x9] sm:$0xff]
    %v3728 = vld [vmem:[%s49 + $0x11] sm:$0xff]
    %v3729 = vld [vmem:[%s49 + $0x29] sm:$0xff]
    %v3730 = vld [vmem:[%s49 + $0x31] sm:$0xff]
    %v3731 = vld [vmem:[%s49 + $0x49] sm:$0xff]
    %v3732 = vld [vmem:[%s49 + $0x51] sm:$0xff]
    %v3733 = vld [vmem:[%s49 + $0x69] sm:$0xff]
    %v3734 = vld [vmem:[%s49 + $0x71] sm:$0xff]
    %v3735 = vld [vmem:[%s49 + $0x89] sm:$0xff]
    %v3736 = vld [vmem:[%s49 + $0x91] sm:$0xff]
    %v3737 = vld [vmem:[%s49 + $0xa9] sm:$0xff]
    %v3738 = vld [vmem:[%s49 + $0xb1] sm:$0xff]
    %v3739 = vld [vmem:[%s49 + $0xc9] sm:$0xff]
    %v3740 = vld [vmem:[%s49 + $0xd1] sm:$0xff]
    %v3741 = vld [vmem:[%s49 + $0xe9] sm:$0xff]
    %v3742 = vld [vmem:[%s49 + $0xf1] sm:$0xff]
    %v3743 = vld [vmem:[%s49 + $0x109] sm:$0xff]
    %v3744 = vld [vmem:[%s49 + $0x111] sm:$0xff]
    %v3745 = vld [vmem:[%s49 + $0x129] sm:$0xff]
    %v3746 = vld [vmem:[%s49 + $0x131] sm:$0xff]
    %v3747 = vld [vmem:[%s49 + $0x149] sm:$0xff]
    %v3748 = vld [vmem:[%s49 + $0x151] sm:$0xff]
    %v3749 = vld [vmem:[%s49 + $0x169] sm:$0xff]
    %v3750 = vld [vmem:[%s49 + $0x171] sm:$0xff]
    %v3751 = vld [vmem:[%s49 + $0x189] sm:$0xff]
    %v3752 = vld [vmem:[%s49 + $0x191] sm:$0xff]
    %v3753 = vld [vmem:[%s49 + $0x1a9] sm:$0xff]
    %v3754 = vld [vmem:[%s49 + $0x1b1] sm:$0xff]
    %v3755 = vld [vmem:[%s49 + $0x1c9] sm:$0xff]
    %v3756 = vld [vmem:[%s49 + $0x1d1] sm:$0xff]
    %v3757 = vld [vmem:[%s49 + $0x1e9] sm:$0xff]
    %v3758 = vld [vmem:[%s49 + $0x1f1] sm:$0xff]
    %v3759 = vld [vmem:[%s49 + $0x249] sm:$0xff]
    %v3760 = vld [vmem:[%s49 + $0x251] sm:$0xff]
    %v3761 = vld [vmem:[%s49 + $0x269] sm:$0xff]
    %v3762 = vld [vmem:[%s49 + $0x271] sm:$0xff]
    %v3763 = vld [vmem:[%s49 + $0x289] sm:$0xff]
    %v3764 = vld [vmem:[%s49 + $0x291] sm:$0xff]
    %v3765 = vld [vmem:[%s49 + $0x2a9] sm:$0xff]
    %v3766 = vld [vmem:[%s49 + $0x2b1] sm:$0xff]
    %v3767 = vld [vmem:[%s49 + $0x2c9] sm:$0xff]
    %v3768 = vld [vmem:[%s49 + $0x2d1] sm:$0xff]
    %v3769 = vld [vmem:[%s49 + $0x2e9] sm:$0xff]
    %v3770 = vld [vmem:[%s49 + $0x2f1] sm:$0xff]
    %v3771 = vld [vmem:[%s49 + $0x309] sm:$0xff]
    %v3772 = vld [vmem:[%s49 + $0x311] sm:$0xff]
    %v3773 = vld [vmem:[%s49 + $0x329] sm:$0xff]
    %v3774 = vld [vmem:[%s49 + $0x331] sm:$0xff]
    %v3775 = vld [vmem:[%s49 + $0x349] sm:$0xff]
    %v3776 = vld [vmem:[%s49 + $0x351] sm:$0xff]
    %v3777 = vld [vmem:[%s49 + $0x369] sm:$0xff]
    %v3778 = vld [vmem:[%s49 + $0x371] sm:$0xff]
    %v3779 = vld [vmem:[%s49 + $0x389] sm:$0xff]
    %v3780 = vld [vmem:[%s49 + $0x391] sm:$0xff]
    %v3781 = vld [vmem:[%s49 + $0x3a9] sm:$0xff]
    %v3782 = vld [vmem:[%s49 + $0x3b1] sm:$0xff]
    %v3783 = vld [vmem:[%s49 + $0x3c9] sm:$0xff]
    %v3784 = vld [vmem:[%s49 + $0x3d1] sm:$0xff]
    %v3785 = vld [vmem:[%s49 + $0x3e9] sm:$0xff]
    %v3786 = vld [vmem:[%s49 + $0x3f1] sm:$0xff]
    %v3787 = vld [vmem:[%s49 + $0x409] sm:$0xff]
    %v3788 = vld [vmem:[%s49 + $0x411] sm:$0xff]
    %v3789 = vld [vmem:[%s49 + $0x429] sm:$0xff]
    %v3790 = vld [vmem:[%s49 + $0x431] sm:$0xff]
    %v3791 = vpack.c.bf16 %v3728, %v3727
    %v3792 = vpack.c.bf16 %v3730, %v3729
    %v3793 = vpack.c.bf16 %v3732, %v3731
    %v3794 = vpack.c.bf16 %v3734, %v3733
    %v3795 = vpack.c.bf16 %v3736, %v3735
    %v3796 = vpack.c.bf16 %v3738, %v3737
    %v3797 = vpack.c.bf16 %v3740, %v3739
    %v3798 = vpack.c.bf16 %v3742, %v3741
    %v3799 = vpack.c.bf16 %v3744, %v3743
    %v3800 = vpack.c.bf16 %v3746, %v3745
    %v3801 = vpack.c.bf16 %v3748, %v3747
    %v3802 = vpack.c.bf16 %v3750, %v3749
    %v3803 = vpack.c.bf16 %v3752, %v3751
    %v3804 = vpack.c.bf16 %v3754, %v3753
    %v3805 = vpack.c.bf16 %v3756, %v3755
    %v3806 = vpack.c.bf16 %v3758, %v3757
    %v3807 = vpack.c.bf16 %v3760, %v3759
    %v3808 = vpack.c.bf16 %v3762, %v3761
    %v3809 = vpack.c.bf16 %v3764, %v3763
    %v3810 = vpack.c.bf16 %v3766, %v3765
    %v3811 = vpack.c.bf16 %v3768, %v3767
    %v3812 = vpack.c.bf16 %v3770, %v3769
    %v3813 = vpack.c.bf16 %v3772, %v3771
    %v3814 = vpack.c.bf16 %v3774, %v3773
    %v3815 = vpack.c.bf16 %v3776, %v3775
    %v3816 = vpack.c.bf16 %v3778, %v3777
    %v3817 = vpack.c.bf16 %v3780, %v3779
    %v3818 = vpack.c.bf16 %v3782, %v3781
    %v3819 = vpack.c.bf16 %v3784, %v3783
    %v3820 = vpack.c.bf16 %v3786, %v3785
    %v3821 = vpack.c.bf16 %v3788, %v3787
    %v3822 = vpack.c.bf16 %v3790, %v3789
    %s3823 = scalar_lea.vmem %s2, 80
    %v3824 = vld [vmem:[%s3823] sm:$0xf]
    %v3825 = vld [vmem:[%s3823 + $0x4] sm:$0xf]
    %v3826 = vld [vmem:[%s3823 + $0x8] sm:$0xf]
    %v3827 = vld [vmem:[%s3823 + $0xc] sm:$0xf]
    %v3832 = vunpack.c.l.b16 %v3824
    %v3833 = vunpack.c.l.b16 %v3825
    %v3834 = vunpack.c.l.b16 %v3826
    %v3835 = vunpack.c.l.b16 %v3827
    %v3836 = vpack.c.b16 %v3833, %v3832
    %v3837 = vpack.c.b16 %v3835, %v3834
    %v3841 = vsel %vm31, %v3791, 0
    %v3844 = vsel %vm31, %v3792, 0
    %v3847 = vsel %vm31, %v3793, 0
    %v3850 = vsel %vm31, %v3794, 0
    %v3853 = vsel %vm31, %v3795, 0
    %v3856 = vsel %vm31, %v3796, 0
    %v3859 = vsel %vm31, %v3797, 0
    %v3862 = vsel %vm31, %v3798, 0
    %v3865 = vsel %vm31, %v3799, 0
    %v3868 = vsel %vm31, %v3800, 0
    %v3871 = vsel %vm31, %v3801, 0
    %v3874 = vsel %vm31, %v3802, 0
    %v3877 = vsel %vm31, %v3803, 0
    %v3880 = vsel %vm31, %v3804, 0
    %v3883 = vsel %vm31, %v3805, 0
    %v3886 = vsel %vm31, %v3806, 0
    %v3889 = vsel %vm31, %v3807, 0
    %v3892 = vsel %vm31, %v3808, 0
    %v3895 = vsel %vm31, %v3809, 0
    %v3898 = vsel %vm31, %v3810, 0
    %v3901 = vsel %vm31, %v3811, 0
    %v3904 = vsel %vm31, %v3812, 0
    %v3907 = vsel %vm31, %v3813, 0
    %v3910 = vsel %vm31, %v3814, 0
    %v3913 = vsel %vm31, %v3815, 0
    %v3916 = vsel %vm31, %v3816, 0
    %v3919 = vsel %vm31, %v3817, 0
    %v3922 = vsel %vm31, %v3818, 0
    %v3925 = vsel %vm31, %v3819, 0
    %v3928 = vsel %vm31, %v3820, 0
    %v3931 = vsel %vm31, %v3821, 0
    %v3934 = vsel %vm31, %v3822, 0
    %3936 = vmatpush.bf16.msra.mxu0 0
    %3937 = vmatpush.bf16.msra.mxu0 0
    %3938 = vmatpush.bf16.msra.mxu0 0
    %3939 = vmatpush.bf16.msra.mxu0 0
    %3940 = vmatpush.bf16.msra.mxu0 0
    %3941 = vmatpush.bf16.msra.mxu0 0
    %3942 = vmatpush.bf16.msra.mxu0 %v3837
    %3943 = vmatpush.bf16.msra.mxu0 %v3836
    %3944 = vmatmul.bf16.gmra.mxu0 %v3841
    %v3945 = vpop.f32.mrf.mxu0
    %v3946 = vadd.f32 0.0, %v3945
    %v3947 = vpop.f32.mrf.mxu0
    %v3948 = vadd.f32 0.0, %v3947
    %3949 = vmatmul.bf16.gmra.mxu0 %v3844
    %v3950 = vpop.f32.mrf.mxu0
    %v3951 = vadd.f32 0.0, %v3950
    %v3952 = vpop.f32.mrf.mxu0
    %v3953 = vadd.f32 0.0, %v3952
    %3954 = vmatmul.bf16.gmra.mxu0 %v3847
    %v3955 = vpop.f32.mrf.mxu0
    %v3956 = vadd.f32 0.0, %v3955
    %v3957 = vpop.f32.mrf.mxu0
    %v3958 = vadd.f32 0.0, %v3957
    %3959 = vmatmul.bf16.gmra.mxu0 %v3850
    %v3960 = vpop.f32.mrf.mxu0
    %v3961 = vadd.f32 0.0, %v3960
    %v3962 = vpop.f32.mrf.mxu0
    %v3963 = vadd.f32 0.0, %v3962
    %3964 = vmatmul.bf16.gmra.mxu0 %v3853
    %v3965 = vpop.f32.mrf.mxu0
    %v3966 = vadd.f32 0.0, %v3965
    %v3967 = vpop.f32.mrf.mxu0
    %v3968 = vadd.f32 0.0, %v3967
    %3969 = vmatmul.bf16.gmra.mxu0 %v3856
    %v3970 = vpop.f32.mrf.mxu0
    %v3971 = vadd.f32 0.0, %v3970
    %v3972 = vpop.f32.mrf.mxu0
    %v3973 = vadd.f32 0.0, %v3972
    %3974 = vmatmul.bf16.gmra.mxu0 %v3859
    %v3975 = vpop.f32.mrf.mxu0
    %v3976 = vadd.f32 0.0, %v3975
    %v3977 = vpop.f32.mrf.mxu0
    %v3978 = vadd.f32 0.0, %v3977
    %3979 = vmatmul.bf16.gmra.mxu0 %v3862
    %v3980 = vpop.f32.mrf.mxu0
    %v3981 = vadd.f32 0.0, %v3980
    %v3982 = vpop.f32.mrf.mxu0
    %v3983 = vadd.f32 0.0, %v3982
    %3984 = vmatmul.bf16.gmra.mxu0 %v3865
    %v3985 = vpop.f32.mrf.mxu0
    %v3986 = vadd.f32 0.0, %v3985
    %v3987 = vpop.f32.mrf.mxu0
    %v3988 = vadd.f32 0.0, %v3987
    %3989 = vmatmul.bf16.gmra.mxu0 %v3868
    %v3990 = vpop.f32.mrf.mxu0
    %v3991 = vadd.f32 0.0, %v3990
    %v3992 = vpop.f32.mrf.mxu0
    %v3993 = vadd.f32 0.0, %v3992
    %3994 = vmatmul.bf16.gmra.mxu0 %v3871
    %v3995 = vpop.f32.mrf.mxu0
    %v3996 = vadd.f32 0.0, %v3995
    %v3997 = vpop.f32.mrf.mxu0
    %v3998 = vadd.f32 0.0, %v3997
    %3999 = vmatmul.bf16.gmra.mxu0 %v3874
    %v4000 = vpop.f32.mrf.mxu0
    %v4001 = vadd.f32 0.0, %v4000
    %v4002 = vpop.f32.mrf.mxu0
    %v4003 = vadd.f32 0.0, %v4002
    %4004 = vmatmul.bf16.gmra.mxu0 %v3877
    %v4005 = vpop.f32.mrf.mxu0
    %v4006 = vadd.f32 0.0, %v4005
    %v4007 = vpop.f32.mrf.mxu0
    %v4008 = vadd.f32 0.0, %v4007
    %4009 = vmatmul.bf16.gmra.mxu0 %v3880
    %v4010 = vpop.f32.mrf.mxu0
    %v4011 = vadd.f32 0.0, %v4010
    %v4012 = vpop.f32.mrf.mxu0
    %v4013 = vadd.f32 0.0, %v4012
    %4014 = vmatmul.bf16.gmra.mxu0 %v3883
    %v4015 = vpop.f32.mrf.mxu0
    %v4016 = vadd.f32 0.0, %v4015
    %v4017 = vpop.f32.mrf.mxu0
    %v4018 = vadd.f32 0.0, %v4017
    %4019 = vmatmul.bf16.gmra.mxu0 %v3886
    %v4020 = vpop.f32.mrf.mxu0
    %v4021 = vadd.f32 0.0, %v4020
    %v4022 = vpop.f32.mrf.mxu0
    %v4023 = vadd.f32 0.0, %v4022
    %4024 = vmatmul.bf16.gmra.mxu0 %v3889
    %v4025 = vpop.f32.mrf.mxu0
    %v4026 = vadd.f32 0.0, %v4025
    %v4027 = vpop.f32.mrf.mxu0
    %v4028 = vadd.f32 0.0, %v4027
    %4029 = vmatmul.bf16.gmra.mxu0 %v3892
    %v4030 = vpop.f32.mrf.mxu0
    %v4031 = vadd.f32 0.0, %v4030
    %v4032 = vpop.f32.mrf.mxu0
    %v4033 = vadd.f32 0.0, %v4032
    %4034 = vmatmul.bf16.gmra.mxu0 %v3895
    %v4035 = vpop.f32.mrf.mxu0
    %v4036 = vadd.f32 0.0, %v4035
    %v4037 = vpop.f32.mrf.mxu0
    %v4038 = vadd.f32 0.0, %v4037
    %4039 = vmatmul.bf16.gmra.mxu0 %v3898
    %v4040 = vpop.f32.mrf.mxu0
    %v4041 = vadd.f32 0.0, %v4040
    %v4042 = vpop.f32.mrf.mxu0
    %v4043 = vadd.f32 0.0, %v4042
    %4044 = vmatmul.bf16.gmra.mxu0 %v3901
    %v4045 = vpop.f32.mrf.mxu0
    %v4046 = vadd.f32 0.0, %v4045
    %v4047 = vpop.f32.mrf.mxu0
    %v4048 = vadd.f32 0.0, %v4047
    %4049 = vmatmul.bf16.gmra.mxu0 %v3904
    %v4050 = vpop.f32.mrf.mxu0
    %v4051 = vadd.f32 0.0, %v4050
    %v4052 = vpop.f32.mrf.mxu0
    %v4053 = vadd.f32 0.0, %v4052
    %4054 = vmatmul.bf16.gmra.mxu0 %v3907
    %v4055 = vpop.f32.mrf.mxu0
    %v4056 = vadd.f32 0.0, %v4055
    %v4057 = vpop.f32.mrf.mxu0
    %v4058 = vadd.f32 0.0, %v4057
    %4059 = vmatmul.bf16.gmra.mxu0 %v3910
    %v4060 = vpop.f32.mrf.mxu0
    %v4061 = vadd.f32 0.0, %v4060
    %v4062 = vpop.f32.mrf.mxu0
    %v4063 = vadd.f32 0.0, %v4062
    %4064 = vmatmul.bf16.gmra.mxu0 %v3913
    %v4065 = vpop.f32.mrf.mxu0
    %v4066 = vadd.f32 0.0, %v4065
    %v4067 = vpop.f32.mrf.mxu0
    %v4068 = vadd.f32 0.0, %v4067
    %4069 = vmatmul.bf16.gmra.mxu0 %v3916
    %v4070 = vpop.f32.mrf.mxu0
    %v4071 = vadd.f32 0.0, %v4070
    %v4072 = vpop.f32.mrf.mxu0
    %v4073 = vadd.f32 0.0, %v4072
    %4074 = vmatmul.bf16.gmra.mxu0 %v3919
    %v4075 = vpop.f32.mrf.mxu0
    %v4076 = vadd.f32 0.0, %v4075
    %v4077 = vpop.f32.mrf.mxu0
    %v4078 = vadd.f32 0.0, %v4077
    %4079 = vmatmul.bf16.gmra.mxu0 %v3922
    %v4080 = vpop.f32.mrf.mxu0
    %v4081 = vadd.f32 0.0, %v4080
    %v4082 = vpop.f32.mrf.mxu0
    %v4083 = vadd.f32 0.0, %v4082
    %4084 = vmatmul.bf16.gmra.mxu0 %v3925
    %v4085 = vpop.f32.mrf.mxu0
    %v4086 = vadd.f32 0.0, %v4085
    %v4087 = vpop.f32.mrf.mxu0
    %v4088 = vadd.f32 0.0, %v4087
    %4089 = vmatmul.bf16.gmra.mxu0 %v3928
    %v4090 = vpop.f32.mrf.mxu0
    %v4091 = vadd.f32 0.0, %v4090
    %v4092 = vpop.f32.mrf.mxu0
    %v4093 = vadd.f32 0.0, %v4092
    %4094 = vmatmul.bf16.gmra.mxu0 %v3931
    %v4095 = vpop.f32.mrf.mxu0
    %v4096 = vadd.f32 0.0, %v4095
    %v4097 = vpop.f32.mrf.mxu0
    %v4098 = vadd.f32 0.0, %v4097
    %4099 = vmatmul.bf16.gmra.mxu0 %v3934
    %v4100 = vpop.f32.mrf.mxu0
    %v4101 = vadd.f32 0.0, %v4100
    %v4102 = vpop.f32.mrf.mxu0
    %v4103 = vadd.f32 0.0, %v4102
    %4104 = vdwg.mxu0
    %v4105 = vld [vmem:[#allocation5] sm:$0xff]
    %v4106 = vld [vmem:[#allocation5 + $0x8] sm:$0xff]
    %v4107 = vld [vmem:[#allocation5 + $0x10] sm:$0xff]
    %v4108 = vld [vmem:[#allocation5 + $0x18] sm:$0xff]
    %v4109 = vld [vmem:[#allocation5 + $0x20] sm:$0xff]
    %v4110 = vld [vmem:[#allocation5 + $0x28] sm:$0xff]
    %v4111 = vld [vmem:[#allocation5 + $0x30] sm:$0xff]
    %v4112 = vld [vmem:[#allocation5 + $0x38] sm:$0xff]
    %v4113 = vld [vmem:[#allocation5 + $0x40] sm:$0xff]
    %v4114 = vld [vmem:[#allocation5 + $0x48] sm:$0xff]
    %v4115 = vld [vmem:[#allocation5 + $0x50] sm:$0xff]
    %v4116 = vld [vmem:[#allocation5 + $0x58] sm:$0xff]
    %v4117 = vld [vmem:[#allocation5 + $0x60] sm:$0xff]
    %v4118 = vld [vmem:[#allocation5 + $0x68] sm:$0xff]
    %v4119 = vld [vmem:[#allocation5 + $0x70] sm:$0xff]
    %v4120 = vld [vmem:[#allocation5 + $0x78] sm:$0xff]
    %v4121 = vld [vmem:[#allocation5 + $0x80] sm:$0xff]
    %v4122 = vld [vmem:[#allocation5 + $0x88] sm:$0xff]
    %v4123 = vld [vmem:[#allocation5 + $0x90] sm:$0xff]
    %v4124 = vld [vmem:[#allocation5 + $0x98] sm:$0xff]
    %v4125 = vld [vmem:[#allocation5 + $0xa0] sm:$0xff]
    %v4126 = vld [vmem:[#allocation5 + $0xa8] sm:$0xff]
    %v4127 = vld [vmem:[#allocation5 + $0xb0] sm:$0xff]
    %v4128 = vld [vmem:[#allocation5 + $0xb8] sm:$0xff]
    %v4129 = vld [vmem:[#allocation5 + $0xc0] sm:$0xff]
    %v4130 = vld [vmem:[#allocation5 + $0xc8] sm:$0xff]
    %v4131 = vld [vmem:[#allocation5 + $0xd0] sm:$0xff]
    %v4132 = vld [vmem:[#allocation5 + $0xd8] sm:$0xff]
    %v4133 = vld [vmem:[#allocation5 + $0xe0] sm:$0xff]
    %v4134 = vld [vmem:[#allocation5 + $0xe8] sm:$0xff]
    %v4135 = vld [vmem:[#allocation5 + $0xf0] sm:$0xff]
    %v4136 = vld [vmem:[#allocation5 + $0xf8] sm:$0xff]
    %v4137 = vld [vmem:[#allocation5 + $0x100] sm:$0xff]
    %v4138 = vld [vmem:[#allocation5 + $0x108] sm:$0xff]
    %v4139 = vld [vmem:[#allocation5 + $0x110] sm:$0xff]
    %v4140 = vld [vmem:[#allocation5 + $0x118] sm:$0xff]
    %v4141 = vld [vmem:[#allocation5 + $0x120] sm:$0xff]
    %v4142 = vld [vmem:[#allocation5 + $0x128] sm:$0xff]
    %v4143 = vld [vmem:[#allocation5 + $0x130] sm:$0xff]
    %v4144 = vld [vmem:[#allocation5 + $0x138] sm:$0xff]
    %v4145 = vld [vmem:[#allocation5 + $0x140] sm:$0xff]
    %v4146 = vld [vmem:[#allocation5 + $0x148] sm:$0xff]
    %v4147 = vld [vmem:[#allocation5 + $0x150] sm:$0xff]
    %v4148 = vld [vmem:[#allocation5 + $0x158] sm:$0xff]
    %v4149 = vld [vmem:[#allocation5 + $0x160] sm:$0xff]
    %v4150 = vld [vmem:[#allocation5 + $0x168] sm:$0xff]
    %v4151 = vld [vmem:[#allocation5 + $0x170] sm:$0xff]
    %v4152 = vld [vmem:[#allocation5 + $0x178] sm:$0xff]
    %v4153 = vld [vmem:[#allocation5 + $0x180] sm:$0xff]
    %v4154 = vld [vmem:[#allocation5 + $0x188] sm:$0xff]
    %v4155 = vld [vmem:[#allocation5 + $0x190] sm:$0xff]
    %v4156 = vld [vmem:[#allocation5 + $0x198] sm:$0xff]
    %v4157 = vld [vmem:[#allocation5 + $0x1a0] sm:$0xff]
    %v4158 = vld [vmem:[#allocation5 + $0x1a8] sm:$0xff]
    %v4159 = vld [vmem:[#allocation5 + $0x1b0] sm:$0xff]
    %v4160 = vld [vmem:[#allocation5 + $0x1b8] sm:$0xff]
    %v4161 = vld [vmem:[#allocation5 + $0x1c0] sm:$0xff]
    %v4162 = vld [vmem:[#allocation5 + $0x1c8] sm:$0xff]
    %v4163 = vld [vmem:[#allocation5 + $0x1d0] sm:$0xff]
    %v4164 = vld [vmem:[#allocation5 + $0x1d8] sm:$0xff]
    %v4165 = vld [vmem:[#allocation5 + $0x1e0] sm:$0xff]
    %v4166 = vld [vmem:[#allocation5 + $0x1e8] sm:$0xff]
    %v4167 = vld [vmem:[#allocation5 + $0x1f0] sm:$0xff]
    %v4168 = vld [vmem:[#allocation5 + $0x1f8] sm:$0xff]
    %v4169 = vadd.f32 %v4105, %v3946
    %v4170 = vadd.f32 %v4106, %v3948
    %v4171 = vadd.f32 %v4107, %v3951
    %v4172 = vadd.f32 %v4108, %v3953
    %v4173 = vadd.f32 %v4109, %v3956
    %v4174 = vadd.f32 %v4110, %v3958
    %v4175 = vadd.f32 %v4111, %v3961
    %v4176 = vadd.f32 %v4112, %v3963
    %v4177 = vadd.f32 %v4113, %v3966
    %v4178 = vadd.f32 %v4114, %v3968
    %v4179 = vadd.f32 %v4115, %v3971
    %v4180 = vadd.f32 %v4116, %v3973
    %v4181 = vadd.f32 %v4117, %v3976
    %v4182 = vadd.f32 %v4118, %v3978
    %v4183 = vadd.f32 %v4119, %v3981
    %v4184 = vadd.f32 %v4120, %v3983
    %v4185 = vadd.f32 %v4121, %v3986
    %v4186 = vadd.f32 %v4122, %v3988
    %v4187 = vadd.f32 %v4123, %v3991
    %v4188 = vadd.f32 %v4124, %v3993
    %v4189 = vadd.f32 %v4125, %v3996
    %v4190 = vadd.f32 %v4126, %v3998
    %v4191 = vadd.f32 %v4127, %v4001
    %v4192 = vadd.f32 %v4128, %v4003
    %v4193 = vadd.f32 %v4129, %v4006
    %v4194 = vadd.f32 %v4130, %v4008
    %v4195 = vadd.f32 %v4131, %v4011
    %v4196 = vadd.f32 %v4132, %v4013
    %v4197 = vadd.f32 %v4133, %v4016
    %v4198 = vadd.f32 %v4134, %v4018
    %v4199 = vadd.f32 %v4135, %v4021
    %v4200 = vadd.f32 %v4136, %v4023
    %v4201 = vadd.f32 %v4137, %v4026
    %v4202 = vadd.f32 %v4138, %v4028
    %v4203 = vadd.f32 %v4139, %v4031
    %v4204 = vadd.f32 %v4140, %v4033
    %v4205 = vadd.f32 %v4141, %v4036
    %v4206 = vadd.f32 %v4142, %v4038
    %v4207 = vadd.f32 %v4143, %v4041
    %v4208 = vadd.f32 %v4144, %v4043
    %v4209 = vadd.f32 %v4145, %v4046
    %v4210 = vadd.f32 %v4146, %v4048
    %v4211 = vadd.f32 %v4147, %v4051
    %v4212 = vadd.f32 %v4148, %v4053
    %v4213 = vadd.f32 %v4149, %v4056
    %v4214 = vadd.f32 %v4150, %v4058
    %v4215 = vadd.f32 %v4151, %v4061
    %v4216 = vadd.f32 %v4152, %v4063
    %v4217 = vadd.f32 %v4153, %v4066
    %v4218 = vadd.f32 %v4154, %v4068
    %v4219 = vadd.f32 %v4155, %v4071
    %v4220 = vadd.f32 %v4156, %v4073
    %v4221 = vadd.f32 %v4157, %v4076
    %v4222 = vadd.f32 %v4158, %v4078
    %v4223 = vadd.f32 %v4159, %v4081
    %v4224 = vadd.f32 %v4160, %v4083
    %v4225 = vadd.f32 %v4161, %v4086
    %v4226 = vadd.f32 %v4162, %v4088
    %v4227 = vadd.f32 %v4163, %v4091
    %v4228 = vadd.f32 %v4164, %v4093
    %v4229 = vadd.f32 %v4165, %v4096
    %v4230 = vadd.f32 %v4166, %v4098
    %v4231 = vadd.f32 %v4167, %v4101
    %v4232 = vadd.f32 %v4168, %v4103
    %4233 = vst.msk [vmem:[#allocation5] sm:$0xff] %vm31, %v4169
    %4234 = vst.msk [vmem:[#allocation5 + $0x8] sm:$0xff] %vm31, %v4170
    %4235 = vst.msk [vmem:[#allocation5 + $0x10] sm:$0xff] %vm31, %v4171
    %4236 = vst.msk [vmem:[#allocation5 + $0x18] sm:$0xff] %vm31, %v4172
    %4237 = vst.msk [vmem:[#allocation5 + $0x20] sm:$0xff] %vm31, %v4173
    %4238 = vst.msk [vmem:[#allocation5 + $0x28] sm:$0xff] %vm31, %v4174
    %4239 = vst.msk [vmem:[#allocation5 + $0x30] sm:$0xff] %vm31, %v4175
    %4240 = vst.msk [vmem:[#allocation5 + $0x38] sm:$0xff] %vm31, %v4176
    %4241 = vst.msk [vmem:[#allocation5 + $0x40] sm:$0xff] %vm31, %v4177
    %4242 = vst.msk [vmem:[#allocation5 + $0x48] sm:$0xff] %vm31, %v4178
    %4243 = vst.msk [vmem:[#allocation5 + $0x50] sm:$0xff] %vm31, %v4179
    %4244 = vst.msk [vmem:[#allocation5 + $0x58] sm:$0xff] %vm31, %v4180
    %4245 = vst.msk [vmem:[#allocation5 + $0x60] sm:$0xff] %vm31, %v4181
    %4246 = vst.msk [vmem:[#allocation5 + $0x68] sm:$0xff] %vm31, %v4182
    %4247 = vst.msk [vmem:[#allocation5 + $0x70] sm:$0xff] %vm31, %v4183
    %4248 = vst.msk [vmem:[#allocation5 + $0x78] sm:$0xff] %vm31, %v4184
    %4249 = vst.msk [vmem:[#allocation5 + $0x80] sm:$0xff] %vm31, %v4185
    %4250 = vst.msk [vmem:[#allocation5 + $0x88] sm:$0xff] %vm31, %v4186
    %4251 = vst.msk [vmem:[#allocation5 + $0x90] sm:$0xff] %vm31, %v4187
    %4252 = vst.msk [vmem:[#allocation5 + $0x98] sm:$0xff] %vm31, %v4188
    %4253 = vst.msk [vmem:[#allocation5 + $0xa0] sm:$0xff] %vm31, %v4189
    %4254 = vst.msk [vmem:[#allocation5 + $0xa8] sm:$0xff] %vm31, %v4190
    %4255 = vst.msk [vmem:[#allocation5 + $0xb0] sm:$0xff] %vm31, %v4191
    %4256 = vst.msk [vmem:[#allocation5 + $0xb8] sm:$0xff] %vm31, %v4192
    %4257 = vst.msk [vmem:[#allocation5 + $0xc0] sm:$0xff] %vm31, %v4193
    %4258 = vst.msk [vmem:[#allocation5 + $0xc8] sm:$0xff] %vm31, %v4194
    %4259 = vst.msk [vmem:[#allocation5 + $0xd0] sm:$0xff] %vm31, %v4195
    %4260 = vst.msk [vmem:[#allocation5 + $0xd8] sm:$0xff] %vm31, %v4196
    %4261 = vst.msk [vmem:[#allocation5 + $0xe0] sm:$0xff] %vm31, %v4197
    %4262 = vst.msk [vmem:[#allocation5 + $0xe8] sm:$0xff] %vm31, %v4198
    %4263 = vst.msk [vmem:[#allocation5 + $0xf0] sm:$0xff] %vm31, %v4199
    %4264 = vst.msk [vmem:[#allocation5 + $0xf8] sm:$0xff] %vm31, %v4200
    %4265 = vst.msk [vmem:[#allocation5 + $0x100] sm:$0xff] %vm31, %v4201
    %4266 = vst.msk [vmem:[#allocation5 + $0x108] sm:$0xff] %vm31, %v4202
    %4267 = vst.msk [vmem:[#allocation5 + $0x110] sm:$0xff] %vm31, %v4203
    %4268 = vst.msk [vmem:[#allocation5 + $0x118] sm:$0xff] %vm31, %v4204
    %4269 = vst.msk [vmem:[#allocation5 + $0x120] sm:$0xff] %vm31, %v4205
    %4270 = vst.msk [vmem:[#allocation5 + $0x128] sm:$0xff] %vm31, %v4206
    %4271 = vst.msk [vmem:[#allocation5 + $0x130] sm:$0xff] %vm31, %v4207
    %4272 = vst.msk [vmem:[#allocation5 + $0x138] sm:$0xff] %vm31, %v4208
    %4273 = vst.msk [vmem:[#allocation5 + $0x140] sm:$0xff] %vm31, %v4209
    %4274 = vst.msk [vmem:[#allocation5 + $0x148] sm:$0xff] %vm31, %v4210
    %4275 = vst.msk [vmem:[#allocation5 + $0x150] sm:$0xff] %vm31, %v4211
    %4276 = vst.msk [vmem:[#allocation5 + $0x158] sm:$0xff] %vm31, %v4212
    %4277 = vst.msk [vmem:[#allocation5 + $0x160] sm:$0xff] %vm31, %v4213
    %4278 = vst.msk [vmem:[#allocation5 + $0x168] sm:$0xff] %vm31, %v4214
    %4279 = vst.msk [vmem:[#allocation5 + $0x170] sm:$0xff] %vm31, %v4215
    %4280 = vst.msk [vmem:[#allocation5 + $0x178] sm:$0xff] %vm31, %v4216
    %4281 = vst.msk [vmem:[#allocation5 + $0x180] sm:$0xff] %vm31, %v4217
    %4282 = vst.msk [vmem:[#allocation5 + $0x188] sm:$0xff] %vm31, %v4218
    %4283 = vst.msk [vmem:[#allocation5 + $0x190] sm:$0xff] %vm31, %v4219
    %4284 = vst.msk [vmem:[#allocation5 + $0x198] sm:$0xff] %vm31, %v4220
    %4285 = vst.msk [vmem:[#allocation5 + $0x1a0] sm:$0xff] %vm31, %v4221
    %4286 = vst.msk [vmem:[#allocation5 + $0x1a8] sm:$0xff] %vm31, %v4222
    %4287 = vst.msk [vmem:[#allocation5 + $0x1b0] sm:$0xff] %vm31, %v4223
    %4288 = vst.msk [vmem:[#allocation5 + $0x1b8] sm:$0xff] %vm31, %v4224
    %4289 = vst.msk [vmem:[#allocation5 + $0x1c0] sm:$0xff] %vm31, %v4225
    %4290 = vst.msk [vmem:[#allocation5 + $0x1c8] sm:$0xff] %vm31, %v4226
    %4291 = vst.msk [vmem:[#allocation5 + $0x1d0] sm:$0xff] %vm31, %v4227
    %4292 = vst.msk [vmem:[#allocation5 + $0x1d8] sm:$0xff] %vm31, %v4228
    %4293 = vst.msk [vmem:[#allocation5 + $0x1e0] sm:$0xff] %vm31, %v4229
    %4294 = vst.msk [vmem:[#allocation5 + $0x1e8] sm:$0xff] %vm31, %v4230
    %4295 = vst.msk [vmem:[#allocation5 + $0x1f0] sm:$0xff] %vm31, %v4231
    %4296 = vst.msk [vmem:[#allocation5 + $0x1f8] sm:$0xff] %vm31, %v4232
    %s4297 = scalar_lea.vmem [#allocation2], 64
    %v4298 = vld [vmem:[%s4297 + $0x7] sm:$0xff]
    %v4299 = vld [vmem:[%s4297 + $0xf] sm:$0xff]
    %v4300 = vld [vmem:[%s4297 + $0x27] sm:$0xff]
    %v4301 = vld [vmem:[%s4297 + $0x2f] sm:$0xff]
    %v4302 = vld [vmem:[%s4297 + $0x47] sm:$0xff]
    %v4303 = vld [vmem:[%s4297 + $0x4f] sm:$0xff]
    %v4304 = vld [vmem:[%s4297 + $0x67] sm:$0xff]
    %v4305 = vld [vmem:[%s4297 + $0x6f] sm:$0xff]
    %v4306 = vld [vmem:[%s4297 + $0x87] sm:$0xff]
    %v4307 = vld [vmem:[%s4297 + $0x8f] sm:$0xff]
    %v4308 = vld [vmem:[%s4297 + $0xa7] sm:$0xff]
    %v4309 = vld [vmem:[%s4297 + $0xaf] sm:$0xff]
    %v4310 = vld [vmem:[%s4297 + $0xc7] sm:$0xff]
    %v4311 = vld [vmem:[%s4297 + $0xcf] sm:$0xff]
    %v4312 = vld [vmem:[%s4297 + $0xe7] sm:$0xff]
    %v4313 = vld [vmem:[%s4297 + $0xef] sm:$0xff]
    %v4314 = vld [vmem:[%s4297 + $0x107] sm:$0xff]
    %v4315 = vld [vmem:[%s4297 + $0x10f] sm:$0xff]
    %v4316 = vld [vmem:[%s4297 + $0x127] sm:$0xff]
    %v4317 = vld [vmem:[%s4297 + $0x12f] sm:$0xff]
    %v4318 = vld [vmem:[%s4297 + $0x147] sm:$0xff]
    %v4319 = vld [vmem:[%s4297 + $0x14f] sm:$0xff]
    %v4320 = vld [vmem:[%s4297 + $0x167] sm:$0xff]
    %v4321 = vld [vmem:[%s4297 + $0x16f] sm:$0xff]
    %v4322 = vld [vmem:[%s4297 + $0x187] sm:$0xff]
    %v4323 = vld [vmem:[%s4297 + $0x18f] sm:$0xff]
    %v4324 = vld [vmem:[%s4297 + $0x1a7] sm:$0xff]
    %v4325 = vld [vmem:[%s4297 + $0x1af] sm:$0xff]
    %v4326 = vld [vmem:[%s4297 + $0x1c7] sm:$0xff]
    %v4327 = vld [vmem:[%s4297 + $0x1cf] sm:$0xff]
    %v4328 = vld [vmem:[%s4297 + $0x1e7] sm:$0xff]
    %v4329 = vld [vmem:[%s4297 + $0x1ef] sm:$0xff]
    %v4330 = vld [vmem:[%s4297 + $0x247] sm:$0xff]
    %v4331 = vld [vmem:[%s4297 + $0x24f] sm:$0xff]
    %v4332 = vld [vmem:[%s4297 + $0x267] sm:$0xff]
    %v4333 = vld [vmem:[%s4297 + $0x26f] sm:$0xff]
    %v4334 = vld [vmem:[%s4297 + $0x287] sm:$0xff]
    %v4335 = vld [vmem:[%s4297 + $0x28f] sm:$0xff]
    %v4336 = vld [vmem:[%s4297 + $0x2a7] sm:$0xff]
    %v4337 = vld [vmem:[%s4297 + $0x2af] sm:$0xff]
    %v4338 = vld [vmem:[%s4297 + $0x2c7] sm:$0xff]
    %v4339 = vld [vmem:[%s4297 + $0x2cf] sm:$0xff]
    %v4340 = vld [vmem:[%s4297 + $0x2e7] sm:$0xff]
    %v4341 = vld [vmem:[%s4297 + $0x2ef] sm:$0xff]
    %v4342 = vld [vmem:[%s4297 + $0x307] sm:$0xff]
    %v4343 = vld [vmem:[%s4297 + $0x30f] sm:$0xff]
    %v4344 = vld [vmem:[%s4297 + $0x327] sm:$0xff]
    %v4345 = vld [vmem:[%s4297 + $0x32f] sm:$0xff]
    %v4346 = vld [vmem:[%s4297 + $0x347] sm:$0xff]
    %v4347 = vld [vmem:[%s4297 + $0x34f] sm:$0xff]
    %v4348 = vld [vmem:[%s4297 + $0x367] sm:$0xff]
    %v4349 = vld [vmem:[%s4297 + $0x36f] sm:$0xff]
    %v4350 = vld [vmem:[%s4297 + $0x387] sm:$0xff]
    %v4351 = vld [vmem:[%s4297 + $0x38f] sm:$0xff]
    %v4352 = vld [vmem:[%s4297 + $0x3a7] sm:$0xff]
    %v4353 = vld [vmem:[%s4297 + $0x3af] sm:$0xff]
    %v4354 = vld [vmem:[%s4297 + $0x3c7] sm:$0xff]
    %v4355 = vld [vmem:[%s4297 + $0x3cf] sm:$0xff]
    %v4356 = vld [vmem:[%s4297 + $0x3e7] sm:$0xff]
    %v4357 = vld [vmem:[%s4297 + $0x3ef] sm:$0xff]
    %v4358 = vld [vmem:[%s4297 + $0x407] sm:$0xff]
    %v4359 = vld [vmem:[%s4297 + $0x40f] sm:$0xff]
    %v4360 = vld [vmem:[%s4297 + $0x427] sm:$0xff]
    %v4361 = vld [vmem:[%s4297 + $0x42f] sm:$0xff]
    %v4362 = vpack.c.bf16 %v4299, %v4298
    %v4363 = vpack.c.bf16 %v4301, %v4300
    %v4364 = vpack.c.bf16 %v4303, %v4302
    %v4365 = vpack.c.bf16 %v4305, %v4304
    %v4366 = vpack.c.bf16 %v4307, %v4306
    %v4367 = vpack.c.bf16 %v4309, %v4308
    %v4368 = vpack.c.bf16 %v4311, %v4310
    %v4369 = vpack.c.bf16 %v4313, %v4312
    %v4370 = vpack.c.bf16 %v4315, %v4314
    %v4371 = vpack.c.bf16 %v4317, %v4316
    %v4372 = vpack.c.bf16 %v4319, %v4318
    %v4373 = vpack.c.bf16 %v4321, %v4320
    %v4374 = vpack.c.bf16 %v4323, %v4322
    %v4375 = vpack.c.bf16 %v4325, %v4324
    %v4376 = vpack.c.bf16 %v4327, %v4326
    %v4377 = vpack.c.bf16 %v4329, %v4328
    %v4378 = vpack.c.bf16 %v4331, %v4330
    %v4379 = vpack.c.bf16 %v4333, %v4332
    %v4380 = vpack.c.bf16 %v4335, %v4334
    %v4381 = vpack.c.bf16 %v4337, %v4336
    %v4382 = vpack.c.bf16 %v4339, %v4338
    %v4383 = vpack.c.bf16 %v4341, %v4340
    %v4384 = vpack.c.bf16 %v4343, %v4342
    %v4385 = vpack.c.bf16 %v4345, %v4344
    %v4386 = vpack.c.bf16 %v4347, %v4346
    %v4387 = vpack.c.bf16 %v4349, %v4348
    %v4388 = vpack.c.bf16 %v4351, %v4350
    %v4389 = vpack.c.bf16 %v4353, %v4352
    %v4390 = vpack.c.bf16 %v4355, %v4354
    %v4391 = vpack.c.bf16 %v4357, %v4356
    %v4392 = vpack.c.bf16 %v4359, %v4358
    %v4393 = vpack.c.bf16 %v4361, %v4360
    %s4394 = scalar_lea.vmem %s2, 96
    %v4395 = vld [vmem:[%s4394] sm:$0xf]
    %v4396 = vld [vmem:[%s4394 + $0x4] sm:$0xf]
    %v4397 = vld [vmem:[%s4394 + $0x8] sm:$0xf]
    %v4398 = vld [vmem:[%s4394 + $0xc] sm:$0xf]
    %v4403 = vunpack.c.l.b16 %v4395
    %v4404 = vunpack.c.l.b16 %v4396
    %v4405 = vunpack.c.l.b16 %v4397
    %v4406 = vunpack.c.l.b16 %v4398
    %v4407 = vpack.c.b16 %v4404, %v4403
    %v4408 = vpack.c.b16 %v4406, %v4405
    %v4412 = vsel %vm31, %v4362, 0
    %v4415 = vsel %vm31, %v4363, 0
    %v4418 = vsel %vm31, %v4364, 0
    %v4421 = vsel %vm31, %v4365, 0
    %v4424 = vsel %vm31, %v4366, 0
    %v4427 = vsel %vm31, %v4367, 0
    %v4430 = vsel %vm31, %v4368, 0
    %v4433 = vsel %vm31, %v4369, 0
    %v4436 = vsel %vm31, %v4370, 0
    %v4439 = vsel %vm31, %v4371, 0
    %v4442 = vsel %vm31, %v4372, 0
    %v4445 = vsel %vm31, %v4373, 0
    %v4448 = vsel %vm31, %v4374, 0
    %v4451 = vsel %vm31, %v4375, 0
    %v4454 = vsel %vm31, %v4376, 0
    %v4457 = vsel %vm31, %v4377, 0
    %v4460 = vsel %vm31, %v4378, 0
    %v4463 = vsel %vm31, %v4379, 0
    %v4466 = vsel %vm31, %v4380, 0
    %v4469 = vsel %vm31, %v4381, 0
    %v4472 = vsel %vm31, %v4382, 0
    %v4475 = vsel %vm31, %v4383, 0
    %v4478 = vsel %vm31, %v4384, 0
    %v4481 = vsel %vm31, %v4385, 0
    %v4484 = vsel %vm31, %v4386, 0
    %v4487 = vsel %vm31, %v4387, 0
    %v4490 = vsel %vm31, %v4388, 0
    %v4493 = vsel %vm31, %v4389, 0
    %v4496 = vsel %vm31, %v4390, 0
    %v4499 = vsel %vm31, %v4391, 0
    %v4502 = vsel %vm31, %v4392, 0
    %v4505 = vsel %vm31, %v4393, 0
    %4507 = vmatpush.bf16.msra.mxu0 0
    %4508 = vmatpush.bf16.msra.mxu0 0
    %4509 = vmatpush.bf16.msra.mxu0 0
    %4510 = vmatpush.bf16.msra.mxu0 0
    %4511 = vmatpush.bf16.msra.mxu0 0
    %4512 = vmatpush.bf16.msra.mxu0 0
    %4513 = vmatpush.bf16.msra.mxu0 %v4408
    %4514 = vmatpush.bf16.msra.mxu0 %v4407
    %4515 = vmatmul.bf16.gmra.mxu0 %v4412
    %v4516 = vpop.f32.mrf.mxu0
    %v4517 = vadd.f32 0.0, %v4516
    %v4518 = vpop.f32.mrf.mxu0
    %v4519 = vadd.f32 0.0, %v4518
    %4520 = vmatmul.bf16.gmra.mxu0 %v4415
    %v4521 = vpop.f32.mrf.mxu0
    %v4522 = vadd.f32 0.0, %v4521
    %v4523 = vpop.f32.mrf.mxu0
    %v4524 = vadd.f32 0.0, %v4523
    %4525 = vmatmul.bf16.gmra.mxu0 %v4418
    %v4526 = vpop.f32.mrf.mxu0
    %v4527 = vadd.f32 0.0, %v4526
    %v4528 = vpop.f32.mrf.mxu0
    %v4529 = vadd.f32 0.0, %v4528
    %4530 = vmatmul.bf16.gmra.mxu0 %v4421
    %v4531 = vpop.f32.mrf.mxu0
    %v4532 = vadd.f32 0.0, %v4531
    %v4533 = vpop.f32.mrf.mxu0
    %v4534 = vadd.f32 0.0, %v4533
    %4535 = vmatmul.bf16.gmra.mxu0 %v4424
    %v4536 = vpop.f32.mrf.mxu0
    %v4537 = vadd.f32 0.0, %v4536
    %v4538 = vpop.f32.mrf.mxu0
    %v4539 = vadd.f32 0.0, %v4538
    %4540 = vmatmul.bf16.gmra.mxu0 %v4427
    %v4541 = vpop.f32.mrf.mxu0
    %v4542 = vadd.f32 0.0, %v4541
    %v4543 = vpop.f32.mrf.mxu0
    %v4544 = vadd.f32 0.0, %v4543
    %4545 = vmatmul.bf16.gmra.mxu0 %v4430
    %v4546 = vpop.f32.mrf.mxu0
    %v4547 = vadd.f32 0.0, %v4546
    %v4548 = vpop.f32.mrf.mxu0
    %v4549 = vadd.f32 0.0, %v4548
    %4550 = vmatmul.bf16.gmra.mxu0 %v4433
    %v4551 = vpop.f32.mrf.mxu0
    %v4552 = vadd.f32 0.0, %v4551
    %v4553 = vpop.f32.mrf.mxu0
    %v4554 = vadd.f32 0.0, %v4553
    %4555 = vmatmul.bf16.gmra.mxu0 %v4436
    %v4556 = vpop.f32.mrf.mxu0
    %v4557 = vadd.f32 0.0, %v4556
    %v4558 = vpop.f32.mrf.mxu0
    %v4559 = vadd.f32 0.0, %v4558
    %4560 = vmatmul.bf16.gmra.mxu0 %v4439
    %v4561 = vpop.f32.mrf.mxu0
    %v4562 = vadd.f32 0.0, %v4561
    %v4563 = vpop.f32.mrf.mxu0
    %v4564 = vadd.f32 0.0, %v4563
    %4565 = vmatmul.bf16.gmra.mxu0 %v4442
    %v4566 = vpop.f32.mrf.mxu0
    %v4567 = vadd.f32 0.0, %v4566
    %v4568 = vpop.f32.mrf.mxu0
    %v4569 = vadd.f32 0.0, %v4568
    %4570 = vmatmul.bf16.gmra.mxu0 %v4445
    %v4571 = vpop.f32.mrf.mxu0
    %v4572 = vadd.f32 0.0, %v4571
    %v4573 = vpop.f32.mrf.mxu0
    %v4574 = vadd.f32 0.0, %v4573
    %4575 = vmatmul.bf16.gmra.mxu0 %v4448
    %v4576 = vpop.f32.mrf.mxu0
    %v4577 = vadd.f32 0.0, %v4576
    %v4578 = vpop.f32.mrf.mxu0
    %v4579 = vadd.f32 0.0, %v4578
    %4580 = vmatmul.bf16.gmra.mxu0 %v4451
    %v4581 = vpop.f32.mrf.mxu0
    %v4582 = vadd.f32 0.0, %v4581
    %v4583 = vpop.f32.mrf.mxu0
    %v4584 = vadd.f32 0.0, %v4583
    %4585 = vmatmul.bf16.gmra.mxu0 %v4454
    %v4586 = vpop.f32.mrf.mxu0
    %v4587 = vadd.f32 0.0, %v4586
    %v4588 = vpop.f32.mrf.mxu0
    %v4589 = vadd.f32 0.0, %v4588
    %4590 = vmatmul.bf16.gmra.mxu0 %v4457
    %v4591 = vpop.f32.mrf.mxu0
    %v4592 = vadd.f32 0.0, %v4591
    %v4593 = vpop.f32.mrf.mxu0
    %v4594 = vadd.f32 0.0, %v4593
    %4595 = vmatmul.bf16.gmra.mxu0 %v4460
    %v4596 = vpop.f32.mrf.mxu0
    %v4597 = vadd.f32 0.0, %v4596
    %v4598 = vpop.f32.mrf.mxu0
    %v4599 = vadd.f32 0.0, %v4598
    %4600 = vmatmul.bf16.gmra.mxu0 %v4463
    %v4601 = vpop.f32.mrf.mxu0
    %v4602 = vadd.f32 0.0, %v4601
    %v4603 = vpop.f32.mrf.mxu0
    %v4604 = vadd.f32 0.0, %v4603
    %4605 = vmatmul.bf16.gmra.mxu0 %v4466
    %v4606 = vpop.f32.mrf.mxu0
    %v4607 = vadd.f32 0.0, %v4606
    %v4608 = vpop.f32.mrf.mxu0
    %v4609 = vadd.f32 0.0, %v4608
    %4610 = vmatmul.bf16.gmra.mxu0 %v4469
    %v4611 = vpop.f32.mrf.mxu0
    %v4612 = vadd.f32 0.0, %v4611
    %v4613 = vpop.f32.mrf.mxu0
    %v4614 = vadd.f32 0.0, %v4613
    %4615 = vmatmul.bf16.gmra.mxu0 %v4472
    %v4616 = vpop.f32.mrf.mxu0
    %v4617 = vadd.f32 0.0, %v4616
    %v4618 = vpop.f32.mrf.mxu0
    %v4619 = vadd.f32 0.0, %v4618
    %4620 = vmatmul.bf16.gmra.mxu0 %v4475
    %v4621 = vpop.f32.mrf.mxu0
    %v4622 = vadd.f32 0.0, %v4621
    %v4623 = vpop.f32.mrf.mxu0
    %v4624 = vadd.f32 0.0, %v4623
    %4625 = vmatmul.bf16.gmra.mxu0 %v4478
    %v4626 = vpop.f32.mrf.mxu0
    %v4627 = vadd.f32 0.0, %v4626
    %v4628 = vpop.f32.mrf.mxu0
    %v4629 = vadd.f32 0.0, %v4628
    %4630 = vmatmul.bf16.gmra.mxu0 %v4481
    %v4631 = vpop.f32.mrf.mxu0
    %v4632 = vadd.f32 0.0, %v4631
    %v4633 = vpop.f32.mrf.mxu0
    %v4634 = vadd.f32 0.0, %v4633
    %4635 = vmatmul.bf16.gmra.mxu0 %v4484
    %v4636 = vpop.f32.mrf.mxu0
    %v4637 = vadd.f32 0.0, %v4636
    %v4638 = vpop.f32.mrf.mxu0
    %v4639 = vadd.f32 0.0, %v4638
    %4640 = vmatmul.bf16.gmra.mxu0 %v4487
    %v4641 = vpop.f32.mrf.mxu0
    %v4642 = vadd.f32 0.0, %v4641
    %v4643 = vpop.f32.mrf.mxu0
    %v4644 = vadd.f32 0.0, %v4643
    %4645 = vmatmul.bf16.gmra.mxu0 %v4490
    %v4646 = vpop.f32.mrf.mxu0
    %v4647 = vadd.f32 0.0, %v4646
    %v4648 = vpop.f32.mrf.mxu0
    %v4649 = vadd.f32 0.0, %v4648
    %4650 = vmatmul.bf16.gmra.mxu0 %v4493
    %v4651 = vpop.f32.mrf.mxu0
    %v4652 = vadd.f32 0.0, %v4651
    %v4653 = vpop.f32.mrf.mxu0
    %v4654 = vadd.f32 0.0, %v4653
    %4655 = vmatmul.bf16.gmra.mxu0 %v4496
    %v4656 = vpop.f32.mrf.mxu0
    %v4657 = vadd.f32 0.0, %v4656
    %v4658 = vpop.f32.mrf.mxu0
    %v4659 = vadd.f32 0.0, %v4658
    %4660 = vmatmul.bf16.gmra.mxu0 %v4499
    %v4661 = vpop.f32.mrf.mxu0
    %v4662 = vadd.f32 0.0, %v4661
    %v4663 = vpop.f32.mrf.mxu0
    %v4664 = vadd.f32 0.0, %v4663
    %4665 = vmatmul.bf16.gmra.mxu0 %v4502
    %v4666 = vpop.f32.mrf.mxu0
    %v4667 = vadd.f32 0.0, %v4666
    %v4668 = vpop.f32.mrf.mxu0
    %v4669 = vadd.f32 0.0, %v4668
    %4670 = vmatmul.bf16.gmra.mxu0 %v4505
    %v4671 = vpop.f32.mrf.mxu0
    %v4672 = vadd.f32 0.0, %v4671
    %v4673 = vpop.f32.mrf.mxu0
    %v4674 = vadd.f32 0.0, %v4673
    %4675 = vdwg.mxu0
    %v4676 = vld [vmem:[#allocation5] sm:$0xff]
    %v4677 = vld [vmem:[#allocation5 + $0x8] sm:$0xff]
    %v4678 = vld [vmem:[#allocation5 + $0x10] sm:$0xff]
    %v4679 = vld [vmem:[#allocation5 + $0x18] sm:$0xff]
    %v4680 = vld [vmem:[#allocation5 + $0x20] sm:$0xff]
    %v4681 = vld [vmem:[#allocation5 + $0x28] sm:$0xff]
    %v4682 = vld [vmem:[#allocation5 + $0x30] sm:$0xff]
    %v4683 = vld [vmem:[#allocation5 + $0x38] sm:$0xff]
    %v4684 = vld [vmem:[#allocation5 + $0x40] sm:$0xff]
    %v4685 = vld [vmem:[#allocation5 + $0x48] sm:$0xff]
    %v4686 = vld [vmem:[#allocation5 + $0x50] sm:$0xff]
    %v4687 = vld [vmem:[#allocation5 + $0x58] sm:$0xff]
    %v4688 = vld [vmem:[#allocation5 + $0x60] sm:$0xff]
    %v4689 = vld [vmem:[#allocation5 + $0x68] sm:$0xff]
    %v4690 = vld [vmem:[#allocation5 + $0x70] sm:$0xff]
    %v4691 = vld [vmem:[#allocation5 + $0x78] sm:$0xff]
    %v4692 = vld [vmem:[#allocation5 + $0x80] sm:$0xff]
    %v4693 = vld [vmem:[#allocation5 + $0x88] sm:$0xff]
    %v4694 = vld [vmem:[#allocation5 + $0x90] sm:$0xff]
    %v4695 = vld [vmem:[#allocation5 + $0x98] sm:$0xff]
    %v4696 = vld [vmem:[#allocation5 + $0xa0] sm:$0xff]
    %v4697 = vld [vmem:[#allocation5 + $0xa8] sm:$0xff]
    %v4698 = vld [vmem:[#allocation5 + $0xb0] sm:$0xff]
    %v4699 = vld [vmem:[#allocation5 + $0xb8] sm:$0xff]
    %v4700 = vld [vmem:[#allocation5 + $0xc0] sm:$0xff]
    %v4701 = vld [vmem:[#allocation5 + $0xc8] sm:$0xff]
    %v4702 = vld [vmem:[#allocation5 + $0xd0] sm:$0xff]
    %v4703 = vld [vmem:[#allocation5 + $0xd8] sm:$0xff]
    %v4704 = vld [vmem:[#allocation5 + $0xe0] sm:$0xff]
    %v4705 = vld [vmem:[#allocation5 + $0xe8] sm:$0xff]
    %v4706 = vld [vmem:[#allocation5 + $0xf0] sm:$0xff]
    %v4707 = vld [vmem:[#allocation5 + $0xf8] sm:$0xff]
    %v4708 = vld [vmem:[#allocation5 + $0x100] sm:$0xff]
    %v4709 = vld [vmem:[#allocation5 + $0x108] sm:$0xff]
    %v4710 = vld [vmem:[#allocation5 + $0x110] sm:$0xff]
    %v4711 = vld [vmem:[#allocation5 + $0x118] sm:$0xff]
    %v4712 = vld [vmem:[#allocation5 + $0x120] sm:$0xff]
    %v4713 = vld [vmem:[#allocation5 + $0x128] sm:$0xff]
    %v4714 = vld [vmem:[#allocation5 + $0x130] sm:$0xff]
    %v4715 = vld [vmem:[#allocation5 + $0x138] sm:$0xff]
    %v4716 = vld [vmem:[#allocation5 + $0x140] sm:$0xff]
    %v4717 = vld [vmem:[#allocation5 + $0x148] sm:$0xff]
    %v4718 = vld [vmem:[#allocation5 + $0x150] sm:$0xff]
    %v4719 = vld [vmem:[#allocation5 + $0x158] sm:$0xff]
    %v4720 = vld [vmem:[#allocation5 + $0x160] sm:$0xff]
    %v4721 = vld [vmem:[#allocation5 + $0x168] sm:$0xff]
    %v4722 = vld [vmem:[#allocation5 + $0x170] sm:$0xff]
    %v4723 = vld [vmem:[#allocation5 + $0x178] sm:$0xff]
    %v4724 = vld [vmem:[#allocation5 + $0x180] sm:$0xff]
    %v4725 = vld [vmem:[#allocation5 + $0x188] sm:$0xff]
    %v4726 = vld [vmem:[#allocation5 + $0x190] sm:$0xff]
    %v4727 = vld [vmem:[#allocation5 + $0x198] sm:$0xff]
    %v4728 = vld [vmem:[#allocation5 + $0x1a0] sm:$0xff]
    %v4729 = vld [vmem:[#allocation5 + $0x1a8] sm:$0xff]
    %v4730 = vld [vmem:[#allocation5 + $0x1b0] sm:$0xff]
    %v4731 = vld [vmem:[#allocation5 + $0x1b8] sm:$0xff]
    %v4732 = vld [vmem:[#allocation5 + $0x1c0] sm:$0xff]
    %v4733 = vld [vmem:[#allocation5 + $0x1c8] sm:$0xff]
    %v4734 = vld [vmem:[#allocation5 + $0x1d0] sm:$0xff]
    %v4735 = vld [vmem:[#allocation5 + $0x1d8] sm:$0xff]
    %v4736 = vld [vmem:[#allocation5 + $0x1e0] sm:$0xff]
    %v4737 = vld [vmem:[#allocation5 + $0x1e8] sm:$0xff]
    %v4738 = vld [vmem:[#allocation5 + $0x1f0] sm:$0xff]
    %v4739 = vld [vmem:[#allocation5 + $0x1f8] sm:$0xff]
    %v4740 = vadd.f32 %v4676, %v4517
    %v4741 = vadd.f32 %v4677, %v4519
    %v4742 = vadd.f32 %v4678, %v4522
    %v4743 = vadd.f32 %v4679, %v4524
    %v4744 = vadd.f32 %v4680, %v4527
    %v4745 = vadd.f32 %v4681, %v4529
    %v4746 = vadd.f32 %v4682, %v4532
    %v4747 = vadd.f32 %v4683, %v4534
    %v4748 = vadd.f32 %v4684, %v4537
    %v4749 = vadd.f32 %v4685, %v4539
    %v4750 = vadd.f32 %v4686, %v4542
    %v4751 = vadd.f32 %v4687, %v4544
    %v4752 = vadd.f32 %v4688, %v4547
    %v4753 = vadd.f32 %v4689, %v4549
    %v4754 = vadd.f32 %v4690, %v4552
    %v4755 = vadd.f32 %v4691, %v4554
    %v4756 = vadd.f32 %v4692, %v4557
    %v4757 = vadd.f32 %v4693, %v4559
    %v4758 = vadd.f32 %v4694, %v4562
    %v4759 = vadd.f32 %v4695, %v4564
    %v4760 = vadd.f32 %v4696, %v4567
    %v4761 = vadd.f32 %v4697, %v4569
    %v4762 = vadd.f32 %v4698, %v4572
    %v4763 = vadd.f32 %v4699, %v4574
    %v4764 = vadd.f32 %v4700, %v4577
    %v4765 = vadd.f32 %v4701, %v4579
    %v4766 = vadd.f32 %v4702, %v4582
    %v4767 = vadd.f32 %v4703, %v4584
    %v4768 = vadd.f32 %v4704, %v4587
    %v4769 = vadd.f32 %v4705, %v4589
    %v4770 = vadd.f32 %v4706, %v4592
    %v4771 = vadd.f32 %v4707, %v4594
    %v4772 = vadd.f32 %v4708, %v4597
    %v4773 = vadd.f32 %v4709, %v4599
    %v4774 = vadd.f32 %v4710, %v4602
    %v4775 = vadd.f32 %v4711, %v4604
    %v4776 = vadd.f32 %v4712, %v4607
    %v4777 = vadd.f32 %v4713, %v4609
    %v4778 = vadd.f32 %v4714, %v4612
    %v4779 = vadd.f32 %v4715, %v4614
    %v4780 = vadd.f32 %v4716, %v4617
    %v4781 = vadd.f32 %v4717, %v4619
    %v4782 = vadd.f32 %v4718, %v4622
    %v4783 = vadd.f32 %v4719, %v4624
    %v4784 = vadd.f32 %v4720, %v4627
    %v4785 = vadd.f32 %v4721, %v4629
    %v4786 = vadd.f32 %v4722, %v4632
    %v4787 = vadd.f32 %v4723, %v4634
    %v4788 = vadd.f32 %v4724, %v4637
    %v4789 = vadd.f32 %v4725, %v4639
    %v4790 = vadd.f32 %v4726, %v4642
    %v4791 = vadd.f32 %v4727, %v4644
    %v4792 = vadd.f32 %v4728, %v4647
    %v4793 = vadd.f32 %v4729, %v4649
    %v4794 = vadd.f32 %v4730, %v4652
    %v4795 = vadd.f32 %v4731, %v4654
    %v4796 = vadd.f32 %v4732, %v4657
    %v4797 = vadd.f32 %v4733, %v4659
    %v4798 = vadd.f32 %v4734, %v4662
    %v4799 = vadd.f32 %v4735, %v4664
    %v4800 = vadd.f32 %v4736, %v4667
    %v4801 = vadd.f32 %v4737, %v4669
    %v4802 = vadd.f32 %v4738, %v4672
    %v4803 = vadd.f32 %v4739, %v4674
    %4804 = vst.msk [vmem:[#allocation5] sm:$0xff] %vm31, %v4740
    %4805 = vst.msk [vmem:[#allocation5 + $0x8] sm:$0xff] %vm31, %v4741
    %4806 = vst.msk [vmem:[#allocation5 + $0x10] sm:$0xff] %vm31, %v4742
    %4807 = vst.msk [vmem:[#allocation5 + $0x18] sm:$0xff] %vm31, %v4743
    %4808 = vst.msk [vmem:[#allocation5 + $0x20] sm:$0xff] %vm31, %v4744
    %4809 = vst.msk [vmem:[#allocation5 + $0x28] sm:$0xff] %vm31, %v4745
    %4810 = vst.msk [vmem:[#allocation5 + $0x30] sm:$0xff] %vm31, %v4746
    %4811 = vst.msk [vmem:[#allocation5 + $0x38] sm:$0xff] %vm31, %v4747
    %4812 = vst.msk [vmem:[#allocation5 + $0x40] sm:$0xff] %vm31, %v4748
    %4813 = vst.msk [vmem:[#allocation5 + $0x48] sm:$0xff] %vm31, %v4749
    %4814 = vst.msk [vmem:[#allocation5 + $0x50] sm:$0xff] %vm31, %v4750
    %4815 = vst.msk [vmem:[#allocation5 + $0x58] sm:$0xff] %vm31, %v4751
    %4816 = vst.msk [vmem:[#allocation5 + $0x60] sm:$0xff] %vm31, %v4752
    %4817 = vst.msk [vmem:[#allocation5 + $0x68] sm:$0xff] %vm31, %v4753
    %4818 = vst.msk [vmem:[#allocation5 + $0x70] sm:$0xff] %vm31, %v4754
    %4819 = vst.msk [vmem:[#allocation5 + $0x78] sm:$0xff] %vm31, %v4755
    %4820 = vst.msk [vmem:[#allocation5 + $0x80] sm:$0xff] %vm31, %v4756
    %4821 = vst.msk [vmem:[#allocation5 + $0x88] sm:$0xff] %vm31, %v4757
    %4822 = vst.msk [vmem:[#allocation5 + $0x90] sm:$0xff] %vm31, %v4758
    %4823 = vst.msk [vmem:[#allocation5 + $0x98] sm:$0xff] %vm31, %v4759
    %4824 = vst.msk [vmem:[#allocation5 + $0xa0] sm:$0xff] %vm31, %v4760
    %4825 = vst.msk [vmem:[#allocation5 + $0xa8] sm:$0xff] %vm31, %v4761
    %4826 = vst.msk [vmem:[#allocation5 + $0xb0] sm:$0xff] %vm31, %v4762
    %4827 = vst.msk [vmem:[#allocation5 + $0xb8] sm:$0xff] %vm31, %v4763
    %4828 = vst.msk [vmem:[#allocation5 + $0xc0] sm:$0xff] %vm31, %v4764
    %4829 = vst.msk [vmem:[#allocation5 + $0xc8] sm:$0xff] %vm31, %v4765
    %4830 = vst.msk [vmem:[#allocation5 + $0xd0] sm:$0xff] %vm31, %v4766
    %4831 = vst.msk [vmem:[#allocation5 + $0xd8] sm:$0xff] %vm31, %v4767
    %4832 = vst.msk [vmem:[#allocation5 + $0xe0] sm:$0xff] %vm31, %v4768
    %4833 = vst.msk [vmem:[#allocation5 + $0xe8] sm:$0xff] %vm31, %v4769
    %4834 = vst.msk [vmem:[#allocation5 + $0xf0] sm:$0xff] %vm31, %v4770
    %4835 = vst.msk [vmem:[#allocation5 + $0xf8] sm:$0xff] %vm31, %v4771
    %4836 = vst.msk [vmem:[#allocation5 + $0x100] sm:$0xff] %vm31, %v4772
    %4837 = vst.msk [vmem:[#allocation5 + $0x108] sm:$0xff] %vm31, %v4773
    %4838 = vst.msk [vmem:[#allocation5 + $0x110] sm:$0xff] %vm31, %v4774
    %4839 = vst.msk [vmem:[#allocation5 + $0x118] sm:$0xff] %vm31, %v4775
    %4840 = vst.msk [vmem:[#allocation5 + $0x120] sm:$0xff] %vm31, %v4776
    %4841 = vst.msk [vmem:[#allocation5 + $0x128] sm:$0xff] %vm31, %v4777
    %4842 = vst.msk [vmem:[#allocation5 + $0x130] sm:$0xff] %vm31, %v4778
    %4843 = vst.msk [vmem:[#allocation5 + $0x138] sm:$0xff] %vm31, %v4779
    %4844 = vst.msk [vmem:[#allocation5 + $0x140] sm:$0xff] %vm31, %v4780
    %4845 = vst.msk [vmem:[#allocation5 + $0x148] sm:$0xff] %vm31, %v4781
    %4846 = vst.msk [vmem:[#allocation5 + $0x150] sm:$0xff] %vm31, %v4782
    %4847 = vst.msk [vmem:[#allocation5 + $0x158] sm:$0xff] %vm31, %v4783
    %4848 = vst.msk [vmem:[#allocation5 + $0x160] sm:$0xff] %vm31, %v4784
    %4849 = vst.msk [vmem:[#allocation5 + $0x168] sm:$0xff] %vm31, %v4785
    %4850 = vst.msk [vmem:[#allocation5 + $0x170] sm:$0xff] %vm31, %v4786
    %4851 = vst.msk [vmem:[#allocation5 + $0x178] sm:$0xff] %vm31, %v4787
    %4852 = vst.msk [vmem:[#allocation5 + $0x180] sm:$0xff] %vm31, %v4788
    %4853 = vst.msk [vmem:[#allocation5 + $0x188] sm:$0xff] %vm31, %v4789
    %4854 = vst.msk [vmem:[#allocation5 + $0x190] sm:$0xff] %vm31, %v4790
    %4855 = vst.msk [vmem:[#allocation5 + $0x198] sm:$0xff] %vm31, %v4791
    %4856 = vst.msk [vmem:[#allocation5 + $0x1a0] sm:$0xff] %vm31, %v4792
    %4857 = vst.msk [vmem:[#allocation5 + $0x1a8] sm:$0xff] %vm31, %v4793
    %4858 = vst.msk [vmem:[#allocation5 + $0x1b0] sm:$0xff] %vm31, %v4794
    %4859 = vst.msk [vmem:[#allocation5 + $0x1b8] sm:$0xff] %vm31, %v4795
    %4860 = vst.msk [vmem:[#allocation5 + $0x1c0] sm:$0xff] %vm31, %v4796
    %4861 = vst.msk [vmem:[#allocation5 + $0x1c8] sm:$0xff] %vm31, %v4797
    %4862 = vst.msk [vmem:[#allocation5 + $0x1d0] sm:$0xff] %vm31, %v4798
    %4863 = vst.msk [vmem:[#allocation5 + $0x1d8] sm:$0xff] %vm31, %v4799
    %4864 = vst.msk [vmem:[#allocation5 + $0x1e0] sm:$0xff] %vm31, %v4800
    %4865 = vst.msk [vmem:[#allocation5 + $0x1e8] sm:$0xff] %vm31, %v4801
    %4866 = vst.msk [vmem:[#allocation5 + $0x1f0] sm:$0xff] %vm31, %v4802
    %4867 = vst.msk [vmem:[#allocation5 + $0x1f8] sm:$0xff] %vm31, %v4803
    %v4868 = vld [vmem:[%s4297 + $0x8] sm:$0xff]
    %v4869 = vld [vmem:[%s4297 + $0x10] sm:$0xff]
    %v4870 = vld [vmem:[%s4297 + $0x28] sm:$0xff]
    %v4871 = vld [vmem:[%s4297 + $0x30] sm:$0xff]
    %v4872 = vld [vmem:[%s4297 + $0x48] sm:$0xff]
    %v4873 = vld [vmem:[%s4297 + $0x50] sm:$0xff]
    %v4874 = vld [vmem:[%s4297 + $0x68] sm:$0xff]
    %v4875 = vld [vmem:[%s4297 + $0x70] sm:$0xff]
    %v4876 = vld [vmem:[%s4297 + $0x88] sm:$0xff]
    %v4877 = vld [vmem:[%s4297 + $0x90] sm:$0xff]
    %v4878 = vld [vmem:[%s4297 + $0xa8] sm:$0xff]
    %v4879 = vld [vmem:[%s4297 + $0xb0] sm:$0xff]
    %v4880 = vld [vmem:[%s4297 + $0xc8] sm:$0xff]
    %v4881 = vld [vmem:[%s4297 + $0xd0] sm:$0xff]
    %v4882 = vld [vmem:[%s4297 + $0xe8] sm:$0xff]
    %v4883 = vld [vmem:[%s4297 + $0xf0] sm:$0xff]
    %v4884 = vld [vmem:[%s4297 + $0x108] sm:$0xff]
    %v4885 = vld [vmem:[%s4297 + $0x110] sm:$0xff]
    %v4886 = vld [vmem:[%s4297 + $0x128] sm:$0xff]
    %v4887 = vld [vmem:[%s4297 + $0x130] sm:$0xff]
    %v4888 = vld [vmem:[%s4297 + $0x148] sm:$0xff]
    %v4889 = vld [vmem:[%s4297 + $0x150] sm:$0xff]
    %v4890 = vld [vmem:[%s4297 + $0x168] sm:$0xff]
    %v4891 = vld [vmem:[%s4297 + $0x170] sm:$0xff]
    %v4892 = vld [vmem:[%s4297 + $0x188] sm:$0xff]
    %v4893 = vld [vmem:[%s4297 + $0x190] sm:$0xff]
    %v4894 = vld [vmem:[%s4297 + $0x1a8] sm:$0xff]
    %v4895 = vld [vmem:[%s4297 + $0x1b0] sm:$0xff]
    %v4896 = vld [vmem:[%s4297 + $0x1c8] sm:$0xff]
    %v4897 = vld [vmem:[%s4297 + $0x1d0] sm:$0xff]
    %v4898 = vld [vmem:[%s4297 + $0x1e8] sm:$0xff]
    %v4899 = vld [vmem:[%s4297 + $0x1f0] sm:$0xff]
    %v4900 = vld [vmem:[%s4297 + $0x248] sm:$0xff]
    %v4901 = vld [vmem:[%s4297 + $0x250] sm:$0xff]
    %v4902 = vld [vmem:[%s4297 + $0x268] sm:$0xff]
    %v4903 = vld [vmem:[%s4297 + $0x270] sm:$0xff]
    %v4904 = vld [vmem:[%s4297 + $0x288] sm:$0xff]
    %v4905 = vld [vmem:[%s4297 + $0x290] sm:$0xff]
    %v4906 = vld [vmem:[%s4297 + $0x2a8] sm:$0xff]
    %v4907 = vld [vmem:[%s4297 + $0x2b0] sm:$0xff]
    %v4908 = vld [vmem:[%s4297 + $0x2c8] sm:$0xff]
    %v4909 = vld [vmem:[%s4297 + $0x2d0] sm:$0xff]
    %v4910 = vld [vmem:[%s4297 + $0x2e8] sm:$0xff]
    %v4911 = vld [vmem:[%s4297 + $0x2f0] sm:$0xff]
    %v4912 = vld [vmem:[%s4297 + $0x308] sm:$0xff]
    %v4913 = vld [vmem:[%s4297 + $0x310] sm:$0xff]
    %v4914 = vld [vmem:[%s4297 + $0x328] sm:$0xff]
    %v4915 = vld [vmem:[%s4297 + $0x330] sm:$0xff]
    %v4916 = vld [vmem:[%s4297 + $0x348] sm:$0xff]
    %v4917 = vld [vmem:[%s4297 + $0x350] sm:$0xff]
    %v4918 = vld [vmem:[%s4297 + $0x368] sm:$0xff]
    %v4919 = vld [vmem:[%s4297 + $0x370] sm:$0xff]
    %v4920 = vld [vmem:[%s4297 + $0x388] sm:$0xff]
    %v4921 = vld [vmem:[%s4297 + $0x390] sm:$0xff]
    %v4922 = vld [vmem:[%s4297 + $0x3a8] sm:$0xff]
    %v4923 = vld [vmem:[%s4297 + $0x3b0] sm:$0xff]
    %v4924 = vld [vmem:[%s4297 + $0x3c8] sm:$0xff]
    %v4925 = vld [vmem:[%s4297 + $0x3d0] sm:$0xff]
    %v4926 = vld [vmem:[%s4297 + $0x3e8] sm:$0xff]
    %v4927 = vld [vmem:[%s4297 + $0x3f0] sm:$0xff]
    %v4928 = vld [vmem:[%s4297 + $0x408] sm:$0xff]
    %v4929 = vld [vmem:[%s4297 + $0x410] sm:$0xff]
    %v4930 = vld [vmem:[%s4297 + $0x428] sm:$0xff]
    %v4931 = vld [vmem:[%s4297 + $0x430] sm:$0xff]
    %v4932 = vpack.c.bf16 %v4869, %v4868
    %v4933 = vpack.c.bf16 %v4871, %v4870
    %v4934 = vpack.c.bf16 %v4873, %v4872
    %v4935 = vpack.c.bf16 %v4875, %v4874
    %v4936 = vpack.c.bf16 %v4877, %v4876
    %v4937 = vpack.c.bf16 %v4879, %v4878
    %v4938 = vpack.c.bf16 %v4881, %v4880
    %v4939 = vpack.c.bf16 %v4883, %v4882
    %v4940 = vpack.c.bf16 %v4885, %v4884
    %v4941 = vpack.c.bf16 %v4887, %v4886
    %v4942 = vpack.c.bf16 %v4889, %v4888
    %v4943 = vpack.c.bf16 %v4891, %v4890
    %v4944 = vpack.c.bf16 %v4893, %v4892
    %v4945 = vpack.c.bf16 %v4895, %v4894
    %v4946 = vpack.c.bf16 %v4897, %v4896
    %v4947 = vpack.c.bf16 %v4899, %v4898
    %v4948 = vpack.c.bf16 %v4901, %v4900
    %v4949 = vpack.c.bf16 %v4903, %v4902
    %v4950 = vpack.c.bf16 %v4905, %v4904
    %v4951 = vpack.c.bf16 %v4907, %v4906
    %v4952 = vpack.c.bf16 %v4909, %v4908
    %v4953 = vpack.c.bf16 %v4911, %v4910
    %v4954 = vpack.c.bf16 %v4913, %v4912
    %v4955 = vpack.c.bf16 %v4915, %v4914
    %v4956 = vpack.c.bf16 %v4917, %v4916
    %v4957 = vpack.c.bf16 %v4919, %v4918
    %v4958 = vpack.c.bf16 %v4921, %v4920
    %v4959 = vpack.c.bf16 %v4923, %v4922
    %v4960 = vpack.c.bf16 %v4925, %v4924
    %v4961 = vpack.c.bf16 %v4927, %v4926
    %v4962 = vpack.c.bf16 %v4929, %v4928
    %v4963 = vpack.c.bf16 %v4931, %v4930
    %s4964 = scalar_lea.vmem %s2, 112
    %v4965 = vld [vmem:[%s4964] sm:$0xf]
    %v4966 = vld [vmem:[%s4964 + $0x4] sm:$0xf]
    %v4967 = vld [vmem:[%s4964 + $0x8] sm:$0xf]
    %v4968 = vld [vmem:[%s4964 + $0xc] sm:$0xf]
    %v4973 = vunpack.c.l.b16 %v4965
    %v4974 = vunpack.c.l.b16 %v4966
    %v4975 = vunpack.c.l.b16 %v4967
    %v4976 = vunpack.c.l.b16 %v4968
    %v4977 = vpack.c.b16 %v4974, %v4973
    %v4978 = vpack.c.b16 %v4976, %v4975
    %v4982 = vsel %vm31, %v4932, 0
    %v4985 = vsel %vm31, %v4933, 0
    %v4988 = vsel %vm31, %v4934, 0
    %v4991 = vsel %vm31, %v4935, 0
    %v4994 = vsel %vm31, %v4936, 0
    %v4997 = vsel %vm31, %v4937, 0
    %v5000 = vsel %vm31, %v4938, 0
    %v5003 = vsel %vm31, %v4939, 0
    %v5006 = vsel %vm31, %v4940, 0
    %v5009 = vsel %vm31, %v4941, 0
    %v5012 = vsel %vm31, %v4942, 0
    %v5015 = vsel %vm31, %v4943, 0
    %v5018 = vsel %vm31, %v4944, 0
    %v5021 = vsel %vm31, %v4945, 0
    %v5024 = vsel %vm31, %v4946, 0
    %v5027 = vsel %vm31, %v4947, 0
    %v5030 = vsel %vm31, %v4948, 0
    %v5033 = vsel %vm31, %v4949, 0
    %v5036 = vsel %vm31, %v4950, 0
    %v5039 = vsel %vm31, %v4951, 0
    %v5042 = vsel %vm31, %v4952, 0
    %v5045 = vsel %vm31, %v4953, 0
    %v5048 = vsel %vm31, %v4954, 0
    %v5051 = vsel %vm31, %v4955, 0
    %v5054 = vsel %vm31, %v4956, 0
    %v5057 = vsel %vm31, %v4957, 0
    %v5060 = vsel %vm31, %v4958, 0
    %v5063 = vsel %vm31, %v4959, 0
    %v5066 = vsel %vm31, %v4960, 0
    %v5069 = vsel %vm31, %v4961, 0
    %v5072 = vsel %vm31, %v4962, 0
    %v5075 = vsel %vm31, %v4963, 0
    %5077 = vmatpush.bf16.msra.mxu0 0
    %5078 = vmatpush.bf16.msra.mxu0 0
    %5079 = vmatpush.bf16.msra.mxu0 0
    %5080 = vmatpush.bf16.msra.mxu0 0
    %5081 = vmatpush.bf16.msra.mxu0 0
    %5082 = vmatpush.bf16.msra.mxu0 0
    %5083 = vmatpush.bf16.msra.mxu0 %v4978
    %5084 = vmatpush.bf16.msra.mxu0 %v4977
    %5085 = vmatmul.bf16.gmra.mxu0 %v4982
    %v5086 = vpop.f32.mrf.mxu0
    %v5087 = vadd.f32 0.0, %v5086
    %v5088 = vpop.f32.mrf.mxu0
    %v5089 = vadd.f32 0.0, %v5088
    %5090 = vmatmul.bf16.gmra.mxu0 %v4985
    %v5091 = vpop.f32.mrf.mxu0
    %v5092 = vadd.f32 0.0, %v5091
    %v5093 = vpop.f32.mrf.mxu0
    %v5094 = vadd.f32 0.0, %v5093
    %5095 = vmatmul.bf16.gmra.mxu0 %v4988
    %v5096 = vpop.f32.mrf.mxu0
    %v5097 = vadd.f32 0.0, %v5096
    %v5098 = vpop.f32.mrf.mxu0
    %v5099 = vadd.f32 0.0, %v5098
    %5100 = vmatmul.bf16.gmra.mxu0 %v4991
    %v5101 = vpop.f32.mrf.mxu0
    %v5102 = vadd.f32 0.0, %v5101
    %v5103 = vpop.f32.mrf.mxu0
    %v5104 = vadd.f32 0.0, %v5103
    %5105 = vmatmul.bf16.gmra.mxu0 %v4994
    %v5106 = vpop.f32.mrf.mxu0
    %v5107 = vadd.f32 0.0, %v5106
    %v5108 = vpop.f32.mrf.mxu0
    %v5109 = vadd.f32 0.0, %v5108
    %5110 = vmatmul.bf16.gmra.mxu0 %v4997
    %v5111 = vpop.f32.mrf.mxu0
    %v5112 = vadd.f32 0.0, %v5111
    %v5113 = vpop.f32.mrf.mxu0
    %v5114 = vadd.f32 0.0, %v5113
    %5115 = vmatmul.bf16.gmra.mxu0 %v5000
    %v5116 = vpop.f32.mrf.mxu0
    %v5117 = vadd.f32 0.0, %v5116
    %v5118 = vpop.f32.mrf.mxu0
    %v5119 = vadd.f32 0.0, %v5118
    %5120 = vmatmul.bf16.gmra.mxu0 %v5003
    %v5121 = vpop.f32.mrf.mxu0
    %v5122 = vadd.f32 0.0, %v5121
    %v5123 = vpop.f32.mrf.mxu0
    %v5124 = vadd.f32 0.0, %v5123
    %5125 = vmatmul.bf16.gmra.mxu0 %v5006
    %v5126 = vpop.f32.mrf.mxu0
    %v5127 = vadd.f32 0.0, %v5126
    %v5128 = vpop.f32.mrf.mxu0
    %v5129 = vadd.f32 0.0, %v5128
    %5130 = vmatmul.bf16.gmra.mxu0 %v5009
    %v5131 = vpop.f32.mrf.mxu0
    %v5132 = vadd.f32 0.0, %v5131
    %v5133 = vpop.f32.mrf.mxu0
    %v5134 = vadd.f32 0.0, %v5133
    %5135 = vmatmul.bf16.gmra.mxu0 %v5012
    %v5136 = vpop.f32.mrf.mxu0
    %v5137 = vadd.f32 0.0, %v5136
    %v5138 = vpop.f32.mrf.mxu0
    %v5139 = vadd.f32 0.0, %v5138
    %5140 = vmatmul.bf16.gmra.mxu0 %v5015
    %v5141 = vpop.f32.mrf.mxu0
    %v5142 = vadd.f32 0.0, %v5141
    %v5143 = vpop.f32.mrf.mxu0
    %v5144 = vadd.f32 0.0, %v5143
    %5145 = vmatmul.bf16.gmra.mxu0 %v5018
    %v5146 = vpop.f32.mrf.mxu0
    %v5147 = vadd.f32 0.0, %v5146
    %v5148 = vpop.f32.mrf.mxu0
    %v5149 = vadd.f32 0.0, %v5148
    %5150 = vmatmul.bf16.gmra.mxu0 %v5021
    %v5151 = vpop.f32.mrf.mxu0
    %v5152 = vadd.f32 0.0, %v5151
    %v5153 = vpop.f32.mrf.mxu0
    %v5154 = vadd.f32 0.0, %v5153
    %5155 = vmatmul.bf16.gmra.mxu0 %v5024
    %v5156 = vpop.f32.mrf.mxu0
    %v5157 = vadd.f32 0.0, %v5156
    %v5158 = vpop.f32.mrf.mxu0
    %v5159 = vadd.f32 0.0, %v5158
    %5160 = vmatmul.bf16.gmra.mxu0 %v5027
    %v5161 = vpop.f32.mrf.mxu0
    %v5162 = vadd.f32 0.0, %v5161
    %v5163 = vpop.f32.mrf.mxu0
    %v5164 = vadd.f32 0.0, %v5163
    %5165 = vmatmul.bf16.gmra.mxu0 %v5030
    %v5166 = vpop.f32.mrf.mxu0
    %v5167 = vadd.f32 0.0, %v5166
    %v5168 = vpop.f32.mrf.mxu0
    %v5169 = vadd.f32 0.0, %v5168
    %5170 = vmatmul.bf16.gmra.mxu0 %v5033
    %v5171 = vpop.f32.mrf.mxu0
    %v5172 = vadd.f32 0.0, %v5171
    %v5173 = vpop.f32.mrf.mxu0
    %v5174 = vadd.f32 0.0, %v5173
    %5175 = vmatmul.bf16.gmra.mxu0 %v5036
    %v5176 = vpop.f32.mrf.mxu0
    %v5177 = vadd.f32 0.0, %v5176
    %v5178 = vpop.f32.mrf.mxu0
    %v5179 = vadd.f32 0.0, %v5178
    %5180 = vmatmul.bf16.gmra.mxu0 %v5039
    %v5181 = vpop.f32.mrf.mxu0
    %v5182 = vadd.f32 0.0, %v5181
    %v5183 = vpop.f32.mrf.mxu0
    %v5184 = vadd.f32 0.0, %v5183
    %5185 = vmatmul.bf16.gmra.mxu0 %v5042
    %v5186 = vpop.f32.mrf.mxu0
    %v5187 = vadd.f32 0.0, %v5186
    %v5188 = vpop.f32.mrf.mxu0
    %v5189 = vadd.f32 0.0, %v5188
    %5190 = vmatmul.bf16.gmra.mxu0 %v5045
    %v5191 = vpop.f32.mrf.mxu0
    %v5192 = vadd.f32 0.0, %v5191
    %v5193 = vpop.f32.mrf.mxu0
    %v5194 = vadd.f32 0.0, %v5193
    %5195 = vmatmul.bf16.gmra.mxu0 %v5048
    %v5196 = vpop.f32.mrf.mxu0
    %v5197 = vadd.f32 0.0, %v5196
    %v5198 = vpop.f32.mrf.mxu0
    %v5199 = vadd.f32 0.0, %v5198
    %5200 = vmatmul.bf16.gmra.mxu0 %v5051
    %v5201 = vpop.f32.mrf.mxu0
    %v5202 = vadd.f32 0.0, %v5201
    %v5203 = vpop.f32.mrf.mxu0
    %v5204 = vadd.f32 0.0, %v5203
    %5205 = vmatmul.bf16.gmra.mxu0 %v5054
    %v5206 = vpop.f32.mrf.mxu0
    %v5207 = vadd.f32 0.0, %v5206
    %v5208 = vpop.f32.mrf.mxu0
    %v5209 = vadd.f32 0.0, %v5208
    %5210 = vmatmul.bf16.gmra.mxu0 %v5057
    %v5211 = vpop.f32.mrf.mxu0
    %v5212 = vadd.f32 0.0, %v5211
    %v5213 = vpop.f32.mrf.mxu0
    %v5214 = vadd.f32 0.0, %v5213
    %5215 = vmatmul.bf16.gmra.mxu0 %v5060
    %v5216 = vpop.f32.mrf.mxu0
    %v5217 = vadd.f32 0.0, %v5216
    %v5218 = vpop.f32.mrf.mxu0
    %v5219 = vadd.f32 0.0, %v5218
    %5220 = vmatmul.bf16.gmra.mxu0 %v5063
    %v5221 = vpop.f32.mrf.mxu0
    %v5222 = vadd.f32 0.0, %v5221
    %v5223 = vpop.f32.mrf.mxu0
    %v5224 = vadd.f32 0.0, %v5223
    %5225 = vmatmul.bf16.gmra.mxu0 %v5066
    %v5226 = vpop.f32.mrf.mxu0
    %v5227 = vadd.f32 0.0, %v5226
    %v5228 = vpop.f32.mrf.mxu0
    %v5229 = vadd.f32 0.0, %v5228
    %5230 = vmatmul.bf16.gmra.mxu0 %v5069
    %v5231 = vpop.f32.mrf.mxu0
    %v5232 = vadd.f32 0.0, %v5231
    %v5233 = vpop.f32.mrf.mxu0
    %v5234 = vadd.f32 0.0, %v5233
    %5235 = vmatmul.bf16.gmra.mxu0 %v5072
    %v5236 = vpop.f32.mrf.mxu0
    %v5237 = vadd.f32 0.0, %v5236
    %v5238 = vpop.f32.mrf.mxu0
    %v5239 = vadd.f32 0.0, %v5238
    %5240 = vmatmul.bf16.gmra.mxu0 %v5075
    %v5241 = vpop.f32.mrf.mxu0
    %v5242 = vadd.f32 0.0, %v5241
    %v5243 = vpop.f32.mrf.mxu0
    %v5244 = vadd.f32 0.0, %v5243
    %5245 = vdwg.mxu0
    %v5246 = vld [vmem:[#allocation5] sm:$0xff]
    %v5247 = vld [vmem:[#allocation5 + $0x8] sm:$0xff]
    %v5248 = vld [vmem:[#allocation5 + $0x10] sm:$0xff]
    %v5249 = vld [vmem:[#allocation5 + $0x18] sm:$0xff]
    %v5250 = vld [vmem:[#allocation5 + $0x20] sm:$0xff]
    %v5251 = vld [vmem:[#allocation5 + $0x28] sm:$0xff]
    %v5252 = vld [vmem:[#allocation5 + $0x30] sm:$0xff]
    %v5253 = vld [vmem:[#allocation5 + $0x38] sm:$0xff]
    %v5254 = vld [vmem:[#allocation5 + $0x40] sm:$0xff]
    %v5255 = vld [vmem:[#allocation5 + $0x48] sm:$0xff]
    %v5256 = vld [vmem:[#allocation5 + $0x50] sm:$0xff]
    %v5257 = vld [vmem:[#allocation5 + $0x58] sm:$0xff]
    %v5258 = vld [vmem:[#allocation5 + $0x60] sm:$0xff]
    %v5259 = vld [vmem:[#allocation5 + $0x68] sm:$0xff]
    %v5260 = vld [vmem:[#allocation5 + $0x70] sm:$0xff]
    %v5261 = vld [vmem:[#allocation5 + $0x78] sm:$0xff]
    %v5262 = vld [vmem:[#allocation5 + $0x80] sm:$0xff]
    %v5263 = vld [vmem:[#allocation5 + $0x88] sm:$0xff]
    %v5264 = vld [vmem:[#allocation5 + $0x90] sm:$0xff]
    %v5265 = vld [vmem:[#allocation5 + $0x98] sm:$0xff]
    %v5266 = vld [vmem:[#allocation5 + $0xa0] sm:$0xff]
    %v5267 = vld [vmem:[#allocation5 + $0xa8] sm:$0xff]
    %v5268 = vld [vmem:[#allocation5 + $0xb0] sm:$0xff]
    %v5269 = vld [vmem:[#allocation5 + $0xb8] sm:$0xff]
    %v5270 = vld [vmem:[#allocation5 + $0xc0] sm:$0xff]
    %v5271 = vld [vmem:[#allocation5 + $0xc8] sm:$0xff]
    %v5272 = vld [vmem:[#allocation5 + $0xd0] sm:$0xff]
    %v5273 = vld [vmem:[#allocation5 + $0xd8] sm:$0xff]
    %v5274 = vld [vmem:[#allocation5 + $0xe0] sm:$0xff]
    %v5275 = vld [vmem:[#allocation5 + $0xe8] sm:$0xff]
    %v5276 = vld [vmem:[#allocation5 + $0xf0] sm:$0xff]
    %v5277 = vld [vmem:[#allocation5 + $0xf8] sm:$0xff]
    %v5278 = vld [vmem:[#allocation5 + $0x100] sm:$0xff]
    %v5279 = vld [vmem:[#allocation5 + $0x108] sm:$0xff]
    %v5280 = vld [vmem:[#allocation5 + $0x110] sm:$0xff]
    %v5281 = vld [vmem:[#allocation5 + $0x118] sm:$0xff]
    %v5282 = vld [vmem:[#allocation5 + $0x120] sm:$0xff]
    %v5283 = vld [vmem:[#allocation5 + $0x128] sm:$0xff]
    %v5284 = vld [vmem:[#allocation5 + $0x130] sm:$0xff]
    %v5285 = vld [vmem:[#allocation5 + $0x138] sm:$0xff]
    %v5286 = vld [vmem:[#allocation5 + $0x140] sm:$0xff]
    %v5287 = vld [vmem:[#allocation5 + $0x148] sm:$0xff]
    %v5288 = vld [vmem:[#allocation5 + $0x150] sm:$0xff]
    %v5289 = vld [vmem:[#allocation5 + $0x158] sm:$0xff]
    %v5290 = vld [vmem:[#allocation5 + $0x160] sm:$0xff]
    %v5291 = vld [vmem:[#allocation5 + $0x168] sm:$0xff]
    %v5292 = vld [vmem:[#allocation5 + $0x170] sm:$0xff]
    %v5293 = vld [vmem:[#allocation5 + $0x178] sm:$0xff]
    %v5294 = vld [vmem:[#allocation5 + $0x180] sm:$0xff]
    %v5295 = vld [vmem:[#allocation5 + $0x188] sm:$0xff]
    %v5296 = vld [vmem:[#allocation5 + $0x190] sm:$0xff]
    %v5297 = vld [vmem:[#allocation5 + $0x198] sm:$0xff]
    %v5298 = vld [vmem:[#allocation5 + $0x1a0] sm:$0xff]
    %v5299 = vld [vmem:[#allocation5 + $0x1a8] sm:$0xff]
    %v5300 = vld [vmem:[#allocation5 + $0x1b0] sm:$0xff]
    %v5301 = vld [vmem:[#allocation5 + $0x1b8] sm:$0xff]
    %v5302 = vld [vmem:[#allocation5 + $0x1c0] sm:$0xff]
    %v5303 = vld [vmem:[#allocation5 + $0x1c8] sm:$0xff]
    %v5304 = vld [vmem:[#allocation5 + $0x1d0] sm:$0xff]
    %v5305 = vld [vmem:[#allocation5 + $0x1d8] sm:$0xff]
    %v5306 = vld [vmem:[#allocation5 + $0x1e0] sm:$0xff]
    %v5307 = vld [vmem:[#allocation5 + $0x1e8] sm:$0xff]
    %v5308 = vld [vmem:[#allocation5 + $0x1f0] sm:$0xff]
    %v5309 = vld [vmem:[#allocation5 + $0x1f8] sm:$0xff]
    %v5310 = vadd.f32 %v5246, %v5087
    %v5311 = vadd.f32 %v5247, %v5089
    %v5312 = vadd.f32 %v5248, %v5092
    %v5313 = vadd.f32 %v5249, %v5094
    %v5314 = vadd.f32 %v5250, %v5097
    %v5315 = vadd.f32 %v5251, %v5099
    %v5316 = vadd.f32 %v5252, %v5102
    %v5317 = vadd.f32 %v5253, %v5104
    %v5318 = vadd.f32 %v5254, %v5107
    %v5319 = vadd.f32 %v5255, %v5109
    %v5320 = vadd.f32 %v5256, %v5112
    %v5321 = vadd.f32 %v5257, %v5114
    %v5322 = vadd.f32 %v5258, %v5117
    %v5323 = vadd.f32 %v5259, %v5119
    %v5324 = vadd.f32 %v5260, %v5122
    %v5325 = vadd.f32 %v5261, %v5124
    %v5326 = vadd.f32 %v5262, %v5127
    %v5327 = vadd.f32 %v5263, %v5129
    %v5328 = vadd.f32 %v5264, %v5132
    %v5329 = vadd.f32 %v5265, %v5134
    %v5330 = vadd.f32 %v5266, %v5137
    %v5331 = vadd.f32 %v5267, %v5139
    %v5332 = vadd.f32 %v5268, %v5142
    %v5333 = vadd.f32 %v5269, %v5144
    %v5334 = vadd.f32 %v5270, %v5147
    %v5335 = vadd.f32 %v5271, %v5149
    %v5336 = vadd.f32 %v5272, %v5152
    %v5337 = vadd.f32 %v5273, %v5154
    %v5338 = vadd.f32 %v5274, %v5157
    %v5339 = vadd.f32 %v5275, %v5159
    %v5340 = vadd.f32 %v5276, %v5162
    %v5341 = vadd.f32 %v5277, %v5164
    %v5342 = vadd.f32 %v5278, %v5167
    %v5343 = vadd.f32 %v5279, %v5169
    %v5344 = vadd.f32 %v5280, %v5172
    %v5345 = vadd.f32 %v5281, %v5174
    %v5346 = vadd.f32 %v5282, %v5177
    %v5347 = vadd.f32 %v5283, %v5179
    %v5348 = vadd.f32 %v5284, %v5182
    %v5349 = vadd.f32 %v5285, %v5184
    %v5350 = vadd.f32 %v5286, %v5187
    %v5351 = vadd.f32 %v5287, %v5189
    %v5352 = vadd.f32 %v5288, %v5192
    %v5353 = vadd.f32 %v5289, %v5194
    %v5354 = vadd.f32 %v5290, %v5197
    %v5355 = vadd.f32 %v5291, %v5199
    %v5356 = vadd.f32 %v5292, %v5202
    %v5357 = vadd.f32 %v5293, %v5204
    %v5358 = vadd.f32 %v5294, %v5207
    %v5359 = vadd.f32 %v5295, %v5209
    %v5360 = vadd.f32 %v5296, %v5212
    %v5361 = vadd.f32 %v5297, %v5214
    %v5362 = vadd.f32 %v5298, %v5217
    %v5363 = vadd.f32 %v5299, %v5219
    %v5364 = vadd.f32 %v5300, %v5222
    %v5365 = vadd.f32 %v5301, %v5224
    %v5366 = vadd.f32 %v5302, %v5227
    %v5367 = vadd.f32 %v5303, %v5229
    %v5368 = vadd.f32 %v5304, %v5232
    %v5369 = vadd.f32 %v5305, %v5234
    %v5370 = vadd.f32 %v5306, %v5237
    %v5371 = vadd.f32 %v5307, %v5239
    %v5372 = vadd.f32 %v5308, %v5242
    %v5373 = vadd.f32 %v5309, %v5244
    %5374 = vst.msk [vmem:[#allocation5] sm:$0xff] %vm31, %v5310
    %5375 = vst.msk [vmem:[#allocation5 + $0x8] sm:$0xff] %vm31, %v5311
    %5376 = vst.msk [vmem:[#allocation5 + $0x10] sm:$0xff] %vm31, %v5312
    %5377 = vst.msk [vmem:[#allocation5 + $0x18] sm:$0xff] %vm31, %v5313
    %5378 = vst.msk [vmem:[#allocation5 + $0x20] sm:$0xff] %vm31, %v5314
    %5379 = vst.msk [vmem:[#allocation5 + $0x28] sm:$0xff] %vm31, %v5315
    %5380 = vst.msk [vmem:[#allocation5 + $0x30] sm:$0xff] %vm31, %v5316
    %5381 = vst.msk [vmem:[#allocation5 + $0x38] sm:$0xff] %vm31, %v5317
    %5382 = vst.msk [vmem:[#allocation5 + $0x40] sm:$0xff] %vm31, %v5318
    %5383 = vst.msk [vmem:[#allocation5 + $0x48] sm:$0xff] %vm31, %v5319
    %5384 = vst.msk [vmem:[#allocation5 + $0x50] sm:$0xff] %vm31, %v5320
    %5385 = vst.msk [vmem:[#allocation5 + $0x58] sm:$0xff] %vm31, %v5321
    %5386 = vst.msk [vmem:[#allocation5 + $0x60] sm:$0xff] %vm31, %v5322
    %5387 = vst.msk [vmem:[#allocation5 + $0x68] sm:$0xff] %vm31, %v5323
    %5388 = vst.msk [vmem:[#allocation5 + $0x70] sm:$0xff] %vm31, %v5324
    %5389 = vst.msk [vmem:[#allocation5 + $0x78] sm:$0xff] %vm31, %v5325
    %5390 = vst.msk [vmem:[#allocation5 + $0x80] sm:$0xff] %vm31, %v5326
    %5391 = vst.msk [vmem:[#allocation5 + $0x88] sm:$0xff] %vm31, %v5327
    %5392 = vst.msk [vmem:[#allocation5 + $0x90] sm:$0xff] %vm31, %v5328
    %5393 = vst.msk [vmem:[#allocation5 + $0x98] sm:$0xff] %vm31, %v5329
    %5394 = vst.msk [vmem:[#allocation5 + $0xa0] sm:$0xff] %vm31, %v5330
    %5395 = vst.msk [vmem:[#allocation5 + $0xa8] sm:$0xff] %vm31, %v5331
    %5396 = vst.msk [vmem:[#allocation5 + $0xb0] sm:$0xff] %vm31, %v5332
    %5397 = vst.msk [vmem:[#allocation5 + $0xb8] sm:$0xff] %vm31, %v5333
    %5398 = vst.msk [vmem:[#allocation5 + $0xc0] sm:$0xff] %vm31, %v5334
    %5399 = vst.msk [vmem:[#allocation5 + $0xc8] sm:$0xff] %vm31, %v5335
    %5400 = vst.msk [vmem:[#allocation5 + $0xd0] sm:$0xff] %vm31, %v5336
    %5401 = vst.msk [vmem:[#allocation5 + $0xd8] sm:$0xff] %vm31, %v5337
    %5402 = vst.msk [vmem:[#allocation5 + $0xe0] sm:$0xff] %vm31, %v5338
    %5403 = vst.msk [vmem:[#allocation5 + $0xe8] sm:$0xff] %vm31, %v5339
    %5404 = vst.msk [vmem:[#allocation5 + $0xf0] sm:$0xff] %vm31, %v5340
    %5405 = vst.msk [vmem:[#allocation5 + $0xf8] sm:$0xff] %vm31, %v5341
    %5406 = vst.msk [vmem:[#allocation5 + $0x100] sm:$0xff] %vm31, %v5342
    %5407 = vst.msk [vmem:[#allocation5 + $0x108] sm:$0xff] %vm31, %v5343
    %5408 = vst.msk [vmem:[#allocation5 + $0x110] sm:$0xff] %vm31, %v5344
    %5409 = vst.msk [vmem:[#allocation5 + $0x118] sm:$0xff] %vm31, %v5345
    %5410 = vst.msk [vmem:[#allocation5 + $0x120] sm:$0xff] %vm31, %v5346
    %5411 = vst.msk [vmem:[#allocation5 + $0x128] sm:$0xff] %vm31, %v5347
    %5412 = vst.msk [vmem:[#allocation5 + $0x130] sm:$0xff] %vm31, %v5348
    %5413 = vst.msk [vmem:[#allocation5 + $0x138] sm:$0xff] %vm31, %v5349
    %5414 = vst.msk [vmem:[#allocation5 + $0x140] sm:$0xff] %vm31, %v5350
    %5415 = vst.msk [vmem:[#allocation5 + $0x148] sm:$0xff] %vm31, %v5351
    %5416 = vst.msk [vmem:[#allocation5 + $0x150] sm:$0xff] %vm31, %v5352
    %5417 = vst.msk [vmem:[#allocation5 + $0x158] sm:$0xff] %vm31, %v5353
    %5418 = vst.msk [vmem:[#allocation5 + $0x160] sm:$0xff] %vm31, %v5354
    %5419 = vst.msk [vmem:[#allocation5 + $0x168] sm:$0xff] %vm31, %v5355
    %5420 = vst.msk [vmem:[#allocation5 + $0x170] sm:$0xff] %vm31, %v5356
    %5421 = vst.msk [vmem:[#allocation5 + $0x178] sm:$0xff] %vm31, %v5357
    %5422 = vst.msk [vmem:[#allocation5 + $0x180] sm:$0xff] %vm31, %v5358
    %5423 = vst.msk [vmem:[#allocation5 + $0x188] sm:$0xff] %vm31, %v5359
    %5424 = vst.msk [vmem:[#allocation5 + $0x190] sm:$0xff] %vm31, %v5360
    %5425 = vst.msk [vmem:[#allocation5 + $0x198] sm:$0xff] %vm31, %v5361
    %5426 = vst.msk [vmem:[#allocation5 + $0x1a0] sm:$0xff] %vm31, %v5362
    %5427 = vst.msk [vmem:[#allocation5 + $0x1a8] sm:$0xff] %vm31, %v5363
    %5428 = vst.msk [vmem:[#allocation5 + $0x1b0] sm:$0xff] %vm31, %v5364
    %5429 = vst.msk [vmem:[#allocation5 + $0x1b8] sm:$0xff] %vm31, %v5365
    %5430 = vst.msk [vmem:[#allocation5 + $0x1c0] sm:$0xff] %vm31, %v5366
    %5431 = vst.msk [vmem:[#allocation5 + $0x1c8] sm:$0xff] %vm31, %v5367
    %5432 = vst.msk [vmem:[#allocation5 + $0x1d0] sm:$0xff] %vm31, %v5368
    %5433 = vst.msk [vmem:[#allocation5 + $0x1d8] sm:$0xff] %vm31, %v5369
    %5434 = vst.msk [vmem:[#allocation5 + $0x1e0] sm:$0xff] %vm31, %v5370
    %5435 = vst.msk [vmem:[#allocation5 + $0x1e8] sm:$0xff] %vm31, %v5371
    %5436 = vst.msk [vmem:[#allocation5 + $0x1f0] sm:$0xff] %vm31, %v5372
    %5437 = vst.msk [vmem:[#allocation5 + $0x1f8] sm:$0xff] %vm31, %v5373
    %v5438 = vld [vmem:[%s4297 + $0x9] sm:$0xff]
    %v5439 = vld [vmem:[%s4297 + $0x11] sm:$0xff]
    %v5440 = vld [vmem:[%s4297 + $0x29] sm:$0xff]
    %v5441 = vld [vmem:[%s4297 + $0x31] sm:$0xff]
    %v5442 = vld [vmem:[%s4297 + $0x49] sm:$0xff]
    %v5443 = vld [vmem:[%s4297 + $0x51] sm:$0xff]
    %v5444 = vld [vmem:[%s4297 + $0x69] sm:$0xff]
    %v5445 = vld [vmem:[%s4297 + $0x71] sm:$0xff]
    %v5446 = vld [vmem:[%s4297 + $0x89] sm:$0xff]
    %v5447 = vld [vmem:[%s4297 + $0x91] sm:$0xff]
    %v5448 = vld [vmem:[%s4297 + $0xa9] sm:$0xff]
    %v5449 = vld [vmem:[%s4297 + $0xb1] sm:$0xff]
    %v5450 = vld [vmem:[%s4297 + $0xc9] sm:$0xff]
    %v5451 = vld [vmem:[%s4297 + $0xd1] sm:$0xff]
    %v5452 = vld [vmem:[%s4297 + $0xe9] sm:$0xff]
    %v5453 = vld [vmem:[%s4297 + $0xf1] sm:$0xff]
    %v5454 = vld [vmem:[%s4297 + $0x109] sm:$0xff]
    %v5455 = vld [vmem:[%s4297 + $0x111] sm:$0xff]
    %v5456 = vld [vmem:[%s4297 + $0x129] sm:$0xff]
    %v5457 = vld [vmem:[%s4297 + $0x131] sm:$0xff]
    %v5458 = vld [vmem:[%s4297 + $0x149] sm:$0xff]
    %v5459 = vld [vmem:[%s4297 + $0x151] sm:$0xff]
    %v5460 = vld [vmem:[%s4297 + $0x169] sm:$0xff]
    %v5461 = vld [vmem:[%s4297 + $0x171] sm:$0xff]
    %v5462 = vld [vmem:[%s4297 + $0x189] sm:$0xff]
    %v5463 = vld [vmem:[%s4297 + $0x191] sm:$0xff]
    %v5464 = vld [vmem:[%s4297 + $0x1a9] sm:$0xff]
    %v5465 = vld [vmem:[%s4297 + $0x1b1] sm:$0xff]
    %v5466 = vld [vmem:[%s4297 + $0x1c9] sm:$0xff]
    %v5467 = vld [vmem:[%s4297 + $0x1d1] sm:$0xff]
    %v5468 = vld [vmem:[%s4297 + $0x1e9] sm:$0xff]
    %v5469 = vld [vmem:[%s4297 + $0x1f1] sm:$0xff]
    %v5470 = vld [vmem:[%s4297 + $0x249] sm:$0xff]
    %v5471 = vld [vmem:[%s4297 + $0x251] sm:$0xff]
    %v5472 = vld [vmem:[%s4297 + $0x269] sm:$0xff]
    %v5473 = vld [vmem:[%s4297 + $0x271] sm:$0xff]
    %v5474 = vld [vmem:[%s4297 + $0x289] sm:$0xff]
    %v5475 = vld [vmem:[%s4297 + $0x291] sm:$0xff]
    %v5476 = vld [vmem:[%s4297 + $0x2a9] sm:$0xff]
    %v5477 = vld [vmem:[%s4297 + $0x2b1] sm:$0xff]
    %v5478 = vld [vmem:[%s4297 + $0x2c9] sm:$0xff]
    %v5479 = vld [vmem:[%s4297 + $0x2d1] sm:$0xff]
    %v5480 = vld [vmem:[%s4297 + $0x2e9] sm:$0xff]
    %v5481 = vld [vmem:[%s4297 + $0x2f1] sm:$0xff]
    %v5482 = vld [vmem:[%s4297 + $0x309] sm:$0xff]
    %v5483 = vld [vmem:[%s4297 + $0x311] sm:$0xff]
    %v5484 = vld [vmem:[%s4297 + $0x329] sm:$0xff]
    %v5485 = vld [vmem:[%s4297 + $0x331] sm:$0xff]
    %v5486 = vld [vmem:[%s4297 + $0x349] sm:$0xff]
    %v5487 = vld [vmem:[%s4297 + $0x351] sm:$0xff]
    %v5488 = vld [vmem:[%s4297 + $0x369] sm:$0xff]
    %v5489 = vld [vmem:[%s4297 + $0x371] sm:$0xff]
    %v5490 = vld [vmem:[%s4297 + $0x389] sm:$0xff]
    %v5491 = vld [vmem:[%s4297 + $0x391] sm:$0xff]
    %v5492 = vld [vmem:[%s4297 + $0x3a9] sm:$0xff]
    %v5493 = vld [vmem:[%s4297 + $0x3b1] sm:$0xff]
    %v5494 = vld [vmem:[%s4297 + $0x3c9] sm:$0xff]
    %v5495 = vld [vmem:[%s4297 + $0x3d1] sm:$0xff]
    %v5496 = vld [vmem:[%s4297 + $0x3e9] sm:$0xff]
    %v5497 = vld [vmem:[%s4297 + $0x3f1] sm:$0xff]
    %v5498 = vld [vmem:[%s4297 + $0x409] sm:$0xff]
    %v5499 = vld [vmem:[%s4297 + $0x411] sm:$0xff]
    %v5500 = vld [vmem:[%s4297 + $0x429] sm:$0xff]
    %v5501 = vld [vmem:[%s4297 + $0x431] sm:$0xff]
    %v5502 = vpack.c.bf16 %v5439, %v5438
    %v5503 = vpack.c.bf16 %v5441, %v5440
    %v5504 = vpack.c.bf16 %v5443, %v5442
    %v5505 = vpack.c.bf16 %v5445, %v5444
    %v5506 = vpack.c.bf16 %v5447, %v5446
    %v5507 = vpack.c.bf16 %v5449, %v5448
    %v5508 = vpack.c.bf16 %v5451, %v5450
    %v5509 = vpack.c.bf16 %v5453, %v5452
    %v5510 = vpack.c.bf16 %v5455, %v5454
    %v5511 = vpack.c.bf16 %v5457, %v5456
    %v5512 = vpack.c.bf16 %v5459, %v5458
    %v5513 = vpack.c.bf16 %v5461, %v5460
    %v5514 = vpack.c.bf16 %v5463, %v5462
    %v5515 = vpack.c.bf16 %v5465, %v5464
    %v5516 = vpack.c.bf16 %v5467, %v5466
    %v5517 = vpack.c.bf16 %v5469, %v5468
    %v5518 = vpack.c.bf16 %v5471, %v5470
    %v5519 = vpack.c.bf16 %v5473, %v5472
    %v5520 = vpack.c.bf16 %v5475, %v5474
    %v5521 = vpack.c.bf16 %v5477, %v5476
    %v5522 = vpack.c.bf16 %v5479, %v5478
    %v5523 = vpack.c.bf16 %v5481, %v5480
    %v5524 = vpack.c.bf16 %v5483, %v5482
    %v5525 = vpack.c.bf16 %v5485, %v5484
    %v5526 = vpack.c.bf16 %v5487, %v5486
    %v5527 = vpack.c.bf16 %v5489, %v5488
    %v5528 = vpack.c.bf16 %v5491, %v5490
    %v5529 = vpack.c.bf16 %v5493, %v5492
    %v5530 = vpack.c.bf16 %v5495, %v5494
    %v5531 = vpack.c.bf16 %v5497, %v5496
    %v5532 = vpack.c.bf16 %v5499, %v5498
    %v5533 = vpack.c.bf16 %v5501, %v5500
    %s5534 = scalar_lea.vmem %s2, 128
    %v5535 = vld [vmem:[%s5534] sm:$0xf]
    %v5536 = vld [vmem:[%s5534 + $0x4] sm:$0xf]
    %v5537 = vld [vmem:[%s5534 + $0x8] sm:$0xf]
    %v5538 = vld [vmem:[%s5534 + $0xc] sm:$0xf]
    %v5543 = vunpack.c.l.b16 %v5535
    %v5544 = vunpack.c.l.b16 %v5536
    %v5545 = vunpack.c.l.b16 %v5537
    %v5546 = vunpack.c.l.b16 %v5538
    %v5547 = vpack.c.b16 %v5544, %v5543
    %v5548 = vpack.c.b16 %v5546, %v5545
    %v5552 = vsel %vm31, %v5502, 0
    %v5555 = vsel %vm31, %v5503, 0
    %v5558 = vsel %vm31, %v5504, 0
    %v5561 = vsel %vm31, %v5505, 0
    %v5564 = vsel %vm31, %v5506, 0
    %v5567 = vsel %vm31, %v5507, 0
    %v5570 = vsel %vm31, %v5508, 0
    %v5573 = vsel %vm31, %v5509, 0
    %v5576 = vsel %vm31, %v5510, 0
    %v5579 = vsel %vm31, %v5511, 0
    %v5582 = vsel %vm31, %v5512, 0
    %v5585 = vsel %vm31, %v5513, 0
    %v5588 = vsel %vm31, %v5514, 0
    %v5591 = vsel %vm31, %v5515, 0
    %v5594 = vsel %vm31, %v5516, 0
    %v5597 = vsel %vm31, %v5517, 0
    %v5600 = vsel %vm31, %v5518, 0
    %v5603 = vsel %vm31, %v5519, 0
    %v5606 = vsel %vm31, %v5520, 0
    %v5609 = vsel %vm31, %v5521, 0
    %v5612 = vsel %vm31, %v5522, 0
    %v5615 = vsel %vm31, %v5523, 0
    %v5618 = vsel %vm31, %v5524, 0
    %v5621 = vsel %vm31, %v5525, 0
    %v5624 = vsel %vm31, %v5526, 0
    %v5627 = vsel %vm31, %v5527, 0
    %v5630 = vsel %vm31, %v5528, 0
    %v5633 = vsel %vm31, %v5529, 0
    %v5636 = vsel %vm31, %v5530, 0
    %v5639 = vsel %vm31, %v5531, 0
    %v5642 = vsel %vm31, %v5532, 0
    %v5645 = vsel %vm31, %v5533, 0
    %5647 = vmatpush.bf16.msra.mxu0 0
    %5648 = vmatpush.bf16.msra.mxu0 0
    %5649 = vmatpush.bf16.msra.mxu0 0
    %5650 = vmatpush.bf16.msra.mxu0 0
    %5651 = vmatpush.bf16.msra.mxu0 0
    %5652 = vmatpush.bf16.msra.mxu0 0
    %5653 = vmatpush.bf16.msra.mxu0 %v5548
    %5654 = vmatpush.bf16.msra.mxu0 %v5547
    %5655 = vmatmul.bf16.gmra.mxu0 %v5552
    %v5656 = vpop.f32.mrf.mxu0
    %v5657 = vadd.f32 0.0, %v5656
    %v5658 = vpop.f32.mrf.mxu0
    %v5659 = vadd.f32 0.0, %v5658
    %5660 = vmatmul.bf16.gmra.mxu0 %v5555
    %v5661 = vpop.f32.mrf.mxu0
    %v5662 = vadd.f32 0.0, %v5661
    %v5663 = vpop.f32.mrf.mxu0
    %v5664 = vadd.f32 0.0, %v5663
    %5665 = vmatmul.bf16.gmra.mxu0 %v5558
    %v5666 = vpop.f32.mrf.mxu0
    %v5667 = vadd.f32 0.0, %v5666
    %v5668 = vpop.f32.mrf.mxu0
    %v5669 = vadd.f32 0.0, %v5668
    %5670 = vmatmul.bf16.gmra.mxu0 %v5561
    %v5671 = vpop.f32.mrf.mxu0
    %v5672 = vadd.f32 0.0, %v5671
    %v5673 = vpop.f32.mrf.mxu0
    %v5674 = vadd.f32 0.0, %v5673
    %5675 = vmatmul.bf16.gmra.mxu0 %v5564
    %v5676 = vpop.f32.mrf.mxu0
    %v5677 = vadd.f32 0.0, %v5676
    %v5678 = vpop.f32.mrf.mxu0
    %v5679 = vadd.f32 0.0, %v5678
    %5680 = vmatmul.bf16.gmra.mxu0 %v5567
    %v5681 = vpop.f32.mrf.mxu0
    %v5682 = vadd.f32 0.0, %v5681
    %v5683 = vpop.f32.mrf.mxu0
    %v5684 = vadd.f32 0.0, %v5683
    %5685 = vmatmul.bf16.gmra.mxu0 %v5570
    %v5686 = vpop.f32.mrf.mxu0
    %v5687 = vadd.f32 0.0, %v5686
    %v5688 = vpop.f32.mrf.mxu0
    %v5689 = vadd.f32 0.0, %v5688
    %5690 = vmatmul.bf16.gmra.mxu0 %v5573
    %v5691 = vpop.f32.mrf.mxu0
    %v5692 = vadd.f32 0.0, %v5691
    %v5693 = vpop.f32.mrf.mxu0
    %v5694 = vadd.f32 0.0, %v5693
    %5695 = vmatmul.bf16.gmra.mxu0 %v5576
    %v5696 = vpop.f32.mrf.mxu0
    %v5697 = vadd.f32 0.0, %v5696
    %v5698 = vpop.f32.mrf.mxu0
    %v5699 = vadd.f32 0.0, %v5698
    %5700 = vmatmul.bf16.gmra.mxu0 %v5579
    %v5701 = vpop.f32.mrf.mxu0
    %v5702 = vadd.f32 0.0, %v5701
    %v5703 = vpop.f32.mrf.mxu0
    %v5704 = vadd.f32 0.0, %v5703
    %5705 = vmatmul.bf16.gmra.mxu0 %v5582
    %v5706 = vpop.f32.mrf.mxu0
    %v5707 = vadd.f32 0.0, %v5706
    %v5708 = vpop.f32.mrf.mxu0
    %v5709 = vadd.f32 0.0, %v5708
    %5710 = vmatmul.bf16.gmra.mxu0 %v5585
    %v5711 = vpop.f32.mrf.mxu0
    %v5712 = vadd.f32 0.0, %v5711
    %v5713 = vpop.f32.mrf.mxu0
    %v5714 = vadd.f32 0.0, %v5713
    %5715 = vmatmul.bf16.gmra.mxu0 %v5588
    %v5716 = vpop.f32.mrf.mxu0
    %v5717 = vadd.f32 0.0, %v5716
    %v5718 = vpop.f32.mrf.mxu0
    %v5719 = vadd.f32 0.0, %v5718
    %5720 = vmatmul.bf16.gmra.mxu0 %v5591
    %v5721 = vpop.f32.mrf.mxu0
    %v5722 = vadd.f32 0.0, %v5721
    %v5723 = vpop.f32.mrf.mxu0
    %v5724 = vadd.f32 0.0, %v5723
    %5725 = vmatmul.bf16.gmra.mxu0 %v5594
    %v5726 = vpop.f32.mrf.mxu0
    %v5727 = vadd.f32 0.0, %v5726
    %v5728 = vpop.f32.mrf.mxu0
    %v5729 = vadd.f32 0.0, %v5728
    %5730 = vmatmul.bf16.gmra.mxu0 %v5597
    %v5731 = vpop.f32.mrf.mxu0
    %v5732 = vadd.f32 0.0, %v5731
    %v5733 = vpop.f32.mrf.mxu0
    %v5734 = vadd.f32 0.0, %v5733
    %5735 = vmatmul.bf16.gmra.mxu0 %v5600
    %v5736 = vpop.f32.mrf.mxu0
    %v5737 = vadd.f32 0.0, %v5736
    %v5738 = vpop.f32.mrf.mxu0
    %v5739 = vadd.f32 0.0, %v5738
    %5740 = vmatmul.bf16.gmra.mxu0 %v5603
    %v5741 = vpop.f32.mrf.mxu0
    %v5742 = vadd.f32 0.0, %v5741
    %v5743 = vpop.f32.mrf.mxu0
    %v5744 = vadd.f32 0.0, %v5743
    %5745 = vmatmul.bf16.gmra.mxu0 %v5606
    %v5746 = vpop.f32.mrf.mxu0
    %v5747 = vadd.f32 0.0, %v5746
    %v5748 = vpop.f32.mrf.mxu0
    %v5749 = vadd.f32 0.0, %v5748
    %5750 = vmatmul.bf16.gmra.mxu0 %v5609
    %v5751 = vpop.f32.mrf.mxu0
    %v5752 = vadd.f32 0.0, %v5751
    %v5753 = vpop.f32.mrf.mxu0
    %v5754 = vadd.f32 0.0, %v5753
    %5755 = vmatmul.bf16.gmra.mxu0 %v5612
    %v5756 = vpop.f32.mrf.mxu0
    %v5757 = vadd.f32 0.0, %v5756
    %v5758 = vpop.f32.mrf.mxu0
    %v5759 = vadd.f32 0.0, %v5758
    %5760 = vmatmul.bf16.gmra.mxu0 %v5615
    %v5761 = vpop.f32.mrf.mxu0
    %v5762 = vadd.f32 0.0, %v5761
    %v5763 = vpop.f32.mrf.mxu0
    %v5764 = vadd.f32 0.0, %v5763
    %5765 = vmatmul.bf16.gmra.mxu0 %v5618
    %v5766 = vpop.f32.mrf.mxu0
    %v5767 = vadd.f32 0.0, %v5766
    %v5768 = vpop.f32.mrf.mxu0
    %v5769 = vadd.f32 0.0, %v5768
    %5770 = vmatmul.bf16.gmra.mxu0 %v5621
    %v5771 = vpop.f32.mrf.mxu0
    %v5772 = vadd.f32 0.0, %v5771
    %v5773 = vpop.f32.mrf.mxu0
    %v5774 = vadd.f32 0.0, %v5773
    %5775 = vmatmul.bf16.gmra.mxu0 %v5624
    %v5776 = vpop.f32.mrf.mxu0
    %v5777 = vadd.f32 0.0, %v5776
    %v5778 = vpop.f32.mrf.mxu0
    %v5779 = vadd.f32 0.0, %v5778
    %5780 = vmatmul.bf16.gmra.mxu0 %v5627
    %v5781 = vpop.f32.mrf.mxu0
    %v5782 = vadd.f32 0.0, %v5781
    %v5783 = vpop.f32.mrf.mxu0
    %v5784 = vadd.f32 0.0, %v5783
    %5785 = vmatmul.bf16.gmra.mxu0 %v5630
    %v5786 = vpop.f32.mrf.mxu0
    %v5787 = vadd.f32 0.0, %v5786
    %v5788 = vpop.f32.mrf.mxu0
    %v5789 = vadd.f32 0.0, %v5788
    %5790 = vmatmul.bf16.gmra.mxu0 %v5633
    %v5791 = vpop.f32.mrf.mxu0
    %v5792 = vadd.f32 0.0, %v5791
    %v5793 = vpop.f32.mrf.mxu0
    %v5794 = vadd.f32 0.0, %v5793
    %5795 = vmatmul.bf16.gmra.mxu0 %v5636
    %v5796 = vpop.f32.mrf.mxu0
    %v5797 = vadd.f32 0.0, %v5796
    %v5798 = vpop.f32.mrf.mxu0
    %v5799 = vadd.f32 0.0, %v5798
    %5800 = vmatmul.bf16.gmra.mxu0 %v5639
    %v5801 = vpop.f32.mrf.mxu0
    %v5802 = vadd.f32 0.0, %v5801
    %v5803 = vpop.f32.mrf.mxu0
    %v5804 = vadd.f32 0.0, %v5803
    %5805 = vmatmul.bf16.gmra.mxu0 %v5642
    %v5806 = vpop.f32.mrf.mxu0
    %v5807 = vadd.f32 0.0, %v5806
    %v5808 = vpop.f32.mrf.mxu0
    %v5809 = vadd.f32 0.0, %v5808
    %5810 = vmatmul.bf16.gmra.mxu0 %v5645
    %v5811 = vpop.f32.mrf.mxu0
    %v5812 = vadd.f32 0.0, %v5811
    %v5813 = vpop.f32.mrf.mxu0
    %v5814 = vadd.f32 0.0, %v5813
    %5815 = vdwg.mxu0
    %v5816 = vld [vmem:[#allocation5] sm:$0xff]
    %v5817 = vld [vmem:[#allocation5 + $0x8] sm:$0xff]
    %v5818 = vld [vmem:[#allocation5 + $0x10] sm:$0xff]
    %v5819 = vld [vmem:[#allocation5 + $0x18] sm:$0xff]
    %v5820 = vld [vmem:[#allocation5 + $0x20] sm:$0xff]
    %v5821 = vld [vmem:[#allocation5 + $0x28] sm:$0xff]
    %v5822 = vld [vmem:[#allocation5 + $0x30] sm:$0xff]
    %v5823 = vld [vmem:[#allocation5 + $0x38] sm:$0xff]
    %v5824 = vld [vmem:[#allocation5 + $0x40] sm:$0xff]
    %v5825 = vld [vmem:[#allocation5 + $0x48] sm:$0xff]
    %v5826 = vld [vmem:[#allocation5 + $0x50] sm:$0xff]
    %v5827 = vld [vmem:[#allocation5 + $0x58] sm:$0xff]
    %v5828 = vld [vmem:[#allocation5 + $0x60] sm:$0xff]
    %v5829 = vld [vmem:[#allocation5 + $0x68] sm:$0xff]
    %v5830 = vld [vmem:[#allocation5 + $0x70] sm:$0xff]
    %v5831 = vld [vmem:[#allocation5 + $0x78] sm:$0xff]
    %v5832 = vld [vmem:[#allocation5 + $0x80] sm:$0xff]
    %v5833 = vld [vmem:[#allocation5 + $0x88] sm:$0xff]
    %v5834 = vld [vmem:[#allocation5 + $0x90] sm:$0xff]
    %v5835 = vld [vmem:[#allocation5 + $0x98] sm:$0xff]
    %v5836 = vld [vmem:[#allocation5 + $0xa0] sm:$0xff]
    %v5837 = vld [vmem:[#allocation5 + $0xa8] sm:$0xff]
    %v5838 = vld [vmem:[#allocation5 + $0xb0] sm:$0xff]
    %v5839 = vld [vmem:[#allocation5 + $0xb8] sm:$0xff]
    %v5840 = vld [vmem:[#allocation5 + $0xc0] sm:$0xff]
    %v5841 = vld [vmem:[#allocation5 + $0xc8] sm:$0xff]
    %v5842 = vld [vmem:[#allocation5 + $0xd0] sm:$0xff]
    %v5843 = vld [vmem:[#allocation5 + $0xd8] sm:$0xff]
    %v5844 = vld [vmem:[#allocation5 + $0xe0] sm:$0xff]
    %v5845 = vld [vmem:[#allocation5 + $0xe8] sm:$0xff]
    %v5846 = vld [vmem:[#allocation5 + $0xf0] sm:$0xff]
    %v5847 = vld [vmem:[#allocation5 + $0xf8] sm:$0xff]
    %v5848 = vld [vmem:[#allocation5 + $0x100] sm:$0xff]
    %v5849 = vld [vmem:[#allocation5 + $0x108] sm:$0xff]
    %v5850 = vld [vmem:[#allocation5 + $0x110] sm:$0xff]
    %v5851 = vld [vmem:[#allocation5 + $0x118] sm:$0xff]
    %v5852 = vld [vmem:[#allocation5 + $0x120] sm:$0xff]
    %v5853 = vld [vmem:[#allocation5 + $0x128] sm:$0xff]
    %v5854 = vld [vmem:[#allocation5 + $0x130] sm:$0xff]
    %v5855 = vld [vmem:[#allocation5 + $0x138] sm:$0xff]
    %v5856 = vld [vmem:[#allocation5 + $0x140] sm:$0xff]
    %v5857 = vld [vmem:[#allocation5 + $0x148] sm:$0xff]
    %v5858 = vld [vmem:[#allocation5 + $0x150] sm:$0xff]
    %v5859 = vld [vmem:[#allocation5 + $0x158] sm:$0xff]
    %v5860 = vld [vmem:[#allocation5 + $0x160] sm:$0xff]
    %v5861 = vld [vmem:[#allocation5 + $0x168] sm:$0xff]
    %v5862 = vld [vmem:[#allocation5 + $0x170] sm:$0xff]
    %v5863 = vld [vmem:[#allocation5 + $0x178] sm:$0xff]
    %v5864 = vld [vmem:[#allocation5 + $0x180] sm:$0xff]
    %v5865 = vld [vmem:[#allocation5 + $0x188] sm:$0xff]
    %v5866 = vld [vmem:[#allocation5 + $0x190] sm:$0xff]
    %v5867 = vld [vmem:[#allocation5 + $0x198] sm:$0xff]
    %v5868 = vld [vmem:[#allocation5 + $0x1a0] sm:$0xff]
    %v5869 = vld [vmem:[#allocation5 + $0x1a8] sm:$0xff]
    %v5870 = vld [vmem:[#allocation5 + $0x1b0] sm:$0xff]
    %v5871 = vld [vmem:[#allocation5 + $0x1b8] sm:$0xff]
    %v5872 = vld [vmem:[#allocation5 + $0x1c0] sm:$0xff]
    %v5873 = vld [vmem:[#allocation5 + $0x1c8] sm:$0xff]
    %v5874 = vld [vmem:[#allocation5 + $0x1d0] sm:$0xff]
    %v5875 = vld [vmem:[#allocation5 + $0x1d8] sm:$0xff]
    %v5876 = vld [vmem:[#allocation5 + $0x1e0] sm:$0xff]
    %v5877 = vld [vmem:[#allocation5 + $0x1e8] sm:$0xff]
    %v5878 = vld [vmem:[#allocation5 + $0x1f0] sm:$0xff]
    %v5879 = vld [vmem:[#allocation5 + $0x1f8] sm:$0xff]
    %v5880 = vadd.f32 %v5816, %v5657
    %v5881 = vadd.f32 %v5817, %v5659
    %v5882 = vadd.f32 %v5818, %v5662
    %v5883 = vadd.f32 %v5819, %v5664
    %v5884 = vadd.f32 %v5820, %v5667
    %v5885 = vadd.f32 %v5821, %v5669
    %v5886 = vadd.f32 %v5822, %v5672
    %v5887 = vadd.f32 %v5823, %v5674
    %v5888 = vadd.f32 %v5824, %v5677
    %v5889 = vadd.f32 %v5825, %v5679
    %v5890 = vadd.f32 %v5826, %v5682
    %v5891 = vadd.f32 %v5827, %v5684
    %v5892 = vadd.f32 %v5828, %v5687
    %v5893 = vadd.f32 %v5829, %v5689
    %v5894 = vadd.f32 %v5830, %v5692
    %v5895 = vadd.f32 %v5831, %v5694
    %v5896 = vadd.f32 %v5832, %v5697
    %v5897 = vadd.f32 %v5833, %v5699
    %v5898 = vadd.f32 %v5834, %v5702
    %v5899 = vadd.f32 %v5835, %v5704
    %v5900 = vadd.f32 %v5836, %v5707
    %v5901 = vadd.f32 %v5837, %v5709
    %v5902 = vadd.f32 %v5838, %v5712
    %v5903 = vadd.f32 %v5839, %v5714
    %v5904 = vadd.f32 %v5840, %v5717
    %v5905 = vadd.f32 %v5841, %v5719
    %v5906 = vadd.f32 %v5842, %v5722
    %v5907 = vadd.f32 %v5843, %v5724
    %v5908 = vadd.f32 %v5844, %v5727
    %v5909 = vadd.f32 %v5845, %v5729
    %v5910 = vadd.f32 %v5846, %v5732
    %v5911 = vadd.f32 %v5847, %v5734
    %v5912 = vadd.f32 %v5848, %v5737
    %v5913 = vadd.f32 %v5849, %v5739
    %v5914 = vadd.f32 %v5850, %v5742
    %v5915 = vadd.f32 %v5851, %v5744
    %v5916 = vadd.f32 %v5852, %v5747
    %v5917 = vadd.f32 %v5853, %v5749
    %v5918 = vadd.f32 %v5854, %v5752
    %v5919 = vadd.f32 %v5855, %v5754
    %v5920 = vadd.f32 %v5856, %v5757
    %v5921 = vadd.f32 %v5857, %v5759
    %v5922 = vadd.f32 %v5858, %v5762
    %v5923 = vadd.f32 %v5859, %v5764
    %v5924 = vadd.f32 %v5860, %v5767
    %v5925 = vadd.f32 %v5861, %v5769
    %v5926 = vadd.f32 %v5862, %v5772
    %v5927 = vadd.f32 %v5863, %v5774
    %v5928 = vadd.f32 %v5864, %v5777
    %v5929 = vadd.f32 %v5865, %v5779
    %v5930 = vadd.f32 %v5866, %v5782
    %v5931 = vadd.f32 %v5867, %v5784
    %v5932 = vadd.f32 %v5868, %v5787
    %v5933 = vadd.f32 %v5869, %v5789
    %v5934 = vadd.f32 %v5870, %v5792
    %v5935 = vadd.f32 %v5871, %v5794
    %v5936 = vadd.f32 %v5872, %v5797
    %v5937 = vadd.f32 %v5873, %v5799
    %v5938 = vadd.f32 %v5874, %v5802
    %v5939 = vadd.f32 %v5875, %v5804
    %v5940 = vadd.f32 %v5876, %v5807
    %v5941 = vadd.f32 %v5877, %v5809
    %v5942 = vadd.f32 %v5878, %v5812
    %v5943 = vadd.f32 %v5879, %v5814
    %5944 = vst.msk [vmem:[#allocation5] sm:$0xff] %vm31, %v5880
    %5945 = vst.msk [vmem:[#allocation5 + $0x8] sm:$0xff] %vm31, %v5881
    %5946 = vst.msk [vmem:[#allocation5 + $0x10] sm:$0xff] %vm31, %v5882
    %5947 = vst.msk [vmem:[#allocation5 + $0x18] sm:$0xff] %vm31, %v5883
    %5948 = vst.msk [vmem:[#allocation5 + $0x20] sm:$0xff] %vm31, %v5884
    %5949 = vst.msk [vmem:[#allocation5 + $0x28] sm:$0xff] %vm31, %v5885
    %5950 = vst.msk [vmem:[#allocation5 + $0x30] sm:$0xff] %vm31, %v5886
    %5951 = vst.msk [vmem:[#allocation5 + $0x38] sm:$0xff] %vm31, %v5887
    %5952 = vst.msk [vmem:[#allocation5 + $0x40] sm:$0xff] %vm31, %v5888
    %5953 = vst.msk [vmem:[#allocation5 + $0x48] sm:$0xff] %vm31, %v5889
    %5954 = vst.msk [vmem:[#allocation5 + $0x50] sm:$0xff] %vm31, %v5890
    %5955 = vst.msk [vmem:[#allocation5 + $0x58] sm:$0xff] %vm31, %v5891
    %5956 = vst.msk [vmem:[#allocation5 + $0x60] sm:$0xff] %vm31, %v5892
    %5957 = vst.msk [vmem:[#allocation5 + $0x68] sm:$0xff] %vm31, %v5893
    %5958 = vst.msk [vmem:[#allocation5 + $0x70] sm:$0xff] %vm31, %v5894
    %5959 = vst.msk [vmem:[#allocation5 + $0x78] sm:$0xff] %vm31, %v5895
    %5960 = vst.msk [vmem:[#allocation5 + $0x80] sm:$0xff] %vm31, %v5896
    %5961 = vst.msk [vmem:[#allocation5 + $0x88] sm:$0xff] %vm31, %v5897
    %5962 = vst.msk [vmem:[#allocation5 + $0x90] sm:$0xff] %vm31, %v5898
    %5963 = vst.msk [vmem:[#allocation5 + $0x98] sm:$0xff] %vm31, %v5899
    %5964 = vst.msk [vmem:[#allocation5 + $0xa0] sm:$0xff] %vm31, %v5900
    %5965 = vst.msk [vmem:[#allocation5 + $0xa8] sm:$0xff] %vm31, %v5901
    %5966 = vst.msk [vmem:[#allocation5 + $0xb0] sm:$0xff] %vm31, %v5902
    %5967 = vst.msk [vmem:[#allocation5 + $0xb8] sm:$0xff] %vm31, %v5903
    %5968 = vst.msk [vmem:[#allocation5 + $0xc0] sm:$0xff] %vm31, %v5904
    %5969 = vst.msk [vmem:[#allocation5 + $0xc8] sm:$0xff] %vm31, %v5905
    %5970 = vst.msk [vmem:[#allocation5 + $0xd0] sm:$0xff] %vm31, %v5906
    %5971 = vst.msk [vmem:[#allocation5 + $0xd8] sm:$0xff] %vm31, %v5907
    %5972 = vst.msk [vmem:[#allocation5 + $0xe0] sm:$0xff] %vm31, %v5908
    %5973 = vst.msk [vmem:[#allocation5 + $0xe8] sm:$0xff] %vm31, %v5909
    %5974 = vst.msk [vmem:[#allocation5 + $0xf0] sm:$0xff] %vm31, %v5910
    %5975 = vst.msk [vmem:[#allocation5 + $0xf8] sm:$0xff] %vm31, %v5911
    %5976 = vst.msk [vmem:[#allocation5 + $0x100] sm:$0xff] %vm31, %v5912
    %5977 = vst.msk [vmem:[#allocation5 + $0x108] sm:$0xff] %vm31, %v5913
    %5978 = vst.msk [vmem:[#allocation5 + $0x110] sm:$0xff] %vm31, %v5914
    %5979 = vst.msk [vmem:[#allocation5 + $0x118] sm:$0xff] %vm31, %v5915
    %5980 = vst.msk [vmem:[#allocation5 + $0x120] sm:$0xff] %vm31, %v5916
    %5981 = vst.msk [vmem:[#allocation5 + $0x128] sm:$0xff] %vm31, %v5917
    %5982 = vst.msk [vmem:[#allocation5 + $0x130] sm:$0xff] %vm31, %v5918
    %5983 = vst.msk [vmem:[#allocation5 + $0x138] sm:$0xff] %vm31, %v5919
    %5984 = vst.msk [vmem:[#allocation5 + $0x140] sm:$0xff] %vm31, %v5920
    %5985 = vst.msk [vmem:[#allocation5 + $0x148] sm:$0xff] %vm31, %v5921
    %5986 = vst.msk [vmem:[#allocation5 + $0x150] sm:$0xff] %vm31, %v5922
    %5987 = vst.msk [vmem:[#allocation5 + $0x158] sm:$0xff] %vm31, %v5923
    %5988 = vst.msk [vmem:[#allocation5 + $0x160] sm:$0xff] %vm31, %v5924
    %5989 = vst.msk [vmem:[#allocation5 + $0x168] sm:$0xff] %vm31, %v5925
    %5990 = vst.msk [vmem:[#allocation5 + $0x170] sm:$0xff] %vm31, %v5926
    %5991 = vst.msk [vmem:[#allocation5 + $0x178] sm:$0xff] %vm31, %v5927
    %5992 = vst.msk [vmem:[#allocation5 + $0x180] sm:$0xff] %vm31, %v5928
    %5993 = vst.msk [vmem:[#allocation5 + $0x188] sm:$0xff] %vm31, %v5929
    %5994 = vst.msk [vmem:[#allocation5 + $0x190] sm:$0xff] %vm31, %v5930
    %5995 = vst.msk [vmem:[#allocation5 + $0x198] sm:$0xff] %vm31, %v5931
    %5996 = vst.msk [vmem:[#allocation5 + $0x1a0] sm:$0xff] %vm31, %v5932
    %5997 = vst.msk [vmem:[#allocation5 + $0x1a8] sm:$0xff] %vm31, %v5933
    %5998 = vst.msk [vmem:[#allocation5 + $0x1b0] sm:$0xff] %vm31, %v5934
    %5999 = vst.msk [vmem:[#allocation5 + $0x1b8] sm:$0xff] %vm31, %v5935
    %6000 = vst.msk [vmem:[#allocation5 + $0x1c0] sm:$0xff] %vm31, %v5936
    %6001 = vst.msk [vmem:[#allocation5 + $0x1c8] sm:$0xff] %vm31, %v5937
    %6002 = vst.msk [vmem:[#allocation5 + $0x1d0] sm:$0xff] %vm31, %v5938
    %6003 = vst.msk [vmem:[#allocation5 + $0x1d8] sm:$0xff] %vm31, %v5939
    %6004 = vst.msk [vmem:[#allocation5 + $0x1e0] sm:$0xff] %vm31, %v5940
    %6005 = vst.msk [vmem:[#allocation5 + $0x1e8] sm:$0xff] %vm31, %v5941
    %6006 = vst.msk [vmem:[#allocation5 + $0x1f0] sm:$0xff] %vm31, %v5942
    %6007 = vst.msk [vmem:[#allocation5 + $0x1f8] sm:$0xff] %vm31, %v5943
    %v6008 = vld [vmem:[#allocation5] sm:$0xff]
    %v6009 = vld [vmem:[#allocation5 + $0x8] sm:$0xff]
    %v6010 = vld [vmem:[#allocation5 + $0x10] sm:$0xff]
    %v6011 = vld [vmem:[#allocation5 + $0x18] sm:$0xff]
    %v6012 = vld [vmem:[#allocation5 + $0x20] sm:$0xff]
    %v6013 = vld [vmem:[#allocation5 + $0x28] sm:$0xff]
    %v6014 = vld [vmem:[#allocation5 + $0x30] sm:$0xff]
    %v6015 = vld [vmem:[#allocation5 + $0x38] sm:$0xff]
    %v6016 = vld [vmem:[#allocation5 + $0x40] sm:$0xff]
    %v6017 = vld [vmem:[#allocation5 + $0x48] sm:$0xff]
    %v6018 = vld [vmem:[#allocation5 + $0x50] sm:$0xff]
    %v6019 = vld [vmem:[#allocation5 + $0x58] sm:$0xff]
    %v6020 = vld [vmem:[#allocation5 + $0x60] sm:$0xff]
    %v6021 = vld [vmem:[#allocation5 + $0x68] sm:$0xff]
    %v6022 = vld [vmem:[#allocation5 + $0x70] sm:$0xff]
    %v6023 = vld [vmem:[#allocation5 + $0x78] sm:$0xff]
    %v6024 = vld [vmem:[#allocation5 + $0x80] sm:$0xff]
    %v6025 = vld [vmem:[#allocation5 + $0x88] sm:$0xff]
    %v6026 = vld [vmem:[#allocation5 + $0x90] sm:$0xff]
    %v6027 = vld [vmem:[#allocation5 + $0x98] sm:$0xff]
    %v6028 = vld [vmem:[#allocation5 + $0xa0] sm:$0xff]
    %v6029 = vld [vmem:[#allocation5 + $0xa8] sm:$0xff]
    %v6030 = vld [vmem:[#allocation5 + $0xb0] sm:$0xff]
    %v6031 = vld [vmem:[#allocation5 + $0xb8] sm:$0xff]
    %v6032 = vld [vmem:[#allocation5 + $0xc0] sm:$0xff]
    %v6033 = vld [vmem:[#allocation5 + $0xc8] sm:$0xff]
    %v6034 = vld [vmem:[#allocation5 + $0xd0] sm:$0xff]
    %v6035 = vld [vmem:[#allocation5 + $0xd8] sm:$0xff]
    %v6036 = vld [vmem:[#allocation5 + $0xe0] sm:$0xff]
    %v6037 = vld [vmem:[#allocation5 + $0xe8] sm:$0xff]
    %v6038 = vld [vmem:[#allocation5 + $0xf0] sm:$0xff]
    %v6039 = vld [vmem:[#allocation5 + $0xf8] sm:$0xff]
    %v6040 = vld [vmem:[#allocation5 + $0x100] sm:$0xff]
    %v6041 = vld [vmem:[#allocation5 + $0x108] sm:$0xff]
    %v6042 = vld [vmem:[#allocation5 + $0x110] sm:$0xff]
    %v6043 = vld [vmem:[#allocation5 + $0x118] sm:$0xff]
    %v6044 = vld [vmem:[#allocation5 + $0x120] sm:$0xff]
    %v6045 = vld [vmem:[#allocation5 + $0x128] sm:$0xff]
    %v6046 = vld [vmem:[#allocation5 + $0x130] sm:$0xff]
    %v6047 = vld [vmem:[#allocation5 + $0x138] sm:$0xff]
    %v6048 = vld [vmem:[#allocation5 + $0x140] sm:$0xff]
    %v6049 = vld [vmem:[#allocation5 + $0x148] sm:$0xff]
    %v6050 = vld [vmem:[#allocation5 + $0x150] sm:$0xff]
    %v6051 = vld [vmem:[#allocation5 + $0x158] sm:$0xff]
    %v6052 = vld [vmem:[#allocation5 + $0x160] sm:$0xff]
    %v6053 = vld [vmem:[#allocation5 + $0x168] sm:$0xff]
    %v6054 = vld [vmem:[#allocation5 + $0x170] sm:$0xff]
    %v6055 = vld [vmem:[#allocation5 + $0x178] sm:$0xff]
    %v6056 = vld [vmem:[#allocation5 + $0x180] sm:$0xff]
    %v6057 = vld [vmem:[#allocation5 + $0x188] sm:$0xff]
    %v6058 = vld [vmem:[#allocation5 + $0x190] sm:$0xff]
    %v6059 = vld [vmem:[#allocation5 + $0x198] sm:$0xff]
    %v6060 = vld [vmem:[#allocation5 + $0x1a0] sm:$0xff]
    %v6061 = vld [vmem:[#allocation5 + $0x1a8] sm:$0xff]
    %v6062 = vld [vmem:[#allocation5 + $0x1b0] sm:$0xff]
    %v6063 = vld [vmem:[#allocation5 + $0x1b8] sm:$0xff]
    %v6064 = vld [vmem:[#allocation5 + $0x1c0] sm:$0xff]
    %v6065 = vld [vmem:[#allocation5 + $0x1c8] sm:$0xff]
    %v6066 = vld [vmem:[#allocation5 + $0x1d0] sm:$0xff]
    %v6067 = vld [vmem:[#allocation5 + $0x1d8] sm:$0xff]
    %v6068 = vld [vmem:[#allocation5 + $0x1e0] sm:$0xff]
    %v6069 = vld [vmem:[#allocation5 + $0x1e8] sm:$0xff]
    %v6070 = vld [vmem:[#allocation5 + $0x1f0] sm:$0xff]
    %v6071 = vld [vmem:[#allocation5 + $0x1f8] sm:$0xff]
    %v6072 = vld [vmem:[%s5 + $0x1] sm:$0x1]
    %v6073 = vperm.slane %v6072, 0
    %v6074 = vadd.f32 %v6008, %v6073
    %v6075 = vadd.f32 %v6009, %v6073
    %v6076 = vadd.f32 %v6010, %v6073
    %v6077 = vadd.f32 %v6011, %v6073
    %v6078 = vadd.f32 %v6012, %v6073
    %v6079 = vadd.f32 %v6013, %v6073
    %v6080 = vadd.f32 %v6014, %v6073
    %v6081 = vadd.f32 %v6015, %v6073
    %v6082 = vadd.f32 %v6016, %v6073
    %v6083 = vadd.f32 %v6017, %v6073
    %v6084 = vadd.f32 %v6018, %v6073
    %v6085 = vadd.f32 %v6019, %v6073
    %v6086 = vadd.f32 %v6020, %v6073
    %v6087 = vadd.f32 %v6021, %v6073
    %v6088 = vadd.f32 %v6022, %v6073
    %v6089 = vadd.f32 %v6023, %v6073
    %v6090 = vadd.f32 %v6024, %v6073
    %v6091 = vadd.f32 %v6025, %v6073
    %v6092 = vadd.f32 %v6026, %v6073
    %v6093 = vadd.f32 %v6027, %v6073
    %v6094 = vadd.f32 %v6028, %v6073
    %v6095 = vadd.f32 %v6029, %v6073
    %v6096 = vadd.f32 %v6030, %v6073
    %v6097 = vadd.f32 %v6031, %v6073
    %v6098 = vadd.f32 %v6032, %v6073
    %v6099 = vadd.f32 %v6033, %v6073
    %v6100 = vadd.f32 %v6034, %v6073
    %v6101 = vadd.f32 %v6035, %v6073
    %v6102 = vadd.f32 %v6036, %v6073
    %v6103 = vadd.f32 %v6037, %v6073
    %v6104 = vadd.f32 %v6038, %v6073
    %v6105 = vadd.f32 %v6039, %v6073
    %v6106 = vadd.f32 %v6040, %v6073
    %v6107 = vadd.f32 %v6041, %v6073
    %v6108 = vadd.f32 %v6042, %v6073
    %v6109 = vadd.f32 %v6043, %v6073
    %v6110 = vadd.f32 %v6044, %v6073
    %v6111 = vadd.f32 %v6045, %v6073
    %v6112 = vadd.f32 %v6046, %v6073
    %v6113 = vadd.f32 %v6047, %v6073
    %v6114 = vadd.f32 %v6048, %v6073
    %v6115 = vadd.f32 %v6049, %v6073
    %v6116 = vadd.f32 %v6050, %v6073
    %v6117 = vadd.f32 %v6051, %v6073
    %v6118 = vadd.f32 %v6052, %v6073
    %v6119 = vadd.f32 %v6053, %v6073
    %v6120 = vadd.f32 %v6054, %v6073
    %v6121 = vadd.f32 %v6055, %v6073
    %v6122 = vadd.f32 %v6056, %v6073
    %v6123 = vadd.f32 %v6057, %v6073
    %v6124 = vadd.f32 %v6058, %v6073
    %v6125 = vadd.f32 %v6059, %v6073
    %v6126 = vadd.f32 %v6060, %v6073
    %v6127 = vadd.f32 %v6061, %v6073
    %v6128 = vadd.f32 %v6062, %v6073
    %v6129 = vadd.f32 %v6063, %v6073
    %v6130 = vadd.f32 %v6064, %v6073
    %v6131 = vadd.f32 %v6065, %v6073
    %v6132 = vadd.f32 %v6066, %v6073
    %v6133 = vadd.f32 %v6067, %v6073
    %v6134 = vadd.f32 %v6068, %v6073
    %v6135 = vadd.f32 %v6069, %v6073
    %v6136 = vadd.f32 %v6070, %v6073
    %v6137 = vadd.f32 %v6071, %v6073
    %vm6138 = vcmp.ge.f32.partialorder %v6074, 0.0
    %vm6139 = vcmp.ge.f32.partialorder %v6075, 0.0
    %vm6140 = vcmp.ge.f32.partialorder %v6076, 0.0
    %vm6141 = vcmp.ge.f32.partialorder %v6077, 0.0
    %vm6142 = vcmp.ge.f32.partialorder %v6078, 0.0
    %vm6143 = vcmp.ge.f32.partialorder %v6079, 0.0
    %vm6144 = vcmp.ge.f32.partialorder %v6080, 0.0
    %vm6145 = vcmp.ge.f32.partialorder %v6081, 0.0
    %vm6146 = vcmp.ge.f32.partialorder %v6082, 0.0
    %vm6147 = vcmp.ge.f32.partialorder %v6083, 0.0
    %vm6148 = vcmp.ge.f32.partialorder %v6084, 0.0
    %vm6149 = vcmp.ge.f32.partialorder %v6085, 0.0
    %vm6150 = vcmp.ge.f32.partialorder %v6086, 0.0
    %vm6151 = vcmp.ge.f32.partialorder %v6087, 0.0
    %vm6152 = vcmp.ge.f32.partialorder %v6088, 0.0
    %vm6153 = vcmp.ge.f32.partialorder %v6089, 0.0
    %vm6154 = vcmp.ge.f32.partialorder %v6090, 0.0
    %vm6155 = vcmp.ge.f32.partialorder %v6091, 0.0
    %vm6156 = vcmp.ge.f32.partialorder %v6092, 0.0
    %vm6157 = vcmp.ge.f32.partialorder %v6093, 0.0
    %vm6158 = vcmp.ge.f32.partialorder %v6094, 0.0
    %vm6159 = vcmp.ge.f32.partialorder %v6095, 0.0
    %vm6160 = vcmp.ge.f32.partialorder %v6096, 0.0
    %vm6161 = vcmp.ge.f32.partialorder %v6097, 0.0
    %vm6162 = vcmp.ge.f32.partialorder %v6098, 0.0
    %vm6163 = vcmp.ge.f32.partialorder %v6099, 0.0
    %vm6164 = vcmp.ge.f32.partialorder %v6100, 0.0
    %vm6165 = vcmp.ge.f32.partialorder %v6101, 0.0
    %vm6166 = vcmp.ge.f32.partialorder %v6102, 0.0
    %vm6167 = vcmp.ge.f32.partialorder %v6103, 0.0
    %vm6168 = vcmp.ge.f32.partialorder %v6104, 0.0
    %vm6169 = vcmp.ge.f32.partialorder %v6105, 0.0
    %vm6170 = vcmp.ge.f32.partialorder %v6106, 0.0
    %vm6171 = vcmp.ge.f32.partialorder %v6107, 0.0
    %vm6172 = vcmp.ge.f32.partialorder %v6108, 0.0
    %vm6173 = vcmp.ge.f32.partialorder %v6109, 0.0
    %vm6174 = vcmp.ge.f32.partialorder %v6110, 0.0
    %vm6175 = vcmp.ge.f32.partialorder %v6111, 0.0
    %vm6176 = vcmp.ge.f32.partialorder %v6112, 0.0
    %vm6177 = vcmp.ge.f32.partialorder %v6113, 0.0
    %vm6178 = vcmp.ge.f32.partialorder %v6114, 0.0
    %vm6179 = vcmp.ge.f32.partialorder %v6115, 0.0
    %vm6180 = vcmp.ge.f32.partialorder %v6116, 0.0
    %vm6181 = vcmp.ge.f32.partialorder %v6117, 0.0
    %vm6182 = vcmp.ge.f32.partialorder %v6118, 0.0
    %vm6183 = vcmp.ge.f32.partialorder %v6119, 0.0
    %vm6184 = vcmp.ge.f32.partialorder %v6120, 0.0
    %vm6185 = vcmp.ge.f32.partialorder %v6121, 0.0
    %vm6186 = vcmp.ge.f32.partialorder %v6122, 0.0
    %vm6187 = vcmp.ge.f32.partialorder %v6123, 0.0
    %vm6188 = vcmp.ge.f32.partialorder %v6124, 0.0
    %vm6189 = vcmp.ge.f32.partialorder %v6125, 0.0
    %vm6190 = vcmp.ge.f32.partialorder %v6126, 0.0
    %vm6191 = vcmp.ge.f32.partialorder %v6127, 0.0
    %vm6192 = vcmp.ge.f32.partialorder %v6128, 0.0
    %vm6193 = vcmp.ge.f32.partialorder %v6129, 0.0
    %vm6194 = vcmp.ge.f32.partialorder %v6130, 0.0
    %vm6195 = vcmp.ge.f32.partialorder %v6131, 0.0
    %vm6196 = vcmp.ge.f32.partialorder %v6132, 0.0
    %vm6197 = vcmp.ge.f32.partialorder %v6133, 0.0
    %vm6198 = vcmp.ge.f32.partialorder %v6134, 0.0
    %vm6199 = vcmp.ge.f32.partialorder %v6135, 0.0
    %vm6200 = vcmp.ge.f32.partialorder %v6136, 0.0
    %vm6201 = vcmp.ge.f32.partialorder %v6137, 0.0
    %v6202 = vmul.f32 %v6074, 0.2
    %v6203 = vmul.f32 %v6075, 0.2
    %v6204 = vmul.f32 %v6076, 0.2
    %v6205 = vmul.f32 %v6077, 0.2
    %v6206 = vmul.f32 %v6078, 0.2
    %v6207 = vmul.f32 %v6079, 0.2
    %v6208 = vmul.f32 %v6080, 0.2
    %v6209 = vmul.f32 %v6081, 0.2
    %v6210 = vmul.f32 %v6082, 0.2
    %v6211 = vmul.f32 %v6083, 0.2
    %v6212 = vmul.f32 %v6084, 0.2
    %v6213 = vmul.f32 %v6085, 0.2
    %v6214 = vmul.f32 %v6086, 0.2
    %v6215 = vmul.f32 %v6087, 0.2
    %v6216 = vmul.f32 %v6088, 0.2
    %v6217 = vmul.f32 %v6089, 0.2
    %v6218 = vmul.f32 %v6090, 0.2
    %v6219 = vmul.f32 %v6091, 0.2
    %v6220 = vmul.f32 %v6092, 0.2
    %v6221 = vmul.f32 %v6093, 0.2
    %v6222 = vmul.f32 %v6094, 0.2
    %v6223 = vmul.f32 %v6095, 0.2
    %v6224 = vmul.f32 %v6096, 0.2
    %v6225 = vmul.f32 %v6097, 0.2
    %v6226 = vmul.f32 %v6098, 0.2
    %v6227 = vmul.f32 %v6099, 0.2
    %v6228 = vmul.f32 %v6100, 0.2
    %v6229 = vmul.f32 %v6101, 0.2
    %v6230 = vmul.f32 %v6102, 0.2
    %v6231 = vmul.f32 %v6103, 0.2
    %v6232 = vmul.f32 %v6104, 0.2
    %v6233 = vmul.f32 %v6105, 0.2
    %v6234 = vmul.f32 %v6106, 0.2
    %v6235 = vmul.f32 %v6107, 0.2
    %v6236 = vmul.f32 %v6108, 0.2
    %v6237 = vmul.f32 %v6109, 0.2
    %v6238 = vmul.f32 %v6110, 0.2
    %v6239 = vmul.f32 %v6111, 0.2
    %v6240 = vmul.f32 %v6112, 0.2
    %v6241 = vmul.f32 %v6113, 0.2
    %v6242 = vmul.f32 %v6114, 0.2
    %v6243 = vmul.f32 %v6115, 0.2
    %v6244 = vmul.f32 %v6116, 0.2
    %v6245 = vmul.f32 %v6117, 0.2
    %v6246 = vmul.f32 %v6118, 0.2
    %v6247 = vmul.f32 %v6119, 0.2
    %v6248 = vmul.f32 %v6120, 0.2
    %v6249 = vmul.f32 %v6121, 0.2
    %v6250 = vmul.f32 %v6122, 0.2
    %v6251 = vmul.f32 %v6123, 0.2
    %v6252 = vmul.f32 %v6124, 0.2
    %v6253 = vmul.f32 %v6125, 0.2
    %v6254 = vmul.f32 %v6126, 0.2
    %v6255 = vmul.f32 %v6127, 0.2
    %v6256 = vmul.f32 %v6128, 0.2
    %v6257 = vmul.f32 %v6129, 0.2
    %v6258 = vmul.f32 %v6130, 0.2
    %v6259 = vmul.f32 %v6131, 0.2
    %v6260 = vmul.f32 %v6132, 0.2
    %v6261 = vmul.f32 %v6133, 0.2
    %v6262 = vmul.f32 %v6134, 0.2
    %v6263 = vmul.f32 %v6135, 0.2
    %v6264 = vmul.f32 %v6136, 0.2
    %v6265 = vmul.f32 %v6137, 0.2
    %v6266 = vsel %vm6138, %v6074, %v6202
    %v6267 = vsel %vm6139, %v6075, %v6203
    %v6268 = vsel %vm6140, %v6076, %v6204
    %v6269 = vsel %vm6141, %v6077, %v6205
    %v6270 = vsel %vm6142, %v6078, %v6206
    %v6271 = vsel %vm6143, %v6079, %v6207
    %v6272 = vsel %vm6144, %v6080, %v6208
    %v6273 = vsel %vm6145, %v6081, %v6209
    %v6274 = vsel %vm6146, %v6082, %v6210
    %v6275 = vsel %vm6147, %v6083, %v6211
    %v6276 = vsel %vm6148, %v6084, %v6212
    %v6277 = vsel %vm6149, %v6085, %v6213
    %v6278 = vsel %vm6150, %v6086, %v6214
    %v6279 = vsel %vm6151, %v6087, %v6215
    %v6280 = vsel %vm6152, %v6088, %v6216
    %v6281 = vsel %vm6153, %v6089, %v6217
    %v6282 = vsel %vm6154, %v6090, %v6218
    %v6283 = vsel %vm6155, %v6091, %v6219
    %v6284 = vsel %vm6156, %v6092, %v6220
    %v6285 = vsel %vm6157, %v6093, %v6221
    %v6286 = vsel %vm6158, %v6094, %v6222
    %v6287 = vsel %vm6159, %v6095, %v6223
    %v6288 = vsel %vm6160, %v6096, %v6224
    %v6289 = vsel %vm6161, %v6097, %v6225
    %v6290 = vsel %vm6162, %v6098, %v6226
    %v6291 = vsel %vm6163, %v6099, %v6227
    %v6292 = vsel %vm6164, %v6100, %v6228
    %v6293 = vsel %vm6165, %v6101, %v6229
    %v6294 = vsel %vm6166, %v6102, %v6230
    %v6295 = vsel %vm6167, %v6103, %v6231
    %v6296 = vsel %vm6168, %v6104, %v6232
    %v6297 = vsel %vm6169, %v6105, %v6233
    %v6298 = vsel %vm6170, %v6106, %v6234
    %v6299 = vsel %vm6171, %v6107, %v6235
    %v6300 = vsel %vm6172, %v6108, %v6236
    %v6301 = vsel %vm6173, %v6109, %v6237
    %v6302 = vsel %vm6174, %v6110, %v6238
    %v6303 = vsel %vm6175, %v6111, %v6239
    %v6304 = vsel %vm6176, %v6112, %v6240
    %v6305 = vsel %vm6177, %v6113, %v6241
    %v6306 = vsel %vm6178, %v6114, %v6242
    %v6307 = vsel %vm6179, %v6115, %v6243
    %v6308 = vsel %vm6180, %v6116, %v6244
    %v6309 = vsel %vm6181, %v6117, %v6245
    %v6310 = vsel %vm6182, %v6118, %v6246
    %v6311 = vsel %vm6183, %v6119, %v6247
    %v6312 = vsel %vm6184, %v6120, %v6248
    %v6313 = vsel %vm6185, %v6121, %v6249
    %v6314 = vsel %vm6186, %v6122, %v6250
    %v6315 = vsel %vm6187, %v6123, %v6251
    %v6316 = vsel %vm6188, %v6124, %v6252
    %v6317 = vsel %vm6189, %v6125, %v6253
    %v6318 = vsel %vm6190, %v6126, %v6254
    %v6319 = vsel %vm6191, %v6127, %v6255
    %v6320 = vsel %vm6192, %v6128, %v6256
    %v6321 = vsel %vm6193, %v6129, %v6257
    %v6322 = vsel %vm6194, %v6130, %v6258
    %v6323 = vsel %vm6195, %v6131, %v6259
    %v6324 = vsel %vm6196, %v6132, %v6260
    %v6325 = vsel %vm6197, %v6133, %v6261
    %v6326 = vsel %vm6198, %v6134, %v6262
    %v6327 = vsel %vm6199, %v6135, %v6263
    %v6328 = vsel %vm6200, %v6136, %v6264
    %v6329 = vsel %vm6201, %v6137, %v6265
    %6330 = vst.msk [vmem:[%s131 + $0x8] sm:$0xff] %vm31, %v6266
    %6331 = vst.msk [vmem:[%s131 + $0x10] sm:$0xff] %vm31, %v6267
    %6332 = vst.msk [vmem:[%s131 + $0x28] sm:$0xff] %vm31, %v6268
    %6333 = vst.msk [vmem:[%s131 + $0x30] sm:$0xff] %vm31, %v6269
    %6334 = vst.msk [vmem:[%s131 + $0x48] sm:$0xff] %vm31, %v6270
    %6335 = vst.msk [vmem:[%s131 + $0x50] sm:$0xff] %vm31, %v6271
    %6336 = vst.msk [vmem:[%s131 + $0x68] sm:$0xff] %vm31, %v6272
    %6337 = vst.msk [vmem:[%s131 + $0x70] sm:$0xff] %vm31, %v6273
    %6338 = vst.msk [vmem:[%s131 + $0x88] sm:$0xff] %vm31, %v6274
    %6339 = vst.msk [vmem:[%s131 + $0x90] sm:$0xff] %vm31, %v6275
    %6340 = vst.msk [vmem:[%s131 + $0xa8] sm:$0xff] %vm31, %v6276
    %6341 = vst.msk [vmem:[%s131 + $0xb0] sm:$0xff] %vm31, %v6277
    %6342 = vst.msk [vmem:[%s131 + $0xc8] sm:$0xff] %vm31, %v6278
    %6343 = vst.msk [vmem:[%s131 + $0xd0] sm:$0xff] %vm31, %v6279
    %6344 = vst.msk [vmem:[%s131 + $0xe8] sm:$0xff] %vm31, %v6280
    %6345 = vst.msk [vmem:[%s131 + $0xf0] sm:$0xff] %vm31, %v6281
    %6346 = vst.msk [vmem:[%s131 + $0x108] sm:$0xff] %vm31, %v6282
    %6347 = vst.msk [vmem:[%s131 + $0x110] sm:$0xff] %vm31, %v6283
    %6348 = vst.msk [vmem:[%s131 + $0x128] sm:$0xff] %vm31, %v6284
    %6349 = vst.msk [vmem:[%s131 + $0x130] sm:$0xff] %vm31, %v6285
    %6350 = vst.msk [vmem:[%s131 + $0x148] sm:$0xff] %vm31, %v6286
    %6351 = vst.msk [vmem:[%s131 + $0x150] sm:$0xff] %vm31, %v6287
    %6352 = vst.msk [vmem:[%s131 + $0x168] sm:$0xff] %vm31, %v6288
    %6353 = vst.msk [vmem:[%s131 + $0x170] sm:$0xff] %vm31, %v6289
    %6354 = vst.msk [vmem:[%s131 + $0x188] sm:$0xff] %vm31, %v6290
    %6355 = vst.msk [vmem:[%s131 + $0x190] sm:$0xff] %vm31, %v6291
    %6356 = vst.msk [vmem:[%s131 + $0x1a8] sm:$0xff] %vm31, %v6292
    %6357 = vst.msk [vmem:[%s131 + $0x1b0] sm:$0xff] %vm31, %v6293
    %6358 = vst.msk [vmem:[%s131 + $0x1c8] sm:$0xff] %vm31, %v6294
    %6359 = vst.msk [vmem:[%s131 + $0x1d0] sm:$0xff] %vm31, %v6295
    %6360 = vst.msk [vmem:[%s131 + $0x1e8] sm:$0xff] %vm31, %v6296
    %6361 = vst.msk [vmem:[%s131 + $0x1f0] sm:$0xff] %vm31, %v6297
    %6362 = vst.msk [vmem:[%s131 + $0x248] sm:$0xff] %vm31, %v6298
    %6363 = vst.msk [vmem:[%s131 + $0x250] sm:$0xff] %vm31, %v6299
    %6364 = vst.msk [vmem:[%s131 + $0x268] sm:$0xff] %vm31, %v6300
    %6365 = vst.msk [vmem:[%s131 + $0x270] sm:$0xff] %vm31, %v6301
    %6366 = vst.msk [vmem:[%s131 + $0x288] sm:$0xff] %vm31, %v6302
    %6367 = vst.msk [vmem:[%s131 + $0x290] sm:$0xff] %vm31, %v6303
    %6368 = vst.msk [vmem:[%s131 + $0x2a8] sm:$0xff] %vm31, %v6304
    %6369 = vst.msk [vmem:[%s131 + $0x2b0] sm:$0xff] %vm31, %v6305
    %6370 = vst.msk [vmem:[%s131 + $0x2c8] sm:$0xff] %vm31, %v6306
    %6371 = vst.msk [vmem:[%s131 + $0x2d0] sm:$0xff] %vm31, %v6307
    %6372 = vst.msk [vmem:[%s131 + $0x2e8] sm:$0xff] %vm31, %v6308
    %6373 = vst.msk [vmem:[%s131 + $0x2f0] sm:$0xff] %vm31, %v6309
    %6374 = vst.msk [vmem:[%s131 + $0x308] sm:$0xff] %vm31, %v6310
    %6375 = vst.msk [vmem:[%s131 + $0x310] sm:$0xff] %vm31, %v6311
    %6376 = vst.msk [vmem:[%s131 + $0x328] sm:$0xff] %vm31, %v6312
    %6377 = vst.msk [vmem:[%s131 + $0x330] sm:$0xff] %vm31, %v6313
    %6378 = vst.msk [vmem:[%s131 + $0x348] sm:$0xff] %vm31, %v6314
    %6379 = vst.msk [vmem:[%s131 + $0x350] sm:$0xff] %vm31, %v6315
    %6380 = vst.msk [vmem:[%s131 + $0x368] sm:$0xff] %vm31, %v6316
    %6381 = vst.msk [vmem:[%s131 + $0x370] sm:$0xff] %vm31, %v6317
    %6382 = vst.msk [vmem:[%s131 + $0x388] sm:$0xff] %vm31, %v6318
    %6383 = vst.msk [vmem:[%s131 + $0x390] sm:$0xff] %vm31, %v6319
    %6384 = vst.msk [vmem:[%s131 + $0x3a8] sm:$0xff] %vm31, %v6320
    %6385 = vst.msk [vmem:[%s131 + $0x3b0] sm:$0xff] %vm31, %v6321
    %6386 = vst.msk [vmem:[%s131 + $0x3c8] sm:$0xff] %vm31, %v6322
    %6387 = vst.msk [vmem:[%s131 + $0x3d0] sm:$0xff] %vm31, %v6323
    %6388 = vst.msk [vmem:[%s131 + $0x3e8] sm:$0xff] %vm31, %v6324
    %6389 = vst.msk [vmem:[%s131 + $0x3f0] sm:$0xff] %vm31, %v6325
    %6390 = vst.msk [vmem:[%s131 + $0x408] sm:$0xff] %vm31, %v6326
    %6391 = vst.msk [vmem:[%s131 + $0x410] sm:$0xff] %vm31, %v6327
    %6392 = vst.msk [vmem:[%s131 + $0x428] sm:$0xff] %vm31, %v6328
    %6393 = vst.msk [vmem:[%s131 + $0x430] sm:$0xff] %vm31, %v6329
    %s6394 = scalar_lea.vmem [#allocation3], 7
    %v6395 = vld [vmem:[%s6394] ss:$2 sm:$0xff]
    %s6396 = scalar_lea.vmem [#allocation3], 71
    %v6397 = vld [vmem:[%s6396] ss:$2 sm:$0xff]
    %s6398 = scalar_lea.vmem [#allocation3], 135
    %v6399 = vld [vmem:[%s6398] ss:$2 sm:$0xff]
    %s6400 = scalar_lea.vmem [#allocation3], 199
    %v6401 = vld [vmem:[%s6400] ss:$2 sm:$0xff]
    %s6402 = scalar_lea.vmem [#allocation3], 263
    %v6403 = vld [vmem:[%s6402] ss:$2 sm:$0xff]
    %s6404 = scalar_lea.vmem [#allocation3], 327
    %v6405 = vld [vmem:[%s6404] ss:$2 sm:$0xff]
    %s6406 = scalar_lea.vmem [#allocation3], 391
    %v6407 = vld [vmem:[%s6406] ss:$2 sm:$0xff]
    %s6408 = scalar_lea.vmem [#allocation3], 455
    %v6409 = vld [vmem:[%s6408] ss:$2 sm:$0xff]
    %s6410 = scalar_lea.vmem [#allocation3], 583
    %v6411 = vld [vmem:[%s6410] ss:$2 sm:$0xff]
    %s6412 = scalar_lea.vmem [#allocation3], 647
    %v6413 = vld [vmem:[%s6412] ss:$2 sm:$0xff]
    %s6414 = scalar_lea.vmem [#allocation3], 711
    %v6415 = vld [vmem:[%s6414] ss:$2 sm:$0xff]
    %s6416 = scalar_lea.vmem [#allocation3], 775
    %v6417 = vld [vmem:[%s6416] ss:$2 sm:$0xff]
    %s6418 = scalar_lea.vmem [#allocation3], 839
    %v6419 = vld [vmem:[%s6418] ss:$2 sm:$0xff]
    %s6420 = scalar_lea.vmem [#allocation3], 903
    %v6421 = vld [vmem:[%s6420] ss:$2 sm:$0xff]
    %s6422 = scalar_lea.vmem [#allocation3], 967
    %v6423 = vld [vmem:[%s6422] ss:$2 sm:$0xff]
    %s6424 = scalar_lea.vmem [#allocation3], 1031
    %v6425 = vld [vmem:[%s6424] ss:$2 sm:$0xff]
    %v6426 = vpack.c.bf16 %v6397, %v6395
    %v6427 = vpack.c.bf16 %v6401, %v6399
    %v6428 = vpack.c.bf16 %v6405, %v6403
    %v6429 = vpack.c.bf16 %v6409, %v6407
    %v6430 = vpack.c.bf16 %v6413, %v6411
    %v6431 = vpack.c.bf16 %v6417, %v6415
    %v6432 = vpack.c.bf16 %v6421, %v6419
    %v6433 = vpack.c.bf16 %v6425, %v6423
    %v6434 = vld [vmem:[%s3] sm:$0xf]
    %v6435 = vld [vmem:[%s3 + $0x4] sm:$0xf]
    %v6436 = vld [vmem:[%s3 + $0x8] sm:$0xf]
    %v6437 = vld [vmem:[%s3 + $0xc] sm:$0xf]
    %s6438 = scalar_lea.vmem [#allocation3], 8
    %v6439 = vld [vmem:[%s6438] ss:$2 sm:$0xff]
    %s6440 = scalar_lea.vmem [#allocation3], 72
    %v6441 = vld [vmem:[%s6440] ss:$2 sm:$0xff]
    %s6442 = scalar_lea.vmem [#allocation3], 136
    %v6443 = vld [vmem:[%s6442] ss:$2 sm:$0xff]
    %s6444 = scalar_lea.vmem [#allocation3], 200
    %v6445 = vld [vmem:[%s6444] ss:$2 sm:$0xff]
    %s6446 = scalar_lea.vmem [#allocation3], 264
    %v6447 = vld [vmem:[%s6446] ss:$2 sm:$0xff]
    %s6448 = scalar_lea.vmem [#allocation3], 328
    %v6449 = vld [vmem:[%s6448] ss:$2 sm:$0xff]
    %s6450 = scalar_lea.vmem [#allocation3], 392
    %v6451 = vld [vmem:[%s6450] ss:$2 sm:$0xff]
    %s6452 = scalar_lea.vmem [#allocation3], 456
    %v6453 = vld [vmem:[%s6452] ss:$2 sm:$0xff]
    %s6454 = scalar_lea.vmem [#allocation3], 584
    %v6455 = vld [vmem:[%s6454] ss:$2 sm:$0xff]
    %s6456 = scalar_lea.vmem [#allocation3], 648
    %v6457 = vld [vmem:[%s6456] ss:$2 sm:$0xff]
    %s6458 = scalar_lea.vmem [#allocation3], 712
    %v6459 = vld [vmem:[%s6458] ss:$2 sm:$0xff]
    %s6460 = scalar_lea.vmem [#allocation3], 776
    %v6461 = vld [vmem:[%s6460] ss:$2 sm:$0xff]
    %s6462 = scalar_lea.vmem [#allocation3], 840
    %v6463 = vld [vmem:[%s6462] ss:$2 sm:$0xff]
    %s6464 = scalar_lea.vmem [#allocation3], 904
    %v6465 = vld [vmem:[%s6464] ss:$2 sm:$0xff]
    %s6466 = scalar_lea.vmem [#allocation3], 968
    %v6467 = vld [vmem:[%s6466] ss:$2 sm:$0xff]
    %s6468 = scalar_lea.vmem [#allocation3], 1032
    %v6469 = vld [vmem:[%s6468] ss:$2 sm:$0xff]
    %v6470 = vpack.c.bf16 %v6441, %v6439
    %v6471 = vpack.c.bf16 %v6445, %v6443
    %v6472 = vpack.c.bf16 %v6449, %v6447
    %v6473 = vpack.c.bf16 %v6453, %v6451
    %v6474 = vpack.c.bf16 %v6457, %v6455
    %v6475 = vpack.c.bf16 %v6461, %v6459
    %v6476 = vpack.c.bf16 %v6465, %v6463
    %v6477 = vpack.c.bf16 %v6469, %v6467
    %s6478 = scalar_lea.vmem %s3, 16
    %v6479 = vld [vmem:[%s6478] sm:$0xf]
    %v6480 = vld [vmem:[%s6478 + $0x4] sm:$0xf]
    %v6481 = vld [vmem:[%s6478 + $0x8] sm:$0xf]
    %v6482 = vld [vmem:[%s6478 + $0xc] sm:$0xf]
    %v6487 = vunpack.c.l.b16 %v6479
    %v6488 = vunpack.c.l.b16 %v6480
    %v6489 = vunpack.c.l.b16 %v6481
    %v6490 = vunpack.c.l.b16 %v6482
    %v6491 = vpack.c.b16 %v6488, %v6487
    %v6492 = vpack.c.b16 %v6490, %v6489
    %v6496 = vsel %vm31, %v6470, 0
    %v6499 = vsel %vm31, %v6471, 0
    %v6502 = vsel %vm31, %v6472, 0
    %v6505 = vsel %vm31, %v6473, 0
    %v6508 = vsel %vm31, %v6474, 0
    %v6511 = vsel %vm31, %v6475, 0
    %v6514 = vsel %vm31, %v6476, 0
    %v6517 = vsel %vm31, %v6477, 0
    %6519 = vmatpush.bf16.msra.mxu0 0
    %6520 = vmatpush.bf16.msra.mxu0 0
    %6521 = vmatpush.bf16.msra.mxu0 0
    %6522 = vmatpush.bf16.msra.mxu0 0
    %6523 = vmatpush.bf16.msra.mxu0 0
    %6524 = vmatpush.bf16.msra.mxu0 0
    %6525 = vmatpush.bf16.msra.mxu0 %v6492
    %6526 = vmatpush.bf16.msra.mxu0 %v6491
    %6527 = vmatmul.bf16.gmra.mxu0 %v6496
    %v6528 = vpop.f32.mrf.mxu0
    %v6529 = vadd.f32 0.0, %v6528
    %v6530 = vpop.f32.mrf.mxu0
    %v6531 = vadd.f32 0.0, %v6530
    %6532 = vmatmul.bf16.gmra.mxu0 %v6499
    %v6533 = vpop.f32.mrf.mxu0
    %v6534 = vadd.f32 0.0, %v6533
    %v6535 = vpop.f32.mrf.mxu0
    %v6536 = vadd.f32 0.0, %v6535
    %6537 = vmatmul.bf16.gmra.mxu0 %v6502
    %v6538 = vpop.f32.mrf.mxu0
    %v6539 = vadd.f32 0.0, %v6538
    %v6540 = vpop.f32.mrf.mxu0
    %v6541 = vadd.f32 0.0, %v6540
    %6542 = vmatmul.bf16.gmra.mxu0 %v6505
    %v6543 = vpop.f32.mrf.mxu0
    %v6544 = vadd.f32 0.0, %v6543
    %v6545 = vpop.f32.mrf.mxu0
    %v6546 = vadd.f32 0.0, %v6545
    %6547 = vmatmul.bf16.gmra.mxu0 %v6508
    %v6548 = vpop.f32.mrf.mxu0
    %v6549 = vadd.f32 0.0, %v6548
    %v6550 = vpop.f32.mrf.mxu0
    %v6551 = vadd.f32 0.0, %v6550
    %6552 = vmatmul.bf16.gmra.mxu0 %v6511
    %v6553 = vpop.f32.mrf.mxu0
    %v6554 = vadd.f32 0.0, %v6553
    %v6555 = vpop.f32.mrf.mxu0
    %v6556 = vadd.f32 0.0, %v6555
    %6557 = vmatmul.bf16.gmra.mxu0 %v6514
    %v6558 = vpop.f32.mrf.mxu0
    %v6559 = vadd.f32 0.0, %v6558
    %v6560 = vpop.f32.mrf.mxu0
    %v6561 = vadd.f32 0.0, %v6560
    %6562 = vmatmul.bf16.gmra.mxu0 %v6517
    %v6563 = vpop.f32.mrf.mxu0
    %v6564 = vadd.f32 0.0, %v6563
    %v6565 = vpop.f32.mrf.mxu0
    %v6566 = vadd.f32 0.0, %v6565
    %6567 = vdwg.mxu0
    %v6572 = vunpack.c.l.b16 %v6434
    %v6573 = vunpack.c.l.b16 %v6435
    %v6574 = vunpack.c.l.b16 %v6436
    %v6575 = vunpack.c.l.b16 %v6437
    %v6576 = vpack.c.b16 %v6573, %v6572
    %v6577 = vpack.c.b16 %v6575, %v6574
    %v6581 = vsel %vm31, %v6426, 0
    %v6584 = vsel %vm31, %v6427, 0
    %v6587 = vsel %vm31, %v6428, 0
    %v6590 = vsel %vm31, %v6429, 0
    %v6593 = vsel %vm31, %v6430, 0
    %v6596 = vsel %vm31, %v6431, 0
    %v6599 = vsel %vm31, %v6432, 0
    %v6602 = vsel %vm31, %v6433, 0
    %6604 = vmatpush.bf16.msra.mxu0 0
    %6605 = vmatpush.bf16.msra.mxu0 0
    %6606 = vmatpush.bf16.msra.mxu0 0
    %6607 = vmatpush.bf16.msra.mxu0 0
    %6608 = vmatpush.bf16.msra.mxu0 0
    %6609 = vmatpush.bf16.msra.mxu0 0
    %6610 = vmatpush.bf16.msra.mxu0 %v6577
    %6611 = vmatpush.bf16.msra.mxu0 %v6576
    %6612 = vmatmul.bf16.gmra.mxu0 %v6581
    %v6613 = vpop.f32.mrf.mxu0
    %v6614 = vadd.f32 %v6529, %v6613
    %v6615 = vpop.f32.mrf.mxu0
    %v6616 = vadd.f32 %v6531, %v6615
    %6617 = vmatmul.bf16.gmra.mxu0 %v6584
    %v6618 = vpop.f32.mrf.mxu0
    %v6619 = vadd.f32 %v6534, %v6618
    %v6620 = vpop.f32.mrf.mxu0
    %v6621 = vadd.f32 %v6536, %v6620
    %6622 = vmatmul.bf16.gmra.mxu0 %v6587
    %v6623 = vpop.f32.mrf.mxu0
    %v6624 = vadd.f32 %v6539, %v6623
    %v6625 = vpop.f32.mrf.mxu0
    %v6626 = vadd.f32 %v6541, %v6625
    %6627 = vmatmul.bf16.gmra.mxu0 %v6590
    %v6628 = vpop.f32.mrf.mxu0
    %v6629 = vadd.f32 %v6544, %v6628
    %v6630 = vpop.f32.mrf.mxu0
    %v6631 = vadd.f32 %v6546, %v6630
    %6632 = vmatmul.bf16.gmra.mxu0 %v6593
    %v6633 = vpop.f32.mrf.mxu0
    %v6634 = vadd.f32 %v6549, %v6633
    %v6635 = vpop.f32.mrf.mxu0
    %v6636 = vadd.f32 %v6551, %v6635
    %6637 = vmatmul.bf16.gmra.mxu0 %v6596
    %v6638 = vpop.f32.mrf.mxu0
    %v6639 = vadd.f32 %v6554, %v6638
    %v6640 = vpop.f32.mrf.mxu0
    %v6641 = vadd.f32 %v6556, %v6640
    %6642 = vmatmul.bf16.gmra.mxu0 %v6599
    %v6643 = vpop.f32.mrf.mxu0
    %v6644 = vadd.f32 %v6559, %v6643
    %v6645 = vpop.f32.mrf.mxu0
    %v6646 = vadd.f32 %v6561, %v6645
    %6647 = vmatmul.bf16.gmra.mxu0 %v6602
    %v6648 = vpop.f32.mrf.mxu0
    %v6649 = vadd.f32 %v6564, %v6648
    %v6650 = vpop.f32.mrf.mxu0
    %v6651 = vadd.f32 %v6566, %v6650
    %6652 = vdwg.mxu0
    %s6653 = scalar_lea.vmem [#allocation3], 9
    %v6654 = vld [vmem:[%s6653] ss:$2 sm:$0xff]
    %s6655 = scalar_lea.vmem [#allocation3], 73
    %v6656 = vld [vmem:[%s6655] ss:$2 sm:$0xff]
    %s6657 = scalar_lea.vmem [#allocation3], 137
    %v6658 = vld [vmem:[%s6657] ss:$2 sm:$0xff]
    %s6659 = scalar_lea.vmem [#allocation3], 201
    %v6660 = vld [vmem:[%s6659] ss:$2 sm:$0xff]
    %s6661 = scalar_lea.vmem [#allocation3], 265
    %v6662 = vld [vmem:[%s6661] ss:$2 sm:$0xff]
    %s6663 = scalar_lea.vmem [#allocation3], 329
    %v6664 = vld [vmem:[%s6663] ss:$2 sm:$0xff]
    %s6665 = scalar_lea.vmem [#allocation3], 393
    %v6666 = vld [vmem:[%s6665] ss:$2 sm:$0xff]
    %s6667 = scalar_lea.vmem [#allocation3], 457
    %v6668 = vld [vmem:[%s6667] ss:$2 sm:$0xff]
    %s6669 = scalar_lea.vmem [#allocation3], 585
    %v6670 = vld [vmem:[%s6669] ss:$2 sm:$0xff]
    %s6671 = scalar_lea.vmem [#allocation3], 649
    %v6672 = vld [vmem:[%s6671] ss:$2 sm:$0xff]
    %s6673 = scalar_lea.vmem [#allocation3], 713
    %v6674 = vld [vmem:[%s6673] ss:$2 sm:$0xff]
    %s6675 = scalar_lea.vmem [#allocation3], 777
    %v6676 = vld [vmem:[%s6675] ss:$2 sm:$0xff]
    %s6677 = scalar_lea.vmem [#allocation3], 841
    %v6678 = vld [vmem:[%s6677] ss:$2 sm:$0xff]
    %s6679 = scalar_lea.vmem [#allocation3], 905
    %v6680 = vld [vmem:[%s6679] ss:$2 sm:$0xff]
    %s6681 = scalar_lea.vmem [#allocation3], 969
    %v6682 = vld [vmem:[%s6681] ss:$2 sm:$0xff]
    %s6683 = scalar_lea.vmem [#allocation3], 1033
    %v6684 = vld [vmem:[%s6683] ss:$2 sm:$0xff]
    %v6685 = vpack.c.bf16 %v6656, %v6654
    %v6686 = vpack.c.bf16 %v6660, %v6658
    %v6687 = vpack.c.bf16 %v6664, %v6662
    %v6688 = vpack.c.bf16 %v6668, %v6666
    %v6689 = vpack.c.bf16 %v6672, %v6670
    %v6690 = vpack.c.bf16 %v6676, %v6674
    %v6691 = vpack.c.bf16 %v6680, %v6678
    %v6692 = vpack.c.bf16 %v6684, %v6682
    %s6693 = scalar_lea.vmem %s3, 32
    %v6694 = vld [vmem:[%s6693] sm:$0xf]
    %v6695 = vld [vmem:[%s6693 + $0x4] sm:$0xf]
    %v6696 = vld [vmem:[%s6693 + $0x8] sm:$0xf]
    %v6697 = vld [vmem:[%s6693 + $0xc] sm:$0xf]
    %v6702 = vunpack.c.l.b16 %v6694
    %v6703 = vunpack.c.l.b16 %v6695
    %v6704 = vunpack.c.l.b16 %v6696
    %v6705 = vunpack.c.l.b16 %v6697
    %v6706 = vpack.c.b16 %v6703, %v6702
    %v6707 = vpack.c.b16 %v6705, %v6704
    %v6711 = vsel %vm31, %v6685, 0
    %v6714 = vsel %vm31, %v6686, 0
    %v6717 = vsel %vm31, %v6687, 0
    %v6720 = vsel %vm31, %v6688, 0
    %v6723 = vsel %vm31, %v6689, 0
    %v6726 = vsel %vm31, %v6690, 0
    %v6729 = vsel %vm31, %v6691, 0
    %v6732 = vsel %vm31, %v6692, 0
    %6734 = vmatpush.bf16.msra.mxu0 0
    %6735 = vmatpush.bf16.msra.mxu0 0
    %6736 = vmatpush.bf16.msra.mxu0 0
    %6737 = vmatpush.bf16.msra.mxu0 0
    %6738 = vmatpush.bf16.msra.mxu0 0
    %6739 = vmatpush.bf16.msra.mxu0 0
    %6740 = vmatpush.bf16.msra.mxu0 %v6707
    %6741 = vmatpush.bf16.msra.mxu0 %v6706
    %6742 = vmatmul.bf16.gmra.mxu0 %v6711
    %v6743 = vpop.f32.mrf.mxu0
    %v6744 = vadd.f32 0.0, %v6743
    %v6745 = vpop.f32.mrf.mxu0
    %v6746 = vadd.f32 0.0, %v6745
    %6747 = vmatmul.bf16.gmra.mxu0 %v6714
    %v6748 = vpop.f32.mrf.mxu0
    %v6749 = vadd.f32 0.0, %v6748
    %v6750 = vpop.f32.mrf.mxu0
    %v6751 = vadd.f32 0.0, %v6750
    %6752 = vmatmul.bf16.gmra.mxu0 %v6717
    %v6753 = vpop.f32.mrf.mxu0
    %v6754 = vadd.f32 0.0, %v6753
    %v6755 = vpop.f32.mrf.mxu0
    %v6756 = vadd.f32 0.0, %v6755
    %6757 = vmatmul.bf16.gmra.mxu0 %v6720
    %v6758 = vpop.f32.mrf.mxu0
    %v6759 = vadd.f32 0.0, %v6758
    %v6760 = vpop.f32.mrf.mxu0
    %v6761 = vadd.f32 0.0, %v6760
    %6762 = vmatmul.bf16.gmra.mxu0 %v6723
    %v6763 = vpop.f32.mrf.mxu0
    %v6764 = vadd.f32 0.0, %v6763
    %v6765 = vpop.f32.mrf.mxu0
    %v6766 = vadd.f32 0.0, %v6765
    %6767 = vmatmul.bf16.gmra.mxu0 %v6726
    %v6768 = vpop.f32.mrf.mxu0
    %v6769 = vadd.f32 0.0, %v6768
    %v6770 = vpop.f32.mrf.mxu0
    %v6771 = vadd.f32 0.0, %v6770
    %6772 = vmatmul.bf16.gmra.mxu0 %v6729
    %v6773 = vpop.f32.mrf.mxu0
    %v6774 = vadd.f32 0.0, %v6773
    %v6775 = vpop.f32.mrf.mxu0
    %v6776 = vadd.f32 0.0, %v6775
    %6777 = vmatmul.bf16.gmra.mxu0 %v6732
    %v6778 = vpop.f32.mrf.mxu0
    %v6779 = vadd.f32 0.0, %v6778
    %v6780 = vpop.f32.mrf.mxu0
    %v6781 = vadd.f32 0.0, %v6780
    %6782 = vdwg.mxu0
    %v6783 = vadd.f32 %v6614, %v6744
    %v6784 = vadd.f32 %v6616, %v6746
    %v6785 = vadd.f32 %v6619, %v6749
    %v6786 = vadd.f32 %v6621, %v6751
    %v6787 = vadd.f32 %v6624, %v6754
    %v6788 = vadd.f32 %v6626, %v6756
    %v6789 = vadd.f32 %v6629, %v6759
    %v6790 = vadd.f32 %v6631, %v6761
    %v6791 = vadd.f32 %v6634, %v6764
    %v6792 = vadd.f32 %v6636, %v6766
    %v6793 = vadd.f32 %v6639, %v6769
    %v6794 = vadd.f32 %v6641, %v6771
    %v6795 = vadd.f32 %v6644, %v6774
    %v6796 = vadd.f32 %v6646, %v6776
    %v6797 = vadd.f32 %v6649, %v6779
    %v6798 = vadd.f32 %v6651, %v6781
    %s6799 = scalar_lea.vmem %s131, 7 [#allocation3]
    %v6800 = vld [vmem:[%s6799] ss:$2 sm:$0xff]
    %s6801 = scalar_lea.vmem %s131, 71 [#allocation3]
    %v6802 = vld [vmem:[%s6801] ss:$2 sm:$0xff]
    %s6803 = scalar_lea.vmem %s131, 135 [#allocation3]
    %v6804 = vld [vmem:[%s6803] ss:$2 sm:$0xff]
    %s6805 = scalar_lea.vmem %s131, 199 [#allocation3]
    %v6806 = vld [vmem:[%s6805] ss:$2 sm:$0xff]
    %s6807 = scalar_lea.vmem %s131, 263 [#allocation3]
    %v6808 = vld [vmem:[%s6807] ss:$2 sm:$0xff]
    %s6809 = scalar_lea.vmem %s131, 327 [#allocation3]
    %v6810 = vld [vmem:[%s6809] ss:$2 sm:$0xff]
    %s6811 = scalar_lea.vmem %s131, 391 [#allocation3]
    %v6812 = vld [vmem:[%s6811] ss:$2 sm:$0xff]
    %s6813 = scalar_lea.vmem %s131, 455 [#allocation3]
    %v6814 = vld [vmem:[%s6813] ss:$2 sm:$0xff]
    %s6815 = scalar_lea.vmem %s131, 583 [#allocation3]
    %v6816 = vld [vmem:[%s6815] ss:$2 sm:$0xff]
    %s6817 = scalar_lea.vmem %s131, 647 [#allocation3]
    %v6818 = vld [vmem:[%s6817] ss:$2 sm:$0xff]
    %s6819 = scalar_lea.vmem %s131, 711 [#allocation3]
    %v6820 = vld [vmem:[%s6819] ss:$2 sm:$0xff]
    %s6821 = scalar_lea.vmem %s131, 775 [#allocation3]
    %v6822 = vld [vmem:[%s6821] ss:$2 sm:$0xff]
    %s6823 = scalar_lea.vmem %s131, 839 [#allocation3]
    %v6824 = vld [vmem:[%s6823] ss:$2 sm:$0xff]
    %s6825 = scalar_lea.vmem %s131, 903 [#allocation3]
    %v6826 = vld [vmem:[%s6825] ss:$2 sm:$0xff]
    %s6827 = scalar_lea.vmem %s131, 967 [#allocation3]
    %v6828 = vld [vmem:[%s6827] ss:$2 sm:$0xff]
    %s6829 = scalar_lea.vmem %s131, 1031 [#allocation3]
    %v6830 = vld [vmem:[%s6829] ss:$2 sm:$0xff]
    %v6831 = vpack.c.bf16 %v6802, %v6800
    %v6832 = vpack.c.bf16 %v6806, %v6804
    %v6833 = vpack.c.bf16 %v6810, %v6808
    %v6834 = vpack.c.bf16 %v6814, %v6812
    %v6835 = vpack.c.bf16 %v6818, %v6816
    %v6836 = vpack.c.bf16 %v6822, %v6820
    %v6837 = vpack.c.bf16 %v6826, %v6824
    %v6838 = vpack.c.bf16 %v6830, %v6828
    %s6839 = scalar_lea.vmem %s3, 48
    %v6840 = vld [vmem:[%s6839] sm:$0xf]
    %v6841 = vld [vmem:[%s6839 + $0x4] sm:$0xf]
    %v6842 = vld [vmem:[%s6839 + $0x8] sm:$0xf]
    %v6843 = vld [vmem:[%s6839 + $0xc] sm:$0xf]
    %v6848 = vunpack.c.l.b16 %v6840
    %v6849 = vunpack.c.l.b16 %v6841
    %v6850 = vunpack.c.l.b16 %v6842
    %v6851 = vunpack.c.l.b16 %v6843
    %v6852 = vpack.c.b16 %v6849, %v6848
    %v6853 = vpack.c.b16 %v6851, %v6850
    %v6857 = vsel %vm31, %v6831, 0
    %v6860 = vsel %vm31, %v6832, 0
    %v6863 = vsel %vm31, %v6833, 0
    %v6866 = vsel %vm31, %v6834, 0
    %v6869 = vsel %vm31, %v6835, 0
    %v6872 = vsel %vm31, %v6836, 0
    %v6875 = vsel %vm31, %v6837, 0
    %v6878 = vsel %vm31, %v6838, 0
    %6880 = vmatpush.bf16.msra.mxu0 0
    %6881 = vmatpush.bf16.msra.mxu0 0
    %6882 = vmatpush.bf16.msra.mxu0 0
    %6883 = vmatpush.bf16.msra.mxu0 0
    %6884 = vmatpush.bf16.msra.mxu0 0
    %6885 = vmatpush.bf16.msra.mxu0 0
    %6886 = vmatpush.bf16.msra.mxu0 %v6853
    %6887 = vmatpush.bf16.msra.mxu0 %v6852
    %6888 = vmatmul.bf16.gmra.mxu0 %v6857
    %v6889 = vpop.f32.mrf.mxu0
    %v6890 = vadd.f32 0.0, %v6889
    %v6891 = vpop.f32.mrf.mxu0
    %v6892 = vadd.f32 0.0, %v6891
    %6893 = vmatmul.bf16.gmra.mxu0 %v6860
    %v6894 = vpop.f32.mrf.mxu0
    %v6895 = vadd.f32 0.0, %v6894
    %v6896 = vpop.f32.mrf.mxu0
    %v6897 = vadd.f32 0.0, %v6896
    %6898 = vmatmul.bf16.gmra.mxu0 %v6863
    %v6899 = vpop.f32.mrf.mxu0
    %v6900 = vadd.f32 0.0, %v6899
    %v6901 = vpop.f32.mrf.mxu0
    %v6902 = vadd.f32 0.0, %v6901
    %6903 = vmatmul.bf16.gmra.mxu0 %v6866
    %v6904 = vpop.f32.mrf.mxu0
    %v6905 = vadd.f32 0.0, %v6904
    %v6906 = vpop.f32.mrf.mxu0
    %v6907 = vadd.f32 0.0, %v6906
    %6908 = vmatmul.bf16.gmra.mxu0 %v6869
    %v6909 = vpop.f32.mrf.mxu0
    %v6910 = vadd.f32 0.0, %v6909
    %v6911 = vpop.f32.mrf.mxu0
    %v6912 = vadd.f32 0.0, %v6911
    %6913 = vmatmul.bf16.gmra.mxu0 %v6872
    %v6914 = vpop.f32.mrf.mxu0
    %v6915 = vadd.f32 0.0, %v6914
    %v6916 = vpop.f32.mrf.mxu0
    %v6917 = vadd.f32 0.0, %v6916
    %6918 = vmatmul.bf16.gmra.mxu0 %v6875
    %v6919 = vpop.f32.mrf.mxu0
    %v6920 = vadd.f32 0.0, %v6919
    %v6921 = vpop.f32.mrf.mxu0
    %v6922 = vadd.f32 0.0, %v6921
    %6923 = vmatmul.bf16.gmra.mxu0 %v6878
    %v6924 = vpop.f32.mrf.mxu0
    %v6925 = vadd.f32 0.0, %v6924
    %v6926 = vpop.f32.mrf.mxu0
    %v6927 = vadd.f32 0.0, %v6926
    %6928 = vdwg.mxu0
    %v6929 = vadd.f32 %v6783, %v6890
    %v6930 = vadd.f32 %v6784, %v6892
    %v6931 = vadd.f32 %v6785, %v6895
    %v6932 = vadd.f32 %v6786, %v6897
    %v6933 = vadd.f32 %v6787, %v6900
    %v6934 = vadd.f32 %v6788, %v6902
    %v6935 = vadd.f32 %v6789, %v6905
    %v6936 = vadd.f32 %v6790, %v6907
    %v6937 = vadd.f32 %v6791, %v6910
    %v6938 = vadd.f32 %v6792, %v6912
    %v6939 = vadd.f32 %v6793, %v6915
    %v6940 = vadd.f32 %v6794, %v6917
    %v6941 = vadd.f32 %v6795, %v6920
    %v6942 = vadd.f32 %v6796, %v6922
    %v6943 = vadd.f32 %v6797, %v6925
    %v6944 = vadd.f32 %v6798, %v6927
    %s6945 = scalar_lea.vmem %s131, 8 [#allocation3]
    %v6946 = vld [vmem:[%s6945] ss:$2 sm:$0xff]
    %s6947 = scalar_lea.vmem %s131, 72 [#allocation3]
    %v6948 = vld [vmem:[%s6947] ss:$2 sm:$0xff]
    %s6949 = scalar_lea.vmem %s131, 136 [#allocation3]
    %v6950 = vld [vmem:[%s6949] ss:$2 sm:$0xff]
    %s6951 = scalar_lea.vmem %s131, 200 [#allocation3]
    %v6952 = vld [vmem:[%s6951] ss:$2 sm:$0xff]
    %s6953 = scalar_lea.vmem %s131, 264 [#allocation3]
    %v6954 = vld [vmem:[%s6953] ss:$2 sm:$0xff]
    %s6955 = scalar_lea.vmem %s131, 328 [#allocation3]
    %v6956 = vld [vmem:[%s6955] ss:$2 sm:$0xff]
    %s6957 = scalar_lea.vmem %s131, 392 [#allocation3]
    %v6958 = vld [vmem:[%s6957] ss:$2 sm:$0xff]
    %s6959 = scalar_lea.vmem %s131, 456 [#allocation3]
    %v6960 = vld [vmem:[%s6959] ss:$2 sm:$0xff]
    %s6961 = scalar_lea.vmem %s131, 584 [#allocation3]
    %v6962 = vld [vmem:[%s6961] ss:$2 sm:$0xff]
    %s6963 = scalar_lea.vmem %s131, 648 [#allocation3]
    %v6964 = vld [vmem:[%s6963] ss:$2 sm:$0xff]
    %s6965 = scalar_lea.vmem %s131, 712 [#allocation3]
    %v6966 = vld [vmem:[%s6965] ss:$2 sm:$0xff]
    %s6967 = scalar_lea.vmem %s131, 776 [#allocation3]
    %v6968 = vld [vmem:[%s6967] ss:$2 sm:$0xff]
    %s6969 = scalar_lea.vmem %s131, 840 [#allocation3]
    %v6970 = vld [vmem:[%s6969] ss:$2 sm:$0xff]
    %s6971 = scalar_lea.vmem %s131, 904 [#allocation3]
    %v6972 = vld [vmem:[%s6971] ss:$2 sm:$0xff]
    %s6973 = scalar_lea.vmem %s131, 968 [#allocation3]
    %v6974 = vld [vmem:[%s6973] ss:$2 sm:$0xff]
    %s6975 = scalar_lea.vmem %s131, 1032 [#allocation3]
    %v6976 = vld [vmem:[%s6975] ss:$2 sm:$0xff]
    %v6977 = vpack.c.bf16 %v6948, %v6946
    %v6978 = vpack.c.bf16 %v6952, %v6950
    %v6979 = vpack.c.bf16 %v6956, %v6954
    %v6980 = vpack.c.bf16 %v6960, %v6958
    %v6981 = vpack.c.bf16 %v6964, %v6962
    %v6982 = vpack.c.bf16 %v6968, %v6966
    %v6983 = vpack.c.bf16 %v6972, %v6970
    %v6984 = vpack.c.bf16 %v6976, %v6974
    %s6985 = scalar_lea.vmem %s3, 64
    %v6986 = vld [vmem:[%s6985] sm:$0xf]
    %v6987 = vld [vmem:[%s6985 + $0x4] sm:$0xf]
    %v6988 = vld [vmem:[%s6985 + $0x8] sm:$0xf]
    %v6989 = vld [vmem:[%s6985 + $0xc] sm:$0xf]
    %v6994 = vunpack.c.l.b16 %v6986
    %v6995 = vunpack.c.l.b16 %v6987
    %v6996 = vunpack.c.l.b16 %v6988
    %v6997 = vunpack.c.l.b16 %v6989
    %v6998 = vpack.c.b16 %v6995, %v6994
    %v6999 = vpack.c.b16 %v6997, %v6996
    %v7003 = vsel %vm31, %v6977, 0
    %v7006 = vsel %vm31, %v6978, 0
    %v7009 = vsel %vm31, %v6979, 0
    %v7012 = vsel %vm31, %v6980, 0
    %v7015 = vsel %vm31, %v6981, 0
    %v7018 = vsel %vm31, %v6982, 0
    %v7021 = vsel %vm31, %v6983, 0
    %v7024 = vsel %vm31, %v6984, 0
    %7026 = vmatpush.bf16.msra.mxu0 0
    %7027 = vmatpush.bf16.msra.mxu0 0
    %7028 = vmatpush.bf16.msra.mxu0 0
    %7029 = vmatpush.bf16.msra.mxu0 0
    %7030 = vmatpush.bf16.msra.mxu0 0
    %7031 = vmatpush.bf16.msra.mxu0 0
    %7032 = vmatpush.bf16.msra.mxu0 %v6999
    %7033 = vmatpush.bf16.msra.mxu0 %v6998
    %7034 = vmatmul.bf16.gmra.mxu0 %v7003
    %v7035 = vpop.f32.mrf.mxu0
    %v7036 = vadd.f32 0.0, %v7035
    %v7037 = vpop.f32.mrf.mxu0
    %v7038 = vadd.f32 0.0, %v7037
    %7039 = vmatmul.bf16.gmra.mxu0 %v7006
    %v7040 = vpop.f32.mrf.mxu0
    %v7041 = vadd.f32 0.0, %v7040
    %v7042 = vpop.f32.mrf.mxu0
    %v7043 = vadd.f32 0.0, %v7042
    %7044 = vmatmul.bf16.gmra.mxu0 %v7009
    %v7045 = vpop.f32.mrf.mxu0
    %v7046 = vadd.f32 0.0, %v7045
    %v7047 = vpop.f32.mrf.mxu0
    %v7048 = vadd.f32 0.0, %v7047
    %7049 = vmatmul.bf16.gmra.mxu0 %v7012
    %v7050 = vpop.f32.mrf.mxu0
    %v7051 = vadd.f32 0.0, %v7050
    %v7052 = vpop.f32.mrf.mxu0
    %v7053 = vadd.f32 0.0, %v7052
    %7054 = vmatmul.bf16.gmra.mxu0 %v7015
    %v7055 = vpop.f32.mrf.mxu0
    %v7056 = vadd.f32 0.0, %v7055
    %v7057 = vpop.f32.mrf.mxu0
    %v7058 = vadd.f32 0.0, %v7057
    %7059 = vmatmul.bf16.gmra.mxu0 %v7018
    %v7060 = vpop.f32.mrf.mxu0
    %v7061 = vadd.f32 0.0, %v7060
    %v7062 = vpop.f32.mrf.mxu0
    %v7063 = vadd.f32 0.0, %v7062
    %7064 = vmatmul.bf16.gmra.mxu0 %v7021
    %v7065 = vpop.f32.mrf.mxu0
    %v7066 = vadd.f32 0.0, %v7065
    %v7067 = vpop.f32.mrf.mxu0
    %v7068 = vadd.f32 0.0, %v7067
    %7069 = vmatmul.bf16.gmra.mxu0 %v7024
    %v7070 = vpop.f32.mrf.mxu0
    %v7071 = vadd.f32 0.0, %v7070
    %v7072 = vpop.f32.mrf.mxu0
    %v7073 = vadd.f32 0.0, %v7072
    %7074 = vdwg.mxu0
    %v7075 = vadd.f32 %v6929, %v7036
    %v7076 = vadd.f32 %v6930, %v7038
    %v7077 = vadd.f32 %v6931, %v7041
    %v7078 = vadd.f32 %v6932, %v7043
    %v7079 = vadd.f32 %v6933, %v7046
    %v7080 = vadd.f32 %v6934, %v7048
    %v7081 = vadd.f32 %v6935, %v7051
    %v7082 = vadd.f32 %v6936, %v7053
    %v7083 = vadd.f32 %v6937, %v7056
    %v7084 = vadd.f32 %v6938, %v7058
    %v7085 = vadd.f32 %v6939, %v7061
    %v7086 = vadd.f32 %v6940, %v7063
    %v7087 = vadd.f32 %v6941, %v7066
    %v7088 = vadd.f32 %v6942, %v7068
    %v7089 = vadd.f32 %v6943, %v7071
    %v7090 = vadd.f32 %v6944, %v7073
    %s7091 = scalar_lea.vmem %s131, 9 [#allocation3]
    %v7092 = vld [vmem:[%s7091] ss:$2 sm:$0xff]
    %s7093 = scalar_lea.vmem %s131, 73 [#allocation3]
    %v7094 = vld [vmem:[%s7093] ss:$2 sm:$0xff]
    %s7095 = scalar_lea.vmem %s131, 137 [#allocation3]
    %v7096 = vld [vmem:[%s7095] ss:$2 sm:$0xff]
    %s7097 = scalar_lea.vmem %s131, 201 [#allocation3]
    %v7098 = vld [vmem:[%s7097] ss:$2 sm:$0xff]
    %s7099 = scalar_lea.vmem %s131, 265 [#allocation3]
    %v7100 = vld [vmem:[%s7099] ss:$2 sm:$0xff]
    %s7101 = scalar_lea.vmem %s131, 329 [#allocation3]
    %v7102 = vld [vmem:[%s7101] ss:$2 sm:$0xff]
    %s7103 = scalar_lea.vmem %s131, 393 [#allocation3]
    %v7104 = vld [vmem:[%s7103] ss:$2 sm:$0xff]
    %s7105 = scalar_lea.vmem %s131, 457 [#allocation3]
    %v7106 = vld [vmem:[%s7105] ss:$2 sm:$0xff]
    %s7107 = scalar_lea.vmem %s131, 585 [#allocation3]
    %v7108 = vld [vmem:[%s7107] ss:$2 sm:$0xff]
    %s7109 = scalar_lea.vmem %s131, 649 [#allocation3]
    %v7110 = vld [vmem:[%s7109] ss:$2 sm:$0xff]
    %s7111 = scalar_lea.vmem %s131, 713 [#allocation3]
    %v7112 = vld [vmem:[%s7111] ss:$2 sm:$0xff]
    %s7113 = scalar_lea.vmem %s131, 777 [#allocation3]
    %v7114 = vld [vmem:[%s7113] ss:$2 sm:$0xff]
    %s7115 = scalar_lea.vmem %s131, 841 [#allocation3]
    %v7116 = vld [vmem:[%s7115] ss:$2 sm:$0xff]
    %s7117 = scalar_lea.vmem %s131, 905 [#allocation3]
    %v7118 = vld [vmem:[%s7117] ss:$2 sm:$0xff]
    %s7119 = scalar_lea.vmem %s131, 969 [#allocation3]
    %v7120 = vld [vmem:[%s7119] ss:$2 sm:$0xff]
    %s7121 = scalar_lea.vmem %s131, 1033 [#allocation3]
    %v7122 = vld [vmem:[%s7121] ss:$2 sm:$0xff]
    %v7123 = vpack.c.bf16 %v7094, %v7092
    %v7124 = vpack.c.bf16 %v7098, %v7096
    %v7125 = vpack.c.bf16 %v7102, %v7100
    %v7126 = vpack.c.bf16 %v7106, %v7104
    %v7127 = vpack.c.bf16 %v7110, %v7108
    %v7128 = vpack.c.bf16 %v7114, %v7112
    %v7129 = vpack.c.bf16 %v7118, %v7116
    %v7130 = vpack.c.bf16 %v7122, %v7120
    %s7131 = scalar_lea.vmem %s3, 80
    %v7132 = vld [vmem:[%s7131] sm:$0xf]
    %v7133 = vld [vmem:[%s7131 + $0x4] sm:$0xf]
    %v7134 = vld [vmem:[%s7131 + $0x8] sm:$0xf]
    %v7135 = vld [vmem:[%s7131 + $0xc] sm:$0xf]
    %v7140 = vunpack.c.l.b16 %v7132
    %v7141 = vunpack.c.l.b16 %v7133
    %v7142 = vunpack.c.l.b16 %v7134
    %v7143 = vunpack.c.l.b16 %v7135
    %v7144 = vpack.c.b16 %v7141, %v7140
    %v7145 = vpack.c.b16 %v7143, %v7142
    %v7149 = vsel %vm31, %v7123, 0
    %v7152 = vsel %vm31, %v7124, 0
    %v7155 = vsel %vm31, %v7125, 0
    %v7158 = vsel %vm31, %v7126, 0
    %v7161 = vsel %vm31, %v7127, 0
    %v7164 = vsel %vm31, %v7128, 0
    %v7167 = vsel %vm31, %v7129, 0
    %v7170 = vsel %vm31, %v7130, 0
    %7172 = vmatpush.bf16.msra.mxu0 0
    %7173 = vmatpush.bf16.msra.mxu0 0
    %7174 = vmatpush.bf16.msra.mxu0 0
    %7175 = vmatpush.bf16.msra.mxu0 0
    %7176 = vmatpush.bf16.msra.mxu0 0
    %7177 = vmatpush.bf16.msra.mxu0 0
    %7178 = vmatpush.bf16.msra.mxu0 %v7145
    %7179 = vmatpush.bf16.msra.mxu0 %v7144
    %7180 = vmatmul.bf16.gmra.mxu0 %v7149
    %v7181 = vpop.f32.mrf.mxu0
    %v7182 = vadd.f32 0.0, %v7181
    %v7183 = vpop.f32.mrf.mxu0
    %v7184 = vadd.f32 0.0, %v7183
    %7185 = vmatmul.bf16.gmra.mxu0 %v7152
    %v7186 = vpop.f32.mrf.mxu0
    %v7187 = vadd.f32 0.0, %v7186
    %v7188 = vpop.f32.mrf.mxu0
    %v7189 = vadd.f32 0.0, %v7188
    %7190 = vmatmul.bf16.gmra.mxu0 %v7155
    %v7191 = vpop.f32.mrf.mxu0
    %v7192 = vadd.f32 0.0, %v7191
    %v7193 = vpop.f32.mrf.mxu0
    %v7194 = vadd.f32 0.0, %v7193
    %7195 = vmatmul.bf16.gmra.mxu0 %v7158
    %v7196 = vpop.f32.mrf.mxu0
    %v7197 = vadd.f32 0.0, %v7196
    %v7198 = vpop.f32.mrf.mxu0
    %v7199 = vadd.f32 0.0, %v7198
    %7200 = vmatmul.bf16.gmra.mxu0 %v7161
    %v7201 = vpop.f32.mrf.mxu0
    %v7202 = vadd.f32 0.0, %v7201
    %v7203 = vpop.f32.mrf.mxu0
    %v7204 = vadd.f32 0.0, %v7203
    %7205 = vmatmul.bf16.gmra.mxu0 %v7164
    %v7206 = vpop.f32.mrf.mxu0
    %v7207 = vadd.f32 0.0, %v7206
    %v7208 = vpop.f32.mrf.mxu0
    %v7209 = vadd.f32 0.0, %v7208
    %7210 = vmatmul.bf16.gmra.mxu0 %v7167
    %v7211 = vpop.f32.mrf.mxu0
    %v7212 = vadd.f32 0.0, %v7211
    %v7213 = vpop.f32.mrf.mxu0
    %v7214 = vadd.f32 0.0, %v7213
    %7215 = vmatmul.bf16.gmra.mxu0 %v7170
    %v7216 = vpop.f32.mrf.mxu0
    %v7217 = vadd.f32 0.0, %v7216
    %v7218 = vpop.f32.mrf.mxu0
    %v7219 = vadd.f32 0.0, %v7218
    %7220 = vdwg.mxu0
    %v7221 = vadd.f32 %v7075, %v7182
    %v7222 = vadd.f32 %v7076, %v7184
    %v7223 = vadd.f32 %v7077, %v7187
    %v7224 = vadd.f32 %v7078, %v7189
    %v7225 = vadd.f32 %v7079, %v7192
    %v7226 = vadd.f32 %v7080, %v7194
    %v7227 = vadd.f32 %v7081, %v7197
    %v7228 = vadd.f32 %v7082, %v7199
    %v7229 = vadd.f32 %v7083, %v7202
    %v7230 = vadd.f32 %v7084, %v7204
    %v7231 = vadd.f32 %v7085, %v7207
    %v7232 = vadd.f32 %v7086, %v7209
    %v7233 = vadd.f32 %v7087, %v7212
    %v7234 = vadd.f32 %v7088, %v7214
    %v7235 = vadd.f32 %v7089, %v7217
    %v7236 = vadd.f32 %v7090, %v7219
    %s7237 = scalar_lea.vmem [#allocation3], 64
    %s7238 = scalar_lea.vmem %s7237, 7 [#allocation3]
    %v7239 = vld [vmem:[%s7238] ss:$2 sm:$0xff]
    %s7240 = scalar_lea.vmem %s7237, 71 [#allocation3]
    %v7241 = vld [vmem:[%s7240] ss:$2 sm:$0xff]
    %s7242 = scalar_lea.vmem %s7237, 135 [#allocation3]
    %v7243 = vld [vmem:[%s7242] ss:$2 sm:$0xff]
    %s7244 = scalar_lea.vmem %s7237, 199 [#allocation3]
    %v7245 = vld [vmem:[%s7244] ss:$2 sm:$0xff]
    %s7246 = scalar_lea.vmem %s7237, 263 [#allocation3]
    %v7247 = vld [vmem:[%s7246] ss:$2 sm:$0xff]
    %s7248 = scalar_lea.vmem %s7237, 327 [#allocation3]
    %v7249 = vld [vmem:[%s7248] ss:$2 sm:$0xff]
    %s7250 = scalar_lea.vmem %s7237, 391 [#allocation3]
    %v7251 = vld [vmem:[%s7250] ss:$2 sm:$0xff]
    %s7252 = scalar_lea.vmem %s7237, 455 [#allocation3]
    %v7253 = vld [vmem:[%s7252] ss:$2 sm:$0xff]
    %s7254 = scalar_lea.vmem %s7237, 583 [#allocation3]
    %v7255 = vld [vmem:[%s7254] ss:$2 sm:$0xff]
    %s7256 = scalar_lea.vmem %s7237, 647 [#allocation3]
    %v7257 = vld [vmem:[%s7256] ss:$2 sm:$0xff]
    %s7258 = scalar_lea.vmem %s7237, 711 [#allocation3]
    %v7259 = vld [vmem:[%s7258] ss:$2 sm:$0xff]
    %s7260 = scalar_lea.vmem %s7237, 775 [#allocation3]
    %v7261 = vld [vmem:[%s7260] ss:$2 sm:$0xff]
    %s7262 = scalar_lea.vmem %s7237, 839 [#allocation3]
    %v7263 = vld [vmem:[%s7262] ss:$2 sm:$0xff]
    %s7264 = scalar_lea.vmem %s7237, 903 [#allocation3]
    %v7265 = vld [vmem:[%s7264] ss:$2 sm:$0xff]
    %s7266 = scalar_lea.vmem %s7237, 967 [#allocation3]
    %v7267 = vld [vmem:[%s7266] ss:$2 sm:$0xff]
    %s7268 = scalar_lea.vmem %s7237, 1031 [#allocation3]
    %v7269 = vld [vmem:[%s7268] ss:$2 sm:$0xff]
    %v7270 = vpack.c.bf16 %v7241, %v7239
    %v7271 = vpack.c.bf16 %v7245, %v7243
    %v7272 = vpack.c.bf16 %v7249, %v7247
    %v7273 = vpack.c.bf16 %v7253, %v7251
    %v7274 = vpack.c.bf16 %v7257, %v7255
    %v7275 = vpack.c.bf16 %v7261, %v7259
    %v7276 = vpack.c.bf16 %v7265, %v7263
    %v7277 = vpack.c.bf16 %v7269, %v7267
    %s7278 = scalar_lea.vmem %s3, 96
    %v7279 = vld [vmem:[%s7278] sm:$0xf]
    %v7280 = vld [vmem:[%s7278 + $0x4] sm:$0xf]
    %v7281 = vld [vmem:[%s7278 + $0x8] sm:$0xf]
    %v7282 = vld [vmem:[%s7278 + $0xc] sm:$0xf]
    %v7287 = vunpack.c.l.b16 %v7279
    %v7288 = vunpack.c.l.b16 %v7280
    %v7289 = vunpack.c.l.b16 %v7281
    %v7290 = vunpack.c.l.b16 %v7282
    %v7291 = vpack.c.b16 %v7288, %v7287
    %v7292 = vpack.c.b16 %v7290, %v7289
    %v7296 = vsel %vm31, %v7270, 0
    %v7299 = vsel %vm31, %v7271, 0
    %v7302 = vsel %vm31, %v7272, 0
    %v7305 = vsel %vm31, %v7273, 0
    %v7308 = vsel %vm31, %v7274, 0
    %v7311 = vsel %vm31, %v7275, 0
    %v7314 = vsel %vm31, %v7276, 0
    %v7317 = vsel %vm31, %v7277, 0
    %7319 = vmatpush.bf16.msra.mxu0 0
    %7320 = vmatpush.bf16.msra.mxu0 0
    %7321 = vmatpush.bf16.msra.mxu0 0
    %7322 = vmatpush.bf16.msra.mxu0 0
    %7323 = vmatpush.bf16.msra.mxu0 0
    %7324 = vmatpush.bf16.msra.mxu0 0
    %7325 = vmatpush.bf16.msra.mxu0 %v7292
    %7326 = vmatpush.bf16.msra.mxu0 %v7291
    %7327 = vmatmul.bf16.gmra.mxu0 %v7296
    %v7328 = vpop.f32.mrf.mxu0
    %v7329 = vadd.f32 0.0, %v7328
    %v7330 = vpop.f32.mrf.mxu0
    %v7331 = vadd.f32 0.0, %v7330
    %7332 = vmatmul.bf16.gmra.mxu0 %v7299
    %v7333 = vpop.f32.mrf.mxu0
    %v7334 = vadd.f32 0.0, %v7333
    %v7335 = vpop.f32.mrf.mxu0
    %v7336 = vadd.f32 0.0, %v7335
    %7337 = vmatmul.bf16.gmra.mxu0 %v7302
    %v7338 = vpop.f32.mrf.mxu0
    %v7339 = vadd.f32 0.0, %v7338
    %v7340 = vpop.f32.mrf.mxu0
    %v7341 = vadd.f32 0.0, %v7340
    %7342 = vmatmul.bf16.gmra.mxu0 %v7305
    %v7343 = vpop.f32.mrf.mxu0
    %v7344 = vadd.f32 0.0, %v7343
    %v7345 = vpop.f32.mrf.mxu0
    %v7346 = vadd.f32 0.0, %v7345
    %7347 = vmatmul.bf16.gmra.mxu0 %v7308
    %v7348 = vpop.f32.mrf.mxu0
    %v7349 = vadd.f32 0.0, %v7348
    %v7350 = vpop.f32.mrf.mxu0
    %v7351 = vadd.f32 0.0, %v7350
    %7352 = vmatmul.bf16.gmra.mxu0 %v7311
    %v7353 = vpop.f32.mrf.mxu0
    %v7354 = vadd.f32 0.0, %v7353
    %v7355 = vpop.f32.mrf.mxu0
    %v7356 = vadd.f32 0.0, %v7355
    %7357 = vmatmul.bf16.gmra.mxu0 %v7314
    %v7358 = vpop.f32.mrf.mxu0
    %v7359 = vadd.f32 0.0, %v7358
    %v7360 = vpop.f32.mrf.mxu0
    %v7361 = vadd.f32 0.0, %v7360
    %7362 = vmatmul.bf16.gmra.mxu0 %v7317
    %v7363 = vpop.f32.mrf.mxu0
    %v7364 = vadd.f32 0.0, %v7363
    %v7365 = vpop.f32.mrf.mxu0
    %v7366 = vadd.f32 0.0, %v7365
    %7367 = vdwg.mxu0
    %v7368 = vadd.f32 %v7221, %v7329
    %v7369 = vadd.f32 %v7222, %v7331
    %v7370 = vadd.f32 %v7223, %v7334
    %v7371 = vadd.f32 %v7224, %v7336
    %v7372 = vadd.f32 %v7225, %v7339
    %v7373 = vadd.f32 %v7226, %v7341
    %v7374 = vadd.f32 %v7227, %v7344
    %v7375 = vadd.f32 %v7228, %v7346
    %v7376 = vadd.f32 %v7229, %v7349
    %v7377 = vadd.f32 %v7230, %v7351
    %v7378 = vadd.f32 %v7231, %v7354
    %v7379 = vadd.f32 %v7232, %v7356
    %v7380 = vadd.f32 %v7233, %v7359
    %v7381 = vadd.f32 %v7234, %v7361
    %v7382 = vadd.f32 %v7235, %v7364
    %v7383 = vadd.f32 %v7236, %v7366
    %s7384 = scalar_lea.vmem %s7237, 8 [#allocation3]
    %v7385 = vld [vmem:[%s7384] ss:$2 sm:$0xff]
    %s7386 = scalar_lea.vmem %s7237, 72 [#allocation3]
    %v7387 = vld [vmem:[%s7386] ss:$2 sm:$0xff]
    %s7388 = scalar_lea.vmem %s7237, 136 [#allocation3]
    %v7389 = vld [vmem:[%s7388] ss:$2 sm:$0xff]
    %s7390 = scalar_lea.vmem %s7237, 200 [#allocation3]
    %v7391 = vld [vmem:[%s7390] ss:$2 sm:$0xff]
    %s7392 = scalar_lea.vmem %s7237, 264 [#allocation3]
    %v7393 = vld [vmem:[%s7392] ss:$2 sm:$0xff]
    %s7394 = scalar_lea.vmem %s7237, 328 [#allocation3]
    %v7395 = vld [vmem:[%s7394] ss:$2 sm:$0xff]
    %s7396 = scalar_lea.vmem %s7237, 392 [#allocation3]
    %v7397 = vld [vmem:[%s7396] ss:$2 sm:$0xff]
    %s7398 = scalar_lea.vmem %s7237, 456 [#allocation3]
    %v7399 = vld [vmem:[%s7398] ss:$2 sm:$0xff]
    %s7400 = scalar_lea.vmem %s7237, 584 [#allocation3]
    %v7401 = vld [vmem:[%s7400] ss:$2 sm:$0xff]
    %s7402 = scalar_lea.vmem %s7237, 648 [#allocation3]
    %v7403 = vld [vmem:[%s7402] ss:$2 sm:$0xff]
    %s7404 = scalar_lea.vmem %s7237, 712 [#allocation3]
    %v7405 = vld [vmem:[%s7404] ss:$2 sm:$0xff]
    %s7406 = scalar_lea.vmem %s7237, 776 [#allocation3]
    %v7407 = vld [vmem:[%s7406] ss:$2 sm:$0xff]
    %s7408 = scalar_lea.vmem %s7237, 840 [#allocation3]
    %v7409 = vld [vmem:[%s7408] ss:$2 sm:$0xff]
    %s7410 = scalar_lea.vmem %s7237, 904 [#allocation3]
    %v7411 = vld [vmem:[%s7410] ss:$2 sm:$0xff]
    %s7412 = scalar_lea.vmem %s7237, 968 [#allocation3]
    %v7413 = vld [vmem:[%s7412] ss:$2 sm:$0xff]
    %s7414 = scalar_lea.vmem %s7237, 1032 [#allocation3]
    %v7415 = vld [vmem:[%s7414] ss:$2 sm:$0xff]
    %v7416 = vpack.c.bf16 %v7387, %v7385
    %v7417 = vpack.c.bf16 %v7391, %v7389
    %v7418 = vpack.c.bf16 %v7395, %v7393
    %v7419 = vpack.c.bf16 %v7399, %v7397
    %v7420 = vpack.c.bf16 %v7403, %v7401
    %v7421 = vpack.c.bf16 %v7407, %v7405
    %v7422 = vpack.c.bf16 %v7411, %v7409
    %v7423 = vpack.c.bf16 %v7415, %v7413
    %s7424 = scalar_lea.vmem %s3, 112
    %v7425 = vld [vmem:[%s7424] sm:$0xf]
    %v7426 = vld [vmem:[%s7424 + $0x4] sm:$0xf]
    %v7427 = vld [vmem:[%s7424 + $0x8] sm:$0xf]
    %v7428 = vld [vmem:[%s7424 + $0xc] sm:$0xf]
    %v7433 = vunpack.c.l.b16 %v7425
    %v7434 = vunpack.c.l.b16 %v7426
    %v7435 = vunpack.c.l.b16 %v7427
    %v7436 = vunpack.c.l.b16 %v7428
    %v7437 = vpack.c.b16 %v7434, %v7433
    %v7438 = vpack.c.b16 %v7436, %v7435
    %v7442 = vsel %vm31, %v7416, 0
    %v7445 = vsel %vm31, %v7417, 0
    %v7448 = vsel %vm31, %v7418, 0
    %v7451 = vsel %vm31, %v7419, 0
    %v7454 = vsel %vm31, %v7420, 0
    %v7457 = vsel %vm31, %v7421, 0
    %v7460 = vsel %vm31, %v7422, 0
    %v7463 = vsel %vm31, %v7423, 0
    %7465 = vmatpush.bf16.msra.mxu0 0
    %7466 = vmatpush.bf16.msra.mxu0 0
    %7467 = vmatpush.bf16.msra.mxu0 0
    %7468 = vmatpush.bf16.msra.mxu0 0
    %7469 = vmatpush.bf16.msra.mxu0 0
    %7470 = vmatpush.bf16.msra.mxu0 0
    %7471 = vmatpush.bf16.msra.mxu0 %v7438
    %7472 = vmatpush.bf16.msra.mxu0 %v7437
    %7473 = vmatmul.bf16.gmra.mxu0 %v7442
    %v7474 = vpop.f32.mrf.mxu0
    %v7475 = vadd.f32 0.0, %v7474
    %v7476 = vpop.f32.mrf.mxu0
    %v7477 = vadd.f32 0.0, %v7476
    %7478 = vmatmul.bf16.gmra.mxu0 %v7445
    %v7479 = vpop.f32.mrf.mxu0
    %v7480 = vadd.f32 0.0, %v7479
    %v7481 = vpop.f32.mrf.mxu0
    %v7482 = vadd.f32 0.0, %v7481
    %7483 = vmatmul.bf16.gmra.mxu0 %v7448
    %v7484 = vpop.f32.mrf.mxu0
    %v7485 = vadd.f32 0.0, %v7484
    %v7486 = vpop.f32.mrf.mxu0
    %v7487 = vadd.f32 0.0, %v7486
    %7488 = vmatmul.bf16.gmra.mxu0 %v7451
    %v7489 = vpop.f32.mrf.mxu0
    %v7490 = vadd.f32 0.0, %v7489
    %v7491 = vpop.f32.mrf.mxu0
    %v7492 = vadd.f32 0.0, %v7491
    %7493 = vmatmul.bf16.gmra.mxu0 %v7454
    %v7494 = vpop.f32.mrf.mxu0
    %v7495 = vadd.f32 0.0, %v7494
    %v7496 = vpop.f32.mrf.mxu0
    %v7497 = vadd.f32 0.0, %v7496
    %7498 = vmatmul.bf16.gmra.mxu0 %v7457
    %v7499 = vpop.f32.mrf.mxu0
    %v7500 = vadd.f32 0.0, %v7499
    %v7501 = vpop.f32.mrf.mxu0
    %v7502 = vadd.f32 0.0, %v7501
    %7503 = vmatmul.bf16.gmra.mxu0 %v7460
    %v7504 = vpop.f32.mrf.mxu0
    %v7505 = vadd.f32 0.0, %v7504
    %v7506 = vpop.f32.mrf.mxu0
    %v7507 = vadd.f32 0.0, %v7506
    %7508 = vmatmul.bf16.gmra.mxu0 %v7463
    %v7509 = vpop.f32.mrf.mxu0
    %v7510 = vadd.f32 0.0, %v7509
    %v7511 = vpop.f32.mrf.mxu0
    %v7512 = vadd.f32 0.0, %v7511
    %7513 = vdwg.mxu0
    %v7514 = vadd.f32 %v7368, %v7475
    %v7515 = vadd.f32 %v7369, %v7477
    %v7516 = vadd.f32 %v7370, %v7480
    %v7517 = vadd.f32 %v7371, %v7482
    %v7518 = vadd.f32 %v7372, %v7485
    %v7519 = vadd.f32 %v7373, %v7487
    %v7520 = vadd.f32 %v7374, %v7490
    %v7521 = vadd.f32 %v7375, %v7492
    %v7522 = vadd.f32 %v7376, %v7495
    %v7523 = vadd.f32 %v7377, %v7497
    %v7524 = vadd.f32 %v7378, %v7500
    %v7525 = vadd.f32 %v7379, %v7502
    %v7526 = vadd.f32 %v7380, %v7505
    %v7527 = vadd.f32 %v7381, %v7507
    %v7528 = vadd.f32 %v7382, %v7510
    %v7529 = vadd.f32 %v7383, %v7512
    %s7530 = scalar_lea.vmem %s7237, 9 [#allocation3]
    %v7531 = vld [vmem:[%s7530] ss:$2 sm:$0xff]
    %s7532 = scalar_lea.vmem %s7237, 73 [#allocation3]
    %v7533 = vld [vmem:[%s7532] ss:$2 sm:$0xff]
    %s7534 = scalar_lea.vmem %s7237, 137 [#allocation3]
    %v7535 = vld [vmem:[%s7534] ss:$2 sm:$0xff]
    %s7536 = scalar_lea.vmem %s7237, 201 [#allocation3]
    %v7537 = vld [vmem:[%s7536] ss:$2 sm:$0xff]
    %s7538 = scalar_lea.vmem %s7237, 265 [#allocation3]
    %v7539 = vld [vmem:[%s7538] ss:$2 sm:$0xff]
    %s7540 = scalar_lea.vmem %s7237, 329 [#allocation3]
    %v7541 = vld [vmem:[%s7540] ss:$2 sm:$0xff]
    %s7542 = scalar_lea.vmem %s7237, 393 [#allocation3]
    %v7543 = vld [vmem:[%s7542] ss:$2 sm:$0xff]
    %s7544 = scalar_lea.vmem %s7237, 457 [#allocation3]
    %v7545 = vld [vmem:[%s7544] ss:$2 sm:$0xff]
    %s7546 = scalar_lea.vmem %s7237, 585 [#allocation3]
    %v7547 = vld [vmem:[%s7546] ss:$2 sm:$0xff]
    %s7548 = scalar_lea.vmem %s7237, 649 [#allocation3]
    %v7549 = vld [vmem:[%s7548] ss:$2 sm:$0xff]
    %s7550 = scalar_lea.vmem %s7237, 713 [#allocation3]
    %v7551 = vld [vmem:[%s7550] ss:$2 sm:$0xff]
    %s7552 = scalar_lea.vmem %s7237, 777 [#allocation3]
    %v7553 = vld [vmem:[%s7552] ss:$2 sm:$0xff]
    %s7554 = scalar_lea.vmem %s7237, 841 [#allocation3]
    %v7555 = vld [vmem:[%s7554] ss:$2 sm:$0xff]
    %s7556 = scalar_lea.vmem %s7237, 905 [#allocation3]
    %v7557 = vld [vmem:[%s7556] ss:$2 sm:$0xff]
    %s7558 = scalar_lea.vmem %s7237, 969 [#allocation3]
    %v7559 = vld [vmem:[%s7558] ss:$2 sm:$0xff]
    %s7560 = scalar_lea.vmem %s7237, 1033 [#allocation3]
    %v7561 = vld [vmem:[%s7560] ss:$2 sm:$0xff]
    %v7562 = vpack.c.bf16 %v7533, %v7531
    %v7563 = vpack.c.bf16 %v7537, %v7535
    %v7564 = vpack.c.bf16 %v7541, %v7539
    %v7565 = vpack.c.bf16 %v7545, %v7543
    %v7566 = vpack.c.bf16 %v7549, %v7547
    %v7567 = vpack.c.bf16 %v7553, %v7551
    %v7568 = vpack.c.bf16 %v7557, %v7555
    %v7569 = vpack.c.bf16 %v7561, %v7559
    %s7570 = scalar_lea.vmem %s3, 128
    %v7571 = vld [vmem:[%s7570] sm:$0xf]
    %v7572 = vld [vmem:[%s7570 + $0x4] sm:$0xf]
    %v7573 = vld [vmem:[%s7570 + $0x8] sm:$0xf]
    %v7574 = vld [vmem:[%s7570 + $0xc] sm:$0xf]
    %v7579 = vunpack.c.l.b16 %v7571
    %v7580 = vunpack.c.l.b16 %v7572
    %v7581 = vunpack.c.l.b16 %v7573
    %v7582 = vunpack.c.l.b16 %v7574
    %v7583 = vpack.c.b16 %v7580, %v7579
    %v7584 = vpack.c.b16 %v7582, %v7581
    %v7588 = vsel %vm31, %v7562, 0
    %v7591 = vsel %vm31, %v7563, 0
    %v7594 = vsel %vm31, %v7564, 0
    %v7597 = vsel %vm31, %v7565, 0
    %v7600 = vsel %vm31, %v7566, 0
    %v7603 = vsel %vm31, %v7567, 0
    %v7606 = vsel %vm31, %v7568, 0
    %v7609 = vsel %vm31, %v7569, 0
    %7611 = vmatpush.bf16.msra.mxu0 0
    %7612 = vmatpush.bf16.msra.mxu0 0
    %7613 = vmatpush.bf16.msra.mxu0 0
    %7614 = vmatpush.bf16.msra.mxu0 0
    %7615 = vmatpush.bf16.msra.mxu0 0
    %7616 = vmatpush.bf16.msra.mxu0 0
    %7617 = vmatpush.bf16.msra.mxu0 %v7584
    %7618 = vmatpush.bf16.msra.mxu0 %v7583
    %7619 = vmatmul.bf16.gmra.mxu0 %v7588
    %v7620 = vpop.f32.mrf.mxu0
    %v7621 = vadd.f32 0.0, %v7620
    %v7622 = vpop.f32.mrf.mxu0
    %v7623 = vadd.f32 0.0, %v7622
    %7624 = vmatmul.bf16.gmra.mxu0 %v7591
    %v7625 = vpop.f32.mrf.mxu0
    %v7626 = vadd.f32 0.0, %v7625
    %v7627 = vpop.f32.mrf.mxu0
    %v7628 = vadd.f32 0.0, %v7627
    %7629 = vmatmul.bf16.gmra.mxu0 %v7594
    %v7630 = vpop.f32.mrf.mxu0
    %v7631 = vadd.f32 0.0, %v7630
    %v7632 = vpop.f32.mrf.mxu0
    %v7633 = vadd.f32 0.0, %v7632
    %7634 = vmatmul.bf16.gmra.mxu0 %v7597
    %v7635 = vpop.f32.mrf.mxu0
    %v7636 = vadd.f32 0.0, %v7635
    %v7637 = vpop.f32.mrf.mxu0
    %v7638 = vadd.f32 0.0, %v7637
    %7639 = vmatmul.bf16.gmra.mxu0 %v7600
    %v7640 = vpop.f32.mrf.mxu0
    %v7641 = vadd.f32 0.0, %v7640
    %v7642 = vpop.f32.mrf.mxu0
    %v7643 = vadd.f32 0.0, %v7642
    %7644 = vmatmul.bf16.gmra.mxu0 %v7603
    %v7645 = vpop.f32.mrf.mxu0
    %v7646 = vadd.f32 0.0, %v7645
    %v7647 = vpop.f32.mrf.mxu0
    %v7648 = vadd.f32 0.0, %v7647
    %7649 = vmatmul.bf16.gmra.mxu0 %v7606
    %v7650 = vpop.f32.mrf.mxu0
    %v7651 = vadd.f32 0.0, %v7650
    %v7652 = vpop.f32.mrf.mxu0
    %v7653 = vadd.f32 0.0, %v7652
    %7654 = vmatmul.bf16.gmra.mxu0 %v7609
    %v7655 = vpop.f32.mrf.mxu0
    %v7656 = vadd.f32 0.0, %v7655
    %v7657 = vpop.f32.mrf.mxu0
    %v7658 = vadd.f32 0.0, %v7657
    %7659 = vdwg.mxu0
    %v7660 = vadd.f32 %v7514, %v7621
    %v7661 = vadd.f32 %v7515, %v7623
    %v7662 = vadd.f32 %v7516, %v7626
    %v7663 = vadd.f32 %v7517, %v7628
    %v7664 = vadd.f32 %v7518, %v7631
    %v7665 = vadd.f32 %v7519, %v7633
    %v7666 = vadd.f32 %v7520, %v7636
    %v7667 = vadd.f32 %v7521, %v7638
    %v7668 = vadd.f32 %v7522, %v7641
    %v7669 = vadd.f32 %v7523, %v7643
    %v7670 = vadd.f32 %v7524, %v7646
    %v7671 = vadd.f32 %v7525, %v7648
    %v7672 = vadd.f32 %v7526, %v7651
    %v7673 = vadd.f32 %v7527, %v7653
    %v7674 = vadd.f32 %v7528, %v7656
    %v7675 = vadd.f32 %v7529, %v7658
    %v7676 = vld [vmem:[%s5 + $0x2] sm:$0x1]
    %v7677 = vperm.slane %v7676, 0
    %v7678 = vadd.f32 %v7660, %v7677
    %v7679 = vadd.f32 %v7661, %v7677
    %v7680 = vadd.f32 %v7662, %v7677
    %v7681 = vadd.f32 %v7663, %v7677
    %v7682 = vadd.f32 %v7664, %v7677
    %v7683 = vadd.f32 %v7665, %v7677
    %v7684 = vadd.f32 %v7666, %v7677
    %v7685 = vadd.f32 %v7667, %v7677
    %v7686 = vadd.f32 %v7668, %v7677
    %v7687 = vadd.f32 %v7669, %v7677
    %v7688 = vadd.f32 %v7670, %v7677
    %v7689 = vadd.f32 %v7671, %v7677
    %v7690 = vadd.f32 %v7672, %v7677
    %v7691 = vadd.f32 %v7673, %v7677
    %v7692 = vadd.f32 %v7674, %v7677
    %v7693 = vadd.f32 %v7675, %v7677
    %vm7694 = vcmp.ge.f32.partialorder %v7678, 0.0
    %vm7695 = vcmp.ge.f32.partialorder %v7679, 0.0
    %vm7696 = vcmp.ge.f32.partialorder %v7680, 0.0
    %vm7697 = vcmp.ge.f32.partialorder %v7681, 0.0
    %vm7698 = vcmp.ge.f32.partialorder %v7682, 0.0
    %vm7699 = vcmp.ge.f32.partialorder %v7683, 0.0
    %vm7700 = vcmp.ge.f32.partialorder %v7684, 0.0
    %vm7701 = vcmp.ge.f32.partialorder %v7685, 0.0
    %vm7702 = vcmp.ge.f32.partialorder %v7686, 0.0
    %vm7703 = vcmp.ge.f32.partialorder %v7687, 0.0
    %vm7704 = vcmp.ge.f32.partialorder %v7688, 0.0
    %vm7705 = vcmp.ge.f32.partialorder %v7689, 0.0
    %vm7706 = vcmp.ge.f32.partialorder %v7690, 0.0
    %vm7707 = vcmp.ge.f32.partialorder %v7691, 0.0
    %vm7708 = vcmp.ge.f32.partialorder %v7692, 0.0
    %vm7709 = vcmp.ge.f32.partialorder %v7693, 0.0
    %v7710 = vmul.f32 %v7678, 0.2
    %v7711 = vmul.f32 %v7679, 0.2
    %v7712 = vmul.f32 %v7680, 0.2
    %v7713 = vmul.f32 %v7681, 0.2
    %v7714 = vmul.f32 %v7682, 0.2
    %v7715 = vmul.f32 %v7683, 0.2
    %v7716 = vmul.f32 %v7684, 0.2
    %v7717 = vmul.f32 %v7685, 0.2
    %v7718 = vmul.f32 %v7686, 0.2
    %v7719 = vmul.f32 %v7687, 0.2
    %v7720 = vmul.f32 %v7688, 0.2
    %v7721 = vmul.f32 %v7689, 0.2
    %v7722 = vmul.f32 %v7690, 0.2
    %v7723 = vmul.f32 %v7691, 0.2
    %v7724 = vmul.f32 %v7692, 0.2
    %v7725 = vmul.f32 %v7693, 0.2
    %v7726 = vsel %vm7694, %v7678, %v7710
    %v7727 = vsel %vm7695, %v7679, %v7711
    %v7728 = vsel %vm7696, %v7680, %v7712
    %v7729 = vsel %vm7697, %v7681, %v7713
    %v7730 = vsel %vm7698, %v7682, %v7714
    %v7731 = vsel %vm7699, %v7683, %v7715
    %v7732 = vsel %vm7700, %v7684, %v7716
    %v7733 = vsel %vm7701, %v7685, %v7717
    %v7734 = vsel %vm7702, %v7686, %v7718
    %v7735 = vsel %vm7703, %v7687, %v7719
    %v7736 = vsel %vm7704, %v7688, %v7720
    %v7737 = vsel %vm7705, %v7689, %v7721
    %v7738 = vsel %vm7706, %v7690, %v7722
    %v7739 = vsel %vm7707, %v7691, %v7723
    %v7740 = vsel %vm7708, %v7692, %v7724
    %v7741 = vsel %vm7709, %v7693, %v7725
    %7742 = vst.msk [vmem:[%s210 + $0x8] sm:$0xff] %vm196, %v7726
    %7743 = vst.msk [vmem:[%s210 + $0x20] sm:$0xff] %vm196, %v7727
    %7744 = vst.msk [vmem:[%s210 + $0x38] sm:$0xff] %vm196, %v7728
    %7745 = vst.msk [vmem:[%s210 + $0x50] sm:$0xff] %vm196, %v7729
    %7746 = vst.msk [vmem:[%s210 + $0x68] sm:$0xff] %vm196, %v7730
    %7747 = vst.msk [vmem:[%s210 + $0x80] sm:$0xff] %vm196, %v7731
    %7748 = vst.msk [vmem:[%s210 + $0x98] sm:$0xff] %vm196, %v7732
    %7749 = vst.msk [vmem:[%s210 + $0xb0] sm:$0xff] %vm196, %v7733
    %7750 = vst.msk [vmem:[%s210 + $0xf8] sm:$0xff] %vm196, %v7734
    %7751 = vst.msk [vmem:[%s210 + $0x110] sm:$0xff] %vm196, %v7735
    %7752 = vst.msk [vmem:[%s210 + $0x128] sm:$0xff] %vm196, %v7736
    %7753 = vst.msk [vmem:[%s210 + $0x140] sm:$0xff] %vm196, %v7737
    %7754 = vst.msk [vmem:[%s210 + $0x158] sm:$0xff] %vm196, %v7738
    %7755 = vst.msk [vmem:[%s210 + $0x170] sm:$0xff] %vm196, %v7739
    %7756 = vst.msk [vmem:[%s210 + $0x188] sm:$0xff] %vm196, %v7740
    %7757 = vst.msk [vmem:[%s210 + $0x1a0] sm:$0xff] %vm196, %v7741
    %v7758 = vld [vmem:[#allocation4 + $0x7] sm:$0xff]
    %v7759 = vld [vmem:[#allocation4 + $0x1f] sm:$0xff]
    %v7760 = vld [vmem:[#allocation4 + $0x37] sm:$0xff]
    %v7761 = vld [vmem:[#allocation4 + $0x4f] sm:$0xff]
    %v7762 = vld [vmem:[#allocation4 + $0x67] sm:$0xff]
    %v7763 = vld [vmem:[#allocation4 + $0x7f] sm:$0xff]
    %v7764 = vld [vmem:[#allocation4 + $0x97] sm:$0xff]
    %v7765 = vld [vmem:[#allocation4 + $0xaf] sm:$0xff]
    %v7766 = vld [vmem:[#allocation4 + $0xf7] sm:$0xff]
    %v7767 = vld [vmem:[#allocation4 + $0x10f] sm:$0xff]
    %v7768 = vld [vmem:[#allocation4 + $0x127] sm:$0xff]
    %v7769 = vld [vmem:[#allocation4 + $0x13f] sm:$0xff]
    %v7770 = vld [vmem:[#allocation4 + $0x157] sm:$0xff]
    %v7771 = vld [vmem:[#allocation4 + $0x16f] sm:$0xff]
    %v7772 = vld [vmem:[#allocation4 + $0x187] sm:$0xff]
    %v7773 = vld [vmem:[#allocation4 + $0x19f] sm:$0xff]
    %v7774 = vpack.c.bf16 %v7759, %v7758
    %v7775 = vpack.c.bf16 %v7761, %v7760
    %v7776 = vpack.c.bf16 %v7763, %v7762
    %v7777 = vpack.c.bf16 %v7765, %v7764
    %v7778 = vpack.c.bf16 %v7767, %v7766
    %v7779 = vpack.c.bf16 %v7769, %v7768
    %v7780 = vpack.c.bf16 %v7771, %v7770
    %v7781 = vpack.c.bf16 %v7773, %v7772
    %v7782 = vld [vmem:[%s4] sm:$0xf]
    %v7783 = vld [vmem:[%s4 + $0x4] sm:$0xf]
    %v7784 = vld [vmem:[%s4 + $0x8] sm:$0xf]
    %v7785 = vld [vmem:[%s4 + $0xc] sm:$0xf]
    %v7786 = vld [vmem:[%s4 + $0x10] sm:$0xf]
    %v7787 = vld [vmem:[%s4 + $0x14] sm:$0xf]
    %v7788 = vld [vmem:[%s4 + $0x18] sm:$0xf]
    %v7789 = vld [vmem:[%s4 + $0x1c] sm:$0xf]
    %v7790 = vld [vmem:[#allocation4 + $0x8] sm:$0xff]
    %v7791 = vld [vmem:[#allocation4 + $0x20] sm:$0xff]
    %v7792 = vld [vmem:[#allocation4 + $0x38] sm:$0xff]
    %v7793 = vld [vmem:[#allocation4 + $0x50] sm:$0xff]
    %v7794 = vld [vmem:[#allocation4 + $0x68] sm:$0xff]
    %v7795 = vld [vmem:[#allocation4 + $0x80] sm:$0xff]
    %v7796 = vld [vmem:[#allocation4 + $0x98] sm:$0xff]
    %v7797 = vld [vmem:[#allocation4 + $0xb0] sm:$0xff]
    %v7798 = vld [vmem:[#allocation4 + $0xf8] sm:$0xff]
    %v7799 = vld [vmem:[#allocation4 + $0x110] sm:$0xff]
    %v7800 = vld [vmem:[#allocation4 + $0x128] sm:$0xff]
    %v7801 = vld [vmem:[#allocation4 + $0x140] sm:$0xff]
    %v7802 = vld [vmem:[#allocation4 + $0x158] sm:$0xff]
    %v7803 = vld [vmem:[#allocation4 + $0x170] sm:$0xff]
    %v7804 = vld [vmem:[#allocation4 + $0x188] sm:$0xff]
    %v7805 = vld [vmem:[#allocation4 + $0x1a0] sm:$0xff]
    %v7806 = vpack.c.bf16 %v7791, %v7790
    %v7807 = vpack.c.bf16 %v7793, %v7792
    %v7808 = vpack.c.bf16 %v7795, %v7794
    %v7809 = vpack.c.bf16 %v7797, %v7796
    %v7810 = vpack.c.bf16 %v7799, %v7798
    %v7811 = vpack.c.bf16 %v7801, %v7800
    %v7812 = vpack.c.bf16 %v7803, %v7802
    %v7813 = vpack.c.bf16 %v7805, %v7804
    %s7814 = scalar_lea.vmem %s4, 32
    %v7815 = vld [vmem:[%s7814] sm:$0xf]
    %v7816 = vld [vmem:[%s7814 + $0x4] sm:$0xf]
    %v7817 = vld [vmem:[%s7814 + $0x8] sm:$0xf]
    %v7818 = vld [vmem:[%s7814 + $0xc] sm:$0xf]
    %v7819 = vld [vmem:[%s7814 + $0x10] sm:$0xf]
    %v7820 = vld [vmem:[%s7814 + $0x14] sm:$0xf]
    %v7821 = vld [vmem:[%s7814 + $0x18] sm:$0xf]
    %v7822 = vld [vmem:[%s7814 + $0x1c] sm:$0xf]
    %v7831 = vunpack.c.l.b16 %v7815
    %v7832 = vunpack.c.l.b16 %v7816
    %v7833 = vunpack.c.l.b16 %v7817
    %v7834 = vunpack.c.l.b16 %v7818
    %v7835 = vunpack.c.l.b16 %v7819
    %v7836 = vunpack.c.l.b16 %v7820
    %v7837 = vunpack.c.l.b16 %v7821
    %v7838 = vunpack.c.l.b16 %v7822
    %v7839 = vpack.c.b16 %v7832, %v7831
    %v7840 = vpack.c.b16 %v7834, %v7833
    %v7841 = vpack.c.b16 %v7836, %v7835
    %v7842 = vpack.c.b16 %v7838, %v7837
    %v7848 = vsel %vm196, %v7806, 0
    %v7851 = vsel %vm196, %v7807, 0
    %v7854 = vsel %vm196, %v7808, 0
    %v7857 = vsel %vm196, %v7809, 0
    %v7860 = vsel %vm196, %v7810, 0
    %v7863 = vsel %vm196, %v7811, 0
    %v7866 = vsel %vm196, %v7812, 0
    %v7869 = vsel %vm196, %v7813, 0
    %7871 = vmatpush.bf16.msra.mxu0 0
    %7872 = vmatpush.bf16.msra.mxu0 0
    %7873 = vmatpush.bf16.msra.mxu0 0
    %7874 = vmatpush.bf16.msra.mxu0 0
    %7875 = vmatpush.bf16.msra.mxu0 %v7842
    %7876 = vmatpush.bf16.msra.mxu0 %v7841
    %7877 = vmatpush.bf16.msra.mxu0 %v7840
    %7878 = vmatpush.bf16.msra.mxu0 %v7839
    %7879 = vmatmul.bf16.gmra.mxu0 %v7848
    %v7880 = vpop.f32.mrf.mxu0
    %v7881 = vadd.f32 0.0, %v7880
    %v7882 = vpop.f32.mrf.mxu0
    %v7883 = vadd.f32 0.0, %v7882
    %7884 = vmatmul.bf16.gmra.mxu0 %v7851
    %v7885 = vpop.f32.mrf.mxu0
    %v7886 = vadd.f32 0.0, %v7885
    %v7887 = vpop.f32.mrf.mxu0
    %v7888 = vadd.f32 0.0, %v7887
    %7889 = vmatmul.bf16.gmra.mxu0 %v7854
    %v7890 = vpop.f32.mrf.mxu0
    %v7891 = vadd.f32 0.0, %v7890
    %v7892 = vpop.f32.mrf.mxu0
    %v7893 = vadd.f32 0.0, %v7892
    %7894 = vmatmul.bf16.gmra.mxu0 %v7857
    %v7895 = vpop.f32.mrf.mxu0
    %v7896 = vadd.f32 0.0, %v7895
    %v7897 = vpop.f32.mrf.mxu0
    %v7898 = vadd.f32 0.0, %v7897
    %7899 = vmatmul.bf16.gmra.mxu0 %v7860
    %v7900 = vpop.f32.mrf.mxu0
    %v7901 = vadd.f32 0.0, %v7900
    %v7902 = vpop.f32.mrf.mxu0
    %v7903 = vadd.f32 0.0, %v7902
    %7904 = vmatmul.bf16.gmra.mxu0 %v7863
    %v7905 = vpop.f32.mrf.mxu0
    %v7906 = vadd.f32 0.0, %v7905
    %v7907 = vpop.f32.mrf.mxu0
    %v7908 = vadd.f32 0.0, %v7907
    %7909 = vmatmul.bf16.gmra.mxu0 %v7866
    %v7910 = vpop.f32.mrf.mxu0
    %v7911 = vadd.f32 0.0, %v7910
    %v7912 = vpop.f32.mrf.mxu0
    %v7913 = vadd.f32 0.0, %v7912
    %7914 = vmatmul.bf16.gmra.mxu0 %v7869
    %v7915 = vpop.f32.mrf.mxu0
    %v7916 = vadd.f32 0.0, %v7915
    %v7917 = vpop.f32.mrf.mxu0
    %v7918 = vadd.f32 0.0, %v7917
    %7919 = vdwg.mxu0
    %v7928 = vunpack.c.l.b16 %v7782
    %v7929 = vunpack.c.l.b16 %v7783
    %v7930 = vunpack.c.l.b16 %v7784
    %v7931 = vunpack.c.l.b16 %v7785
    %v7932 = vunpack.c.l.b16 %v7786
    %v7933 = vunpack.c.l.b16 %v7787
    %v7934 = vunpack.c.l.b16 %v7788
    %v7935 = vunpack.c.l.b16 %v7789
    %v7936 = vpack.c.b16 %v7929, %v7928
    %v7937 = vpack.c.b16 %v7931, %v7930
    %v7938 = vpack.c.b16 %v7933, %v7932
    %v7939 = vpack.c.b16 %v7935, %v7934
    %v7945 = vsel %vm196, %v7774, 0
    %v7948 = vsel %vm196, %v7775, 0
    %v7951 = vsel %vm196, %v7776, 0
    %v7954 = vsel %vm196, %v7777, 0
    %v7957 = vsel %vm196, %v7778, 0
    %v7960 = vsel %vm196, %v7779, 0
    %v7963 = vsel %vm196, %v7780, 0
    %v7966 = vsel %vm196, %v7781, 0
    %7968 = vmatpush.bf16.msra.mxu0 0
    %7969 = vmatpush.bf16.msra.mxu0 0
    %7970 = vmatpush.bf16.msra.mxu0 0
    %7971 = vmatpush.bf16.msra.mxu0 0
    %7972 = vmatpush.bf16.msra.mxu0 %v7939
    %7973 = vmatpush.bf16.msra.mxu0 %v7938
    %7974 = vmatpush.bf16.msra.mxu0 %v7937
    %7975 = vmatpush.bf16.msra.mxu0 %v7936
    %7976 = vmatmul.bf16.gmra.mxu0 %v7945
    %v7977 = vpop.f32.mrf.mxu0
    %v7978 = vadd.f32 %v7881, %v7977
    %v7979 = vpop.f32.mrf.mxu0
    %v7980 = vadd.f32 %v7883, %v7979
    %7981 = vmatmul.bf16.gmra.mxu0 %v7948
    %v7982 = vpop.f32.mrf.mxu0
    %v7983 = vadd.f32 %v7886, %v7982
    %v7984 = vpop.f32.mrf.mxu0
    %v7985 = vadd.f32 %v7888, %v7984
    %7986 = vmatmul.bf16.gmra.mxu0 %v7951
    %v7987 = vpop.f32.mrf.mxu0
    %v7988 = vadd.f32 %v7891, %v7987
    %v7989 = vpop.f32.mrf.mxu0
    %v7990 = vadd.f32 %v7893, %v7989
    %7991 = vmatmul.bf16.gmra.mxu0 %v7954
    %v7992 = vpop.f32.mrf.mxu0
    %v7993 = vadd.f32 %v7896, %v7992
    %v7994 = vpop.f32.mrf.mxu0
    %v7995 = vadd.f32 %v7898, %v7994
    %7996 = vmatmul.bf16.gmra.mxu0 %v7957
    %v7997 = vpop.f32.mrf.mxu0
    %v7998 = vadd.f32 %v7901, %v7997
    %v7999 = vpop.f32.mrf.mxu0
    %v8000 = vadd.f32 %v7903, %v7999
    %8001 = vmatmul.bf16.gmra.mxu0 %v7960
    %v8002 = vpop.f32.mrf.mxu0
    %v8003 = vadd.f32 %v7906, %v8002
    %v8004 = vpop.f32.mrf.mxu0
    %v8005 = vadd.f32 %v7908, %v8004
    %8006 = vmatmul.bf16.gmra.mxu0 %v7963
    %v8007 = vpop.f32.mrf.mxu0
    %v8008 = vadd.f32 %v7911, %v8007
    %v8009 = vpop.f32.mrf.mxu0
    %v8010 = vadd.f32 %v7913, %v8009
    %8011 = vmatmul.bf16.gmra.mxu0 %v7966
    %v8012 = vpop.f32.mrf.mxu0
    %v8013 = vadd.f32 %v7916, %v8012
    %v8014 = vpop.f32.mrf.mxu0
    %v8015 = vadd.f32 %v7918, %v8014
    %8016 = vdwg.mxu0
    %v8017 = vld [vmem:[#allocation4 + $0x9] sm:$0xff]
    %v8018 = vld [vmem:[#allocation4 + $0x21] sm:$0xff]
    %v8019 = vld [vmem:[#allocation4 + $0x39] sm:$0xff]
    %v8020 = vld [vmem:[#allocation4 + $0x51] sm:$0xff]
    %v8021 = vld [vmem:[#allocation4 + $0x69] sm:$0xff]
    %v8022 = vld [vmem:[#allocation4 + $0x81] sm:$0xff]
    %v8023 = vld [vmem:[#allocation4 + $0x99] sm:$0xff]
    %v8024 = vld [vmem:[#allocation4 + $0xb1] sm:$0xff]
    %v8025 = vld [vmem:[#allocation4 + $0xf9] sm:$0xff]
    %v8026 = vld [vmem:[#allocation4 + $0x111] sm:$0xff]
    %v8027 = vld [vmem:[#allocation4 + $0x129] sm:$0xff]
    %v8028 = vld [vmem:[#allocation4 + $0x141] sm:$0xff]
    %v8029 = vld [vmem:[#allocation4 + $0x159] sm:$0xff]
    %v8030 = vld [vmem:[#allocation4 + $0x171] sm:$0xff]
    %v8031 = vld [vmem:[#allocation4 + $0x189] sm:$0xff]
    %v8032 = vld [vmem:[#allocation4 + $0x1a1] sm:$0xff]
    %v8033 = vpack.c.bf16 %v8018, %v8017
    %v8034 = vpack.c.bf16 %v8020, %v8019
    %v8035 = vpack.c.bf16 %v8022, %v8021
    %v8036 = vpack.c.bf16 %v8024, %v8023
    %v8037 = vpack.c.bf16 %v8026, %v8025
    %v8038 = vpack.c.bf16 %v8028, %v8027
    %v8039 = vpack.c.bf16 %v8030, %v8029
    %v8040 = vpack.c.bf16 %v8032, %v8031
    %s8041 = scalar_lea.vmem %s4, 64
    %v8042 = vld [vmem:[%s8041] sm:$0xf]
    %v8043 = vld [vmem:[%s8041 + $0x4] sm:$0xf]
    %v8044 = vld [vmem:[%s8041 + $0x8] sm:$0xf]
    %v8045 = vld [vmem:[%s8041 + $0xc] sm:$0xf]
    %v8046 = vld [vmem:[%s8041 + $0x10] sm:$0xf]
    %v8047 = vld [vmem:[%s8041 + $0x14] sm:$0xf]
    %v8048 = vld [vmem:[%s8041 + $0x18] sm:$0xf]
    %v8049 = vld [vmem:[%s8041 + $0x1c] sm:$0xf]
    %v8058 = vunpack.c.l.b16 %v8042
    %v8059 = vunpack.c.l.b16 %v8043
    %v8060 = vunpack.c.l.b16 %v8044
    %v8061 = vunpack.c.l.b16 %v8045
    %v8062 = vunpack.c.l.b16 %v8046
    %v8063 = vunpack.c.l.b16 %v8047
    %v8064 = vunpack.c.l.b16 %v8048
    %v8065 = vunpack.c.l.b16 %v8049
    %v8066 = vpack.c.b16 %v8059, %v8058
    %v8067 = vpack.c.b16 %v8061, %v8060
    %v8068 = vpack.c.b16 %v8063, %v8062
    %v8069 = vpack.c.b16 %v8065, %v8064
    %v8075 = vsel %vm196, %v8033, 0
    %v8078 = vsel %vm196, %v8034, 0
    %v8081 = vsel %vm196, %v8035, 0
    %v8084 = vsel %vm196, %v8036, 0
    %v8087 = vsel %vm196, %v8037, 0
    %v8090 = vsel %vm196, %v8038, 0
    %v8093 = vsel %vm196, %v8039, 0
    %v8096 = vsel %vm196, %v8040, 0
    %8098 = vmatpush.bf16.msra.mxu0 0
    %8099 = vmatpush.bf16.msra.mxu0 0
    %8100 = vmatpush.bf16.msra.mxu0 0
    %8101 = vmatpush.bf16.msra.mxu0 0
    %8102 = vmatpush.bf16.msra.mxu0 %v8069
    %8103 = vmatpush.bf16.msra.mxu0 %v8068
    %8104 = vmatpush.bf16.msra.mxu0 %v8067
    %8105 = vmatpush.bf16.msra.mxu0 %v8066
    %8106 = vmatmul.bf16.gmra.mxu0 %v8075
    %v8107 = vpop.f32.mrf.mxu0
    %v8108 = vadd.f32 0.0, %v8107
    %v8109 = vpop.f32.mrf.mxu0
    %v8110 = vadd.f32 0.0, %v8109
    %8111 = vmatmul.bf16.gmra.mxu0 %v8078
    %v8112 = vpop.f32.mrf.mxu0
    %v8113 = vadd.f32 0.0, %v8112
    %v8114 = vpop.f32.mrf.mxu0
    %v8115 = vadd.f32 0.0, %v8114
    %8116 = vmatmul.bf16.gmra.mxu0 %v8081
    %v8117 = vpop.f32.mrf.mxu0
    %v8118 = vadd.f32 0.0, %v8117
    %v8119 = vpop.f32.mrf.mxu0
    %v8120 = vadd.f32 0.0, %v8119
    %8121 = vmatmul.bf16.gmra.mxu0 %v8084
    %v8122 = vpop.f32.mrf.mxu0
    %v8123 = vadd.f32 0.0, %v8122
    %v8124 = vpop.f32.mrf.mxu0
    %v8125 = vadd.f32 0.0, %v8124
    %8126 = vmatmul.bf16.gmra.mxu0 %v8087
    %v8127 = vpop.f32.mrf.mxu0
    %v8128 = vadd.f32 0.0, %v8127
    %v8129 = vpop.f32.mrf.mxu0
    %v8130 = vadd.f32 0.0, %v8129
    %8131 = vmatmul.bf16.gmra.mxu0 %v8090
    %v8132 = vpop.f32.mrf.mxu0
    %v8133 = vadd.f32 0.0, %v8132
    %v8134 = vpop.f32.mrf.mxu0
    %v8135 = vadd.f32 0.0, %v8134
    %8136 = vmatmul.bf16.gmra.mxu0 %v8093
    %v8137 = vpop.f32.mrf.mxu0
    %v8138 = vadd.f32 0.0, %v8137
    %v8139 = vpop.f32.mrf.mxu0
    %v8140 = vadd.f32 0.0, %v8139
    %8141 = vmatmul.bf16.gmra.mxu0 %v8096
    %v8142 = vpop.f32.mrf.mxu0
    %v8143 = vadd.f32 0.0, %v8142
    %v8144 = vpop.f32.mrf.mxu0
    %v8145 = vadd.f32 0.0, %v8144
    %8146 = vdwg.mxu0
    %v8147 = vadd.f32 %v7978, %v8108
    %v8148 = vadd.f32 %v7980, %v8110
    %v8149 = vadd.f32 %v7983, %v8113
    %v8150 = vadd.f32 %v7985, %v8115
    %v8151 = vadd.f32 %v7988, %v8118
    %v8152 = vadd.f32 %v7990, %v8120
    %v8153 = vadd.f32 %v7993, %v8123
    %v8154 = vadd.f32 %v7995, %v8125
    %v8155 = vadd.f32 %v7998, %v8128
    %v8156 = vadd.f32 %v8000, %v8130
    %v8157 = vadd.f32 %v8003, %v8133
    %v8158 = vadd.f32 %v8005, %v8135
    %v8159 = vadd.f32 %v8008, %v8138
    %v8160 = vadd.f32 %v8010, %v8140
    %v8161 = vadd.f32 %v8013, %v8143
    %v8162 = vadd.f32 %v8015, %v8145
    %v8163 = vld [vmem:[%s210 + $0x7] sm:$0xff]
    %v8164 = vld [vmem:[%s210 + $0x1f] sm:$0xff]
    %v8165 = vld [vmem:[%s210 + $0x37] sm:$0xff]
    %v8166 = vld [vmem:[%s210 + $0x4f] sm:$0xff]
    %v8167 = vld [vmem:[%s210 + $0x67] sm:$0xff]
    %v8168 = vld [vmem:[%s210 + $0x7f] sm:$0xff]
    %v8169 = vld [vmem:[%s210 + $0x97] sm:$0xff]
    %v8170 = vld [vmem:[%s210 + $0xaf] sm:$0xff]
    %v8171 = vld [vmem:[%s210 + $0xf7] sm:$0xff]
    %v8172 = vld [vmem:[%s210 + $0x10f] sm:$0xff]
    %v8173 = vld [vmem:[%s210 + $0x127] sm:$0xff]
    %v8174 = vld [vmem:[%s210 + $0x13f] sm:$0xff]
    %v8175 = vld [vmem:[%s210 + $0x157] sm:$0xff]
    %v8176 = vld [vmem:[%s210 + $0x16f] sm:$0xff]
    %v8177 = vld [vmem:[%s210 + $0x187] sm:$0xff]
    %v8178 = vld [vmem:[%s210 + $0x19f] sm:$0xff]
    %v8179 = vpack.c.bf16 %v8164, %v8163
    %v8180 = vpack.c.bf16 %v8166, %v8165
    %v8181 = vpack.c.bf16 %v8168, %v8167
    %v8182 = vpack.c.bf16 %v8170, %v8169
    %v8183 = vpack.c.bf16 %v8172, %v8171
    %v8184 = vpack.c.bf16 %v8174, %v8173
    %v8185 = vpack.c.bf16 %v8176, %v8175
    %v8186 = vpack.c.bf16 %v8178, %v8177
    %s8187 = scalar_lea.vmem %s4, 96
    %v8188 = vld [vmem:[%s8187] sm:$0xf]
    %v8189 = vld [vmem:[%s8187 + $0x4] sm:$0xf]
    %v8190 = vld [vmem:[%s8187 + $0x8] sm:$0xf]
    %v8191 = vld [vmem:[%s8187 + $0xc] sm:$0xf]
    %v8192 = vld [vmem:[%s8187 + $0x10] sm:$0xf]
    %v8193 = vld [vmem:[%s8187 + $0x14] sm:$0xf]
    %v8194 = vld [vmem:[%s8187 + $0x18] sm:$0xf]
    %v8195 = vld [vmem:[%s8187 + $0x1c] sm:$0xf]
    %v8204 = vunpack.c.l.b16 %v8188
    %v8205 = vunpack.c.l.b16 %v8189
    %v8206 = vunpack.c.l.b16 %v8190
    %v8207 = vunpack.c.l.b16 %v8191
    %v8208 = vunpack.c.l.b16 %v8192
    %v8209 = vunpack.c.l.b16 %v8193
    %v8210 = vunpack.c.l.b16 %v8194
    %v8211 = vunpack.c.l.b16 %v8195
    %v8212 = vpack.c.b16 %v8205, %v8204
    %v8213 = vpack.c.b16 %v8207, %v8206
    %v8214 = vpack.c.b16 %v8209, %v8208
    %v8215 = vpack.c.b16 %v8211, %v8210
    %v8221 = vsel %vm196, %v8179, 0
    %v8224 = vsel %vm196, %v8180, 0
    %v8227 = vsel %vm196, %v8181, 0
    %v8230 = vsel %vm196, %v8182, 0
    %v8233 = vsel %vm196, %v8183, 0
    %v8236 = vsel %vm196, %v8184, 0
    %v8239 = vsel %vm196, %v8185, 0
    %v8242 = vsel %vm196, %v8186, 0
    %8244 = vmatpush.bf16.msra.mxu0 0
    %8245 = vmatpush.bf16.msra.mxu0 0
    %8246 = vmatpush.bf16.msra.mxu0 0
    %8247 = vmatpush.bf16.msra.mxu0 0
    %8248 = vmatpush.bf16.msra.mxu0 %v8215
    %8249 = vmatpush.bf16.msra.mxu0 %v8214
    %8250 = vmatpush.bf16.msra.mxu0 %v8213
    %8251 = vmatpush.bf16.msra.mxu0 %v8212
    %8252 = vmatmul.bf16.gmra.mxu0 %v8221
    %v8253 = vpop.f32.mrf.mxu0
    %v8254 = vadd.f32 0.0, %v8253
    %v8255 = vpop.f32.mrf.mxu0
    %v8256 = vadd.f32 0.0, %v8255
    %8257 = vmatmul.bf16.gmra.mxu0 %v8224
    %v8258 = vpop.f32.mrf.mxu0
    %v8259 = vadd.f32 0.0, %v8258
    %v8260 = vpop.f32.mrf.mxu0
    %v8261 = vadd.f32 0.0, %v8260
    %8262 = vmatmul.bf16.gmra.mxu0 %v8227
    %v8263 = vpop.f32.mrf.mxu0
    %v8264 = vadd.f32 0.0, %v8263
    %v8265 = vpop.f32.mrf.mxu0
    %v8266 = vadd.f32 0.0, %v8265
    %8267 = vmatmul.bf16.gmra.mxu0 %v8230
    %v8268 = vpop.f32.mrf.mxu0
    %v8269 = vadd.f32 0.0, %v8268
    %v8270 = vpop.f32.mrf.mxu0
    %v8271 = vadd.f32 0.0, %v8270
    %8272 = vmatmul.bf16.gmra.mxu0 %v8233
    %v8273 = vpop.f32.mrf.mxu0
    %v8274 = vadd.f32 0.0, %v8273
    %v8275 = vpop.f32.mrf.mxu0
    %v8276 = vadd.f32 0.0, %v8275
    %8277 = vmatmul.bf16.gmra.mxu0 %v8236
    %v8278 = vpop.f32.mrf.mxu0
    %v8279 = vadd.f32 0.0, %v8278
    %v8280 = vpop.f32.mrf.mxu0
    %v8281 = vadd.f32 0.0, %v8280
    %8282 = vmatmul.bf16.gmra.mxu0 %v8239
    %v8283 = vpop.f32.mrf.mxu0
    %v8284 = vadd.f32 0.0, %v8283
    %v8285 = vpop.f32.mrf.mxu0
    %v8286 = vadd.f32 0.0, %v8285
    %8287 = vmatmul.bf16.gmra.mxu0 %v8242
    %v8288 = vpop.f32.mrf.mxu0
    %v8289 = vadd.f32 0.0, %v8288
    %v8290 = vpop.f32.mrf.mxu0
    %v8291 = vadd.f32 0.0, %v8290
    %8292 = vdwg.mxu0
    %v8293 = vadd.f32 %v8147, %v8254
    %v8294 = vadd.f32 %v8148, %v8256
    %v8295 = vadd.f32 %v8149, %v8259
    %v8296 = vadd.f32 %v8150, %v8261
    %v8297 = vadd.f32 %v8151, %v8264
    %v8298 = vadd.f32 %v8152, %v8266
    %v8299 = vadd.f32 %v8153, %v8269
    %v8300 = vadd.f32 %v8154, %v8271
    %v8301 = vadd.f32 %v8155, %v8274
    %v8302 = vadd.f32 %v8156, %v8276
    %v8303 = vadd.f32 %v8157, %v8279
    %v8304 = vadd.f32 %v8158, %v8281
    %v8305 = vadd.f32 %v8159, %v8284
    %v8306 = vadd.f32 %v8160, %v8286
    %v8307 = vadd.f32 %v8161, %v8289
    %v8308 = vadd.f32 %v8162, %v8291
    %v8309 = vld [vmem:[%s210 + $0x8] sm:$0xff]
    %v8310 = vld [vmem:[%s210 + $0x20] sm:$0xff]
    %v8311 = vld [vmem:[%s210 + $0x38] sm:$0xff]
    %v8312 = vld [vmem:[%s210 + $0x50] sm:$0xff]
    %v8313 = vld [vmem:[%s210 + $0x68] sm:$0xff]
    %v8314 = vld [vmem:[%s210 + $0x80] sm:$0xff]
    %v8315 = vld [vmem:[%s210 + $0x98] sm:$0xff]
    %v8316 = vld [vmem:[%s210 + $0xb0] sm:$0xff]
    %v8317 = vld [vmem:[%s210 + $0xf8] sm:$0xff]
    %v8318 = vld [vmem:[%s210 + $0x110] sm:$0xff]
    %v8319 = vld [vmem:[%s210 + $0x128] sm:$0xff]
    %v8320 = vld [vmem:[%s210 + $0x140] sm:$0xff]
    %v8321 = vld [vmem:[%s210 + $0x158] sm:$0xff]
    %v8322 = vld [vmem:[%s210 + $0x170] sm:$0xff]
    %v8323 = vld [vmem:[%s210 + $0x188] sm:$0xff]
    %v8324 = vld [vmem:[%s210 + $0x1a0] sm:$0xff]
    %v8325 = vpack.c.bf16 %v8310, %v8309
    %v8326 = vpack.c.bf16 %v8312, %v8311
    %v8327 = vpack.c.bf16 %v8314, %v8313
    %v8328 = vpack.c.bf16 %v8316, %v8315
    %v8329 = vpack.c.bf16 %v8318, %v8317
    %v8330 = vpack.c.bf16 %v8320, %v8319
    %v8331 = vpack.c.bf16 %v8322, %v8321
    %v8332 = vpack.c.bf16 %v8324, %v8323
    %s8333 = scalar_lea.vmem %s4, 128
    %v8334 = vld [vmem:[%s8333] sm:$0xf]
    %v8335 = vld [vmem:[%s8333 + $0x4] sm:$0xf]
    %v8336 = vld [vmem:[%s8333 + $0x8] sm:$0xf]
    %v8337 = vld [vmem:[%s8333 + $0xc] sm:$0xf]
    %v8338 = vld [vmem:[%s8333 + $0x10] sm:$0xf]
    %v8339 = vld [vmem:[%s8333 + $0x14] sm:$0xf]
    %v8340 = vld [vmem:[%s8333 + $0x18] sm:$0xf]
    %v8341 = vld [vmem:[%s8333 + $0x1c] sm:$0xf]
    %v8350 = vunpack.c.l.b16 %v8334
    %v8351 = vunpack.c.l.b16 %v8335
    %v8352 = vunpack.c.l.b16 %v8336
    %v8353 = vunpack.c.l.b16 %v8337
    %v8354 = vunpack.c.l.b16 %v8338
    %v8355 = vunpack.c.l.b16 %v8339
    %v8356 = vunpack.c.l.b16 %v8340
    %v8357 = vunpack.c.l.b16 %v8341
    %v8358 = vpack.c.b16 %v8351, %v8350
    %v8359 = vpack.c.b16 %v8353, %v8352
    %v8360 = vpack.c.b16 %v8355, %v8354
    %v8361 = vpack.c.b16 %v8357, %v8356
    %v8367 = vsel %vm196, %v8325, 0
    %v8370 = vsel %vm196, %v8326, 0
    %v8373 = vsel %vm196, %v8327, 0
    %v8376 = vsel %vm196, %v8328, 0
    %v8379 = vsel %vm196, %v8329, 0
    %v8382 = vsel %vm196, %v8330, 0
    %v8385 = vsel %vm196, %v8331, 0
    %v8388 = vsel %vm196, %v8332, 0
    %8390 = vmatpush.bf16.msra.mxu0 0
    %8391 = vmatpush.bf16.msra.mxu0 0
    %8392 = vmatpush.bf16.msra.mxu0 0
    %8393 = vmatpush.bf16.msra.mxu0 0
    %8394 = vmatpush.bf16.msra.mxu0 %v8361
    %8395 = vmatpush.bf16.msra.mxu0 %v8360
    %8396 = vmatpush.bf16.msra.mxu0 %v8359
    %8397 = vmatpush.bf16.msra.mxu0 %v8358
    %8398 = vmatmul.bf16.gmra.mxu0 %v8367
    %v8399 = vpop.f32.mrf.mxu0
    %v8400 = vadd.f32 0.0, %v8399
    %v8401 = vpop.f32.mrf.mxu0
    %v8402 = vadd.f32 0.0, %v8401
    %8403 = vmatmul.bf16.gmra.mxu0 %v8370
    %v8404 = vpop.f32.mrf.mxu0
    %v8405 = vadd.f32 0.0, %v8404
    %v8406 = vpop.f32.mrf.mxu0
    %v8407 = vadd.f32 0.0, %v8406
    %8408 = vmatmul.bf16.gmra.mxu0 %v8373
    %v8409 = vpop.f32.mrf.mxu0
    %v8410 = vadd.f32 0.0, %v8409
    %v8411 = vpop.f32.mrf.mxu0
    %v8412 = vadd.f32 0.0, %v8411
    %8413 = vmatmul.bf16.gmra.mxu0 %v8376
    %v8414 = vpop.f32.mrf.mxu0
    %v8415 = vadd.f32 0.0, %v8414
    %v8416 = vpop.f32.mrf.mxu0
    %v8417 = vadd.f32 0.0, %v8416
    %8418 = vmatmul.bf16.gmra.mxu0 %v8379
    %v8419 = vpop.f32.mrf.mxu0
    %v8420 = vadd.f32 0.0, %v8419
    %v8421 = vpop.f32.mrf.mxu0
    %v8422 = vadd.f32 0.0, %v8421
    %8423 = vmatmul.bf16.gmra.mxu0 %v8382
    %v8424 = vpop.f32.mrf.mxu0
    %v8425 = vadd.f32 0.0, %v8424
    %v8426 = vpop.f32.mrf.mxu0
    %v8427 = vadd.f32 0.0, %v8426
    %8428 = vmatmul.bf16.gmra.mxu0 %v8385
    %v8429 = vpop.f32.mrf.mxu0
    %v8430 = vadd.f32 0.0, %v8429
    %v8431 = vpop.f32.mrf.mxu0
    %v8432 = vadd.f32 0.0, %v8431
    %8433 = vmatmul.bf16.gmra.mxu0 %v8388
    %v8434 = vpop.f32.mrf.mxu0
    %v8435 = vadd.f32 0.0, %v8434
    %v8436 = vpop.f32.mrf.mxu0
    %v8437 = vadd.f32 0.0, %v8436
    %8438 = vdwg.mxu0
    %v8439 = vadd.f32 %v8293, %v8400
    %v8440 = vadd.f32 %v8294, %v8402
    %v8441 = vadd.f32 %v8295, %v8405
    %v8442 = vadd.f32 %v8296, %v8407
    %v8443 = vadd.f32 %v8297, %v8410
    %v8444 = vadd.f32 %v8298, %v8412
    %v8445 = vadd.f32 %v8299, %v8415
    %v8446 = vadd.f32 %v8300, %v8417
    %v8447 = vadd.f32 %v8301, %v8420
    %v8448 = vadd.f32 %v8302, %v8422
    %v8449 = vadd.f32 %v8303, %v8425
    %v8450 = vadd.f32 %v8304, %v8427
    %v8451 = vadd.f32 %v8305, %v8430
    %v8452 = vadd.f32 %v8306, %v8432
    %v8453 = vadd.f32 %v8307, %v8435
    %v8454 = vadd.f32 %v8308, %v8437
    %v8455 = vld [vmem:[%s210 + $0x9] sm:$0xff]
    %v8456 = vld [vmem:[%s210 + $0x21] sm:$0xff]
    %v8457 = vld [vmem:[%s210 + $0x39] sm:$0xff]
    %v8458 = vld [vmem:[%s210 + $0x51] sm:$0xff]
    %v8459 = vld [vmem:[%s210 + $0x69] sm:$0xff]
    %v8460 = vld [vmem:[%s210 + $0x81] sm:$0xff]
    %v8461 = vld [vmem:[%s210 + $0x99] sm:$0xff]
    %v8462 = vld [vmem:[%s210 + $0xb1] sm:$0xff]
    %v8463 = vld [vmem:[%s210 + $0xf9] sm:$0xff]
    %v8464 = vld [vmem:[%s210 + $0x111] sm:$0xff]
    %v8465 = vld [vmem:[%s210 + $0x129] sm:$0xff]
    %v8466 = vld [vmem:[%s210 + $0x141] sm:$0xff]
    %v8467 = vld [vmem:[%s210 + $0x159] sm:$0xff]
    %v8468 = vld [vmem:[%s210 + $0x171] sm:$0xff]
    %v8469 = vld [vmem:[%s210 + $0x189] sm:$0xff]
    %v8470 = vld [vmem:[%s210 + $0x1a1] sm:$0xff]
    %v8471 = vpack.c.bf16 %v8456, %v8455
    %v8472 = vpack.c.bf16 %v8458, %v8457
    %v8473 = vpack.c.bf16 %v8460, %v8459
    %v8474 = vpack.c.bf16 %v8462, %v8461
    %v8475 = vpack.c.bf16 %v8464, %v8463
    %v8476 = vpack.c.bf16 %v8466, %v8465
    %v8477 = vpack.c.bf16 %v8468, %v8467
    %v8478 = vpack.c.bf16 %v8470, %v8469
    %s8479 = scalar_lea.vmem %s4, 160
    %v8480 = vld [vmem:[%s8479] sm:$0xf]
    %v8481 = vld [vmem:[%s8479 + $0x4] sm:$0xf]
    %v8482 = vld [vmem:[%s8479 + $0x8] sm:$0xf]
    %v8483 = vld [vmem:[%s8479 + $0xc] sm:$0xf]
    %v8484 = vld [vmem:[%s8479 + $0x10] sm:$0xf]
    %v8485 = vld [vmem:[%s8479 + $0x14] sm:$0xf]
    %v8486 = vld [vmem:[%s8479 + $0x18] sm:$0xf]
    %v8487 = vld [vmem:[%s8479 + $0x1c] sm:$0xf]
    %v8496 = vunpack.c.l.b16 %v8480
    %v8497 = vunpack.c.l.b16 %v8481
    %v8498 = vunpack.c.l.b16 %v8482
    %v8499 = vunpack.c.l.b16 %v8483
    %v8500 = vunpack.c.l.b16 %v8484
    %v8501 = vunpack.c.l.b16 %v8485
    %v8502 = vunpack.c.l.b16 %v8486
    %v8503 = vunpack.c.l.b16 %v8487
    %v8504 = vpack.c.b16 %v8497, %v8496
    %v8505 = vpack.c.b16 %v8499, %v8498
    %v8506 = vpack.c.b16 %v8501, %v8500
    %v8507 = vpack.c.b16 %v8503, %v8502
    %v8513 = vsel %vm196, %v8471, 0
    %v8516 = vsel %vm196, %v8472, 0
    %v8519 = vsel %vm196, %v8473, 0
    %v8522 = vsel %vm196, %v8474, 0
    %v8525 = vsel %vm196, %v8475, 0
    %v8528 = vsel %vm196, %v8476, 0
    %v8531 = vsel %vm196, %v8477, 0
    %v8534 = vsel %vm196, %v8478, 0
    %8536 = vmatpush.bf16.msra.mxu0 0
    %8537 = vmatpush.bf16.msra.mxu0 0
    %8538 = vmatpush.bf16.msra.mxu0 0
    %8539 = vmatpush.bf16.msra.mxu0 0
    %8540 = vmatpush.bf16.msra.mxu0 %v8507
    %8541 = vmatpush.bf16.msra.mxu0 %v8506
    %8542 = vmatpush.bf16.msra.mxu0 %v8505
    %8543 = vmatpush.bf16.msra.mxu0 %v8504
    %8544 = vmatmul.bf16.gmra.mxu0 %v8513
    %v8545 = vpop.f32.mrf.mxu0
    %v8546 = vadd.f32 0.0, %v8545
    %v8547 = vpop.f32.mrf.mxu0
    %v8548 = vadd.f32 0.0, %v8547
    %8549 = vmatmul.bf16.gmra.mxu0 %v8516
    %v8550 = vpop.f32.mrf.mxu0
    %v8551 = vadd.f32 0.0, %v8550
    %v8552 = vpop.f32.mrf.mxu0
    %v8553 = vadd.f32 0.0, %v8552
    %8554 = vmatmul.bf16.gmra.mxu0 %v8519
    %v8555 = vpop.f32.mrf.mxu0
    %v8556 = vadd.f32 0.0, %v8555
    %v8557 = vpop.f32.mrf.mxu0
    %v8558 = vadd.f32 0.0, %v8557
    %8559 = vmatmul.bf16.gmra.mxu0 %v8522
    %v8560 = vpop.f32.mrf.mxu0
    %v8561 = vadd.f32 0.0, %v8560
    %v8562 = vpop.f32.mrf.mxu0
    %v8563 = vadd.f32 0.0, %v8562
    %8564 = vmatmul.bf16.gmra.mxu0 %v8525
    %v8565 = vpop.f32.mrf.mxu0
    %v8566 = vadd.f32 0.0, %v8565
    %v8567 = vpop.f32.mrf.mxu0
    %v8568 = vadd.f32 0.0, %v8567
    %8569 = vmatmul.bf16.gmra.mxu0 %v8528
    %v8570 = vpop.f32.mrf.mxu0
    %v8571 = vadd.f32 0.0, %v8570
    %v8572 = vpop.f32.mrf.mxu0
    %v8573 = vadd.f32 0.0, %v8572
    %8574 = vmatmul.bf16.gmra.mxu0 %v8531
    %v8575 = vpop.f32.mrf.mxu0
    %v8576 = vadd.f32 0.0, %v8575
    %v8577 = vpop.f32.mrf.mxu0
    %v8578 = vadd.f32 0.0, %v8577
    %8579 = vmatmul.bf16.gmra.mxu0 %v8534
    %v8580 = vpop.f32.mrf.mxu0
    %v8581 = vadd.f32 0.0, %v8580
    %v8582 = vpop.f32.mrf.mxu0
    %v8583 = vadd.f32 0.0, %v8582
    %8584 = vdwg.mxu0
    %v8585 = vadd.f32 %v8439, %v8546
    %v8586 = vadd.f32 %v8440, %v8548
    %v8587 = vadd.f32 %v8441, %v8551
    %v8588 = vadd.f32 %v8442, %v8553
    %v8589 = vadd.f32 %v8443, %v8556
    %v8590 = vadd.f32 %v8444, %v8558
    %v8591 = vadd.f32 %v8445, %v8561
    %v8592 = vadd.f32 %v8446, %v8563
    %v8593 = vadd.f32 %v8447, %v8566
    %v8594 = vadd.f32 %v8448, %v8568
    %v8595 = vadd.f32 %v8449, %v8571
    %v8596 = vadd.f32 %v8450, %v8573
    %v8597 = vadd.f32 %v8451, %v8576
    %v8598 = vadd.f32 %v8452, %v8578
    %v8599 = vadd.f32 %v8453, %v8581
    %v8600 = vadd.f32 %v8454, %v8583
    %s8601 = scalar_lea.vmem [#allocation4], 48
    %v8602 = vld [vmem:[%s8601 + $0x7] sm:$0xff]
    %v8603 = vld [vmem:[%s8601 + $0x1f] sm:$0xff]
    %v8604 = vld [vmem:[%s8601 + $0x37] sm:$0xff]
    %v8605 = vld [vmem:[%s8601 + $0x4f] sm:$0xff]
    %v8606 = vld [vmem:[%s8601 + $0x67] sm:$0xff]
    %v8607 = vld [vmem:[%s8601 + $0x7f] sm:$0xff]
    %v8608 = vld [vmem:[%s8601 + $0x97] sm:$0xff]
    %v8609 = vld [vmem:[%s8601 + $0xaf] sm:$0xff]
    %v8610 = vld [vmem:[%s8601 + $0xf7] sm:$0xff]
    %v8611 = vld [vmem:[%s8601 + $0x10f] sm:$0xff]
    %v8612 = vld [vmem:[%s8601 + $0x127] sm:$0xff]
    %v8613 = vld [vmem:[%s8601 + $0x13f] sm:$0xff]
    %v8614 = vld [vmem:[%s8601 + $0x157] sm:$0xff]
    %v8615 = vld [vmem:[%s8601 + $0x16f] sm:$0xff]
    %v8616 = vld [vmem:[%s8601 + $0x187] sm:$0xff]
    %v8617 = vld [vmem:[%s8601 + $0x19f] sm:$0xff]
    %v8618 = vpack.c.bf16 %v8603, %v8602
    %v8619 = vpack.c.bf16 %v8605, %v8604
    %v8620 = vpack.c.bf16 %v8607, %v8606
    %v8621 = vpack.c.bf16 %v8609, %v8608
    %v8622 = vpack.c.bf16 %v8611, %v8610
    %v8623 = vpack.c.bf16 %v8613, %v8612
    %v8624 = vpack.c.bf16 %v8615, %v8614
    %v8625 = vpack.c.bf16 %v8617, %v8616
    %s8626 = scalar_lea.vmem %s4, 192
    %v8627 = vld [vmem:[%s8626] sm:$0xf]
    %v8628 = vld [vmem:[%s8626 + $0x4] sm:$0xf]
    %v8629 = vld [vmem:[%s8626 + $0x8] sm:$0xf]
    %v8630 = vld [vmem:[%s8626 + $0xc] sm:$0xf]
    %v8631 = vld [vmem:[%s8626 + $0x10] sm:$0xf]
    %v8632 = vld [vmem:[%s8626 + $0x14] sm:$0xf]
    %v8633 = vld [vmem:[%s8626 + $0x18] sm:$0xf]
    %v8634 = vld [vmem:[%s8626 + $0x1c] sm:$0xf]
    %v8643 = vunpack.c.l.b16 %v8627
    %v8644 = vunpack.c.l.b16 %v8628
    %v8645 = vunpack.c.l.b16 %v8629
    %v8646 = vunpack.c.l.b16 %v8630
    %v8647 = vunpack.c.l.b16 %v8631
    %v8648 = vunpack.c.l.b16 %v8632
    %v8649 = vunpack.c.l.b16 %v8633
    %v8650 = vunpack.c.l.b16 %v8634
    %v8651 = vpack.c.b16 %v8644, %v8643
    %v8652 = vpack.c.b16 %v8646, %v8645
    %v8653 = vpack.c.b16 %v8648, %v8647
    %v8654 = vpack.c.b16 %v8650, %v8649
    %v8660 = vsel %vm196, %v8618, 0
    %v8663 = vsel %vm196, %v8619, 0
    %v8666 = vsel %vm196, %v8620, 0
    %v8669 = vsel %vm196, %v8621, 0
    %v8672 = vsel %vm196, %v8622, 0
    %v8675 = vsel %vm196, %v8623, 0
    %v8678 = vsel %vm196, %v8624, 0
    %v8681 = vsel %vm196, %v8625, 0
    %8683 = vmatpush.bf16.msra.mxu0 0
    %8684 = vmatpush.bf16.msra.mxu0 0
    %8685 = vmatpush.bf16.msra.mxu0 0
    %8686 = vmatpush.bf16.msra.mxu0 0
    %8687 = vmatpush.bf16.msra.mxu0 %v8654
    %8688 = vmatpush.bf16.msra.mxu0 %v8653
    %8689 = vmatpush.bf16.msra.mxu0 %v8652
    %8690 = vmatpush.bf16.msra.mxu0 %v8651
    %8691 = vmatmul.bf16.gmra.mxu0 %v8660
    %v8692 = vpop.f32.mrf.mxu0
    %v8693 = vadd.f32 0.0, %v8692
    %v8694 = vpop.f32.mrf.mxu0
    %v8695 = vadd.f32 0.0, %v8694
    %8696 = vmatmul.bf16.gmra.mxu0 %v8663
    %v8697 = vpop.f32.mrf.mxu0
    %v8698 = vadd.f32 0.0, %v8697
    %v8699 = vpop.f32.mrf.mxu0
    %v8700 = vadd.f32 0.0, %v8699
    %8701 = vmatmul.bf16.gmra.mxu0 %v8666
    %v8702 = vpop.f32.mrf.mxu0
    %v8703 = vadd.f32 0.0, %v8702
    %v8704 = vpop.f32.mrf.mxu0
    %v8705 = vadd.f32 0.0, %v8704
    %8706 = vmatmul.bf16.gmra.mxu0 %v8669
    %v8707 = vpop.f32.mrf.mxu0
    %v8708 = vadd.f32 0.0, %v8707
    %v8709 = vpop.f32.mrf.mxu0
    %v8710 = vadd.f32 0.0, %v8709
    %8711 = vmatmul.bf16.gmra.mxu0 %v8672
    %v8712 = vpop.f32.mrf.mxu0
    %v8713 = vadd.f32 0.0, %v8712
    %v8714 = vpop.f32.mrf.mxu0
    %v8715 = vadd.f32 0.0, %v8714
    %8716 = vmatmul.bf16.gmra.mxu0 %v8675
    %v8717 = vpop.f32.mrf.mxu0
    %v8718 = vadd.f32 0.0, %v8717
    %v8719 = vpop.f32.mrf.mxu0
    %v8720 = vadd.f32 0.0, %v8719
    %8721 = vmatmul.bf16.gmra.mxu0 %v8678
    %v8722 = vpop.f32.mrf.mxu0
    %v8723 = vadd.f32 0.0, %v8722
    %v8724 = vpop.f32.mrf.mxu0
    %v8725 = vadd.f32 0.0, %v8724
    %8726 = vmatmul.bf16.gmra.mxu0 %v8681
    %v8727 = vpop.f32.mrf.mxu0
    %v8728 = vadd.f32 0.0, %v8727
    %v8729 = vpop.f32.mrf.mxu0
    %v8730 = vadd.f32 0.0, %v8729
    %8731 = vdwg.mxu0
    %v8732 = vadd.f32 %v8585, %v8693
    %v8733 = vadd.f32 %v8586, %v8695
    %v8734 = vadd.f32 %v8587, %v8698
    %v8735 = vadd.f32 %v8588, %v8700
    %v8736 = vadd.f32 %v8589, %v8703
    %v8737 = vadd.f32 %v8590, %v8705
    %v8738 = vadd.f32 %v8591, %v8708
    %v8739 = vadd.f32 %v8592, %v8710
    %v8740 = vadd.f32 %v8593, %v8713
    %v8741 = vadd.f32 %v8594, %v8715
    %v8742 = vadd.f32 %v8595, %v8718
    %v8743 = vadd.f32 %v8596, %v8720
    %v8744 = vadd.f32 %v8597, %v8723
    %v8745 = vadd.f32 %v8598, %v8725
    %v8746 = vadd.f32 %v8599, %v8728
    %v8747 = vadd.f32 %v8600, %v8730
    %v8748 = vld [vmem:[%s8601 + $0x8] sm:$0xff]
    %v8749 = vld [vmem:[%s8601 + $0x20] sm:$0xff]
    %v8750 = vld [vmem:[%s8601 + $0x38] sm:$0xff]
    %v8751 = vld [vmem:[%s8601 + $0x50] sm:$0xff]
    %v8752 = vld [vmem:[%s8601 + $0x68] sm:$0xff]
    %v8753 = vld [vmem:[%s8601 + $0x80] sm:$0xff]
    %v8754 = vld [vmem:[%s8601 + $0x98] sm:$0xff]
    %v8755 = vld [vmem:[%s8601 + $0xb0] sm:$0xff]
    %v8756 = vld [vmem:[%s8601 + $0xf8] sm:$0xff]
    %v8757 = vld [vmem:[%s8601 + $0x110] sm:$0xff]
    %v8758 = vld [vmem:[%s8601 + $0x128] sm:$0xff]
    %v8759 = vld [vmem:[%s8601 + $0x140] sm:$0xff]
    %v8760 = vld [vmem:[%s8601 + $0x158] sm:$0xff]
    %v8761 = vld [vmem:[%s8601 + $0x170] sm:$0xff]
    %v8762 = vld [vmem:[%s8601 + $0x188] sm:$0xff]
    %v8763 = vld [vmem:[%s8601 + $0x1a0] sm:$0xff]
    %v8764 = vpack.c.bf16 %v8749, %v8748
    %v8765 = vpack.c.bf16 %v8751, %v8750
    %v8766 = vpack.c.bf16 %v8753, %v8752
    %v8767 = vpack.c.bf16 %v8755, %v8754
    %v8768 = vpack.c.bf16 %v8757, %v8756
    %v8769 = vpack.c.bf16 %v8759, %v8758
    %v8770 = vpack.c.bf16 %v8761, %v8760
    %v8771 = vpack.c.bf16 %v8763, %v8762
    %s8772 = scalar_lea.vmem %s4, 224
    %v8773 = vld [vmem:[%s8772] sm:$0xf]
    %v8774 = vld [vmem:[%s8772 + $0x4] sm:$0xf]
    %v8775 = vld [vmem:[%s8772 + $0x8] sm:$0xf]
    %v8776 = vld [vmem:[%s8772 + $0xc] sm:$0xf]
    %v8777 = vld [vmem:[%s8772 + $0x10] sm:$0xf]
    %v8778 = vld [vmem:[%s8772 + $0x14] sm:$0xf]
    %v8779 = vld [vmem:[%s8772 + $0x18] sm:$0xf]
    %v8780 = vld [vmem:[%s8772 + $0x1c] sm:$0xf]
    %v8789 = vunpack.c.l.b16 %v8773
    %v8790 = vunpack.c.l.b16 %v8774
    %v8791 = vunpack.c.l.b16 %v8775
    %v8792 = vunpack.c.l.b16 %v8776
    %v8793 = vunpack.c.l.b16 %v8777
    %v8794 = vunpack.c.l.b16 %v8778
    %v8795 = vunpack.c.l.b16 %v8779
    %v8796 = vunpack.c.l.b16 %v8780
    %v8797 = vpack.c.b16 %v8790, %v8789
    %v8798 = vpack.c.b16 %v8792, %v8791
    %v8799 = vpack.c.b16 %v8794, %v8793
    %v8800 = vpack.c.b16 %v8796, %v8795
    %v8806 = vsel %vm196, %v8764, 0
    %v8809 = vsel %vm196, %v8765, 0
    %v8812 = vsel %vm196, %v8766, 0
    %v8815 = vsel %vm196, %v8767, 0
    %v8818 = vsel %vm196, %v8768, 0
    %v8821 = vsel %vm196, %v8769, 0
    %v8824 = vsel %vm196, %v8770, 0
    %v8827 = vsel %vm196, %v8771, 0
    %8829 = vmatpush.bf16.msra.mxu0 0
    %8830 = vmatpush.bf16.msra.mxu0 0
    %8831 = vmatpush.bf16.msra.mxu0 0
    %8832 = vmatpush.bf16.msra.mxu0 0
    %8833 = vmatpush.bf16.msra.mxu0 %v8800
    %8834 = vmatpush.bf16.msra.mxu0 %v8799
    %8835 = vmatpush.bf16.msra.mxu0 %v8798
    %8836 = vmatpush.bf16.msra.mxu0 %v8797
    %8837 = vmatmul.bf16.gmra.mxu0 %v8806
    %v8838 = vpop.f32.mrf.mxu0
    %v8839 = vadd.f32 0.0, %v8838
    %v8840 = vpop.f32.mrf.mxu0
    %v8841 = vadd.f32 0.0, %v8840
    %8842 = vmatmul.bf16.gmra.mxu0 %v8809
    %v8843 = vpop.f32.mrf.mxu0
    %v8844 = vadd.f32 0.0, %v8843
    %v8845 = vpop.f32.mrf.mxu0
    %v8846 = vadd.f32 0.0, %v8845
    %8847 = vmatmul.bf16.gmra.mxu0 %v8812
    %v8848 = vpop.f32.mrf.mxu0
    %v8849 = vadd.f32 0.0, %v8848
    %v8850 = vpop.f32.mrf.mxu0
    %v8851 = vadd.f32 0.0, %v8850
    %8852 = vmatmul.bf16.gmra.mxu0 %v8815
    %v8853 = vpop.f32.mrf.mxu0
    %v8854 = vadd.f32 0.0, %v8853
    %v8855 = vpop.f32.mrf.mxu0
    %v8856 = vadd.f32 0.0, %v8855
    %8857 = vmatmul.bf16.gmra.mxu0 %v8818
    %v8858 = vpop.f32.mrf.mxu0
    %v8859 = vadd.f32 0.0, %v8858
    %v8860 = vpop.f32.mrf.mxu0
    %v8861 = vadd.f32 0.0, %v8860
    %8862 = vmatmul.bf16.gmra.mxu0 %v8821
    %v8863 = vpop.f32.mrf.mxu0
    %v8864 = vadd.f32 0.0, %v8863
    %v8865 = vpop.f32.mrf.mxu0
    %v8866 = vadd.f32 0.0, %v8865
    %8867 = vmatmul.bf16.gmra.mxu0 %v8824
    %v8868 = vpop.f32.mrf.mxu0
    %v8869 = vadd.f32 0.0, %v8868
    %v8870 = vpop.f32.mrf.mxu0
    %v8871 = vadd.f32 0.0, %v8870
    %8872 = vmatmul.bf16.gmra.mxu0 %v8827
    %v8873 = vpop.f32.mrf.mxu0
    %v8874 = vadd.f32 0.0, %v8873
    %v8875 = vpop.f32.mrf.mxu0
    %v8876 = vadd.f32 0.0, %v8875
    %8877 = vdwg.mxu0
    %v8878 = vadd.f32 %v8732, %v8839
    %v8879 = vadd.f32 %v8733, %v8841
    %v8880 = vadd.f32 %v8734, %v8844
    %v8881 = vadd.f32 %v8735, %v8846
    %v8882 = vadd.f32 %v8736, %v8849
    %v8883 = vadd.f32 %v8737, %v8851
    %v8884 = vadd.f32 %v8738, %v8854
    %v8885 = vadd.f32 %v8739, %v8856
    %v8886 = vadd.f32 %v8740, %v8859
    %v8887 = vadd.f32 %v8741, %v8861
    %v8888 = vadd.f32 %v8742, %v8864
    %v8889 = vadd.f32 %v8743, %v8866
    %v8890 = vadd.f32 %v8744, %v8869
    %v8891 = vadd.f32 %v8745, %v8871
    %v8892 = vadd.f32 %v8746, %v8874
    %v8893 = vadd.f32 %v8747, %v8876
    %v8894 = vld [vmem:[%s8601 + $0x9] sm:$0xff]
    %v8895 = vld [vmem:[%s8601 + $0x21] sm:$0xff]
    %v8896 = vld [vmem:[%s8601 + $0x39] sm:$0xff]
    %v8897 = vld [vmem:[%s8601 + $0x51] sm:$0xff]
    %v8898 = vld [vmem:[%s8601 + $0x69] sm:$0xff]
    %v8899 = vld [vmem:[%s8601 + $0x81] sm:$0xff]
    %v8900 = vld [vmem:[%s8601 + $0x99] sm:$0xff]
    %v8901 = vld [vmem:[%s8601 + $0xb1] sm:$0xff]
    %v8902 = vld [vmem:[%s8601 + $0xf9] sm:$0xff]
    %v8903 = vld [vmem:[%s8601 + $0x111] sm:$0xff]
    %v8904 = vld [vmem:[%s8601 + $0x129] sm:$0xff]
    %v8905 = vld [vmem:[%s8601 + $0x141] sm:$0xff]
    %v8906 = vld [vmem:[%s8601 + $0x159] sm:$0xff]
    %v8907 = vld [vmem:[%s8601 + $0x171] sm:$0xff]
    %v8908 = vld [vmem:[%s8601 + $0x189] sm:$0xff]
    %v8909 = vld [vmem:[%s8601 + $0x1a1] sm:$0xff]
    %v8910 = vpack.c.bf16 %v8895, %v8894
    %v8911 = vpack.c.bf16 %v8897, %v8896
    %v8912 = vpack.c.bf16 %v8899, %v8898
    %v8913 = vpack.c.bf16 %v8901, %v8900
    %v8914 = vpack.c.bf16 %v8903, %v8902
    %v8915 = vpack.c.bf16 %v8905, %v8904
    %v8916 = vpack.c.bf16 %v8907, %v8906
    %v8917 = vpack.c.bf16 %v8909, %v8908
    %s8918 = scalar_lea.vmem %s4, 256
    %v8919 = vld [vmem:[%s8918] sm:$0xf]
    %v8920 = vld [vmem:[%s8918 + $0x4] sm:$0xf]
    %v8921 = vld [vmem:[%s8918 + $0x8] sm:$0xf]
    %v8922 = vld [vmem:[%s8918 + $0xc] sm:$0xf]
    %v8923 = vld [vmem:[%s8918 + $0x10] sm:$0xf]
    %v8924 = vld [vmem:[%s8918 + $0x14] sm:$0xf]
    %v8925 = vld [vmem:[%s8918 + $0x18] sm:$0xf]
    %v8926 = vld [vmem:[%s8918 + $0x1c] sm:$0xf]
    %v8935 = vunpack.c.l.b16 %v8919
    %v8936 = vunpack.c.l.b16 %v8920
    %v8937 = vunpack.c.l.b16 %v8921
    %v8938 = vunpack.c.l.b16 %v8922
    %v8939 = vunpack.c.l.b16 %v8923
    %v8940 = vunpack.c.l.b16 %v8924
    %v8941 = vunpack.c.l.b16 %v8925
    %v8942 = vunpack.c.l.b16 %v8926
    %v8943 = vpack.c.b16 %v8936, %v8935
    %v8944 = vpack.c.b16 %v8938, %v8937
    %v8945 = vpack.c.b16 %v8940, %v8939
    %v8946 = vpack.c.b16 %v8942, %v8941
    %v8952 = vsel %vm196, %v8910, 0
    %v8955 = vsel %vm196, %v8911, 0
    %v8958 = vsel %vm196, %v8912, 0
    %v8961 = vsel %vm196, %v8913, 0
    %v8964 = vsel %vm196, %v8914, 0
    %v8967 = vsel %vm196, %v8915, 0
    %v8970 = vsel %vm196, %v8916, 0
    %v8973 = vsel %vm196, %v8917, 0
    %8975 = vmatpush.bf16.msra.mxu0 0
    %8976 = vmatpush.bf16.msra.mxu0 0
    %8977 = vmatpush.bf16.msra.mxu0 0
    %8978 = vmatpush.bf16.msra.mxu0 0
    %8979 = vmatpush.bf16.msra.mxu0 %v8946
    %8980 = vmatpush.bf16.msra.mxu0 %v8945
    %8981 = vmatpush.bf16.msra.mxu0 %v8944
    %8982 = vmatpush.bf16.msra.mxu0 %v8943
    %8983 = vmatmul.bf16.gmra.mxu0 %v8952
    %v8984 = vpop.f32.mrf.mxu0
    %v8985 = vadd.f32 0.0, %v8984
    %v8986 = vpop.f32.mrf.mxu0
    %v8987 = vadd.f32 0.0, %v8986
    %8988 = vmatmul.bf16.gmra.mxu0 %v8955
    %v8989 = vpop.f32.mrf.mxu0
    %v8990 = vadd.f32 0.0, %v8989
    %v8991 = vpop.f32.mrf.mxu0
    %v8992 = vadd.f32 0.0, %v8991
    %8993 = vmatmul.bf16.gmra.mxu0 %v8958
    %v8994 = vpop.f32.mrf.mxu0
    %v8995 = vadd.f32 0.0, %v8994
    %v8996 = vpop.f32.mrf.mxu0
    %v8997 = vadd.f32 0.0, %v8996
    %8998 = vmatmul.bf16.gmra.mxu0 %v8961
    %v8999 = vpop.f32.mrf.mxu0
    %v9000 = vadd.f32 0.0, %v8999
    %v9001 = vpop.f32.mrf.mxu0
    %v9002 = vadd.f32 0.0, %v9001
    %9003 = vmatmul.bf16.gmra.mxu0 %v8964
    %v9004 = vpop.f32.mrf.mxu0
    %v9005 = vadd.f32 0.0, %v9004
    %v9006 = vpop.f32.mrf.mxu0
    %v9007 = vadd.f32 0.0, %v9006
    %9008 = vmatmul.bf16.gmra.mxu0 %v8967
    %v9009 = vpop.f32.mrf.mxu0
    %v9010 = vadd.f32 0.0, %v9009
    %v9011 = vpop.f32.mrf.mxu0
    %v9012 = vadd.f32 0.0, %v9011
    %9013 = vmatmul.bf16.gmra.mxu0 %v8970
    %v9014 = vpop.f32.mrf.mxu0
    %v9015 = vadd.f32 0.0, %v9014
    %v9016 = vpop.f32.mrf.mxu0
    %v9017 = vadd.f32 0.0, %v9016
    %9018 = vmatmul.bf16.gmra.mxu0 %v8973
    %v9019 = vpop.f32.mrf.mxu0
    %v9020 = vadd.f32 0.0, %v9019
    %v9021 = vpop.f32.mrf.mxu0
    %v9022 = vadd.f32 0.0, %v9021
    %9023 = vdwg.mxu0
    %v9024 = vadd.f32 %v8878, %v8985
    %v9025 = vadd.f32 %v8879, %v8987
    %v9026 = vadd.f32 %v8880, %v8990
    %v9027 = vadd.f32 %v8881, %v8992
    %v9028 = vadd.f32 %v8882, %v8995
    %v9029 = vadd.f32 %v8883, %v8997
    %v9030 = vadd.f32 %v8884, %v9000
    %v9031 = vadd.f32 %v8885, %v9002
    %v9032 = vadd.f32 %v8886, %v9005
    %v9033 = vadd.f32 %v8887, %v9007
    %v9034 = vadd.f32 %v8888, %v9010
    %v9035 = vadd.f32 %v8889, %v9012
    %v9036 = vadd.f32 %v8890, %v9015
    %v9037 = vadd.f32 %v8891, %v9017
    %v9038 = vadd.f32 %v8892, %v9020
    %v9039 = vadd.f32 %v8893, %v9022
    %v9040 = vld [vmem:[%s5 + $0x3] sm:$0x1]
    %v9041 = vperm.slane %v9040, 0
    %v9042 = vadd.f32 %v9024, %v9041
    %v9043 = vadd.f32 %v9025, %v9041
    %v9044 = vadd.f32 %v9026, %v9041
    %v9045 = vadd.f32 %v9027, %v9041
    %v9046 = vadd.f32 %v9028, %v9041
    %v9047 = vadd.f32 %v9029, %v9041
    %v9048 = vadd.f32 %v9030, %v9041
    %v9049 = vadd.f32 %v9031, %v9041
    %v9050 = vadd.f32 %v9032, %v9041
    %v9051 = vadd.f32 %v9033, %v9041
    %v9052 = vadd.f32 %v9034, %v9041
    %v9053 = vadd.f32 %v9035, %v9041
    %v9054 = vadd.f32 %v9036, %v9041
    %v9055 = vadd.f32 %v9037, %v9041
    %v9056 = vadd.f32 %v9038, %v9041
    %v9057 = vadd.f32 %v9039, %v9041
    %vm9058 = vcmp.ge.f32.partialorder %v9042, 0.0
    %vm9059 = vcmp.ge.f32.partialorder %v9043, 0.0
    %vm9060 = vcmp.ge.f32.partialorder %v9044, 0.0
    %vm9061 = vcmp.ge.f32.partialorder %v9045, 0.0
    %vm9062 = vcmp.ge.f32.partialorder %v9046, 0.0
    %vm9063 = vcmp.ge.f32.partialorder %v9047, 0.0
    %vm9064 = vcmp.ge.f32.partialorder %v9048, 0.0
    %vm9065 = vcmp.ge.f32.partialorder %v9049, 0.0
    %vm9066 = vcmp.ge.f32.partialorder %v9050, 0.0
    %vm9067 = vcmp.ge.f32.partialorder %v9051, 0.0
    %vm9068 = vcmp.ge.f32.partialorder %v9052, 0.0
    %vm9069 = vcmp.ge.f32.partialorder %v9053, 0.0
    %vm9070 = vcmp.ge.f32.partialorder %v9054, 0.0
    %vm9071 = vcmp.ge.f32.partialorder %v9055, 0.0
    %vm9072 = vcmp.ge.f32.partialorder %v9056, 0.0
    %vm9073 = vcmp.ge.f32.partialorder %v9057, 0.0
    %v9074 = vmul.f32 %v9042, 0.2
    %v9075 = vmul.f32 %v9043, 0.2
    %v9076 = vmul.f32 %v9044, 0.2
    %v9077 = vmul.f32 %v9045, 0.2
    %v9078 = vmul.f32 %v9046, 0.2
    %v9079 = vmul.f32 %v9047, 0.2
    %v9080 = vmul.f32 %v9048, 0.2
    %v9081 = vmul.f32 %v9049, 0.2
    %v9082 = vmul.f32 %v9050, 0.2
    %v9083 = vmul.f32 %v9051, 0.2
    %v9084 = vmul.f32 %v9052, 0.2
    %v9085 = vmul.f32 %v9053, 0.2
    %v9086 = vmul.f32 %v9054, 0.2
    %v9087 = vmul.f32 %v9055, 0.2
    %v9088 = vmul.f32 %v9056, 0.2
    %v9089 = vmul.f32 %v9057, 0.2
    %v9090 = vsel %vm9058, %v9042, %v9074
    %v9091 = vsel %vm9059, %v9043, %v9075
    %v9092 = vsel %vm9060, %v9044, %v9076
    %v9093 = vsel %vm9061, %v9045, %v9077
    %v9094 = vsel %vm9062, %v9046, %v9078
    %v9095 = vsel %vm9063, %v9047, %v9079
    %v9096 = vsel %vm9064, %v9048, %v9080
    %v9097 = vsel %vm9065, %v9049, %v9081
    %v9098 = vsel %vm9066, %v9050, %v9082
    %v9099 = vsel %vm9067, %v9051, %v9083
    %v9100 = vsel %vm9068, %v9052, %v9084
    %v9101 = vsel %vm9069, %v9053, %v9085
    %v9102 = vsel %vm9070, %v9054, %v9086
    %v9103 = vsel %vm9071, %v9055, %v9087
    %v9104 = vsel %vm9072, %v9056, %v9088
    %v9105 = vsel %vm9073, %v9057, %v9089
    %v9106 = vld [vmem:[%s6] sm:$0xff]
    %v9107 = vld [vmem:[%s6 + $0x8] sm:$0xff]
    %v9108 = vld [vmem:[%s6 + $0x10] sm:$0xff]
    %v9109 = vld [vmem:[%s6 + $0x18] sm:$0xff]
    %v9110 = vld [vmem:[%s6 + $0x20] sm:$0xff]
    %v9111 = vld [vmem:[%s6 + $0x28] sm:$0xff]
    %v9112 = vld [vmem:[%s6 + $0x30] sm:$0xff]
    %v9113 = vld [vmem:[%s6 + $0x38] sm:$0xff]
    %v9114 = vld [vmem:[%s6 + $0x40] sm:$0xff]
    %v9115 = vld [vmem:[%s6 + $0x48] sm:$0xff]
    %v9116 = vld [vmem:[%s6 + $0x50] sm:$0xff]
    %v9117 = vld [vmem:[%s6 + $0x58] sm:$0xff]
    %v9118 = vld [vmem:[%s6 + $0x60] sm:$0xff]
    %v9119 = vld [vmem:[%s6 + $0x68] sm:$0xff]
    %v9120 = vld [vmem:[%s6 + $0x70] sm:$0xff]
    %v9121 = vld [vmem:[%s6 + $0x78] sm:$0xff]
    %v9122 = vld [vmem:[%s6 + $0x80] sm:$0xff]
    %v9123 = vld [vmem:[%s6 + $0x88] sm:$0xff]
    %v9124 = vld [vmem:[%s6 + $0x90] sm:$0xff]
    %v9125 = vld [vmem:[%s6 + $0x98] sm:$0xff]
    %v9126 = vld [vmem:[%s6 + $0xa0] sm:$0xff]
    %v9127 = vld [vmem:[%s6 + $0xa8] sm:$0xff]
    %v9128 = vld [vmem:[%s6 + $0xb0] sm:$0xff]
    %v9129 = vld [vmem:[%s6 + $0xb8] sm:$0xff]
    %v9130 = vld [vmem:[%s6 + $0xc0] sm:$0xff]
    %v9131 = vld [vmem:[%s6 + $0xc8] sm:$0xff]
    %v9132 = vld [vmem:[%s6 + $0xd0] sm:$0xff]
    %v9133 = vld [vmem:[%s6 + $0xd8] sm:$0xff]
    %v9134 = vld [vmem:[%s6 + $0xe0] sm:$0xff]
    %v9135 = vld [vmem:[%s6 + $0xe8] sm:$0xff]
    %v9136 = vld [vmem:[%s6 + $0xf0] sm:$0xff]
    %v9137 = vld [vmem:[%s6 + $0xf8] sm:$0xff]
    %v9138 = vld [vmem:[%s6 + $0x100] sm:$0xff]
    %v9139 = vld [vmem:[%s6 + $0x108] sm:$0xff]
    %v9140 = vld [vmem:[%s6 + $0x110] sm:$0xff]
    %v9141 = vld [vmem:[%s6 + $0x118] sm:$0xff]
    %v9142 = vld [vmem:[%s6 + $0x120] sm:$0xff]
    %v9143 = vld [vmem:[%s6 + $0x128] sm:$0xff]
    %v9144 = vld [vmem:[%s6 + $0x130] sm:$0xff]
    %v9145 = vld [vmem:[%s6 + $0x138] sm:$0xff]
    %v9146 = vld [vmem:[%s6 + $0x140] sm:$0xff]
    %v9147 = vld [vmem:[%s6 + $0x148] sm:$0xff]
    %v9148 = vld [vmem:[%s6 + $0x150] sm:$0xff]
    %v9149 = vld [vmem:[%s6 + $0x158] sm:$0xff]
    %v9150 = vld [vmem:[%s6 + $0x160] sm:$0xff]
    %v9151 = vld [vmem:[%s6 + $0x168] sm:$0xff]
    %v9152 = vld [vmem:[%s6 + $0x170] sm:$0xff]
    %v9153 = vld [vmem:[%s6 + $0x178] sm:$0xff]
    %v9154 = vld [vmem:[%s6 + $0x180] sm:$0xff]
    %v9155 = vld [vmem:[%s6 + $0x188] sm:$0xff]
    %v9156 = vld [vmem:[%s6 + $0x190] sm:$0xff]
    %v9157 = vld [vmem:[%s6 + $0x198] sm:$0xff]
    %v9158 = vld [vmem:[%s6 + $0x1a0] sm:$0xff]
    %v9159 = vld [vmem:[%s6 + $0x1a8] sm:$0xff]
    %v9160 = vld [vmem:[%s6 + $0x1b0] sm:$0xff]
    %v9161 = vld [vmem:[%s6 + $0x1b8] sm:$0xff]
    %v9162 = vld [vmem:[%s6 + $0x1c0] sm:$0xff]
    %v9163 = vld [vmem:[%s6 + $0x1c8] sm:$0xff]
    %v9164 = vld [vmem:[%s6 + $0x1d0] sm:$0xff]
    %v9165 = vld [vmem:[%s6 + $0x1d8] sm:$0xff]
    %v9166 = vld [vmem:[%s6 + $0x1e0] sm:$0xff]
    %v9167 = vld [vmem:[%s6 + $0x1e8] sm:$0xff]
    %v9168 = vld [vmem:[%s6 + $0x1f0] sm:$0xff]
    %v9169 = vld [vmem:[%s6 + $0x1f8] sm:$0xff]
    %v9170 = vld [vmem:[%s6 + $0x200] sm:$0xff]
    %v9171 = vld [vmem:[%s6 + $0x208] sm:$0xff]
    %v9172 = vld [vmem:[%s6 + $0x210] sm:$0xff]
    %v9173 = vld [vmem:[%s6 + $0x218] sm:$0xff]
    %v9174 = vld [vmem:[%s6 + $0x220] sm:$0xff]
    %v9175 = vld [vmem:[%s6 + $0x228] sm:$0xff]
    %v9176 = vld [vmem:[%s6 + $0x230] sm:$0xff]
    %v9177 = vld [vmem:[%s6 + $0x238] sm:$0xff]
    %v9178 = vld [vmem:[%s6 + $0x240] sm:$0xff]
    %v9179 = vld [vmem:[%s6 + $0x248] sm:$0xff]
    %v9180 = vld [vmem:[%s6 + $0x250] sm:$0xff]
    %v9181 = vld [vmem:[%s6 + $0x258] sm:$0xff]
    %v9182 = vld [vmem:[%s6 + $0x260] sm:$0xff]
    %v9183 = vld [vmem:[%s6 + $0x268] sm:$0xff]
    %v9184 = vld [vmem:[%s6 + $0x270] sm:$0xff]
    %v9185 = vld [vmem:[%s6 + $0x278] sm:$0xff]
    %v9186 = vmul.f32 %v9090, %v9106
    %v9187 = vmul.f32 %v9091, %v9107
    %v9188 = vmul.f32 %v9092, %v9108
    %v9189 = vmul.f32 %v9093, %v9109
    %v9190 = vmul.f32 %v9094, %v9110
    %v9191 = vmul.f32 %v9095, %v9111
    %v9192 = vmul.f32 %v9096, %v9112
    %v9193 = vmul.f32 %v9097, %v9113
    %v9194 = vmul.f32 %v9090, %v9114
    %v9195 = vmul.f32 %v9091, %v9115
    %v9196 = vmul.f32 %v9092, %v9116
    %v9197 = vmul.f32 %v9093, %v9117
    %v9198 = vmul.f32 %v9094, %v9118
    %v9199 = vmul.f32 %v9095, %v9119
    %v9200 = vmul.f32 %v9096, %v9120
    %v9201 = vmul.f32 %v9097, %v9121
    %v9202 = vmul.f32 %v9090, %v9122
    %v9203 = vmul.f32 %v9091, %v9123
    %v9204 = vmul.f32 %v9092, %v9124
    %v9205 = vmul.f32 %v9093, %v9125
    %v9206 = vmul.f32 %v9094, %v9126
    %v9207 = vmul.f32 %v9095, %v9127
    %v9208 = vmul.f32 %v9096, %v9128
    %v9209 = vmul.f32 %v9097, %v9129
    %v9210 = vmul.f32 %v9090, %v9130
    %v9211 = vmul.f32 %v9091, %v9131
    %v9212 = vmul.f32 %v9092, %v9132
    %v9213 = vmul.f32 %v9093, %v9133
    %v9214 = vmul.f32 %v9094, %v9134
    %v9215 = vmul.f32 %v9095, %v9135
    %v9216 = vmul.f32 %v9096, %v9136
    %v9217 = vmul.f32 %v9097, %v9137
    %v9218 = vmul.f32 %v9090, %v9138
    %v9219 = vmul.f32 %v9091, %v9139
    %v9220 = vmul.f32 %v9092, %v9140
    %v9221 = vmul.f32 %v9093, %v9141
    %v9222 = vmul.f32 %v9094, %v9142
    %v9223 = vmul.f32 %v9095, %v9143
    %v9224 = vmul.f32 %v9096, %v9144
    %v9225 = vmul.f32 %v9097, %v9145
    %v9226 = vmul.f32 %v9090, %v9146
    %v9227 = vmul.f32 %v9091, %v9147
    %v9228 = vmul.f32 %v9092, %v9148
    %v9229 = vmul.f32 %v9093, %v9149
    %v9230 = vmul.f32 %v9094, %v9150
    %v9231 = vmul.f32 %v9095, %v9151
    %v9232 = vmul.f32 %v9096, %v9152
    %v9233 = vmul.f32 %v9097, %v9153
    %v9234 = vmul.f32 %v9090, %v9154
    %v9235 = vmul.f32 %v9091, %v9155
    %v9236 = vmul.f32 %v9092, %v9156
    %v9237 = vmul.f32 %v9093, %v9157
    %v9238 = vmul.f32 %v9094, %v9158
    %v9239 = vmul.f32 %v9095, %v9159
    %v9240 = vmul.f32 %v9096, %v9160
    %v9241 = vmul.f32 %v9097, %v9161
    %v9242 = vmul.f32 %v9090, %v9162
    %v9243 = vmul.f32 %v9091, %v9163
    %v9244 = vmul.f32 %v9092, %v9164
    %v9245 = vmul.f32 %v9093, %v9165
    %v9246 = vmul.f32 %v9094, %v9166
    %v9247 = vmul.f32 %v9095, %v9167
    %v9248 = vmul.f32 %v9096, %v9168
    %v9249 = vmul.f32 %v9097, %v9169
    %v9250 = vmul.f32 %v9090, %v9170
    %v9251 = vmul.f32 %v9091, %v9171
    %v9252 = vmul.f32 %v9092, %v9172
    %v9253 = vmul.f32 %v9093, %v9173
    %v9254 = vmul.f32 %v9094, %v9174
    %v9255 = vmul.f32 %v9095, %v9175
    %v9256 = vmul.f32 %v9096, %v9176
    %v9257 = vmul.f32 %v9097, %v9177
    %v9258 = vmul.f32 %v9090, %v9178
    %v9259 = vmul.f32 %v9091, %v9179
    %v9260 = vmul.f32 %v9092, %v9180
    %v9261 = vmul.f32 %v9093, %v9181
    %v9262 = vmul.f32 %v9094, %v9182
    %v9263 = vmul.f32 %v9095, %v9183
    %v9264 = vmul.f32 %v9096, %v9184
    %v9265 = vmul.f32 %v9097, %v9185
    %v9266 = vmul.f32 %v9098, %v9106
    %v9267 = vmul.f32 %v9099, %v9107
    %v9268 = vmul.f32 %v9100, %v9108
    %v9269 = vmul.f32 %v9101, %v9109
    %v9270 = vmul.f32 %v9102, %v9110
    %v9271 = vmul.f32 %v9103, %v9111
    %v9272 = vmul.f32 %v9104, %v9112
    %v9273 = vmul.f32 %v9105, %v9113
    %v9274 = vmul.f32 %v9098, %v9114
    %v9275 = vmul.f32 %v9099, %v9115
    %v9276 = vmul.f32 %v9100, %v9116
    %v9277 = vmul.f32 %v9101, %v9117
    %v9278 = vmul.f32 %v9102, %v9118
    %v9279 = vmul.f32 %v9103, %v9119
    %v9280 = vmul.f32 %v9104, %v9120
    %v9281 = vmul.f32 %v9105, %v9121
    %v9282 = vmul.f32 %v9098, %v9122
    %v9283 = vmul.f32 %v9099, %v9123
    %v9284 = vmul.f32 %v9100, %v9124
    %v9285 = vmul.f32 %v9101, %v9125
    %v9286 = vmul.f32 %v9102, %v9126
    %v9287 = vmul.f32 %v9103, %v9127
    %v9288 = vmul.f32 %v9104, %v9128
    %v9289 = vmul.f32 %v9105, %v9129
    %v9290 = vmul.f32 %v9098, %v9130
    %v9291 = vmul.f32 %v9099, %v9131
    %v9292 = vmul.f32 %v9100, %v9132
    %v9293 = vmul.f32 %v9101, %v9133
    %v9294 = vmul.f32 %v9102, %v9134
    %v9295 = vmul.f32 %v9103, %v9135
    %v9296 = vmul.f32 %v9104, %v9136
    %v9297 = vmul.f32 %v9105, %v9137
    %v9298 = vmul.f32 %v9098, %v9138
    %v9299 = vmul.f32 %v9099, %v9139
    %v9300 = vmul.f32 %v9100, %v9140
    %v9301 = vmul.f32 %v9101, %v9141
    %v9302 = vmul.f32 %v9102, %v9142
    %v9303 = vmul.f32 %v9103, %v9143
    %v9304 = vmul.f32 %v9104, %v9144
    %v9305 = vmul.f32 %v9105, %v9145
    %v9306 = vmul.f32 %v9098, %v9146
    %v9307 = vmul.f32 %v9099, %v9147
    %v9308 = vmul.f32 %v9100, %v9148
    %v9309 = vmul.f32 %v9101, %v9149
    %v9310 = vmul.f32 %v9102, %v9150
    %v9311 = vmul.f32 %v9103, %v9151
    %v9312 = vmul.f32 %v9104, %v9152
    %v9313 = vmul.f32 %v9105, %v9153
    %v9314 = vmul.f32 %v9098, %v9154
    %v9315 = vmul.f32 %v9099, %v9155
    %v9316 = vmul.f32 %v9100, %v9156
    %v9317 = vmul.f32 %v9101, %v9157
    %v9318 = vmul.f32 %v9102, %v9158
    %v9319 = vmul.f32 %v9103, %v9159
    %v9320 = vmul.f32 %v9104, %v9160
    %v9321 = vmul.f32 %v9105, %v9161
    %v9322 = vmul.f32 %v9098, %v9162
    %v9323 = vmul.f32 %v9099, %v9163
    %v9324 = vmul.f32 %v9100, %v9164
    %v9325 = vmul.f32 %v9101, %v9165
    %v9326 = vmul.f32 %v9102, %v9166
    %v9327 = vmul.f32 %v9103, %v9167
    %v9328 = vmul.f32 %v9104, %v9168
    %v9329 = vmul.f32 %v9105, %v9169
    %v9330 = vmul.f32 %v9098, %v9170
    %v9331 = vmul.f32 %v9099, %v9171
    %v9332 = vmul.f32 %v9100, %v9172
    %v9333 = vmul.f32 %v9101, %v9173
    %v9334 = vmul.f32 %v9102, %v9174
    %v9335 = vmul.f32 %v9103, %v9175
    %v9336 = vmul.f32 %v9104, %v9176
    %v9337 = vmul.f32 %v9105, %v9177
    %v9338 = vmul.f32 %v9098, %v9178
    %v9339 = vmul.f32 %v9099, %v9179
    %v9340 = vmul.f32 %v9100, %v9180
    %v9341 = vmul.f32 %v9101, %v9181
    %v9342 = vmul.f32 %v9102, %v9182
    %v9343 = vmul.f32 %v9103, %v9183
    %v9344 = vmul.f32 %v9104, %v9184
    %v9345 = vmul.f32 %v9105, %v9185
    %v9346 = vsel %vm196, %v9186, 0.0
    %9347 = vadd.xlane.f32.xlu0 %v9346
    %v9348 = vpop.xlane.xlu0 %9347
    %v9349 = vsel %vm196, %v9187, 0.0
    %9350 = vadd.xlane.f32.xlu0 %v9349
    %v9351 = vpop.xlane.xlu0 %9350
    %v9352 = vsel %vm196, %v9188, 0.0
    %9353 = vadd.xlane.f32.xlu0 %v9352
    %v9354 = vpop.xlane.xlu0 %9353
    %v9355 = vsel %vm196, %v9189, 0.0
    %9356 = vadd.xlane.f32.xlu0 %v9355
    %v9357 = vpop.xlane.xlu0 %9356
    %v9358 = vsel %vm196, %v9190, 0.0
    %9359 = vadd.xlane.f32.xlu0 %v9358
    %v9360 = vpop.xlane.xlu0 %9359
    %v9361 = vsel %vm196, %v9191, 0.0
    %9362 = vadd.xlane.f32.xlu0 %v9361
    %v9363 = vpop.xlane.xlu0 %9362
    %v9364 = vsel %vm196, %v9192, 0.0
    %9365 = vadd.xlane.f32.xlu0 %v9364
    %v9366 = vpop.xlane.xlu0 %9365
    %v9367 = vsel %vm196, %v9193, 0.0
    %9368 = vadd.xlane.f32.xlu0 %v9367
    %v9369 = vpop.xlane.xlu0 %9368
    %v9370 = vsel %vm196, %v9194, 0.0
    %9371 = vadd.xlane.f32.xlu0 %v9370
    %v9372 = vpop.xlane.xlu0 %9371
    %v9373 = vsel %vm196, %v9195, 0.0
    %9374 = vadd.xlane.f32.xlu0 %v9373
    %v9375 = vpop.xlane.xlu0 %9374
    %v9376 = vsel %vm196, %v9196, 0.0
    %9377 = vadd.xlane.f32.xlu0 %v9376
    %v9378 = vpop.xlane.xlu0 %9377
    %v9379 = vsel %vm196, %v9197, 0.0
    %9380 = vadd.xlane.f32.xlu0 %v9379
    %v9381 = vpop.xlane.xlu0 %9380
    %v9382 = vsel %vm196, %v9198, 0.0
    %9383 = vadd.xlane.f32.xlu0 %v9382
    %v9384 = vpop.xlane.xlu0 %9383
    %v9385 = vsel %vm196, %v9199, 0.0
    %9386 = vadd.xlane.f32.xlu0 %v9385
    %v9387 = vpop.xlane.xlu0 %9386
    %v9388 = vsel %vm196, %v9200, 0.0
    %9389 = vadd.xlane.f32.xlu0 %v9388
    %v9390 = vpop.xlane.xlu0 %9389
    %v9391 = vsel %vm196, %v9201, 0.0
    %9392 = vadd.xlane.f32.xlu0 %v9391
    %v9393 = vpop.xlane.xlu0 %9392
    %v9394 = vsel %vm196, %v9202, 0.0
    %9395 = vadd.xlane.f32.xlu0 %v9394
    %v9396 = vpop.xlane.xlu0 %9395
    %v9397 = vsel %vm196, %v9203, 0.0
    %9398 = vadd.xlane.f32.xlu0 %v9397
    %v9399 = vpop.xlane.xlu0 %9398
    %v9400 = vsel %vm196, %v9204, 0.0
    %9401 = vadd.xlane.f32.xlu0 %v9400
    %v9402 = vpop.xlane.xlu0 %9401
    %v9403 = vsel %vm196, %v9205, 0.0
    %9404 = vadd.xlane.f32.xlu0 %v9403
    %v9405 = vpop.xlane.xlu0 %9404
    %v9406 = vsel %vm196, %v9206, 0.0
    %9407 = vadd.xlane.f32.xlu0 %v9406
    %v9408 = vpop.xlane.xlu0 %9407
    %v9409 = vsel %vm196, %v9207, 0.0
    %9410 = vadd.xlane.f32.xlu0 %v9409
    %v9411 = vpop.xlane.xlu0 %9410
    %v9412 = vsel %vm196, %v9208, 0.0
    %9413 = vadd.xlane.f32.xlu0 %v9412
    %v9414 = vpop.xlane.xlu0 %9413
    %v9415 = vsel %vm196, %v9209, 0.0
    %9416 = vadd.xlane.f32.xlu0 %v9415
    %v9417 = vpop.xlane.xlu0 %9416
    %v9418 = vsel %vm196, %v9210, 0.0
    %9419 = vadd.xlane.f32.xlu0 %v9418
    %v9420 = vpop.xlane.xlu0 %9419
    %v9421 = vsel %vm196, %v9211, 0.0
    %9422 = vadd.xlane.f32.xlu0 %v9421
    %v9423 = vpop.xlane.xlu0 %9422
    %v9424 = vsel %vm196, %v9212, 0.0
    %9425 = vadd.xlane.f32.xlu0 %v9424
    %v9426 = vpop.xlane.xlu0 %9425
    %v9427 = vsel %vm196, %v9213, 0.0
    %9428 = vadd.xlane.f32.xlu0 %v9427
    %v9429 = vpop.xlane.xlu0 %9428
    %v9430 = vsel %vm196, %v9214, 0.0
    %9431 = vadd.xlane.f32.xlu0 %v9430
    %v9432 = vpop.xlane.xlu0 %9431
    %v9433 = vsel %vm196, %v9215, 0.0
    %9434 = vadd.xlane.f32.xlu0 %v9433
    %v9435 = vpop.xlane.xlu0 %9434
    %v9436 = vsel %vm196, %v9216, 0.0
    %9437 = vadd.xlane.f32.xlu0 %v9436
    %v9438 = vpop.xlane.xlu0 %9437
    %v9439 = vsel %vm196, %v9217, 0.0
    %9440 = vadd.xlane.f32.xlu0 %v9439
    %v9441 = vpop.xlane.xlu0 %9440
    %v9442 = vsel %vm196, %v9218, 0.0
    %9443 = vadd.xlane.f32.xlu0 %v9442
    %v9444 = vpop.xlane.xlu0 %9443
    %v9445 = vsel %vm196, %v9219, 0.0
    %9446 = vadd.xlane.f32.xlu0 %v9445
    %v9447 = vpop.xlane.xlu0 %9446
    %v9448 = vsel %vm196, %v9220, 0.0
    %9449 = vadd.xlane.f32.xlu0 %v9448
    %v9450 = vpop.xlane.xlu0 %9449
    %v9451 = vsel %vm196, %v9221, 0.0
    %9452 = vadd.xlane.f32.xlu0 %v9451
    %v9453 = vpop.xlane.xlu0 %9452
    %v9454 = vsel %vm196, %v9222, 0.0
    %9455 = vadd.xlane.f32.xlu0 %v9454
    %v9456 = vpop.xlane.xlu0 %9455
    %v9457 = vsel %vm196, %v9223, 0.0
    %9458 = vadd.xlane.f32.xlu0 %v9457
    %v9459 = vpop.xlane.xlu0 %9458
    %v9460 = vsel %vm196, %v9224, 0.0
    %9461 = vadd.xlane.f32.xlu0 %v9460
    %v9462 = vpop.xlane.xlu0 %9461
    %v9463 = vsel %vm196, %v9225, 0.0
    %9464 = vadd.xlane.f32.xlu0 %v9463
    %v9465 = vpop.xlane.xlu0 %9464
    %v9466 = vsel %vm196, %v9226, 0.0
    %9467 = vadd.xlane.f32.xlu0 %v9466
    %v9468 = vpop.xlane.xlu0 %9467
    %v9469 = vsel %vm196, %v9227, 0.0
    %9470 = vadd.xlane.f32.xlu0 %v9469
    %v9471 = vpop.xlane.xlu0 %9470
    %v9472 = vsel %vm196, %v9228, 0.0
    %9473 = vadd.xlane.f32.xlu0 %v9472
    %v9474 = vpop.xlane.xlu0 %9473
    %v9475 = vsel %vm196, %v9229, 0.0
    %9476 = vadd.xlane.f32.xlu0 %v9475
    %v9477 = vpop.xlane.xlu0 %9476
    %v9478 = vsel %vm196, %v9230, 0.0
    %9479 = vadd.xlane.f32.xlu0 %v9478
    %v9480 = vpop.xlane.xlu0 %9479
    %v9481 = vsel %vm196, %v9231, 0.0
    %9482 = vadd.xlane.f32.xlu0 %v9481
    %v9483 = vpop.xlane.xlu0 %9482
    %v9484 = vsel %vm196, %v9232, 0.0
    %9485 = vadd.xlane.f32.xlu0 %v9484
    %v9486 = vpop.xlane.xlu0 %9485
    %v9487 = vsel %vm196, %v9233, 0.0
    %9488 = vadd.xlane.f32.xlu0 %v9487
    %v9489 = vpop.xlane.xlu0 %9488
    %v9490 = vsel %vm196, %v9234, 0.0
    %9491 = vadd.xlane.f32.xlu0 %v9490
    %v9492 = vpop.xlane.xlu0 %9491
    %v9493 = vsel %vm196, %v9235, 0.0
    %9494 = vadd.xlane.f32.xlu0 %v9493
    %v9495 = vpop.xlane.xlu0 %9494
    %v9496 = vsel %vm196, %v9236, 0.0
    %9497 = vadd.xlane.f32.xlu0 %v9496
    %v9498 = vpop.xlane.xlu0 %9497
    %v9499 = vsel %vm196, %v9237, 0.0
    %9500 = vadd.xlane.f32.xlu0 %v9499
    %v9501 = vpop.xlane.xlu0 %9500
    %v9502 = vsel %vm196, %v9238, 0.0
    %9503 = vadd.xlane.f32.xlu0 %v9502
    %v9504 = vpop.xlane.xlu0 %9503
    %v9505 = vsel %vm196, %v9239, 0.0
    %9506 = vadd.xlane.f32.xlu0 %v9505
    %v9507 = vpop.xlane.xlu0 %9506
    %v9508 = vsel %vm196, %v9240, 0.0
    %9509 = vadd.xlane.f32.xlu0 %v9508
    %v9510 = vpop.xlane.xlu0 %9509
    %v9511 = vsel %vm196, %v9241, 0.0
    %9512 = vadd.xlane.f32.xlu0 %v9511
    %v9513 = vpop.xlane.xlu0 %9512
    %v9514 = vsel %vm196, %v9242, 0.0
    %9515 = vadd.xlane.f32.xlu0 %v9514
    %v9516 = vpop.xlane.xlu0 %9515
    %v9517 = vsel %vm196, %v9243, 0.0
    %9518 = vadd.xlane.f32.xlu0 %v9517
    %v9519 = vpop.xlane.xlu0 %9518
    %v9520 = vsel %vm196, %v9244, 0.0
    %9521 = vadd.xlane.f32.xlu0 %v9520
    %v9522 = vpop.xlane.xlu0 %9521
    %v9523 = vsel %vm196, %v9245, 0.0
    %9524 = vadd.xlane.f32.xlu0 %v9523
    %v9525 = vpop.xlane.xlu0 %9524
    %v9526 = vsel %vm196, %v9246, 0.0
    %9527 = vadd.xlane.f32.xlu0 %v9526
    %v9528 = vpop.xlane.xlu0 %9527
    %v9529 = vsel %vm196, %v9247, 0.0
    %9530 = vadd.xlane.f32.xlu0 %v9529
    %v9531 = vpop.xlane.xlu0 %9530
    %v9532 = vsel %vm196, %v9248, 0.0
    %9533 = vadd.xlane.f32.xlu0 %v9532
    %v9534 = vpop.xlane.xlu0 %9533
    %v9535 = vsel %vm196, %v9249, 0.0
    %9536 = vadd.xlane.f32.xlu0 %v9535
    %v9537 = vpop.xlane.xlu0 %9536
    %v9538 = vsel %vm196, %v9250, 0.0
    %9539 = vadd.xlane.f32.xlu0 %v9538
    %v9540 = vpop.xlane.xlu0 %9539
    %v9541 = vsel %vm196, %v9251, 0.0
    %9542 = vadd.xlane.f32.xlu0 %v9541
    %v9543 = vpop.xlane.xlu0 %9542
    %v9544 = vsel %vm196, %v9252, 0.0
    %9545 = vadd.xlane.f32.xlu0 %v9544
    %v9546 = vpop.xlane.xlu0 %9545
    %v9547 = vsel %vm196, %v9253, 0.0
    %9548 = vadd.xlane.f32.xlu0 %v9547
    %v9549 = vpop.xlane.xlu0 %9548
    %v9550 = vsel %vm196, %v9254, 0.0
    %9551 = vadd.xlane.f32.xlu0 %v9550
    %v9552 = vpop.xlane.xlu0 %9551
    %v9553 = vsel %vm196, %v9255, 0.0
    %9554 = vadd.xlane.f32.xlu0 %v9553
    %v9555 = vpop.xlane.xlu0 %9554
    %v9556 = vsel %vm196, %v9256, 0.0
    %9557 = vadd.xlane.f32.xlu0 %v9556
    %v9558 = vpop.xlane.xlu0 %9557
    %v9559 = vsel %vm196, %v9257, 0.0
    %9560 = vadd.xlane.f32.xlu0 %v9559
    %v9561 = vpop.xlane.xlu0 %9560
    %v9562 = vsel %vm196, %v9258, 0.0
    %9563 = vadd.xlane.f32.xlu0 %v9562
    %v9564 = vpop.xlane.xlu0 %9563
    %v9565 = vsel %vm196, %v9259, 0.0
    %9566 = vadd.xlane.f32.xlu0 %v9565
    %v9567 = vpop.xlane.xlu0 %9566
    %v9568 = vsel %vm196, %v9260, 0.0
    %9569 = vadd.xlane.f32.xlu0 %v9568
    %v9570 = vpop.xlane.xlu0 %9569
    %v9571 = vsel %vm196, %v9261, 0.0
    %9572 = vadd.xlane.f32.xlu0 %v9571
    %v9573 = vpop.xlane.xlu0 %9572
    %v9574 = vsel %vm196, %v9262, 0.0
    %9575 = vadd.xlane.f32.xlu0 %v9574
    %v9576 = vpop.xlane.xlu0 %9575
    %v9577 = vsel %vm196, %v9263, 0.0
    %9578 = vadd.xlane.f32.xlu0 %v9577
    %v9579 = vpop.xlane.xlu0 %9578
    %v9580 = vsel %vm196, %v9264, 0.0
    %9581 = vadd.xlane.f32.xlu0 %v9580
    %v9582 = vpop.xlane.xlu0 %9581
    %v9583 = vsel %vm196, %v9265, 0.0
    %9584 = vadd.xlane.f32.xlu0 %v9583
    %v9585 = vpop.xlane.xlu0 %9584
    %v9586 = vsel %vm196, %v9266, 0.0
    %9587 = vadd.xlane.f32.xlu0 %v9586
    %v9588 = vpop.xlane.xlu0 %9587
    %v9589 = vsel %vm196, %v9267, 0.0
    %9590 = vadd.xlane.f32.xlu0 %v9589
    %v9591 = vpop.xlane.xlu0 %9590
    %v9592 = vsel %vm196, %v9268, 0.0
    %9593 = vadd.xlane.f32.xlu0 %v9592
    %v9594 = vpop.xlane.xlu0 %9593
    %v9595 = vsel %vm196, %v9269, 0.0
    %9596 = vadd.xlane.f32.xlu0 %v9595
    %v9597 = vpop.xlane.xlu0 %9596
    %v9598 = vsel %vm196, %v9270, 0.0
    %9599 = vadd.xlane.f32.xlu0 %v9598
    %v9600 = vpop.xlane.xlu0 %9599
    %v9601 = vsel %vm196, %v9271, 0.0
    %9602 = vadd.xlane.f32.xlu0 %v9601
    %v9603 = vpop.xlane.xlu0 %9602
    %v9604 = vsel %vm196, %v9272, 0.0
    %9605 = vadd.xlane.f32.xlu0 %v9604
    %v9606 = vpop.xlane.xlu0 %9605
    %v9607 = vsel %vm196, %v9273, 0.0
    %9608 = vadd.xlane.f32.xlu0 %v9607
    %v9609 = vpop.xlane.xlu0 %9608
    %v9610 = vsel %vm196, %v9274, 0.0
    %9611 = vadd.xlane.f32.xlu0 %v9610
    %v9612 = vpop.xlane.xlu0 %9611
    %v9613 = vsel %vm196, %v9275, 0.0
    %9614 = vadd.xlane.f32.xlu0 %v9613
    %v9615 = vpop.xlane.xlu0 %9614
    %v9616 = vsel %vm196, %v9276, 0.0
    %9617 = vadd.xlane.f32.xlu0 %v9616
    %v9618 = vpop.xlane.xlu0 %9617
    %v9619 = vsel %vm196, %v9277, 0.0
    %9620 = vadd.xlane.f32.xlu0 %v9619
    %v9621 = vpop.xlane.xlu0 %9620
    %v9622 = vsel %vm196, %v9278, 0.0
    %9623 = vadd.xlane.f32.xlu0 %v9622
    %v9624 = vpop.xlane.xlu0 %9623
    %v9625 = vsel %vm196, %v9279, 0.0
    %9626 = vadd.xlane.f32.xlu0 %v9625
    %v9627 = vpop.xlane.xlu0 %9626
    %v9628 = vsel %vm196, %v9280, 0.0
    %9629 = vadd.xlane.f32.xlu0 %v9628
    %v9630 = vpop.xlane.xlu0 %9629
    %v9631 = vsel %vm196, %v9281, 0.0
    %9632 = vadd.xlane.f32.xlu0 %v9631
    %v9633 = vpop.xlane.xlu0 %9632
    %v9634 = vsel %vm196, %v9282, 0.0
    %9635 = vadd.xlane.f32.xlu0 %v9634
    %v9636 = vpop.xlane.xlu0 %9635
    %v9637 = vsel %vm196, %v9283, 0.0
    %9638 = vadd.xlane.f32.xlu0 %v9637
    %v9639 = vpop.xlane.xlu0 %9638
    %v9640 = vsel %vm196, %v9284, 0.0
    %9641 = vadd.xlane.f32.xlu0 %v9640
    %v9642 = vpop.xlane.xlu0 %9641
    %v9643 = vsel %vm196, %v9285, 0.0
    %9644 = vadd.xlane.f32.xlu0 %v9643
    %v9645 = vpop.xlane.xlu0 %9644
    %v9646 = vsel %vm196, %v9286, 0.0
    %9647 = vadd.xlane.f32.xlu0 %v9646
    %v9648 = vpop.xlane.xlu0 %9647
    %v9649 = vsel %vm196, %v9287, 0.0
    %9650 = vadd.xlane.f32.xlu0 %v9649
    %v9651 = vpop.xlane.xlu0 %9650
    %v9652 = vsel %vm196, %v9288, 0.0
    %9653 = vadd.xlane.f32.xlu0 %v9652
    %v9654 = vpop.xlane.xlu0 %9653
    %v9655 = vsel %vm196, %v9289, 0.0
    %9656 = vadd.xlane.f32.xlu0 %v9655
    %v9657 = vpop.xlane.xlu0 %9656
    %v9658 = vsel %vm196, %v9290, 0.0
    %9659 = vadd.xlane.f32.xlu0 %v9658
    %v9660 = vpop.xlane.xlu0 %9659
    %v9661 = vsel %vm196, %v9291, 0.0
    %9662 = vadd.xlane.f32.xlu0 %v9661
    %v9663 = vpop.xlane.xlu0 %9662
    %v9664 = vsel %vm196, %v9292, 0.0
    %9665 = vadd.xlane.f32.xlu0 %v9664
    %v9666 = vpop.xlane.xlu0 %9665
    %v9667 = vsel %vm196, %v9293, 0.0
    %9668 = vadd.xlane.f32.xlu0 %v9667
    %v9669 = vpop.xlane.xlu0 %9668
    %v9670 = vsel %vm196, %v9294, 0.0
    %9671 = vadd.xlane.f32.xlu0 %v9670
    %v9672 = vpop.xlane.xlu0 %9671
    %v9673 = vsel %vm196, %v9295, 0.0
    %9674 = vadd.xlane.f32.xlu0 %v9673
    %v9675 = vpop.xlane.xlu0 %9674
    %v9676 = vsel %vm196, %v9296, 0.0
    %9677 = vadd.xlane.f32.xlu0 %v9676
    %v9678 = vpop.xlane.xlu0 %9677
    %v9679 = vsel %vm196, %v9297, 0.0
    %9680 = vadd.xlane.f32.xlu0 %v9679
    %v9681 = vpop.xlane.xlu0 %9680
    %v9682 = vsel %vm196, %v9298, 0.0
    %9683 = vadd.xlane.f32.xlu0 %v9682
    %v9684 = vpop.xlane.xlu0 %9683
    %v9685 = vsel %vm196, %v9299, 0.0
    %9686 = vadd.xlane.f32.xlu0 %v9685
    %v9687 = vpop.xlane.xlu0 %9686
    %v9688 = vsel %vm196, %v9300, 0.0
    %9689 = vadd.xlane.f32.xlu0 %v9688
    %v9690 = vpop.xlane.xlu0 %9689
    %v9691 = vsel %vm196, %v9301, 0.0
    %9692 = vadd.xlane.f32.xlu0 %v9691
    %v9693 = vpop.xlane.xlu0 %9692
    %v9694 = vsel %vm196, %v9302, 0.0
    %9695 = vadd.xlane.f32.xlu0 %v9694
    %v9696 = vpop.xlane.xlu0 %9695
    %v9697 = vsel %vm196, %v9303, 0.0
    %9698 = vadd.xlane.f32.xlu0 %v9697
    %v9699 = vpop.xlane.xlu0 %9698
    %v9700 = vsel %vm196, %v9304, 0.0
    %9701 = vadd.xlane.f32.xlu0 %v9700
    %v9702 = vpop.xlane.xlu0 %9701
    %v9703 = vsel %vm196, %v9305, 0.0
    %9704 = vadd.xlane.f32.xlu0 %v9703
    %v9705 = vpop.xlane.xlu0 %9704
    %v9706 = vsel %vm196, %v9306, 0.0
    %9707 = vadd.xlane.f32.xlu0 %v9706
    %v9708 = vpop.xlane.xlu0 %9707
    %v9709 = vsel %vm196, %v9307, 0.0
    %9710 = vadd.xlane.f32.xlu0 %v9709
    %v9711 = vpop.xlane.xlu0 %9710
    %v9712 = vsel %vm196, %v9308, 0.0
    %9713 = vadd.xlane.f32.xlu0 %v9712
    %v9714 = vpop.xlane.xlu0 %9713
    %v9715 = vsel %vm196, %v9309, 0.0
    %9716 = vadd.xlane.f32.xlu0 %v9715
    %v9717 = vpop.xlane.xlu0 %9716
    %v9718 = vsel %vm196, %v9310, 0.0
    %9719 = vadd.xlane.f32.xlu0 %v9718
    %v9720 = vpop.xlane.xlu0 %9719
    %v9721 = vsel %vm196, %v9311, 0.0
    %9722 = vadd.xlane.f32.xlu0 %v9721
    %v9723 = vpop.xlane.xlu0 %9722
    %v9724 = vsel %vm196, %v9312, 0.0
    %9725 = vadd.xlane.f32.xlu0 %v9724
    %v9726 = vpop.xlane.xlu0 %9725
    %v9727 = vsel %vm196, %v9313, 0.0
    %9728 = vadd.xlane.f32.xlu0 %v9727
    %v9729 = vpop.xlane.xlu0 %9728
    %v9730 = vsel %vm196, %v9314, 0.0
    %9731 = vadd.xlane.f32.xlu0 %v9730
    %v9732 = vpop.xlane.xlu0 %9731
    %v9733 = vsel %vm196, %v9315, 0.0
    %9734 = vadd.xlane.f32.xlu0 %v9733
    %v9735 = vpop.xlane.xlu0 %9734
    %v9736 = vsel %vm196, %v9316, 0.0
    %9737 = vadd.xlane.f32.xlu0 %v9736
    %v9738 = vpop.xlane.xlu0 %9737
    %v9739 = vsel %vm196, %v9317, 0.0
    %9740 = vadd.xlane.f32.xlu0 %v9739
    %v9741 = vpop.xlane.xlu0 %9740
    %v9742 = vsel %vm196, %v9318, 0.0
    %9743 = vadd.xlane.f32.xlu0 %v9742
    %v9744 = vpop.xlane.xlu0 %9743
    %v9745 = vsel %vm196, %v9319, 0.0
    %9746 = vadd.xlane.f32.xlu0 %v9745
    %v9747 = vpop.xlane.xlu0 %9746
    %v9748 = vsel %vm196, %v9320, 0.0
    %9749 = vadd.xlane.f32.xlu0 %v9748
    %v9750 = vpop.xlane.xlu0 %9749
    %v9751 = vsel %vm196, %v9321, 0.0
    %9752 = vadd.xlane.f32.xlu0 %v9751
    %v9753 = vpop.xlane.xlu0 %9752
    %v9754 = vsel %vm196, %v9322, 0.0
    %9755 = vadd.xlane.f32.xlu0 %v9754
    %v9756 = vpop.xlane.xlu0 %9755
    %v9757 = vsel %vm196, %v9323, 0.0
    %9758 = vadd.xlane.f32.xlu0 %v9757
    %v9759 = vpop.xlane.xlu0 %9758
    %v9760 = vsel %vm196, %v9324, 0.0
    %9761 = vadd.xlane.f32.xlu0 %v9760
    %v9762 = vpop.xlane.xlu0 %9761
    %v9763 = vsel %vm196, %v9325, 0.0
    %9764 = vadd.xlane.f32.xlu0 %v9763
    %v9765 = vpop.xlane.xlu0 %9764
    %v9766 = vsel %vm196, %v9326, 0.0
    %9767 = vadd.xlane.f32.xlu0 %v9766
    %v9768 = vpop.xlane.xlu0 %9767
    %v9769 = vsel %vm196, %v9327, 0.0
    %9770 = vadd.xlane.f32.xlu0 %v9769
    %v9771 = vpop.xlane.xlu0 %9770
    %v9772 = vsel %vm196, %v9328, 0.0
    %9773 = vadd.xlane.f32.xlu0 %v9772
    %v9774 = vpop.xlane.xlu0 %9773
    %v9775 = vsel %vm196, %v9329, 0.0
    %9776 = vadd.xlane.f32.xlu0 %v9775
    %v9777 = vpop.xlane.xlu0 %9776
    %v9778 = vsel %vm196, %v9330, 0.0
    %9779 = vadd.xlane.f32.xlu0 %v9778
    %v9780 = vpop.xlane.xlu0 %9779
    %v9781 = vsel %vm196, %v9331, 0.0
    %9782 = vadd.xlane.f32.xlu0 %v9781
    %v9783 = vpop.xlane.xlu0 %9782
    %v9784 = vsel %vm196, %v9332, 0.0
    %9785 = vadd.xlane.f32.xlu0 %v9784
    %v9786 = vpop.xlane.xlu0 %9785
    %v9787 = vsel %vm196, %v9333, 0.0
    %9788 = vadd.xlane.f32.xlu0 %v9787
    %v9789 = vpop.xlane.xlu0 %9788
    %v9790 = vsel %vm196, %v9334, 0.0
    %9791 = vadd.xlane.f32.xlu0 %v9790
    %v9792 = vpop.xlane.xlu0 %9791
    %v9793 = vsel %vm196, %v9335, 0.0
    %9794 = vadd.xlane.f32.xlu0 %v9793
    %v9795 = vpop.xlane.xlu0 %9794
    %v9796 = vsel %vm196, %v9336, 0.0
    %9797 = vadd.xlane.f32.xlu0 %v9796
    %v9798 = vpop.xlane.xlu0 %9797
    %v9799 = vsel %vm196, %v9337, 0.0
    %9800 = vadd.xlane.f32.xlu0 %v9799
    %v9801 = vpop.xlane.xlu0 %9800
    %v9802 = vsel %vm196, %v9338, 0.0
    %9803 = vadd.xlane.f32.xlu0 %v9802
    %v9804 = vpop.xlane.xlu0 %9803
    %v9805 = vsel %vm196, %v9339, 0.0
    %9806 = vadd.xlane.f32.xlu0 %v9805
    %v9807 = vpop.xlane.xlu0 %9806
    %v9808 = vsel %vm196, %v9340, 0.0
    %9809 = vadd.xlane.f32.xlu0 %v9808
    %v9810 = vpop.xlane.xlu0 %9809
    %v9811 = vsel %vm196, %v9341, 0.0
    %9812 = vadd.xlane.f32.xlu0 %v9811
    %v9813 = vpop.xlane.xlu0 %9812
    %v9814 = vsel %vm196, %v9342, 0.0
    %9815 = vadd.xlane.f32.xlu0 %v9814
    %v9816 = vpop.xlane.xlu0 %9815
    %v9817 = vsel %vm196, %v9343, 0.0
    %9818 = vadd.xlane.f32.xlu0 %v9817
    %v9819 = vpop.xlane.xlu0 %9818
    %v9820 = vsel %vm196, %v9344, 0.0
    %9821 = vadd.xlane.f32.xlu0 %v9820
    %v9822 = vpop.xlane.xlu0 %9821
    %v9823 = vsel %vm196, %v9345, 0.0
    %9824 = vadd.xlane.f32.xlu0 %v9823
    %v9825 = vpop.xlane.xlu0 %9824
    %v9986 = vlaneseq
    %v9987 = vand.u32 %v9986, 127
    %v9988 = vperm.slane %v9348, %v9987
    %v9989 = vadd.s32 %v9987, 4294967288
    %v9990 = vperm.slane %v9351, %v9989
    %vm9991 = vcmask 130112
    %v9992 = vsel %vm9991, %v9990, %v9988
    %v9993 = vadd.s32 %v9987, 4294967280
    %v9994 = vperm.slane %v9354, %v9993
    %vm9995 = vcmask 195712
    %v9996 = vsel %vm9995, %v9994, %v9992
    %v9997 = vadd.s32 %v9987, 4294967272
    %v9998 = vperm.slane %v9357, %v9997
    %vm9999 = vcmask 261312
    %v10000 = vsel %vm9999, %v9998, %v9996
    %v10001 = vadd.s32 %v9987, 4294967264
    %v10002 = vperm.slane %v9360, %v10001
    %vm10003 = vcmask 326912
    %v10004 = vsel %vm10003, %v10002, %v10000
    %v10005 = vadd.s32 %v9987, 4294967256
    %v10006 = vperm.slane %v9363, %v10005
    %vm10007 = vcmask 392512
    %v10008 = vsel %vm10007, %v10006, %v10004
    %v10009 = vadd.s32 %v9987, 4294967248
    %v10010 = vperm.slane %v9366, %v10009
    %vm10011 = vcmask 458112
    %v10012 = vsel %vm10011, %v10010, %v10008
    %v10013 = vadd.s32 %v9987, 4294967240
    %v10014 = vperm.slane %v9369, %v10013
    %vm10015 = vcmask 523712
    %v10016 = vsel %vm10015, %v10014, %v10012
    %v10017 = vperm.slane %v9372, %v9987
    %v10018 = vperm.slane %v9375, %v9989
    %v10019 = vsel %vm9991, %v10018, %v10017
    %v10020 = vperm.slane %v9378, %v9993
    %v10021 = vsel %vm9995, %v10020, %v10019
    %v10022 = vperm.slane %v9381, %v9997
    %v10023 = vsel %vm9999, %v10022, %v10021
    %v10024 = vperm.slane %v9384, %v10001
    %v10025 = vsel %vm10003, %v10024, %v10023
    %v10026 = vperm.slane %v9387, %v10005
    %v10027 = vsel %vm10007, %v10026, %v10025
    %v10028 = vperm.slane %v9390, %v10009
    %v10029 = vsel %vm10011, %v10028, %v10027
    %v10030 = vperm.slane %v9393, %v10013
    %v10031 = vsel %vm10015, %v10030, %v10029
    %v10032 = vperm.slane %v9396, %v9987
    %v10033 = vperm.slane %v9399, %v9989
    %v10034 = vsel %vm9991, %v10033, %v10032
    %v10035 = vperm.slane %v9402, %v9993
    %v10036 = vsel %vm9995, %v10035, %v10034
    %v10037 = vperm.slane %v9405, %v9997
    %v10038 = vsel %vm9999, %v10037, %v10036
    %v10039 = vperm.slane %v9408, %v10001
    %v10040 = vsel %vm10003, %v10039, %v10038
    %v10041 = vperm.slane %v9411, %v10005
    %v10042 = vsel %vm10007, %v10041, %v10040
    %v10043 = vperm.slane %v9414, %v10009
    %v10044 = vsel %vm10011, %v10043, %v10042
    %v10045 = vperm.slane %v9417, %v10013
    %v10046 = vsel %vm10015, %v10045, %v10044
    %v10047 = vperm.slane %v9420, %v9987
    %v10048 = vperm.slane %v9423, %v9989
    %v10049 = vsel %vm9991, %v10048, %v10047
    %v10050 = vperm.slane %v9426, %v9993
    %v10051 = vsel %vm9995, %v10050, %v10049
    %v10052 = vperm.slane %v9429, %v9997
    %v10053 = vsel %vm9999, %v10052, %v10051
    %v10054 = vperm.slane %v9432, %v10001
    %v10055 = vsel %vm10003, %v10054, %v10053
    %v10056 = vperm.slane %v9435, %v10005
    %v10057 = vsel %vm10007, %v10056, %v10055
    %v10058 = vperm.slane %v9438, %v10009
    %v10059 = vsel %vm10011, %v10058, %v10057
    %v10060 = vperm.slane %v9441, %v10013
    %v10061 = vsel %vm10015, %v10060, %v10059
    %v10062 = vperm.slane %v9444, %v9987
    %v10063 = vperm.slane %v9447, %v9989
    %v10064 = vsel %vm9991, %v10063, %v10062
    %v10065 = vperm.slane %v9450, %v9993
    %v10066 = vsel %vm9995, %v10065, %v10064
    %v10067 = vperm.slane %v9453, %v9997
    %v10068 = vsel %vm9999, %v10067, %v10066
    %v10069 = vperm.slane %v9456, %v10001
    %v10070 = vsel %vm10003, %v10069, %v10068
    %v10071 = vperm.slane %v9459, %v10005
    %v10072 = vsel %vm10007, %v10071, %v10070
    %v10073 = vperm.slane %v9462, %v10009
    %v10074 = vsel %vm10011, %v10073, %v10072
    %v10075 = vperm.slane %v9465, %v10013
    %v10076 = vsel %vm10015, %v10075, %v10074
    %v10077 = vperm.slane %v9468, %v9987
    %v10078 = vperm.slane %v9471, %v9989
    %v10079 = vsel %vm9991, %v10078, %v10077
    %v10080 = vperm.slane %v9474, %v9993
    %v10081 = vsel %vm9995, %v10080, %v10079
    %v10082 = vperm.slane %v9477, %v9997
    %v10083 = vsel %vm9999, %v10082, %v10081
    %v10084 = vperm.slane %v9480, %v10001
    %v10085 = vsel %vm10003, %v10084, %v10083
    %v10086 = vperm.slane %v9483, %v10005
    %v10087 = vsel %vm10007, %v10086, %v10085
    %v10088 = vperm.slane %v9486, %v10009
    %v10089 = vsel %vm10011, %v10088, %v10087
    %v10090 = vperm.slane %v9489, %v10013
    %v10091 = vsel %vm10015, %v10090, %v10089
    %v10092 = vperm.slane %v9492, %v9987
    %v10093 = vperm.slane %v9495, %v9989
    %v10094 = vsel %vm9991, %v10093, %v10092
    %v10095 = vperm.slane %v9498, %v9993
    %v10096 = vsel %vm9995, %v10095, %v10094
    %v10097 = vperm.slane %v9501, %v9997
    %v10098 = vsel %vm9999, %v10097, %v10096
    %v10099 = vperm.slane %v9504, %v10001
    %v10100 = vsel %vm10003, %v10099, %v10098
    %v10101 = vperm.slane %v9507, %v10005
    %v10102 = vsel %vm10007, %v10101, %v10100
    %v10103 = vperm.slane %v9510, %v10009
    %v10104 = vsel %vm10011, %v10103, %v10102
    %v10105 = vperm.slane %v9513, %v10013
    %v10106 = vsel %vm10015, %v10105, %v10104
    %v10107 = vperm.slane %v9516, %v9987
    %v10108 = vperm.slane %v9519, %v9989
    %v10109 = vsel %vm9991, %v10108, %v10107
    %v10110 = vperm.slane %v9522, %v9993
    %v10111 = vsel %vm9995, %v10110, %v10109
    %v10112 = vperm.slane %v9525, %v9997
    %v10113 = vsel %vm9999, %v10112, %v10111
    %v10114 = vperm.slane %v9528, %v10001
    %v10115 = vsel %vm10003, %v10114, %v10113
    %v10116 = vperm.slane %v9531, %v10005
    %v10117 = vsel %vm10007, %v10116, %v10115
    %v10118 = vperm.slane %v9534, %v10009
    %v10119 = vsel %vm10011, %v10118, %v10117
    %v10120 = vperm.slane %v9537, %v10013
    %v10121 = vsel %vm10015, %v10120, %v10119
    %v10122 = vperm.slane %v9540, %v9987
    %v10123 = vperm.slane %v9543, %v9989
    %v10124 = vsel %vm9991, %v10123, %v10122
    %v10125 = vperm.slane %v9546, %v9993
    %v10126 = vsel %vm9995, %v10125, %v10124
    %v10127 = vperm.slane %v9549, %v9997
    %v10128 = vsel %vm9999, %v10127, %v10126
    %v10129 = vperm.slane %v9552, %v10001
    %v10130 = vsel %vm10003, %v10129, %v10128
    %v10131 = vperm.slane %v9555, %v10005
    %v10132 = vsel %vm10007, %v10131, %v10130
    %v10133 = vperm.slane %v9558, %v10009
    %v10134 = vsel %vm10011, %v10133, %v10132
    %v10135 = vperm.slane %v9561, %v10013
    %v10136 = vsel %vm10015, %v10135, %v10134
    %v10137 = vperm.slane %v9564, %v9987
    %v10138 = vperm.slane %v9567, %v9989
    %v10139 = vsel %vm9991, %v10138, %v10137
    %v10140 = vperm.slane %v9570, %v9993
    %v10141 = vsel %vm9995, %v10140, %v10139
    %v10142 = vperm.slane %v9573, %v9997
    %v10143 = vsel %vm9999, %v10142, %v10141
    %v10144 = vperm.slane %v9576, %v10001
    %v10145 = vsel %vm10003, %v10144, %v10143
    %v10146 = vperm.slane %v9579, %v10005
    %v10147 = vsel %vm10007, %v10146, %v10145
    %v10148 = vperm.slane %v9582, %v10009
    %v10149 = vsel %vm10011, %v10148, %v10147
    %v10150 = vperm.slane %v9585, %v10013
    %v10151 = vsel %vm10015, %v10150, %v10149
    %v10152 = vperm.slane %v9588, %v9987
    %v10153 = vperm.slane %v9591, %v9989
    %v10154 = vsel %vm9991, %v10153, %v10152
    %v10155 = vperm.slane %v9594, %v9993
    %v10156 = vsel %vm9995, %v10155, %v10154
    %v10157 = vperm.slane %v9597, %v9997
    %v10158 = vsel %vm9999, %v10157, %v10156
    %v10159 = vperm.slane %v9600, %v10001
    %v10160 = vsel %vm10003, %v10159, %v10158
    %v10161 = vperm.slane %v9603, %v10005
    %v10162 = vsel %vm10007, %v10161, %v10160
    %v10163 = vperm.slane %v9606, %v10009
    %v10164 = vsel %vm10011, %v10163, %v10162
    %v10165 = vperm.slane %v9609, %v10013
    %v10166 = vsel %vm10015, %v10165, %v10164
    %v10167 = vperm.slane %v9612, %v9987
    %v10168 = vperm.slane %v9615, %v9989
    %v10169 = vsel %vm9991, %v10168, %v10167
    %v10170 = vperm.slane %v9618, %v9993
    %v10171 = vsel %vm9995, %v10170, %v10169
    %v10172 = vperm.slane %v9621, %v9997
    %v10173 = vsel %vm9999, %v10172, %v10171
    %v10174 = vperm.slane %v9624, %v10001
    %v10175 = vsel %vm10003, %v10174, %v10173
    %v10176 = vperm.slane %v9627, %v10005
    %v10177 = vsel %vm10007, %v10176, %v10175
    %v10178 = vperm.slane %v9630, %v10009
    %v10179 = vsel %vm10011, %v10178, %v10177
    %v10180 = vperm.slane %v9633, %v10013
    %v10181 = vsel %vm10015, %v10180, %v10179
    %v10182 = vperm.slane %v9636, %v9987
    %v10183 = vperm.slane %v9639, %v9989
    %v10184 = vsel %vm9991, %v10183, %v10182
    %v10185 = vperm.slane %v9642, %v9993
    %v10186 = vsel %vm9995, %v10185, %v10184
    %v10187 = vperm.slane %v9645, %v9997
    %v10188 = vsel %vm9999, %v10187, %v10186
    %v10189 = vperm.slane %v9648, %v10001
    %v10190 = vsel %vm10003, %v10189, %v10188
    %v10191 = vperm.slane %v9651, %v10005
    %v10192 = vsel %vm10007, %v10191, %v10190
    %v10193 = vperm.slane %v9654, %v10009
    %v10194 = vsel %vm10011, %v10193, %v10192
    %v10195 = vperm.slane %v9657, %v10013
    %v10196 = vsel %vm10015, %v10195, %v10194
    %v10197 = vperm.slane %v9660, %v9987
    %v10198 = vperm.slane %v9663, %v9989
    %v10199 = vsel %vm9991, %v10198, %v10197
    %v10200 = vperm.slane %v9666, %v9993
    %v10201 = vsel %vm9995, %v10200, %v10199
    %v10202 = vperm.slane %v9669, %v9997
    %v10203 = vsel %vm9999, %v10202, %v10201
    %v10204 = vperm.slane %v9672, %v10001
    %v10205 = vsel %vm10003, %v10204, %v10203
    %v10206 = vperm.slane %v9675, %v10005
    %v10207 = vsel %vm10007, %v10206, %v10205
    %v10208 = vperm.slane %v9678, %v10009
    %v10209 = vsel %vm10011, %v10208, %v10207
    %v10210 = vperm.slane %v9681, %v10013
    %v10211 = vsel %vm10015, %v10210, %v10209
    %v10212 = vperm.slane %v9684, %v9987
    %v10213 = vperm.slane %v9687, %v9989
    %v10214 = vsel %vm9991, %v10213, %v10212
    %v10215 = vperm.slane %v9690, %v9993
    %v10216 = vsel %vm9995, %v10215, %v10214
    %v10217 = vperm.slane %v9693, %v9997
    %v10218 = vsel %vm9999, %v10217, %v10216
    %v10219 = vperm.slane %v9696, %v10001
    %v10220 = vsel %vm10003, %v10219, %v10218
    %v10221 = vperm.slane %v9699, %v10005
    %v10222 = vsel %vm10007, %v10221, %v10220
    %v10223 = vperm.slane %v9702, %v10009
    %v10224 = vsel %vm10011, %v10223, %v10222
    %v10225 = vperm.slane %v9705, %v10013
    %v10226 = vsel %vm10015, %v10225, %v10224
    %v10227 = vperm.slane %v9708, %v9987
    %v10228 = vperm.slane %v9711, %v9989
    %v10229 = vsel %vm9991, %v10228, %v10227
    %v10230 = vperm.slane %v9714, %v9993
    %v10231 = vsel %vm9995, %v10230, %v10229
    %v10232 = vperm.slane %v9717, %v9997
    %v10233 = vsel %vm9999, %v10232, %v10231
    %v10234 = vperm.slane %v9720, %v10001
    %v10235 = vsel %vm10003, %v10234, %v10233
    %v10236 = vperm.slane %v9723, %v10005
    %v10237 = vsel %vm10007, %v10236, %v10235
    %v10238 = vperm.slane %v9726, %v10009
    %v10239 = vsel %vm10011, %v10238, %v10237
    %v10240 = vperm.slane %v9729, %v10013
    %v10241 = vsel %vm10015, %v10240, %v10239
    %v10242 = vperm.slane %v9732, %v9987
    %v10243 = vperm.slane %v9735, %v9989
    %v10244 = vsel %vm9991, %v10243, %v10242
    %v10245 = vperm.slane %v9738, %v9993
    %v10246 = vsel %vm9995, %v10245, %v10244
    %v10247 = vperm.slane %v9741, %v9997
    %v10248 = vsel %vm9999, %v10247, %v10246
    %v10249 = vperm.slane %v9744, %v10001
    %v10250 = vsel %vm10003, %v10249, %v10248
    %v10251 = vperm.slane %v9747, %v10005
    %v10252 = vsel %vm10007, %v10251, %v10250
    %v10253 = vperm.slane %v9750, %v10009
    %v10254 = vsel %vm10011, %v10253, %v10252
    %v10255 = vperm.slane %v9753, %v10013
    %v10256 = vsel %vm10015, %v10255, %v10254
    %v10257 = vperm.slane %v9756, %v9987
    %v10258 = vperm.slane %v9759, %v9989
    %v10259 = vsel %vm9991, %v10258, %v10257
    %v10260 = vperm.slane %v9762, %v9993
    %v10261 = vsel %vm9995, %v10260, %v10259
    %v10262 = vperm.slane %v9765, %v9997
    %v10263 = vsel %vm9999, %v10262, %v10261
    %v10264 = vperm.slane %v9768, %v10001
    %v10265 = vsel %vm10003, %v10264, %v10263
    %v10266 = vperm.slane %v9771, %v10005
    %v10267 = vsel %vm10007, %v10266, %v10265
    %v10268 = vperm.slane %v9774, %v10009
    %v10269 = vsel %vm10011, %v10268, %v10267
    %v10270 = vperm.slane %v9777, %v10013
    %v10271 = vsel %vm10015, %v10270, %v10269
    %v10272 = vperm.slane %v9780, %v9987
    %v10273 = vperm.slane %v9783, %v9989
    %v10274 = vsel %vm9991, %v10273, %v10272
    %v10275 = vperm.slane %v9786, %v9993
    %v10276 = vsel %vm9995, %v10275, %v10274
    %v10277 = vperm.slane %v9789, %v9997
    %v10278 = vsel %vm9999, %v10277, %v10276
    %v10279 = vperm.slane %v9792, %v10001
    %v10280 = vsel %vm10003, %v10279, %v10278
    %v10281 = vperm.slane %v9795, %v10005
    %v10282 = vsel %vm10007, %v10281, %v10280
    %v10283 = vperm.slane %v9798, %v10009
    %v10284 = vsel %vm10011, %v10283, %v10282
    %v10285 = vperm.slane %v9801, %v10013
    %v10286 = vsel %vm10015, %v10285, %v10284
    %v10287 = vperm.slane %v9804, %v9987
    %v10288 = vperm.slane %v9807, %v9989
    %v10289 = vsel %vm9991, %v10288, %v10287
    %v10290 = vperm.slane %v9810, %v9993
    %v10291 = vsel %vm9995, %v10290, %v10289
    %v10292 = vperm.slane %v9813, %v9997
    %v10293 = vsel %vm9999, %v10292, %v10291
    %v10294 = vperm.slane %v9816, %v10001
    %v10295 = vsel %vm10003, %v10294, %v10293
    %v10296 = vperm.slane %v9819, %v10005
    %v10297 = vsel %vm10007, %v10296, %v10295
    %v10298 = vperm.slane %v9822, %v10009
    %v10299 = vsel %vm10011, %v10298, %v10297
    %v10300 = vperm.slane %v9825, %v10013
    %v10301 = vsel %vm10015, %v10300, %v10299
    %vm10302 = vcmask 1041409
    %v10303 = vsel %vm10302, %v10031, %v10016
    %vm10304 = vcmask 1042434
    %v10305 = vsel %vm10304, %v10046, %v10303
    %vm10306 = vcmask 1043459
    %v10307 = vsel %vm10306, %v10061, %v10305
    %vm10308 = vcmask 1044484
    %v10309 = vsel %vm10308, %v10076, %v10307
    %vm10310 = vcmask 1045509
    %v10311 = vsel %vm10310, %v10091, %v10309
    %vm10312 = vcmask 1046534
    %v10313 = vsel %vm10312, %v10106, %v10311
    %vm10314 = vcmask 1047559
    %v10315 = vsel %vm10314, %v10121, %v10313
    %v10316 = vsel %vm10302, %v10151, %v10136
    %v10317 = vsel %vm10302, %v10181, %v10166
    %v10318 = vsel %vm10304, %v10196, %v10317
    %v10319 = vsel %vm10306, %v10211, %v10318
    %v10320 = vsel %vm10308, %v10226, %v10319
    %v10321 = vsel %vm10310, %v10241, %v10320
    %v10322 = vsel %vm10312, %v10256, %v10321
    %v10323 = vsel %vm10314, %v10271, %v10322
    %v10324 = vsel %vm10302, %v10301, %v10286
    %v10329 = vsel %vm196, %v10315, 0.0
    %10330 = vadd.xlane.f32.xlu0 %v10329
    %v10331 = vpop.xlane.xlu0 %10330
    %vm10332 = vcmask 517120
    %v10333 = vsel %vm10332, %v10316, 0.0
    %10334 = vadd.xlane.f32.xlu0 %v10333
    %v10335 = vpop.xlane.xlu0 %10334
    %v10336 = vsel %vm196, %v10323, 0.0
    %10337 = vadd.xlane.f32.xlu0 %v10336
    %v10338 = vpop.xlane.xlu0 %10337
    %v10339 = vsel %vm10332, %v10324, 0.0
    %10340 = vadd.xlane.f32.xlu0 %v10339
    %v10341 = vpop.xlane.xlu0 %10340
    %v10342 = vld [vmem:[%s7] sm:$0x1]
    %v10344 = vperm.slane %v10342, 0
    %v10345 = vlaneseq
    %v10346 = vshrl.u32 %v10345, 7
    %10348 = vset.pattern.permute.xlu0 %v10346
    %10349 = vperm.xlu0 %10348, %v10344
    %v10350 = vpop.permute.xlu0 %10349
    %v10351 = vlaneseq
    %v10352 = vshrl.u32 %v10351, 7
    %v10353 = vadd.s32 %v10352, 8
    %10354 = vset.pattern.permute.xlu0 %v10353
    %10355 = vperm.xlu0 %10354, %v10344
    %v10356 = vpop.permute.xlu0 %10355
    %v10359 = vadd.f32 %v10331, %v10350
    %v10360 = vadd.f32 %v10335, %v10356
    %v10361 = vadd.f32 %v10338, %v10350
    %v10362 = vadd.f32 %v10341, %v10356
    %10367 = vset.pattern.permute.xlu0 0
    %10368 = vperm.xlu0 %10367, %v10359
    %v10369 = vpop.permute.xlu0 %10368
    %10370 = vset.pattern.permute.xlu0 0
    %10371 = vperm.xlu0 %10370, %v10360
    %v10372 = vpop.permute.xlu0 %10371
    %10373 = vset.pattern.permute.xlu0 0
    %10374 = vperm.xlu0 %10373, %v10361
    %v10375 = vpop.permute.xlu0 %10374
    %10376 = vset.pattern.permute.xlu0 0
    %10377 = vperm.xlu0 %10376, %v10362
    %v10378 = vpop.permute.xlu0 %10377
    %v10379 = vperm.slane %v10369, %v9987
    %v10380 = vperm.slane %v10372, %v9989
    %v10381 = vsel %vm9991, %v10380, %v10379
    %v10382 = vperm.slane %v10375, %v9987
    %v10383 = vperm.slane %v10378, %v9989
    %v10384 = vsel %vm9991, %v10383, %v10382
    %v10385 = vsel %vm10302, %v10384, %v10381
    %vm10387 = vcmask 74752
    %10388 = vst.msk [vmem:[#allocation6] sm:$0x3] %vm10387, %v10385
    // Predicated region
    $region34: #{decoder_forward.1} parent=1 // pred_check
      _
    $region35: #{decoder_forward.1} parent=1 // pred_check_branch
      %10390 = sbr.rel (0) target = $region37
    $region36: #{decoder_forward.1} parent=1 // pred_region
      %10392 = vsyncadd [#allocation7], 0
      %s10394 = sshll.u32 [#allocation6], 4
      %s10395 = int_to_ptr.vmem [resolvable:$true] %s10394
      %s10396 = sshll.u32 %s8, 4
      %s10397 = int_to_ptr.hbm [resolvable:$true] %s10396
      %10399 = dma.vmem_to_hbm [thread:$0]  %s10395, 32, %s10397, [#allocation7]
    $region37: #{decoder_forward.1} parent=1 // pred_fallthru
      _
    // Predicated region
    $region38: #{decoder_forward.1} parent=1 // pred_check
      _
    $region39: #{decoder_forward.1} parent=1 // pred_check_branch
      %10401 = sbr.rel (0) target = $region41
    $region40: #{decoder_forward.1} parent=1 // pred_region
      %10403 = dma.done [#allocation7], 32
    $region41: #{decoder_forward.1} parent=1 // pred_fallthru
      _
    %10404 = vsyncpa [#allocation7], 1

</llo_original>
